<compile_context>
chip_gen: v7x
topology: tpu7x:2x2x1
jax: 0.10.0
libtpu: 0.0.40
codegen_flags: <defaults>
</compile_context>

<pallas_src>
import math
import functools

import jax
import jax.numpy as jnp
from jax import lax
from jax.experimental import pallas as pl
from jax.experimental.pallas import tpu as pltpu


# ----------------------------------------------------------------------------
# small helpers
# ----------------------------------------------------------------------------
def _triple(v):
    return (v, v, v) if isinstance(v, int) else tuple(v)


def _round_up(x, m):
    return ((x + m - 1) // m) * m


def _vmem_limit_bytes(working_set_bytes):
    """Scoped-VMEM budget: generous headroom, clamped to a portable range."""
    return int(min(max(2 * working_set_bytes, 32 * 1024 * 1024), 64 * 1024 * 1024))


def _pick_row_tile(h_out, w_out, mp, target_bytes=2 << 20):
    """Largest divisor TH of h_out such that the f32 accumulator (TH*w_out, mp) stays
    small and TH*w_out is sublane (8) aligned; prefer >=2 tiles (pipeline + megacore)."""
    cap = max(1, target_bytes // max(1, w_out * mp * 4))
    if h_out > 1:
        cap = min(cap, max(1, h_out // 2))
    cap = min(cap, h_out)
    for th in range(int(cap), 0, -1):
        if h_out % th == 0 and (th * w_out) % 8 == 0:
            return th
    return h_out          # full height block: always layout-legal


def _pick_flat_tile(hw, t_out, cop, target_bytes=4 << 20):
    """Largest 8-aligned divisor of hw such that the f32 accumulator (t_out, THW, cop)
    stays small; prefer >=2 tiles."""
    cap = max(8, target_bytes // max(1, t_out * cop * 4))
    if hw >= 16:
        cap = min(cap, hw // 2)
    cap = min(cap, hw)
    for d in range(int(cap), 0, -1):
        if hw % d == 0 and d % 8 == 0:
            return d
    return hw             # full HW block: always layout-legal


# ----------------------------------------------------------------------------
# Pallas kernels
# ----------------------------------------------------------------------------
def _spatial_conv_kernel(x_ref, w_ref, b_ref, o_ref, acc_ref, *, kh, kw, TH, W_out):
    """2D conv (1 x kh x kw), channels-last, one output row-tile of one padded frame.

    x_ref  : (1, Hp, Wp, Cp)     whole padded frame (revisited across row tiles)
    w_ref  : (kh*kw, Cp, Mp)     lane-padded weights
    b_ref  : (1, Mp)             f32 bias
    o_ref  : (1, TH*W_out, Mp)   flattened (rows, lanes) output tile
    acc_ref: (TH*W_out, Mp) f32  VMEM accumulator
    """
    Cp = x_ref.shape[3]
    row0 = pl.program_id(1) * TH
    # bias folded into the accumulator init (one broadcast per grid step)
    acc_ref[...] = jnp.broadcast_to(b_ref[...], acc_ref.shape)
    for dh in range(kh):                       # static taps -> unrolled K=Cp matmuls
        for dw in range(kw):
            patch = x_ref[0, pl.ds(row0 + dh, TH), dw:dw + W_out, :]
            acc_ref[...] += jnp.dot(patch.reshape(TH * W_out, Cp),
                                    w_ref[dh * kw + dw],
                                    preferred_element_type=jnp.float32)
    o_ref[0] = acc_ref[...].astype(o_ref.dtype)


def _temporal_conv_kernel(x_ref, w_ref, b_ref, o_ref, acc_ref, *, kt, pt):
    """1D temporal conv (kt x 1 x 1), channels-last, one HW-tile of one clip.
    Temporal zero padding is realized by shifted-slice accumulation (no HBM pad).

    x_ref  : (1, T, THW, Mp)
    w_ref  : (kt, Mp, Cop)
    b_ref  : (1, Cop)                 f32 bias
    o_ref  : (1, T_out, THW, Cop)
    acc_ref: (T_out, THW, Cop) f32    VMEM accumulator
    """
    T, THW, Mp = x_ref.shape[1], x_ref.shape[2], x_ref.shape[3]
    T_out, _, Cop = acc_ref.shape
    acc_ref[...] = jnp.broadcast_to(b_ref[...], acc_ref.shape)
    for dt in range(kt):                       # static taps
        lo_out = max(0, pt - dt)
        hi_out = min(T_out, T + pt - dt)
        n = hi_out - lo_out
        if n <= 0:
            continue
        lo_in = lo_out + dt - pt
        xs = x_ref[0, lo_in:lo_in + n, :, :].reshape(n * THW, Mp)
        prod = jnp.dot(xs, w_ref[dt], preferred_element_type=jnp.float32)
        acc_ref[lo_out:hi_out] = acc_ref[lo_out:hi_out] + prod.reshape(n, THW, Cop)
    o_ref[0] = acc_ref[...].astype(o_ref.dtype)


# ----------------------------------------------------------------------------
# pallas_call wrappers
# ----------------------------------------------------------------------------
def _spatial_conv(xp, ws, bs, *, kh, kw, out_dtype):
    NT, Hp, Wp, Cp = xp.shape
    KK, _, Mp = ws.shape
    H_out, W_out = Hp - kh + 1, Wp - kw + 1
    TH = _pick_row_tile(H_out, W_out, Mp)
    n_tiles = H_out // TH

    in_item = jnp.dtype(xp.dtype).itemsize
    out_item = jnp.dtype(out_dtype).itemsize
    working = (2 * Hp * Wp * Cp * in_item            # double-buffered frame
               + KK * Cp * Mp * in_item + 2 * Mp * 4
               + 2 * TH * W_out * Mp * out_item      # double-buffered out tile
               + TH * W_out * Mp * 4)                # f32 accumulator scratch

    kernel = functools.partial(_spatial_conv_kernel, kh=kh, kw=kw, TH=TH, W_out=W_out)
    return pl.pallas_call(
        kernel,
        out_shape=jax.ShapeDtypeStruct((NT, H_out * W_out, Mp), out_dtype),
        grid=(NT, n_tiles),
        in_specs=[
            # Whole padded frame: same block index across the row-tile axis, so it is
            # DMA'd once per frame and revisited.
            # TODO(synk): halo-tiled H BlockSpec for frames too large for VMEM.
            pl.BlockSpec((1, Hp, Wp, Cp), lambda i, j: (i, 0, 0, 0)),
            pl.BlockSpec((KK, Cp, Mp), lambda i, j: (0, 0, 0)),
            pl.BlockSpec((1, Mp), lambda i, j: (0, 0)),
        ],
        out_specs=pl.BlockSpec((1, TH * W_out, Mp), lambda i, j: (i, j, 0)),
        scratch_shapes=[pltpu.VMEM((TH * W_out, Mp), jnp.float32)],
        compiler_params=pltpu.CompilerParams(
            dimension_semantics=("parallel", "parallel"),
            vmem_limit_bytes=_vmem_limit_bytes(working)),
    )(xp, ws, bs)


def _temporal_conv(y, wt, bt, *, kt, pt, out_dtype):
    N, T, HW, Mp = y.shape
    _, _, Cop = wt.shape
    T_out = T + 2 * pt - kt + 1
    THW = _pick_flat_tile(HW, T_out, Cop)
    n_tiles = HW // THW

    in_item = jnp.dtype(y.dtype).itemsize
    out_item = jnp.dtype(out_dtype).itemsize
    working = (2 * T * THW * Mp * in_item
               + kt * Mp * Cop * in_item + 2 * Cop * 4
               + 2 * T_out * THW * Cop * out_item
               + T_out * THW * Cop * 4)

    kernel = functools.partial(_temporal_conv_kernel, kt=kt, pt=pt)
    return pl.pallas_call(
        kernel,
        out_shape=jax.ShapeDtypeStruct((N, T_out, HW, Cop), out_dtype),
        grid=(N, n_tiles),
        in_specs=[
            pl.BlockSpec((1, T, THW, Mp), lambda n, s: (n, 0, s, 0)),
            pl.BlockSpec((kt, Mp, Cop), lambda n, s: (0, 0, 0)),
            pl.BlockSpec((1, Cop), lambda n, s: (0, 0)),
        ],
        out_specs=pl.BlockSpec((1, T_out, THW, Cop), lambda n, s: (n, 0, s, 0)),
        scratch_shapes=[pltpu.VMEM((T_out, THW, Cop), jnp.float32)],
        compiler_params=pltpu.CompilerParams(
            dimension_semantics=("parallel", "parallel"),
            vmem_limit_bytes=_vmem_limit_bytes(working)),
    )(y, wt, bt)


# ----------------------------------------------------------------------------
# Module: parameter construction + forward
# ----------------------------------------------------------------------------
def init_params(key, in_channels, out_channels, kernel_size):
    kt, kh, kw = _triple(kernel_size)
    intermed = int(math.floor(
        kt * kh * kw * in_channels * out_channels
        / (kh * kw * in_channels + kt * out_channels)))
    k0, k1, k2, k3 = jax.random.split(key, 4)
    fan_sp = in_channels * kh * kw
    fan_tc = intermed * kt
    w_sp = jax.random.uniform(k0, (kh, kw, in_channels, intermed), jnp.float32,
                              -1.0 / math.sqrt(fan_sp), 1.0 / math.sqrt(fan_sp))
    b_sp = jax.random.uniform(k1, (intermed,), jnp.float32,
                              -1.0 / math.sqrt(fan_sp), 1.0 / math.sqrt(fan_sp))
    w_tc = jax.random.uniform(k2, (kt, intermed, out_channels), jnp.float32,
                              -1.0 / math.sqrt(fan_tc), 1.0 / math.sqrt(fan_tc))
    b_tc = jax.random.uniform(k3, (out_channels,), jnp.float32,
                              -1.0 / math.sqrt(fan_tc), 1.0 / math.sqrt(fan_tc))
    return dict(w_sp=w_sp, b_sp=b_sp, w_tc=w_tc, b_tc=b_tc)


def spatiotemporal_conv_nobnr(x_ncdhw, params, kernel_size=3, stride=1, padding=1,
                              compute_dtype=None):
    """Forward pass of SpatioTemporalConv_nobnr.  Input/output NCDHW (N, C, T, H, W)."""
    kt, kh, kw = _triple(kernel_size)
    st, sh, sw = _triple(stride)
    pt, ph, pw = _triple(padding)
    assert (st, sh, sw) == (1, 1, 1), "only stride=1 implemented"
    # TODO(synk): general stride would need strided output row/col selection in-kernel.

    N, Cin, T, H, W = x_ncdhw.shape
    out_dtype = x_ncdhw.dtype
    cdt = out_dtype if compute_dtype is None else compute_dtype   # bf16 recommended in prod

    w_sp, b_sp = params["w_sp"], params["b_sp"]
    w_tc, b_tc = params["w_tc"], params["b_tc"]
    M, Cout = w_sp.shape[-1], w_tc.shape[-1]
    # lane-dense channel padding: K and N of every matmul become multiples of 128
    Cp = _round_up(Cin, 128)
    Mp = _round_up(M, 128)
    Cop = _round_up(Cout, 128)

    # --- spatial conv: NCDHW -> (N*T, H, W, C); halo + channel pad fused in one pad ---
    x = jnp.transpose(x_ncdhw, (0, 2, 3, 4, 1)).reshape(N * T, H, W, Cin)
    xp = jnp.pad(x, ((0, 0), (ph, ph), (pw, pw), (0, Cp - Cin))).astype(cdt)
    ws = jnp.pad(w_sp, ((0, 0), (0, 0), (0, Cp - Cin), (0, Mp - M))
                 ).reshape(kh * kw, Cp, Mp).astype(cdt)
    bs = jnp.pad(b_sp, (0, Mp - M)).reshape(1, Mp).astype(jnp.float32)
    y = _spatial_conv(xp, ws, bs, kh=kh, kw=kw, out_dtype=cdt)

    # --- temporal conv on the flattened-HW intermediate (free reshape, no HBM pad) ---
    H_out, W_out = H + 2 * ph - kh + 1, W + 2 * pw - kw + 1
    y = y.reshape(N, T, H_out * W_out, Mp)
    wt = jnp.pad(w_tc, ((0, 0), (0, Mp - M), (0, Cop - Cout))).astype(cdt)
    bt = jnp.pad(b_tc, (0, Cop - Cout)).reshape(1, Cop).astype(jnp.float32)
    # TODO(synk): fuse spatial+temporal into one pallas_call (VMEM ring of kt spatially
    # convolved frames) to drop this intermediate HBM round trip entirely.
    z = _temporal_conv(y, wt, bt, kt=kt, pt=pt, out_dtype=out_dtype)

    # --- strip channel padding, back to NCDHW ---
    T_out = T + 2 * pt - kt + 1
    z = z.reshape(N, T_out, H_out, W_out, Cop)[..., :Cout]
    return jnp.transpose(z, (0, 4, 1, 2, 3))


# ----------------------------------------------------------------------------
# Reference (pure JAX, mimics the two nn.Conv3d calls) for verification
# ----------------------------------------------------------------------------
def reference_forward(x_ncdhw, params, kernel_size=3, padding=1):
    kt, kh, kw = _triple(kernel_size)
    pt, ph, pw = _triple(padding)
    dn = ("NCDHW", "OIDHW", "NCDHW")
    w_sp = jnp.transpose(params["w_sp"], (3, 2, 0, 1)).reshape(
        params["w_sp"].shape[3], params["w_sp"].shape[2], 1, kh, kw)
    y = lax.conv_general_dilated(
        x_ncdhw, w_sp, window_strides=(1, 1, 1),
        padding=[(0, 0), (ph, ph), (pw, pw)], dimension_numbers=dn)
    y = y + params["b_sp"].reshape(1, -1, 1, 1, 1)
    w_tc = jnp.transpose(params["w_tc"], (2, 1, 0)).reshape(
        params["w_tc"].shape[2], params["w_tc"].shape[1], kt, 1, 1)
    z = lax.conv_general_dilated(
        y, w_tc, window_strides=(1, 1, 1),
        padding=[(pt, pt), (0, 0), (0, 0)], dimension_numbers=dn)
    return z + params["b_tc"].reshape(1, -1, 1, 1, 1)


# ----------------------------------------------------------------------------
if __name__ == "__main__":
    N, Cin, T, H, W = 2, 4, 8, 16, 16
    Cout, ksize, stride, pad = 8, 3, 1, 1

    key = jax.random.PRNGKey(0)
    kx, kp = jax.random.split(key)
    x = jax.random.normal(kx, (N, Cin, T, H, W), jnp.float32)
    params = init_params(kp, Cin, Cout, ksize)

    fwd = jax.jit(functools.partial(spatiotemporal_conv_nobnr,
                                    kernel_size=ksize, stride=stride, padding=pad))
    out = jax.block_until_ready(fwd(x, params))
    ref = jax.block_until_ready(reference_forward(x, params, ksize, pad))
    assert out.shape == ref.shape == (N, Cout, T, H, W), (out.shape, ref.shape)
    assert jnp.allclose(out, ref, atol=1e-4, rtol=1e-4), float(
        jnp.max(jnp.abs(out - ref)))

    # bf16 MXU path (f32 accumulation) — production recommendation from the perf review.
    out_bf16 = jax.block_until_ready(
        spatiotemporal_conv_nobnr(x, params, kernel_size=ksize, stride=stride,
                                  padding=pad, compute_dtype=jnp.bfloat16))
    assert jnp.allclose(out_bf16.astype(jnp.float32), ref, atol=2e-1, rtol=2e-1), float(
        jnp.max(jnp.abs(out_bf16.astype(jnp.float32) - ref)))

    print("KERNEL_OK")
</pallas_src>

<mosaic_0001>
module attributes {stable_mosaic.version = 11 : i64} {
  func.func @_spatial_conv_kernel(%arg0: i32, %arg1: i32, %arg2: memref<1x18x18x128xf32, #tpu.memory_space<vmem>>, %arg3: memref<9x128x128xf32, #tpu.memory_space<vmem>>, %arg4: memref<1x128xf32, #tpu.memory_space<vmem>>, %arg5: memref<1x128x128xf32, #tpu.memory_space<vmem>>, %arg6: memref<128x128xf32, #tpu.memory_space<vmem>>) attributes {dimension_semantics = [#tpu.dimension_semantics<parallel>, #tpu.dimension_semantics<parallel>], iteration_bounds = array<i64: 16, 2>, scalar_prefetch = 0 : i64, scratch_operands = 1 : i64, tpu.core_type = #tpu.core_type<tc>, window_params = [{transform_indices = @transform_0, window_bounds = array<i64: 1, 18, 18, 128>}, {pipeline_mode = #tpu.pipeline_mode<synchronous>, transform_indices = @transform_1, window_bounds = array<i64: 9, 128, 128>}, {pipeline_mode = #tpu.pipeline_mode<synchronous>, transform_indices = @transform_2, window_bounds = array<i64: 1, 128>}, {transform_indices = @transform_3, window_bounds = array<i64: 1, 128, 128>}]} {
    %c8_i32 = arith.constant 8 : i32
    %0 = arith.muli %arg1, %c8_i32 : i32
    %c0 = arith.constant 0 : index
    %c0_0 = arith.constant 0 : index
    %1 = vector.load %arg4[%c0, %c0_0] : memref<1x128xf32, #tpu.memory_space<vmem>>, vector<1x128xf32>
    %2 = vector.shape_cast %1 : vector<1x128xf32> to vector<1x128xf32>
    %3 = vector.broadcast %2 : vector<1x128xf32> to vector<128x128xf32>
    %c0_1 = arith.constant 0 : index
    %c0_2 = arith.constant 0 : index
    %4 = vector.load %arg6[%c0_1, %c0_2] : memref<128x128xf32, #tpu.memory_space<vmem>>, vector<128x128xf32>
    tpu.vector_store %arg6[%c0_1, %c0_2], %3 {strides = array<i32>} : memref<128x128xf32, #tpu.memory_space<vmem>>, vector<128x128xf32>,
    %c0_i32 = arith.constant 0 : i32
    %5 = arith.addi %0, %c0_i32 : i32
    %c0_3 = arith.constant 0 : index
    %6 = arith.index_cast %5 : i32 to index
    %c0_4 = arith.constant 0 : index
    %c0_5 = arith.constant 0 : index
    %7 = vector.load %arg2[%c0_3, %6, %c0_4, %c0_5] : memref<1x18x18x128xf32, #tpu.memory_space<vmem>>, vector<1x8x16x128xf32>
    %8 = vector.shape_cast %7 : vector<1x8x16x128xf32> to vector<8x16x128xf32>
    %c0_6 = arith.constant 0 : index
    %c0_7 = arith.constant 0 : index
    %9 = vector.load %arg6[%c0_6, %c0_7] : memref<128x128xf32, #tpu.memory_space<vmem>>, vector<128x128xf32>
    %10 = vector.shape_cast %8 : vector<8x16x128xf32> to vector<128x128xf32>
    %c0_8 = arith.constant 0 : index
    %c0_9 = arith.constant 0 : index
    %c0_10 = arith.constant 0 : index
    %11 = vector.load %arg3[%c0_8, %c0_9, %c0_10] : memref<9x128x128xf32, #tpu.memory_space<vmem>>, vector<1x128x128xf32>
    %12 = vector.shape_cast %11 : vector<1x128x128xf32> to vector<128x128xf32>
    %cst = arith.constant dense<0.000000e+00> : vector<128x128xf32>
    %13 = tpu.matmul %10, %12, %cst {dimension_numbers = #tpu.dot_dimension_numbers<[1], [0], [0], [1], [0, 0, 1, 1], [], []>} : vector<128x128xf32>, vector<128x128xf32>, vector<128x128xf32> -> vector<128x128xf32>
    %14 = arith.addf %9, %13 : vector<128x128xf32>
    %c0_11 = arith.constant 0 : index
    %c0_12 = arith.constant 0 : index
    %15 = vector.load %arg6[%c0_11, %c0_12] : memref<128x128xf32, #tpu.memory_space<vmem>>, vector<128x128xf32>
    tpu.vector_store %arg6[%c0_11, %c0_12], %14 {strides = array<i32>} : memref<128x128xf32, #tpu.memory_space<vmem>>, vector<128x128xf32>,
    %c0_i32_13 = arith.constant 0 : i32
    %16 = arith.addi %0, %c0_i32_13 : i32
    %c0_14 = arith.constant 0 : index
    %17 = arith.index_cast %16 : i32 to index
    %c1 = arith.constant 1 : index
    %c0_15 = arith.constant 0 : index
    %18 = vector.load %arg2[%c0_14, %17, %c1, %c0_15] : memref<1x18x18x128xf32, #tpu.memory_space<vmem>>, vector<1x8x16x128xf32>
    %19 = vector.shape_cast %18 : vector<1x8x16x128xf32> to vector<8x16x128xf32>
    %c0_16 = arith.constant 0 : index
    %c0_17 = arith.constant 0 : index
    %20 = vector.load %arg6[%c0_16, %c0_17] : memref<128x128xf32, #tpu.memory_space<vmem>>, vector<128x128xf32>
    %21 = vector.shape_cast %19 : vector<8x16x128xf32> to vector<128x128xf32>
    %c1_18 = arith.constant 1 : index
    %c0_19 = arith.constant 0 : index
    %c0_20 = arith.constant 0 : index
    %22 = vector.load %arg3[%c1_18, %c0_19, %c0_20] : memref<9x128x128xf32, #tpu.memory_space<vmem>>, vector<1x128x128xf32>
    %23 = vector.shape_cast %22 : vector<1x128x128xf32> to vector<128x128xf32>
    %cst_21 = arith.constant dense<0.000000e+00> : vector<128x128xf32>
    %24 = tpu.matmul %21, %23, %cst_21 {dimension_numbers = #tpu.dot_dimension_numbers<[1], [0], [0], [1], [0, 0, 1, 1], [], []>} : vector<128x128xf32>, vector<128x128xf32>, vector<128x128xf32> -> vector<128x128xf32>
    %25 = arith.addf %20, %24 : vector<128x128xf32>
    %c0_22 = arith.constant 0 : index
    %c0_23 = arith.constant 0 : index
    %26 = vector.load %arg6[%c0_22, %c0_23] : memref<128x128xf32, #tpu.memory_space<vmem>>, vector<128x128xf32>
    tpu.vector_store %arg6[%c0_22, %c0_23], %25 {strides = array<i32>} : memref<128x128xf32, #tpu.memory_space<vmem>>, vector<128x128xf32>,
    %c0_i32_24 = arith.constant 0 : i32
    %27 = arith.addi %0, %c0_i32_24 : i32
    %c0_25 = arith.constant 0 : index
    %28 = arith.index_cast %27 : i32 to index
    %c2 = arith.constant 2 : index
    %c0_26 = arith.constant 0 : index
    %29 = vector.load %arg2[%c0_25, %28, %c2, %c0_26] : memref<1x18x18x128xf32, #tpu.memory_space<vmem>>, vector<1x8x16x128xf32>
    %30 = vector.shape_cast %29 : vector<1x8x16x128xf32> to vector<8x16x128xf32>
    %c0_27 = arith.constant 0 : index
    %c0_28 = arith.constant 0 : index
    %31 = vector.load %arg6[%c0_27, %c0_28] : memref<128x128xf32, #tpu.memory_space<vmem>>, vector<128x128xf32>
    %32 = vector.shape_cast %30 : vector<8x16x128xf32> to vector<128x128xf32>
    %c2_29 = arith.constant 2 : index
    %c0_30 = arith.constant 0 : index
    %c0_31 = arith.constant 0 : index
    %33 = vector.load %arg3[%c2_29, %c0_30, %c0_31] : memref<9x128x128xf32, #tpu.memory_space<vmem>>, vector<1x128x128xf32>
    %34 = vector.shape_cast %33 : vector<1x128x128xf32> to vector<128x128xf32>
    %cst_32 = arith.constant dense<0.000000e+00> : vector<128x128xf32>
    %35 = tpu.matmul %32, %34, %cst_32 {dimension_numbers = #tpu.dot_dimension_numbers<[1], [0], [0], [1], [0, 0, 1, 1], [], []>} : vector<128x128xf32>, vector<128x128xf32>, vector<128x128xf32> -> vector<128x128xf32>
    %36 = arith.addf %31, %35 : vector<128x128xf32>
    %c0_33 = arith.constant 0 : index
    %c0_34 = arith.constant 0 : index
    %37 = vector.load %arg6[%c0_33, %c0_34] : memref<128x128xf32, #tpu.memory_space<vmem>>, vector<128x128xf32>
    tpu.vector_store %arg6[%c0_33, %c0_34], %36 {strides = array<i32>} : memref<128x128xf32, #tpu.memory_space<vmem>>, vector<128x128xf32>,
    %c1_i32 = arith.constant 1 : i32
    %38 = arith.addi %0, %c1_i32 : i32
    %c0_35 = arith.constant 0 : index
    %39 = arith.index_cast %38 : i32 to index
    %c0_36 = arith.constant 0 : index
    %c0_37 = arith.constant 0 : index
    %40 = vector.load %arg2[%c0_35, %39, %c0_36, %c0_37] : memref<1x18x18x128xf32, #tpu.memory_space<vmem>>, vector<1x8x16x128xf32>
    %41 = vector.shape_cast %40 : vector<1x8x16x128xf32> to vector<8x16x128xf32>
    %c0_38 = arith.constant 0 : index
    %c0_39 = arith.constant 0 : index
    %42 = vector.load %arg6[%c0_38, %c0_39] : memref<128x128xf32, #tpu.memory_space<vmem>>, vector<128x128xf32>
    %43 = vector.shape_cast %41 : vector<8x16x128xf32> to vector<128x128xf32>
    %c3 = arith.constant 3 : index
    %c0_40 = arith.constant 0 : index
    %c0_41 = arith.constant 0 : index
    %44 = vector.load %arg3[%c3, %c0_40, %c0_41] : memref<9x128x128xf32, #tpu.memory_space<vmem>>, vector<1x128x128xf32>
    %45 = vector.shape_cast %44 : vector<1x128x128xf32> to vector<128x128xf32>
    %cst_42 = arith.constant dense<0.000000e+00> : vector<128x128xf32>
    %46 = tpu.matmul %43, %45, %cst_42 {dimension_numbers = #tpu.dot_dimension_numbers<[1], [0], [0], [1], [0, 0, 1, 1], [], []>} : vector<128x128xf32>, vector<128x128xf32>, vector<128x128xf32> -> vector<128x128xf32>
    %47 = arith.addf %42, %46 : vector<128x128xf32>
    %c0_43 = arith.constant 0 : index
    %c0_44 = arith.constant 0 : index
    %48 = vector.load %arg6[%c0_43, %c0_44] : memref<128x128xf32, #tpu.memory_space<vmem>>, vector<128x128xf32>
    tpu.vector_store %arg6[%c0_43, %c0_44], %47 {strides = array<i32>} : memref<128x128xf32, #tpu.memory_space<vmem>>, vector<128x128xf32>,
    %c1_i32_45 = arith.constant 1 : i32
    %49 = arith.addi %0, %c1_i32_45 : i32
    %c0_46 = arith.constant 0 : index
    %50 = arith.index_cast %49 : i32 to index
    %c1_47 = arith.constant 1 : index
    %c0_48 = arith.constant 0 : index
    %51 = vector.load %arg2[%c0_46, %50, %c1_47, %c0_48] : memref<1x18x18x128xf32, #tpu.memory_space<vmem>>, vector<1x8x16x128xf32>
    %52 = vector.shape_cast %51 : vector<1x8x16x128xf32> to vector<8x16x128xf32>
    %c0_49 = arith.constant 0 : index
    %c0_50 = arith.constant 0 : index
    %53 = vector.load %arg6[%c0_49, %c0_50] : memref<128x128xf32, #tpu.memory_space<vmem>>, vector<128x128xf32>
    %54 = vector.shape_cast %52 : vector<8x16x128xf32> to vector<128x128xf32>
    %c4 = arith.constant 4 : index
    %c0_51 = arith.constant 0 : index
    %c0_52 = arith.constant 0 : index
    %55 = vector.load %arg3[%c4, %c0_51, %c0_52] : memref<9x128x128xf32, #tpu.memory_space<vmem>>, vector<1x128x128xf32>
    %56 = vector.shape_cast %55 : vector<1x128x128xf32> to vector<128x128xf32>
    %cst_53 = arith.constant dense<0.000000e+00> : vector<128x128xf32>
    %57 = tpu.matmul %54, %56, %cst_53 {dimension_numbers = #tpu.dot_dimension_numbers<[1], [0], [0], [1], [0, 0, 1, 1], [], []>} : vector<128x128xf32>, vector<128x128xf32>, vector<128x128xf32> -> vector<128x128xf32>
    %58 = arith.addf %53, %57 : vector<128x128xf32>
    %c0_54 = arith.constant 0 : index
    %c0_55 = arith.constant 0 : index
    %59 = vector.load %arg6[%c0_54, %c0_55] : memref<128x128xf32, #tpu.memory_space<vmem>>, vector<128x128xf32>
    tpu.vector_store %arg6[%c0_54, %c0_55], %58 {strides = array<i32>} : memref<128x128xf32, #tpu.memory_space<vmem>>, vector<128x128xf32>,
    %c1_i32_56 = arith.constant 1 : i32
    %60 = arith.addi %0, %c1_i32_56 : i32
    %c0_57 = arith.constant 0 : index
    %61 = arith.index_cast %60 : i32 to index
    %c2_58 = arith.constant 2 : index
    %c0_59 = arith.constant 0 : index
    %62 = vector.load %arg2[%c0_57, %61, %c2_58, %c0_59] : memref<1x18x18x128xf32, #tpu.memory_space<vmem>>, vector<1x8x16x128xf32>
    %63 = vector.shape_cast %62 : vector<1x8x16x128xf32> to vector<8x16x128xf32>
    %c0_60 = arith.constant 0 : index
    %c0_61 = arith.constant 0 : index
    %64 = vector.load %arg6[%c0_60, %c0_61] : memref<128x128xf32, #tpu.memory_space<vmem>>, vector<128x128xf32>
    %65 = vector.shape_cast %63 : vector<8x16x128xf32> to vector<128x128xf32>
    %c5 = arith.constant 5 : index
    %c0_62 = arith.constant 0 : index
    %c0_63 = arith.constant 0 : index
    %66 = vector.load %arg3[%c5, %c0_62, %c0_63] : memref<9x128x128xf32, #tpu.memory_space<vmem>>, vector<1x128x128xf32>
    %67 = vector.shape_cast %66 : vector<1x128x128xf32> to vector<128x128xf32>
    %cst_64 = arith.constant dense<0.000000e+00> : vector<128x128xf32>
    %68 = tpu.matmul %65, %67, %cst_64 {dimension_numbers = #tpu.dot_dimension_numbers<[1], [0], [0], [1], [0, 0, 1, 1], [], []>} : vector<128x128xf32>, vector<128x128xf32>, vector<128x128xf32> -> vector<128x128xf32>
    %69 = arith.addf %64, %68 : vector<128x128xf32>
    %c0_65 = arith.constant 0 : index
    %c0_66 = arith.constant 0 : index
    %70 = vector.load %arg6[%c0_65, %c0_66] : memref<128x128xf32, #tpu.memory_space<vmem>>, vector<128x128xf32>
    tpu.vector_store %arg6[%c0_65, %c0_66], %69 {strides = array<i32>} : memref<128x128xf32, #tpu.memory_space<vmem>>, vector<128x128xf32>,
    %c2_i32 = arith.constant 2 : i32
    %71 = arith.addi %0, %c2_i32 : i32
    %c0_67 = arith.constant 0 : index
    %72 = arith.index_cast %71 : i32 to index
    %c0_68 = arith.constant 0 : index
    %c0_69 = arith.constant 0 : index
    %73 = vector.load %arg2[%c0_67, %72, %c0_68, %c0_69] : memref<1x18x18x128xf32, #tpu.memory_space<vmem>>, vector<1x8x16x128xf32>
    %74 = vector.shape_cast %73 : vector<1x8x16x128xf32> to vector<8x16x128xf32>
    %c0_70 = arith.constant 0 : index
    %c0_71 = arith.constant 0 : index
    %75 = vector.load %arg6[%c0_70, %c0_71] : memref<128x128xf32, #tpu.memory_space<vmem>>, vector<128x128xf32>
    %76 = vector.shape_cast %74 : vector<8x16x128xf32> to vector<128x128xf32>
    %c6 = arith.constant 6 : index
    %c0_72 = arith.constant 0 : index
    %c0_73 = arith.constant 0 : index
    %77 = vector.load %arg3[%c6, %c0_72, %c0_73] : memref<9x128x128xf32, #tpu.memory_space<vmem>>, vector<1x128x128xf32>
    %78 = vector.shape_cast %77 : vector<1x128x128xf32> to vector<128x128xf32>
    %cst_74 = arith.constant dense<0.000000e+00> : vector<128x128xf32>
    %79 = tpu.matmul %76, %78, %cst_74 {dimension_numbers = #tpu.dot_dimension_numbers<[1], [0], [0], [1], [0, 0, 1, 1], [], []>} : vector<128x128xf32>, vector<128x128xf32>, vector<128x128xf32> -> vector<128x128xf32>
    %80 = arith.addf %75, %79 : vector<128x128xf32>
    %c0_75 = arith.constant 0 : index
    %c0_76 = arith.constant 0 : index
    %81 = vector.load %arg6[%c0_75, %c0_76] : memref<128x128xf32, #tpu.memory_space<vmem>>, vector<128x128xf32>
    tpu.vector_store %arg6[%c0_75, %c0_76], %80 {strides = array<i32>} : memref<128x128xf32, #tpu.memory_space<vmem>>, vector<128x128xf32>,
    %c2_i32_77 = arith.constant 2 : i32
    %82 = arith.addi %0, %c2_i32_77 : i32
    %c0_78 = arith.constant 0 : index
    %83 = arith.index_cast %82 : i32 to index
    %c1_79 = arith.constant 1 : index
    %c0_80 = arith.constant 0 : index
    %84 = vector.load %arg2[%c0_78, %83, %c1_79, %c0_80] : memref<1x18x18x128xf32, #tpu.memory_space<vmem>>, vector<1x8x16x128xf32>
    %85 = vector.shape_cast %84 : vector<1x8x16x128xf32> to vector<8x16x128xf32>
    %c0_81 = arith.constant 0 : index
    %c0_82 = arith.constant 0 : index
    %86 = vector.load %arg6[%c0_81, %c0_82] : memref<128x128xf32, #tpu.memory_space<vmem>>, vector<128x128xf32>
    %87 = vector.shape_cast %85 : vector<8x16x128xf32> to vector<128x128xf32>
    %c7 = arith.constant 7 : index
    %c0_83 = arith.constant 0 : index
    %c0_84 = arith.constant 0 : index
    %88 = vector.load %arg3[%c7, %c0_83, %c0_84] : memref<9x128x128xf32, #tpu.memory_space<vmem>>, vector<1x128x128xf32>
    %89 = vector.shape_cast %88 : vector<1x128x128xf32> to vector<128x128xf32>
    %cst_85 = arith.constant dense<0.000000e+00> : vector<128x128xf32>
    %90 = tpu.matmul %87, %89, %cst_85 {dimension_numbers = #tpu.dot_dimension_numbers<[1], [0], [0], [1], [0, 0, 1, 1], [], []>} : vector<128x128xf32>, vector<128x128xf32>, vector<128x128xf32> -> vector<128x128xf32>
    %91 = arith.addf %86, %90 : vector<128x128xf32>
    %c0_86 = arith.constant 0 : index
    %c0_87 = arith.constant 0 : index
    %92 = vector.load %arg6[%c0_86, %c0_87] : memref<128x128xf32, #tpu.memory_space<vmem>>, vector<128x128xf32>
    tpu.vector_store %arg6[%c0_86, %c0_87], %91 {strides = array<i32>} : memref<128x128xf32, #tpu.memory_space<vmem>>, vector<128x128xf32>,
    %c2_i32_88 = arith.constant 2 : i32
    %93 = arith.addi %0, %c2_i32_88 : i32
    %c0_89 = arith.constant 0 : index
    %94 = arith.index_cast %93 : i32 to index
    %c2_90 = arith.constant 2 : index
    %c0_91 = arith.constant 0 : index
    %95 = vector.load %arg2[%c0_89, %94, %c2_90, %c0_91] : memref<1x18x18x128xf32, #tpu.memory_space<vmem>>, vector<1x8x16x128xf32>
    %96 = vector.shape_cast %95 : vector<1x8x16x128xf32> to vector<8x16x128xf32>
    %c0_92 = arith.constant 0 : index
    %c0_93 = arith.constant 0 : index
    %97 = vector.load %arg6[%c0_92, %c0_93] : memref<128x128xf32, #tpu.memory_space<vmem>>, vector<128x128xf32>
    %98 = vector.shape_cast %96 : vector<8x16x128xf32> to vector<128x128xf32>
    %c8 = arith.constant 8 : index
    %c0_94 = arith.constant 0 : index
    %c0_95 = arith.constant 0 : index
    %99 = vector.load %arg3[%c8, %c0_94, %c0_95] : memref<9x128x128xf32, #tpu.memory_space<vmem>>, vector<1x128x128xf32>
    %100 = vector.shape_cast %99 : vector<1x128x128xf32> to vector<128x128xf32>
    %cst_96 = arith.constant dense<0.000000e+00> : vector<128x128xf32>
    %101 = tpu.matmul %98, %100, %cst_96 {dimension_numbers = #tpu.dot_dimension_numbers<[1], [0], [0], [1], [0, 0, 1, 1], [], []>} : vector<128x128xf32>, vector<128x128xf32>, vector<128x128xf32> -> vector<128x128xf32>
    %102 = arith.addf %97, %101 : vector<128x128xf32>
    %c0_97 = arith.constant 0 : index
    %c0_98 = arith.constant 0 : index
    %103 = vector.load %arg6[%c0_97, %c0_98] : memref<128x128xf32, #tpu.memory_space<vmem>>, vector<128x128xf32>
    tpu.vector_store %arg6[%c0_97, %c0_98], %102 {strides = array<i32>} : memref<128x128xf32, #tpu.memory_space<vmem>>, vector<128x128xf32>,
    %c0_99 = arith.constant 0 : index
    %c0_100 = arith.constant 0 : index
    %104 = vector.load %arg6[%c0_99, %c0_100] : memref<128x128xf32, #tpu.memory_space<vmem>>, vector<128x128xf32>
    %c0_101 = arith.constant 0 : index
    %c0_102 = arith.constant 0 : index
    %c0_103 = arith.constant 0 : index
    %105 = vector.load %arg5[%c0_101, %c0_102, %c0_103] : memref<1x128x128xf32, #tpu.memory_space<vmem>>, vector<1x128x128xf32>
    %106 = vector.shape_cast %105 : vector<1x128x128xf32> to vector<128x128xf32>
    %107 = vector.shape_cast %104 : vector<128x128xf32> to vector<1x128x128xf32>
    tpu.vector_store %arg5[%c0_101, %c0_102, %c0_103], %107 {strides = array<i32>} : memref<1x128x128xf32, #tpu.memory_space<vmem>>, vector<1x128x128xf32>,
    return
  }
  func.func @transform_0(%arg0: i32, %arg1: i32) -> (i32, i32, i32, i32) {
    %c0_i32 = arith.constant 0 : i32
    %c0_i32_0 = arith.constant 0 : i32
    %c0_i32_1 = arith.constant 0 : i32
    %c0_i32_2 = arith.constant 0 : i32
    return %arg0, %c0_i32, %c0_i32_0, %c0_i32_1 : i32, i32, i32, i32
  }
  func.func @transform_1(%arg0: i32, %arg1: i32) -> (i32, i32, i32) {
    %c0_i32 = arith.constant 0 : i32
    %c0_i32_0 = arith.constant 0 : i32
    %c0_i32_1 = arith.constant 0 : i32
    %c0_i32_2 = arith.constant 0 : i32
    return %c0_i32, %c0_i32_0, %c0_i32_1 : i32, i32, i32
  }
  func.func @transform_2(%arg0: i32, %arg1: i32) -> (i32, i32) {
    %c0_i32 = arith.constant 0 : i32
    %c0_i32_0 = arith.constant 0 : i32
    %c0_i32_1 = arith.constant 0 : i32
    return %c0_i32, %c0_i32_0 : i32, i32
  }
  func.func @transform_3(%arg0: i32, %arg1: i32) -> (i32, i32, i32) {
    %c0_i32 = arith.constant 0 : i32
    %c0_i32_0 = arith.constant 0 : i32
    return %arg0, %arg1, %c0_i32 : i32, i32, i32
  }
}

module attributes {stable_mosaic.version = 11 : i64} {
  func.func @_temporal_conv_kernel(%arg0: i32, %arg1: i32, %arg2: memref<1x8x128x128xf32, #tpu.memory_space<vmem>>, %arg3: memref<3x128x128xf32, #tpu.memory_space<vmem>>, %arg4: memref<1x128xf32, #tpu.memory_space<vmem>>, %arg5: memref<1x8x128x128xf32, #tpu.memory_space<vmem>>, %arg6: memref<8x128x128xf32, #tpu.memory_space<vmem>>) attributes {dimension_semantics = [#tpu.dimension_semantics<parallel>, #tpu.dimension_semantics<parallel>], iteration_bounds = array<i64: 2, 2>, scalar_prefetch = 0 : i64, scratch_operands = 1 : i64, tpu.core_type = #tpu.core_type<tc>, window_params = [{transform_indices = @transform_0, window_bounds = array<i64: 1, 8, 128, 128>}, {pipeline_mode = #tpu.pipeline_mode<synchronous>, transform_indices = @transform_1, window_bounds = array<i64: 3, 128, 128>}, {pipeline_mode = #tpu.pipeline_mode<synchronous>, transform_indices = @transform_2, window_bounds = array<i64: 1, 128>}, {transform_indices = @transform_3, window_bounds = array<i64: 1, 8, 128, 128>}]} {
    %c0 = arith.constant 0 : index
    %c0_0 = arith.constant 0 : index
    %0 = vector.load %arg4[%c0, %c0_0] : memref<1x128xf32, #tpu.memory_space<vmem>>, vector<1x128xf32>
    %1 = vector.shape_cast %0 : vector<1x128xf32> to vector<1x1x128xf32>
    %2 = vector.broadcast %1 : vector<1x1x128xf32> to vector<8x128x128xf32>
    %c0_1 = arith.constant 0 : index
    %c0_2 = arith.constant 0 : index
    %c0_3 = arith.constant 0 : index
    %3 = vector.load %arg6[%c0_1, %c0_2, %c0_3] : memref<8x128x128xf32, #tpu.memory_space<vmem>>, vector<8x128x128xf32>
    tpu.vector_store %arg6[%c0_1, %c0_2, %c0_3], %2 {strides = array<i32>} : memref<8x128x128xf32, #tpu.memory_space<vmem>>, vector<8x128x128xf32>,
    %c0_4 = arith.constant 0 : index
    %c0_5 = arith.constant 0 : index
    %c0_6 = arith.constant 0 : index
    %c0_7 = arith.constant 0 : index
    %4 = vector.load %arg2[%c0_4, %c0_5, %c0_6, %c0_7] : memref<1x8x128x128xf32, #tpu.memory_space<vmem>>, vector<1x7x128x128xf32>
    %5 = vector.shape_cast %4 : vector<1x7x128x128xf32> to vector<7x128x128xf32>
    %6 = vector.shape_cast %5 : vector<7x128x128xf32> to vector<896x128xf32>
    %c0_8 = arith.constant 0 : index
    %c0_9 = arith.constant 0 : index
    %c0_10 = arith.constant 0 : index
    %7 = vector.load %arg3[%c0_8, %c0_9, %c0_10] : memref<3x128x128xf32, #tpu.memory_space<vmem>>, vector<1x128x128xf32>
    %8 = vector.shape_cast %7 : vector<1x128x128xf32> to vector<128x128xf32>
    %cst = arith.constant dense<0.000000e+00> : vector<896x128xf32>
    %9 = tpu.matmul %6, %8, %cst {dimension_numbers = #tpu.dot_dimension_numbers<[1], [0], [0], [1], [0, 0, 1, 1], [], []>} : vector<896x128xf32>, vector<128x128xf32>, vector<896x128xf32> -> vector<896x128xf32>
    %c1 = arith.constant 1 : index
    %c0_11 = arith.constant 0 : index
    %c0_12 = arith.constant 0 : index
    %10 = vector.load %arg6[%c1, %c0_11, %c0_12] : memref<8x128x128xf32, #tpu.memory_space<vmem>>, vector<7x128x128xf32>
    %11 = vector.shape_cast %9 : vector<896x128xf32> to vector<7x128x128xf32>
    %12 = arith.addf %10, %11 : vector<7x128x128xf32>
    %c1_13 = arith.constant 1 : index
    %c0_14 = arith.constant 0 : index
    %c0_15 = arith.constant 0 : index
    %13 = vector.load %arg6[%c1_13, %c0_14, %c0_15] : memref<8x128x128xf32, #tpu.memory_space<vmem>>, vector<7x128x128xf32>
    tpu.vector_store %arg6[%c1_13, %c0_14, %c0_15], %12 {strides = array<i32>} : memref<8x128x128xf32, #tpu.memory_space<vmem>>, vector<7x128x128xf32>,
    %c0_16 = arith.constant 0 : index
    %c0_17 = arith.constant 0 : index
    %c0_18 = arith.constant 0 : index
    %c0_19 = arith.constant 0 : index
    %14 = vector.load %arg2[%c0_16, %c0_17, %c0_18, %c0_19] : memref<1x8x128x128xf32, #tpu.memory_space<vmem>>, vector<1x8x128x128xf32>
    %15 = vector.shape_cast %14 : vector<1x8x128x128xf32> to vector<8x128x128xf32>
    %16 = vector.shape_cast %15 : vector<8x128x128xf32> to vector<1024x128xf32>
    %c1_20 = arith.constant 1 : index
    %c0_21 = arith.constant 0 : index
    %c0_22 = arith.constant 0 : index
    %17 = vector.load %arg3[%c1_20, %c0_21, %c0_22] : memref<3x128x128xf32, #tpu.memory_space<vmem>>, vector<1x128x128xf32>
    %18 = vector.shape_cast %17 : vector<1x128x128xf32> to vector<128x128xf32>
    %cst_23 = arith.constant dense<0.000000e+00> : vector<1024x128xf32>
    %19 = tpu.matmul %16, %18, %cst_23 {dimension_numbers = #tpu.dot_dimension_numbers<[1], [0], [0], [1], [0, 0, 1, 1], [], []>} : vector<1024x128xf32>, vector<128x128xf32>, vector<1024x128xf32> -> vector<1024x128xf32>
    %c0_24 = arith.constant 0 : index
    %c0_25 = arith.constant 0 : index
    %c0_26 = arith.constant 0 : index
    %20 = vector.load %arg6[%c0_24, %c0_25, %c0_26] : memref<8x128x128xf32, #tpu.memory_space<vmem>>, vector<8x128x128xf32>
    %21 = vector.shape_cast %19 : vector<1024x128xf32> to vector<8x128x128xf32>
    %22 = arith.addf %20, %21 : vector<8x128x128xf32>
    %c0_27 = arith.constant 0 : index
    %c0_28 = arith.constant 0 : index
    %c0_29 = arith.constant 0 : index
    %23 = vector.load %arg6[%c0_27, %c0_28, %c0_29] : memref<8x128x128xf32, #tpu.memory_space<vmem>>, vector<8x128x128xf32>
    tpu.vector_store %arg6[%c0_27, %c0_28, %c0_29], %22 {strides = array<i32>} : memref<8x128x128xf32, #tpu.memory_space<vmem>>, vector<8x128x128xf32>,
    %c0_30 = arith.constant 0 : index
    %c1_31 = arith.constant 1 : index
    %c0_32 = arith.constant 0 : index
    %c0_33 = arith.constant 0 : index
    %24 = vector.load %arg2[%c0_30, %c1_31, %c0_32, %c0_33] : memref<1x8x128x128xf32, #tpu.memory_space<vmem>>, vector<1x7x128x128xf32>
    %25 = vector.shape_cast %24 : vector<1x7x128x128xf32> to vector<7x128x128xf32>
    %26 = vector.shape_cast %25 : vector<7x128x128xf32> to vector<896x128xf32>
    %c2 = arith.constant 2 : index
    %c0_34 = arith.constant 0 : index
    %c0_35 = arith.constant 0 : index
    %27 = vector.load %arg3[%c2, %c0_34, %c0_35] : memref<3x128x128xf32, #tpu.memory_space<vmem>>, vector<1x128x128xf32>
    %28 = vector.shape_cast %27 : vector<1x128x128xf32> to vector<128x128xf32>
    %cst_36 = arith.constant dense<0.000000e+00> : vector<896x128xf32>
    %29 = tpu.matmul %26, %28, %cst_36 {dimension_numbers = #tpu.dot_dimension_numbers<[1], [0], [0], [1], [0, 0, 1, 1], [], []>} : vector<896x128xf32>, vector<128x128xf32>, vector<896x128xf32> -> vector<896x128xf32>
    %c0_37 = arith.constant 0 : index
    %c0_38 = arith.constant 0 : index
    %c0_39 = arith.constant 0 : index
    %30 = vector.load %arg6[%c0_37, %c0_38, %c0_39] : memref<8x128x128xf32, #tpu.memory_space<vmem>>, vector<7x128x128xf32>
    %31 = vector.shape_cast %29 : vector<896x128xf32> to vector<7x128x128xf32>
    %32 = arith.addf %30, %31 : vector<7x128x128xf32>
    %c0_40 = arith.constant 0 : index
    %c0_41 = arith.constant 0 : index
    %c0_42 = arith.constant 0 : index
    %33 = vector.load %arg6[%c0_40, %c0_41, %c0_42] : memref<8x128x128xf32, #tpu.memory_space<vmem>>, vector<7x128x128xf32>
    tpu.vector_store %arg6[%c0_40, %c0_41, %c0_42], %32 {strides = array<i32>} : memref<8x128x128xf32, #tpu.memory_space<vmem>>, vector<7x128x128xf32>,
    %c0_43 = arith.constant 0 : index
    %c0_44 = arith.constant 0 : index
    %c0_45 = arith.constant 0 : index
    %34 = vector.load %arg6[%c0_43, %c0_44, %c0_45] : memref<8x128x128xf32, #tpu.memory_space<vmem>>, vector<8x128x128xf32>
    %c0_46 = arith.constant 0 : index
    %c0_47 = arith.constant 0 : index
    %c0_48 = arith.constant 0 : index
    %c0_49 = arith.constant 0 : index
    %35 = vector.load %arg5[%c0_46, %c0_47, %c0_48, %c0_49] : memref<1x8x128x128xf32, #tpu.memory_space<vmem>>, vector<1x8x128x128xf32>
    %36 = vector.shape_cast %35 : vector<1x8x128x128xf32> to vector<8x128x128xf32>
    %37 = vector.shape_cast %34 : vector<8x128x128xf32> to vector<1x8x128x128xf32>
    tpu.vector_store %arg5[%c0_46, %c0_47, %c0_48, %c0_49], %37 {strides = array<i32>} : memref<1x8x128x128xf32, #tpu.memory_space<vmem>>, vector<1x8x128x128xf32>,
    return
  }
  func.func @transform_0(%arg0: i32, %arg1: i32) -> (i32, i32, i32, i32) {
    %c0_i32 = arith.constant 0 : i32
    %c0_i32_0 = arith.constant 0 : i32
    %c0_i32_1 = arith.constant 0 : i32
    return %arg0, %c0_i32, %arg1, %c0_i32_0 : i32, i32, i32, i32
  }
  func.func @transform_1(%arg0: i32, %arg1: i32) -> (i32, i32, i32) {
    %c0_i32 = arith.constant 0 : i32
    %c0_i32_0 = arith.constant 0 : i32
    %c0_i32_1 = arith.constant 0 : i32
    %c0_i32_2 = arith.constant 0 : i32
    return %c0_i32, %c0_i32_0, %c0_i32_1 : i32, i32, i32
  }
  func.func @transform_2(%arg0: i32, %arg1: i32) -> (i32, i32) {
    %c0_i32 = arith.constant 0 : i32
    %c0_i32_0 = arith.constant 0 : i32
    %c0_i32_1 = arith.constant 0 : i32
    return %c0_i32, %c0_i32_0 : i32, i32
  }
  func.func @transform_3(%arg0: i32, %arg1: i32) -> (i32, i32, i32, i32) {
    %c0_i32 = arith.constant 0 : i32
    %c0_i32_0 = arith.constant 0 : i32
    %c0_i32_1 = arith.constant 0 : i32
    return %arg0, %c0_i32, %arg1, %c0_i32_0 : i32, i32, i32, i32
  }
}

</mosaic_0001>

<llo_original>
// kernel: spatiotemporal_conv_nobnr.2
$region0: #{spatiotemporal_conv_nobnr.2}
  #allocation0 [shape = 'u32[]', space=smem, size = 0x4, offset = 0x4, fixed_abs, tag = 'smem constant byte address 0x4 - core index']
  #allocation1 [shape = 'u32[144,128]{1,0:T(1,128)}', space=vmem, size = 0x12000, scoped, tag = 'internal scratch']
  #allocation2 [shape = 'f32[128,128]{1,0:T(8,128)}', space=vmem, size = 0x10000, scoped, tag = 'scratch operand']
  %s0 = inlined_call_operand.vmem [shape: f32[16,18,18,128], index: 0, kind: input, shape index: {}]
  %s1 = inlined_call_operand.vmem [shape: f32[9,128,128], index: 1, kind: input, shape index: {}]
  %s2 = inlined_call_operand.vmem [shape: f32[1,128], index: 2, kind: input, shape index: {}]
  %s3 = inlined_call_operand.vmem [shape: f32[16,256,128], index: 3, kind: output, shape index: {}]
  %s4 = sld [smem:[#allocation0]]
  $region45: #{spatiotemporal_conv_nobnr.2} parent=0
    _
  %s6 = ssub.s32 1, %s4
  %s7 = scalar_select 0, %s6, %s4
  loop: start=0, step=1, limit=34
  $region2: #{spatiotemporal_conv_nobnr.2} parent=0 // loop_pre_header
    _
  $region3: #{spatiotemporal_conv_nobnr.2} parent=0 // loop_header
    %s9 = sphi 0, %s13
    %p10 = scmp.ge.s32.totalorder %s9, 34
    %s16 = sphi 0, %s28
    %s17 = sphi 0, %s24
    %s18 = sphi 0, %s16
    %s19 = sphi 0, %s17
    %s20 = sphi 0, %s18
    %s21 = sphi 0, %s19
    %s31 = sphi 0, %s33
    %s34 = sphi 0, %s31
    %s35 = sphi 0, %s34
    %s51 = sphi 0, %s35
    %s55 = sphi 0, %s55
    %s57 = sphi 0, %s55
    %s58 = sphi 0, %s57
    %s72 = sphi 0, %s58
    %s76 = sphi 0, %s76
    %s78 = sphi 0, %s76
    %s79 = sphi 0, %s78
    %s93 = sphi 0, %s79
    %s101 = sphi 0, %s103
    %s104 = sphi 0, %s101
    %s105 = sphi 0, %s104
    %s121 = sphi 0, %s105
  $region4: #{spatiotemporal_conv_nobnr.2} parent=0 // loop_header_branch
    %12 = sbr.rel (%p10) target = $region8
  $region5: #{spatiotemporal_conv_nobnr.2} parent=0 // loop_body
    %s14 = ssub.s32 %s9, 1
    %s15 = ssub.s32 %s9, 2
    %s22 = sadd.s32 1, %s17
    %p23 = scmp.ge.s32.totalorder %s22, 2
    %s24 = scalar_select %p23, 0, %s22
    %s25 = sadd.s32 1, %s16
    %s26 = scalar_select %p23, %s25, %s16
    %p27 = scmp.ge.s32.totalorder %s26, 16
    %s28 = scalar_select %p27, 0, %s26
    %s29 = ssub.s32 %s16, %s28
    %p30 = scmp.eq.s32.totalorder %s29, 0
    %s32 = sadd.s32 %s31, 1
    %s33 = scalar_select %p30, %s31, %s32
    %p36 = pneg %p30
    %p37 = scmp.eq.s32.totalorder %s9, 31
    %p38 = por %p36, %p37
    %p39 = scmp.ne.s32.totalorder %s31, %s34
    %p40 = scmp.eq.s32.totalorder %s9, 0
    %p41 = por %p39, %p40
    %p42 = scmp.ne.s32.totalorder %s31, %s34
    %p43 = scmp.eq.s32.totalorder %s14, 31
    %p44 = por %p42, %p43
    %p45 = scmp.ne.s32.totalorder %s34, %s35
    %p46 = scmp.eq.s32.totalorder %s14, 0
    %p47 = por %p45, %p46
    %p48 = scmp.ne.s32.totalorder %s34, %s35
    %p49 = scmp.eq.s32.totalorder %s15, 31
    %p50 = por %p48, %p49
    %p52 = scmp.ne.s32.totalorder %s35, %s51
    %p53 = scmp.eq.s32.totalorder %s15, 0
    %p54 = por %p52, %p53
    %s56 = sadd.s32 %s55, 1
    %p59 = scmp.eq.s32.totalorder %s9, 31
    %p60 = scmp.ne.s32.totalorder %s55, %s57
    %p61 = scmp.eq.s32.totalorder %s9, 0
    %p62 = por %p60, %p61
    %p63 = scmp.ne.s32.totalorder %s55, %s57
    %p64 = scmp.eq.s32.totalorder %s14, 31
    %p65 = por %p63, %p64
    %p66 = scmp.ne.s32.totalorder %s57, %s58
    %p67 = scmp.eq.s32.totalorder %s14, 0
    %p68 = por %p66, %p67
    %p69 = scmp.ne.s32.totalorder %s57, %s58
    %p70 = scmp.eq.s32.totalorder %s15, 31
    %p71 = por %p69, %p70
    %p73 = scmp.ne.s32.totalorder %s58, %s72
    %p74 = scmp.eq.s32.totalorder %s15, 0
    %p75 = por %p73, %p74
    %s77 = sadd.s32 %s76, 1
    %p80 = scmp.eq.s32.totalorder %s9, 31
    %p81 = scmp.ne.s32.totalorder %s76, %s78
    %p82 = scmp.eq.s32.totalorder %s9, 0
    %p83 = por %p81, %p82
    %p84 = scmp.ne.s32.totalorder %s76, %s78
    %p85 = scmp.eq.s32.totalorder %s14, 31
    %p86 = por %p84, %p85
    %p87 = scmp.ne.s32.totalorder %s78, %s79
    %p88 = scmp.eq.s32.totalorder %s14, 0
    %p89 = por %p87, %p88
    %p90 = scmp.ne.s32.totalorder %s78, %s79
    %p91 = scmp.eq.s32.totalorder %s15, 31
    %p92 = por %p90, %p91
    %p94 = scmp.ne.s32.totalorder %s79, %s93
    %p95 = scmp.eq.s32.totalorder %s15, 0
    %p96 = por %p94, %p95
    %s97 = ssub.s32 %s16, %s28
    %s98 = ssub.s32 %s17, %s24
    %s99 = sor.u32 %s97, %s98
    %p100 = scmp.eq.s32.totalorder %s99, 0
    %s102 = sadd.s32 %s101, 1
    %s103 = scalar_select %p100, %s101, %s102
    %p106 = pneg %p100
    %p107 = scmp.eq.s32.totalorder %s9, 31
    %p108 = por %p106, %p107
    %p109 = scmp.ne.s32.totalorder %s101, %s104
    %p110 = scmp.eq.s32.totalorder %s9, 0
    %p111 = por %p109, %p110
    %p112 = scmp.ne.s32.totalorder %s101, %s104
    %p113 = scmp.eq.s32.totalorder %s14, 31
    %p114 = por %p112, %p113
    %p115 = scmp.ne.s32.totalorder %s104, %s105
    %p116 = scmp.eq.s32.totalorder %s14, 0
    %p117 = por %p115, %p116
    %p118 = scmp.ne.s32.totalorder %s104, %s105
    %p119 = scmp.eq.s32.totalorder %s15, 31
    %p120 = por %p118, %p119
    %p122 = scmp.ne.s32.totalorder %s105, %s121
    %p123 = scmp.eq.s32.totalorder %s15, 0
    %p124 = por %p122, %p123
    %p125 = scmp.le.s32.totalorder 1, %s9
    %p126 = scmp.lt.s32.totalorder %s9, 33
    %p127 = pnand %p125, %p126
    %p128 = pneg %p127
    // Predicated region
    $region9: #{spatiotemporal_conv_nobnr.2} parent=5 // pred_check
      _
    $region10: #{spatiotemporal_conv_nobnr.2} parent=5 // pred_check_branch
      %130 = sbr.rel (%p127) target = $region12
    $region11: #{spatiotemporal_conv_nobnr.2} parent=5 // pred_region
      %s131 = ssub.s32 %s9, 1
      // Predicated region
      $region13: #{spatiotemporal_conv_nobnr.2} parent=11 // pred_check
        %p132 = pneg %p68
      $region14: #{spatiotemporal_conv_nobnr.2} parent=11 // pred_check_branch
        %134 = sbr.rel (%p132) target = $region16
      $region15: #{spatiotemporal_conv_nobnr.2} parent=11 // pred_region
        _
      $region16: #{spatiotemporal_conv_nobnr.2} parent=11 // pred_fallthru
        _
      // Predicated region
      $region17: #{spatiotemporal_conv_nobnr.2} parent=11 // pred_check
        %p135 = pneg %p89
      $region18: #{spatiotemporal_conv_nobnr.2} parent=11 // pred_check_branch
        %137 = sbr.rel (%p135) target = $region20
      $region19: #{spatiotemporal_conv_nobnr.2} parent=11 // pred_region
        _
      $region20: #{spatiotemporal_conv_nobnr.2} parent=11 // pred_fallthru
        _
    $region12: #{spatiotemporal_conv_nobnr.2} parent=5 // pred_fallthru
      _
    %p138 = scmp.lt.s32.totalorder %s9, 32
    // Predicated region
    $region21: #{spatiotemporal_conv_nobnr.2} parent=5 // pred_check
      %p139 = pneg %p138
    $region22: #{spatiotemporal_conv_nobnr.2} parent=5 // pred_check_branch
      %141 = sbr.rel (%p139) target = $region24
    $region23: #{spatiotemporal_conv_nobnr.2} parent=5 // pred_region
      // Predicated region
      $region25: #{spatiotemporal_conv_nobnr.2} parent=23 // pred_check
        %p142 = pneg %p41
      $region26: #{spatiotemporal_conv_nobnr.2} parent=23 // pred_check_branch
        %144 = sbr.rel (%p142) target = $region28
      $region27: #{spatiotemporal_conv_nobnr.2} parent=23 // pred_region
        %p145 = scmp.lt.s32.totalorder %s16, 15
        %s146 = scalar_select %p145, %s16, 15
        %s147 = smul.addr %s146, 54
        %s148 = smul.addr %s147, 8
        %s149 = scalar_lea.vmem %s0, %s148
      $region28: #{spatiotemporal_conv_nobnr.2} parent=23 // pred_fallthru
        _
    $region24: #{spatiotemporal_conv_nobnr.2} parent=5 // pred_fallthru
      _
    %p150 = scmp.le.s32.totalorder 1, %s9
    %p151 = scmp.lt.s32.totalorder %s9, 33
    %p152 = pnand %p150, %p151
    %p153 = pneg %p152
    // Predicated region
    $region29: #{spatiotemporal_conv_nobnr.2} parent=5 // pred_check
      _
    $region30: #{spatiotemporal_conv_nobnr.2} parent=5 // pred_check_branch
      %155 = sbr.rel (%p152) target = $region32
    $region31: #{spatiotemporal_conv_nobnr.2} parent=5 // pred_region
      %s156 = ssub.s32 %s9, 1
      %p157 = scmp.lt.s32.totalorder %s18, 15
      %s158 = scalar_select %p157, %s18, 15
      %s159 = smul.addr %s158, 54
      %s160 = smul.addr %s159, 8
      %s161 = scalar_lea.vmem %s0, %s160
      %p162 = pneg %p47
      %p163 = pneg %p44
      %p164 = pneg %p68
      %p165 = pneg %p65
      %p166 = pneg %p89
      %p167 = pneg %p86
      %p168 = pneg %p117
      %p169 = pneg %p114
      %s170 = smul.u32 16, %s19
      %p171 = scmp.lt.s32.totalorder %s18, 15
      %s172 = scalar_select %p171, %s18, 15
      %p173 = scmp.lt.s32.totalorder %s170, 31
      %s174 = scalar_select %p173, %s170, 31
      %s175 = smul.addr %s172, 32
      %s176 = sadd.s32 %s174, %s175
      %s177 = smul.addr %s176, 8
      %s178 = scalar_lea.vmem %s3, %s177
      %p179 = scmp.lt.s32.totalorder %s18, 15
      %s180 = scalar_select %p179, %s18, 15
      %s181 = smul.addr %s180, 54
      %s182 = smul.addr %s181, 8
      %s183 = scalar_lea.vmem %s0, %s182
      %s184 = smul.u32 16, %s19
      %p185 = scmp.lt.s32.totalorder %s18, 15
      %s186 = scalar_select %p185, %s18, 15
      %p187 = scmp.lt.s32.totalorder %s184, 31
      %s188 = scalar_select %p187, %s184, 31
      %s189 = smul.addr %s186, 32
      %s190 = sadd.s32 %s188, %s189
      %s191 = smul.addr %s190, 8
      %s192 = scalar_lea.vmem %s3, %s191
      %s193 = smul.u32 16, %s19
      %s194 = smul.u32 %s19, 8
      %v195 = vld [vmem:[%s2] sm:$0x1]
      %v197 = vlaneseq
      %v198 = vshrl.u32 %v197, 7
      %v199 = vsub.s32 0, %v198
      %v200 = vrot.slane %v195, %v199
      %202 = vst [vmem:[#allocation2] sm:$0xff] %v200
      %203 = vst [vmem:[#allocation2 + $0x8] sm:$0xff] %v200
      %204 = vst [vmem:[#allocation2 + $0x10] sm:$0xff] %v200
      %205 = vst [vmem:[#allocation2 + $0x18] sm:$0xff] %v200
      %206 = vst [vmem:[#allocation2 + $0x20] sm:$0xff] %v200
      %207 = vst [vmem:[#allocation2 + $0x28] sm:$0xff] %v200
      %208 = vst [vmem:[#allocation2 + $0x30] sm:$0xff] %v200
      %209 = vst [vmem:[#allocation2 + $0x38] sm:$0xff] %v200
      %210 = vst [vmem:[#allocation2 + $0x40] sm:$0xff] %v200
      %211 = vst [vmem:[#allocation2 + $0x48] sm:$0xff] %v200
      %212 = vst [vmem:[#allocation2 + $0x50] sm:$0xff] %v200
      %213 = vst [vmem:[#allocation2 + $0x58] sm:$0xff] %v200
      %214 = vst [vmem:[#allocation2 + $0x60] sm:$0xff] %v200
      %215 = vst [vmem:[#allocation2 + $0x68] sm:$0xff] %v200
      %216 = vst [vmem:[#allocation2 + $0x70] sm:$0xff] %v200
      %217 = vst [vmem:[#allocation2 + $0x78] sm:$0xff] %v200
      %s218 = smul.u32 %s194, 24
      %s219 = scalar_lea.vmem %s183, %s218
      %v220 = vld [vmem:[%s219] sm:$0xff]
      %v221 = vld [vmem:[%s219 + $0x8] sm:$0xff]
      %v222 = vld [vmem:[%s219 + $0x18] sm:$0xff]
      %v223 = vld [vmem:[%s219 + $0x20] sm:$0xff]
      %v224 = vld [vmem:[%s219 + $0x30] sm:$0xff]
      %v225 = vld [vmem:[%s219 + $0x38] sm:$0xff]
      %v226 = vld [vmem:[%s219 + $0x48] sm:$0xff]
      %v227 = vld [vmem:[%s219 + $0x50] sm:$0xff]
      %v228 = vld [vmem:[%s219 + $0x60] sm:$0xff]
      %v229 = vld [vmem:[%s219 + $0x68] sm:$0xff]
      %v230 = vld [vmem:[%s219 + $0x78] sm:$0xff]
      %v231 = vld [vmem:[%s219 + $0x80] sm:$0xff]
      %v232 = vld [vmem:[%s219 + $0x90] sm:$0xff]
      %v233 = vld [vmem:[%s219 + $0x98] sm:$0xff]
      %v234 = vld [vmem:[%s219 + $0xa8] sm:$0xff]
      %v235 = vld [vmem:[%s219 + $0xb0] sm:$0xff]
      %v236 = vld [vmem:[#allocation2] sm:$0xff]
      %v237 = vld [vmem:[#allocation2 + $0x8] sm:$0xff]
      %v238 = vld [vmem:[#allocation2 + $0x10] sm:$0xff]
      %v239 = vld [vmem:[#allocation2 + $0x18] sm:$0xff]
      %v240 = vld [vmem:[#allocation2 + $0x20] sm:$0xff]
      %v241 = vld [vmem:[#allocation2 + $0x28] sm:$0xff]
      %v242 = vld [vmem:[#allocation2 + $0x30] sm:$0xff]
      %v243 = vld [vmem:[#allocation2 + $0x38] sm:$0xff]
      %v244 = vld [vmem:[#allocation2 + $0x40] sm:$0xff]
      %v245 = vld [vmem:[#allocation2 + $0x48] sm:$0xff]
      %v246 = vld [vmem:[#allocation2 + $0x50] sm:$0xff]
      %v247 = vld [vmem:[#allocation2 + $0x58] sm:$0xff]
      %v248 = vld [vmem:[#allocation2 + $0x60] sm:$0xff]
      %v249 = vld [vmem:[#allocation2 + $0x68] sm:$0xff]
      %v250 = vld [vmem:[#allocation2 + $0x70] sm:$0xff]
      %v251 = vld [vmem:[#allocation2 + $0x78] sm:$0xff]
      %v252 = vld [vmem:[%s1] sm:$0xff]
      %v253 = vld [vmem:[%s1 + $0x8] sm:$0xff]
      %v254 = vld [vmem:[%s1 + $0x10] sm:$0xff]
      %v255 = vld [vmem:[%s1 + $0x18] sm:$0xff]
      %v256 = vld [vmem:[%s1 + $0x20] sm:$0xff]
      %v257 = vld [vmem:[%s1 + $0x28] sm:$0xff]
      %v258 = vld [vmem:[%s1 + $0x30] sm:$0xff]
      %v259 = vld [vmem:[%s1 + $0x38] sm:$0xff]
      %v260 = vld [vmem:[%s1 + $0x40] sm:$0xff]
      %v261 = vld [vmem:[%s1 + $0x48] sm:$0xff]
      %v262 = vld [vmem:[%s1 + $0x50] sm:$0xff]
      %v263 = vld [vmem:[%s1 + $0x58] sm:$0xff]
      %v264 = vld [vmem:[%s1 + $0x60] sm:$0xff]
      %v265 = vld [vmem:[%s1 + $0x68] sm:$0xff]
      %v266 = vld [vmem:[%s1 + $0x70] sm:$0xff]
      %v267 = vld [vmem:[%s1 + $0x78] sm:$0xff]
      %268 = vmatprep.subr.mxu0 0.0
      %269 = vmatpush1.msra.mxu0 %v252
      %270 = vmatprep.subr.mxu0 0.0
      %271 = vmatpush1.msra.mxu0 %v253
      %272 = vmatprep.subr.mxu0 0.0
      %273 = vmatpush1.msra.mxu0 %v254
      %274 = vmatprep.subr.mxu0 0.0
      %275 = vmatpush1.msra.mxu0 %v255
      %276 = vmatprep.subr.mxu0 0.0
      %277 = vmatpush1.msra.mxu0 %v256
      %278 = vmatprep.subr.mxu0 0.0
      %279 = vmatpush1.msra.mxu0 %v257
      %280 = vmatprep.subr.mxu0 0.0
      %281 = vmatpush1.msra.mxu0 %v258
      %282 = vmatprep.subr.mxu0 0.0
      %283 = vmatpush1.msra.mxu0 %v259
      %284 = vmatprep.subr.mxu0 0.0
      %285 = vmatpush1.msra.mxu0 %v260
      %286 = vmatprep.subr.mxu0 0.0
      %287 = vmatpush1.msra.mxu0 %v261
      %288 = vmatprep.subr.mxu0 0.0
      %289 = vmatpush1.msra.mxu0 %v262
      %290 = vmatprep.subr.mxu0 0.0
      %291 = vmatpush1.msra.mxu0 %v263
      %292 = vmatprep.subr.mxu0 0.0
      %293 = vmatpush1.msra.mxu0 %v264
      %294 = vmatprep.subr.mxu0 0.0
      %295 = vmatpush1.msra.mxu0 %v265
      %296 = vmatprep.subr.mxu0 0.0
      %297 = vmatpush1.msra.mxu0 %v266
      %298 = vmatprep.subr.mxu0 0.0
      %299 = vmatpush1.msra.mxu0 %v267
      %300 = vmatprep.subr.mxu0 0.0
      %301 = vmatpush1.msra.mxu0 0.0
      %302 = vmatprep.subr.mxu0 0.0
      %303 = vmatpush1.msra.mxu0 0.0
      %304 = vmatprep.subr.mxu0 0.0
      %305 = vmatpush1.msra.mxu0 0.0
      %306 = vmatprep.subr.mxu0 0.0
      %307 = vmatpush1.msra.mxu0 0.0
      %308 = vmatprep.subr.mxu0 0.0
      %309 = vmatpush1.msra.mxu0 0.0
      %310 = vmatprep.subr.mxu0 0.0
      %311 = vmatpush1.msra.mxu0 0.0
      %312 = vmatprep.subr.mxu0 0.0
      %313 = vmatpush1.msra.mxu0 0.0
      %314 = vmatprep.subr.mxu0 0.0
      %315 = vmatpush1.msra.mxu0 0.0
      %316 = vmatprep.subr.mxu0 0.0
      %317 = vmatpush1.msra.mxu0 0.0
      %318 = vmatprep.subr.mxu0 0.0
      %319 = vmatpush1.msra.mxu0 0.0
      %320 = vmatprep.subr.mxu0 0.0
      %321 = vmatpush1.msra.mxu0 0.0
      %322 = vmatprep.subr.mxu0 0.0
      %323 = vmatpush1.msra.mxu0 0.0
      %324 = vmatprep.subr.mxu0 0.0
      %325 = vmatpush1.msra.mxu0 0.0
      %326 = vmatprep.subr.mxu0 0.0
      %327 = vmatpush1.msra.mxu0 0.0
      %328 = vmatprep.subr.mxu0 0.0
      %329 = vmatpush1.msra.mxu0 0.0
      %330 = vmatprep.subr.mxu0 0.0
      %331 = vmatpush1.msra.mxu0 0.0
      %332 = vmatprep.mubr.f32.mxu0 0.0
      %333 = vmatmul.mubr.f32.gmra.mrb[0].mxu0 %v220
      %v334 = vpop.f32.mrb[0].mxu0
      %v335 = vadd.f32 0.0, %v334
      %v336 = vpop.f32.mrb[0].mxu0
      %337 = vmatprep.mubr.f32.mxu0 0.0
      %338 = vmatmul.mubr.f32.gmra.mrb[0].mxu0 %v221
      %v339 = vpop.f32.mrb[0].mxu0
      %v340 = vadd.f32 0.0, %v339
      %v341 = vpop.f32.mrb[0].mxu0
      %342 = vmatprep.mubr.f32.mxu0 0.0
      %343 = vmatmul.mubr.f32.gmra.mrb[0].mxu0 %v222
      %v344 = vpop.f32.mrb[0].mxu0
      %v345 = vadd.f32 0.0, %v344
      %v346 = vpop.f32.mrb[0].mxu0
      %347 = vmatprep.mubr.f32.mxu0 0.0
      %348 = vmatmul.mubr.f32.gmra.mrb[0].mxu0 %v223
      %v349 = vpop.f32.mrb[0].mxu0
      %v350 = vadd.f32 0.0, %v349
      %v351 = vpop.f32.mrb[0].mxu0
      %352 = vmatprep.mubr.f32.mxu0 0.0
      %353 = vmatmul.mubr.f32.gmra.mrb[0].mxu0 %v224
      %v354 = vpop.f32.mrb[0].mxu0
      %v355 = vadd.f32 0.0, %v354
      %v356 = vpop.f32.mrb[0].mxu0
      %357 = vmatprep.mubr.f32.mxu0 0.0
      %358 = vmatmul.mubr.f32.gmra.mrb[0].mxu0 %v225
      %v359 = vpop.f32.mrb[0].mxu0
      %v360 = vadd.f32 0.0, %v359
      %v361 = vpop.f32.mrb[0].mxu0
      %362 = vmatprep.mubr.f32.mxu0 0.0
      %363 = vmatmul.mubr.f32.gmra.mrb[0].mxu0 %v226
      %v364 = vpop.f32.mrb[0].mxu0
      %v365 = vadd.f32 0.0, %v364
      %v366 = vpop.f32.mrb[0].mxu0
      %367 = vmatprep.mubr.f32.mxu0 0.0
      %368 = vmatmul.mubr.f32.gmra.mrb[0].mxu0 %v227
      %v369 = vpop.f32.mrb[0].mxu0
      %v370 = vadd.f32 0.0, %v369
      %v371 = vpop.f32.mrb[0].mxu0
      %372 = vmatprep.mubr.f32.mxu0 0.0
      %373 = vmatmul.mubr.f32.gmra.mrb[0].mxu0 %v228
      %v374 = vpop.f32.mrb[0].mxu0
      %v375 = vadd.f32 0.0, %v374
      %v376 = vpop.f32.mrb[0].mxu0
      %377 = vmatprep.mubr.f32.mxu0 0.0
      %378 = vmatmul.mubr.f32.gmra.mrb[0].mxu0 %v229
      %v379 = vpop.f32.mrb[0].mxu0
      %v380 = vadd.f32 0.0, %v379
      %v381 = vpop.f32.mrb[0].mxu0
      %382 = vmatprep.mubr.f32.mxu0 0.0
      %383 = vmatmul.mubr.f32.gmra.mrb[0].mxu0 %v230
      %v384 = vpop.f32.mrb[0].mxu0
      %v385 = vadd.f32 0.0, %v384
      %v386 = vpop.f32.mrb[0].mxu0
      %387 = vmatprep.mubr.f32.mxu0 0.0
      %388 = vmatmul.mubr.f32.gmra.mrb[0].mxu0 %v231
      %v389 = vpop.f32.mrb[0].mxu0
      %v390 = vadd.f32 0.0, %v389
      %v391 = vpop.f32.mrb[0].mxu0
      %392 = vmatprep.mubr.f32.mxu0 0.0
      %393 = vmatmul.mubr.f32.gmra.mrb[0].mxu0 %v232
      %v394 = vpop.f32.mrb[0].mxu0
      %v395 = vadd.f32 0.0, %v394
      %v396 = vpop.f32.mrb[0].mxu0
      %397 = vmatprep.mubr.f32.mxu0 0.0
      %398 = vmatmul.mubr.f32.gmra.mrb[0].mxu0 %v233
      %v399 = vpop.f32.mrb[0].mxu0
      %v400 = vadd.f32 0.0, %v399
      %v401 = vpop.f32.mrb[0].mxu0
      %402 = vmatprep.mubr.f32.mxu0 0.0
      %403 = vmatmul.mubr.f32.gmra.mrb[0].mxu0 %v234
      %v404 = vpop.f32.mrb[0].mxu0
      %v405 = vadd.f32 0.0, %v404
      %v406 = vpop.f32.mrb[0].mxu0
      %407 = vmatprep.mubr.f32.mxu0 0.0
      %408 = vmatmul.mubr.f32.gmra.mrb[0].mxu0 %v235
      %v409 = vpop.f32.mrb[0].mxu0
      %v410 = vadd.f32 0.0, %v409
      %v411 = vpop.f32.mrb[0].mxu0
      %412 = vdwg.mxu0
      %v413 = vadd.f32 %v236, %v335
      %v414 = vadd.f32 %v237, %v340
      %v415 = vadd.f32 %v238, %v345
      %v416 = vadd.f32 %v239, %v350
      %v417 = vadd.f32 %v240, %v355
      %v418 = vadd.f32 %v241, %v360
      %v419 = vadd.f32 %v242, %v365
      %v420 = vadd.f32 %v243, %v370
      %v421 = vadd.f32 %v244, %v375
      %v422 = vadd.f32 %v245, %v380
      %v423 = vadd.f32 %v246, %v385
      %v424 = vadd.f32 %v247, %v390
      %v425 = vadd.f32 %v248, %v395
      %v426 = vadd.f32 %v249, %v400
      %v427 = vadd.f32 %v250, %v405
      %v428 = vadd.f32 %v251, %v410
      %429 = vst [vmem:[#allocation2] sm:$0xff] %v413
      %430 = vst [vmem:[#allocation2 + $0x8] sm:$0xff] %v414
      %431 = vst [vmem:[#allocation2 + $0x10] sm:$0xff] %v415
      %432 = vst [vmem:[#allocation2 + $0x18] sm:$0xff] %v416
      %433 = vst [vmem:[#allocation2 + $0x20] sm:$0xff] %v417
      %434 = vst [vmem:[#allocation2 + $0x28] sm:$0xff] %v418
      %435 = vst [vmem:[#allocation2 + $0x30] sm:$0xff] %v419
      %436 = vst [vmem:[#allocation2 + $0x38] sm:$0xff] %v420
      %437 = vst [vmem:[#allocation2 + $0x40] sm:$0xff] %v421
      %438 = vst [vmem:[#allocation2 + $0x48] sm:$0xff] %v422
      %439 = vst [vmem:[#allocation2 + $0x50] sm:$0xff] %v423
      %440 = vst [vmem:[#allocation2 + $0x58] sm:$0xff] %v424
      %441 = vst [vmem:[#allocation2 + $0x60] sm:$0xff] %v425
      %442 = vst [vmem:[#allocation2 + $0x68] sm:$0xff] %v426
      %443 = vst [vmem:[#allocation2 + $0x70] sm:$0xff] %v427
      %444 = vst [vmem:[#allocation2 + $0x78] sm:$0xff] %v428
      %v445 = vld [vmem:[%s219 + $0x1] sm:$0xff]
      %v446 = vld [vmem:[%s219 + $0x9] sm:$0xff]
      %v447 = vld [vmem:[%s219 + $0x19] sm:$0xff]
      %v448 = vld [vmem:[%s219 + $0x21] sm:$0xff]
      %v449 = vld [vmem:[%s219 + $0x31] sm:$0xff]
      %v450 = vld [vmem:[%s219 + $0x39] sm:$0xff]
      %v451 = vld [vmem:[%s219 + $0x49] sm:$0xff]
      %v452 = vld [vmem:[%s219 + $0x51] sm:$0xff]
      %v453 = vld [vmem:[%s219 + $0x61] sm:$0xff]
      %v454 = vld [vmem:[%s219 + $0x69] sm:$0xff]
      %v455 = vld [vmem:[%s219 + $0x79] sm:$0xff]
      %v456 = vld [vmem:[%s219 + $0x81] sm:$0xff]
      %v457 = vld [vmem:[%s219 + $0x91] sm:$0xff]
      %v458 = vld [vmem:[%s219 + $0x99] sm:$0xff]
      %v459 = vld [vmem:[%s219 + $0xa9] sm:$0xff]
      %v460 = vld [vmem:[%s219 + $0xb1] sm:$0xff]
      %v461 = vld [vmem:[#allocation2] sm:$0xff]
      %v462 = vld [vmem:[#allocation2 + $0x8] sm:$0xff]
      %v463 = vld [vmem:[#allocation2 + $0x10] sm:$0xff]
      %v464 = vld [vmem:[#allocation2 + $0x18] sm:$0xff]
      %v465 = vld [vmem:[#allocation2 + $0x20] sm:$0xff]
      %v466 = vld [vmem:[#allocation2 + $0x28] sm:$0xff]
      %v467 = vld [vmem:[#allocation2 + $0x30] sm:$0xff]
      %v468 = vld [vmem:[#allocation2 + $0x38] sm:$0xff]
      %v469 = vld [vmem:[#allocation2 + $0x40] sm:$0xff]
      %v470 = vld [vmem:[#allocation2 + $0x48] sm:$0xff]
      %v471 = vld [vmem:[#allocation2 + $0x50] sm:$0xff]
      %v472 = vld [vmem:[#allocation2 + $0x58] sm:$0xff]
      %v473 = vld [vmem:[#allocation2 + $0x60] sm:$0xff]
      %v474 = vld [vmem:[#allocation2 + $0x68] sm:$0xff]
      %v475 = vld [vmem:[#allocation2 + $0x70] sm:$0xff]
      %v476 = vld [vmem:[#allocation2 + $0x78] sm:$0xff]
      %s477 = scalar_lea.vmem %s1, 128
      %v478 = vld [vmem:[%s477] sm:$0xff]
      %v479 = vld [vmem:[%s477 + $0x8] sm:$0xff]
      %v480 = vld [vmem:[%s477 + $0x10] sm:$0xff]
      %v481 = vld [vmem:[%s477 + $0x18] sm:$0xff]
      %v482 = vld [vmem:[%s477 + $0x20] sm:$0xff]
      %v483 = vld [vmem:[%s477 + $0x28] sm:$0xff]
      %v484 = vld [vmem:[%s477 + $0x30] sm:$0xff]
      %v485 = vld [vmem:[%s477 + $0x38] sm:$0xff]
      %v486 = vld [vmem:[%s477 + $0x40] sm:$0xff]
      %v487 = vld [vmem:[%s477 + $0x48] sm:$0xff]
      %v488 = vld [vmem:[%s477 + $0x50] sm:$0xff]
      %v489 = vld [vmem:[%s477 + $0x58] sm:$0xff]
      %v490 = vld [vmem:[%s477 + $0x60] sm:$0xff]
      %v491 = vld [vmem:[%s477 + $0x68] sm:$0xff]
      %v492 = vld [vmem:[%s477 + $0x70] sm:$0xff]
      %v493 = vld [vmem:[%s477 + $0x78] sm:$0xff]
      %494 = vmatprep.subr.mxu0 0.0
      %495 = vmatpush1.msra.mxu0 %v478
      %496 = vmatprep.subr.mxu0 0.0
      %497 = vmatpush1.msra.mxu0 %v479
      %498 = vmatprep.subr.mxu0 0.0
      %499 = vmatpush1.msra.mxu0 %v480
      %500 = vmatprep.subr.mxu0 0.0
      %501 = vmatpush1.msra.mxu0 %v481
      %502 = vmatprep.subr.mxu0 0.0
      %503 = vmatpush1.msra.mxu0 %v482
      %504 = vmatprep.subr.mxu0 0.0
      %505 = vmatpush1.msra.mxu0 %v483
      %506 = vmatprep.subr.mxu0 0.0
      %507 = vmatpush1.msra.mxu0 %v484
      %508 = vmatprep.subr.mxu0 0.0
      %509 = vmatpush1.msra.mxu0 %v485
      %510 = vmatprep.subr.mxu0 0.0
      %511 = vmatpush1.msra.mxu0 %v486
      %512 = vmatprep.subr.mxu0 0.0
      %513 = vmatpush1.msra.mxu0 %v487
      %514 = vmatprep.subr.mxu0 0.0
      %515 = vmatpush1.msra.mxu0 %v488
      %516 = vmatprep.subr.mxu0 0.0
      %517 = vmatpush1.msra.mxu0 %v489
      %518 = vmatprep.subr.mxu0 0.0
      %519 = vmatpush1.msra.mxu0 %v490
      %520 = vmatprep.subr.mxu0 0.0
      %521 = vmatpush1.msra.mxu0 %v491
      %522 = vmatprep.subr.mxu0 0.0
      %523 = vmatpush1.msra.mxu0 %v492
      %524 = vmatprep.subr.mxu0 0.0
      %525 = vmatpush1.msra.mxu0 %v493
      %526 = vmatprep.subr.mxu0 0.0
      %527 = vmatpush1.msra.mxu0 0.0
      %528 = vmatprep.subr.mxu0 0.0
      %529 = vmatpush1.msra.mxu0 0.0
      %530 = vmatprep.subr.mxu0 0.0
      %531 = vmatpush1.msra.mxu0 0.0
      %532 = vmatprep.subr.mxu0 0.0
      %533 = vmatpush1.msra.mxu0 0.0
      %534 = vmatprep.subr.mxu0 0.0
      %535 = vmatpush1.msra.mxu0 0.0
      %536 = vmatprep.subr.mxu0 0.0
      %537 = vmatpush1.msra.mxu0 0.0
      %538 = vmatprep.subr.mxu0 0.0
      %539 = vmatpush1.msra.mxu0 0.0
      %540 = vmatprep.subr.mxu0 0.0
      %541 = vmatpush1.msra.mxu0 0.0
      %542 = vmatprep.subr.mxu0 0.0
      %543 = vmatpush1.msra.mxu0 0.0
      %544 = vmatprep.subr.mxu0 0.0
      %545 = vmatpush1.msra.mxu0 0.0
      %546 = vmatprep.subr.mxu0 0.0
      %547 = vmatpush1.msra.mxu0 0.0
      %548 = vmatprep.subr.mxu0 0.0
      %549 = vmatpush1.msra.mxu0 0.0
      %550 = vmatprep.subr.mxu0 0.0
      %551 = vmatpush1.msra.mxu0 0.0
      %552 = vmatprep.subr.mxu0 0.0
      %553 = vmatpush1.msra.mxu0 0.0
      %554 = vmatprep.subr.mxu0 0.0
      %555 = vmatpush1.msra.mxu0 0.0
      %556 = vmatprep.subr.mxu0 0.0
      %557 = vmatpush1.msra.mxu0 0.0
      %558 = vmatprep.mubr.f32.mxu0 0.0
      %559 = vmatmul.mubr.f32.gmra.mrb[0].mxu0 %v445
      %v560 = vpop.f32.mrb[0].mxu0
      %v561 = vadd.f32 0.0, %v560
      %v562 = vpop.f32.mrb[0].mxu0
      %563 = vmatprep.mubr.f32.mxu0 0.0
      %564 = vmatmul.mubr.f32.gmra.mrb[0].mxu0 %v446
      %v565 = vpop.f32.mrb[0].mxu0
      %v566 = vadd.f32 0.0, %v565
      %v567 = vpop.f32.mrb[0].mxu0
      %568 = vmatprep.mubr.f32.mxu0 0.0
      %569 = vmatmul.mubr.f32.gmra.mrb[0].mxu0 %v447
      %v570 = vpop.f32.mrb[0].mxu0
      %v571 = vadd.f32 0.0, %v570
      %v572 = vpop.f32.mrb[0].mxu0
      %573 = vmatprep.mubr.f32.mxu0 0.0
      %574 = vmatmul.mubr.f32.gmra.mrb[0].mxu0 %v448
      %v575 = vpop.f32.mrb[0].mxu0
      %v576 = vadd.f32 0.0, %v575
      %v577 = vpop.f32.mrb[0].mxu0
      %578 = vmatprep.mubr.f32.mxu0 0.0
      %579 = vmatmul.mubr.f32.gmra.mrb[0].mxu0 %v449
      %v580 = vpop.f32.mrb[0].mxu0
      %v581 = vadd.f32 0.0, %v580
      %v582 = vpop.f32.mrb[0].mxu0
      %583 = vmatprep.mubr.f32.mxu0 0.0
      %584 = vmatmul.mubr.f32.gmra.mrb[0].mxu0 %v450
      %v585 = vpop.f32.mrb[0].mxu0
      %v586 = vadd.f32 0.0, %v585
      %v587 = vpop.f32.mrb[0].mxu0
      %588 = vmatprep.mubr.f32.mxu0 0.0
      %589 = vmatmul.mubr.f32.gmra.mrb[0].mxu0 %v451
      %v590 = vpop.f32.mrb[0].mxu0
      %v591 = vadd.f32 0.0, %v590
      %v592 = vpop.f32.mrb[0].mxu0
      %593 = vmatprep.mubr.f32.mxu0 0.0
      %594 = vmatmul.mubr.f32.gmra.mrb[0].mxu0 %v452
      %v595 = vpop.f32.mrb[0].mxu0
      %v596 = vadd.f32 0.0, %v595
      %v597 = vpop.f32.mrb[0].mxu0
      %598 = vmatprep.mubr.f32.mxu0 0.0
      %599 = vmatmul.mubr.f32.gmra.mrb[0].mxu0 %v453
      %v600 = vpop.f32.mrb[0].mxu0
      %v601 = vadd.f32 0.0, %v600
      %v602 = vpop.f32.mrb[0].mxu0
      %603 = vmatprep.mubr.f32.mxu0 0.0
      %604 = vmatmul.mubr.f32.gmra.mrb[0].mxu0 %v454
      %v605 = vpop.f32.mrb[0].mxu0
      %v606 = vadd.f32 0.0, %v605
      %v607 = vpop.f32.mrb[0].mxu0
      %608 = vmatprep.mubr.f32.mxu0 0.0
      %609 = vmatmul.mubr.f32.gmra.mrb[0].mxu0 %v455
      %v610 = vpop.f32.mrb[0].mxu0
      %v611 = vadd.f32 0.0, %v610
      %v612 = vpop.f32.mrb[0].mxu0
      %613 = vmatprep.mubr.f32.mxu0 0.0
      %614 = vmatmul.mubr.f32.gmra.mrb[0].mxu0 %v456
      %v615 = vpop.f32.mrb[0].mxu0
      %v616 = vadd.f32 0.0, %v615
      %v617 = vpop.f32.mrb[0].mxu0
      %618 = vmatprep.mubr.f32.mxu0 0.0
      %619 = vmatmul.mubr.f32.gmra.mrb[0].mxu0 %v457
      %v620 = vpop.f32.mrb[0].mxu0
      %v621 = vadd.f32 0.0, %v620
      %v622 = vpop.f32.mrb[0].mxu0
      %623 = vmatprep.mubr.f32.mxu0 0.0
      %624 = vmatmul.mubr.f32.gmra.mrb[0].mxu0 %v458
      %v625 = vpop.f32.mrb[0].mxu0
      %v626 = vadd.f32 0.0, %v625
      %v627 = vpop.f32.mrb[0].mxu0
      %628 = vmatprep.mubr.f32.mxu0 0.0
      %629 = vmatmul.mubr.f32.gmra.mrb[0].mxu0 %v459
      %v630 = vpop.f32.mrb[0].mxu0
      %v631 = vadd.f32 0.0, %v630
      %v632 = vpop.f32.mrb[0].mxu0
      %633 = vmatprep.mubr.f32.mxu0 0.0
      %634 = vmatmul.mubr.f32.gmra.mrb[0].mxu0 %v460
      %v635 = vpop.f32.mrb[0].mxu0
      %v636 = vadd.f32 0.0, %v635
      %v637 = vpop.f32.mrb[0].mxu0
      %638 = vdwg.mxu0
      %v639 = vadd.f32 %v461, %v561
      %v640 = vadd.f32 %v462, %v566
      %v641 = vadd.f32 %v463, %v571
      %v642 = vadd.f32 %v464, %v576
      %v643 = vadd.f32 %v465, %v581
      %v644 = vadd.f32 %v466, %v586
      %v645 = vadd.f32 %v467, %v591
      %v646 = vadd.f32 %v468, %v596
      %v647 = vadd.f32 %v469, %v601
      %v648 = vadd.f32 %v470, %v606
      %v649 = vadd.f32 %v471, %v611
      %v650 = vadd.f32 %v472, %v616
      %v651 = vadd.f32 %v473, %v621
      %v652 = vadd.f32 %v474, %v626
      %v653 = vadd.f32 %v475, %v631
      %v654 = vadd.f32 %v476, %v636
      %655 = vst [vmem:[#allocation2] sm:$0xff] %v639
      %656 = vst [vmem:[#allocation2 + $0x8] sm:$0xff] %v640
      %657 = vst [vmem:[#allocation2 + $0x10] sm:$0xff] %v641
      %658 = vst [vmem:[#allocation2 + $0x18] sm:$0xff] %v642
      %659 = vst [vmem:[#allocation2 + $0x20] sm:$0xff] %v643
      %660 = vst [vmem:[#allocation2 + $0x28] sm:$0xff] %v644
      %661 = vst [vmem:[#allocation2 + $0x30] sm:$0xff] %v645
      %662 = vst [vmem:[#allocation2 + $0x38] sm:$0xff] %v646
      %663 = vst [vmem:[#allocation2 + $0x40] sm:$0xff] %v647
      %664 = vst [vmem:[#allocation2 + $0x48] sm:$0xff] %v648
      %665 = vst [vmem:[#allocation2 + $0x50] sm:$0xff] %v649
      %666 = vst [vmem:[#allocation2 + $0x58] sm:$0xff] %v650
      %667 = vst [vmem:[#allocation2 + $0x60] sm:$0xff] %v651
      %668 = vst [vmem:[#allocation2 + $0x68] sm:$0xff] %v652
      %669 = vst [vmem:[#allocation2 + $0x70] sm:$0xff] %v653
      %670 = vst [vmem:[#allocation2 + $0x78] sm:$0xff] %v654
      %v671 = vld [vmem:[%s219 + $0x2] sm:$0xff]
      %v672 = vld [vmem:[%s219 + $0xa] sm:$0xff]
      %v673 = vld [vmem:[%s219 + $0x1a] sm:$0xff]
      %v674 = vld [vmem:[%s219 + $0x22] sm:$0xff]
      %v675 = vld [vmem:[%s219 + $0x32] sm:$0xff]
      %v676 = vld [vmem:[%s219 + $0x3a] sm:$0xff]
      %v677 = vld [vmem:[%s219 + $0x4a] sm:$0xff]
      %v678 = vld [vmem:[%s219 + $0x52] sm:$0xff]
      %v679 = vld [vmem:[%s219 + $0x62] sm:$0xff]
      %v680 = vld [vmem:[%s219 + $0x6a] sm:$0xff]
      %v681 = vld [vmem:[%s219 + $0x7a] sm:$0xff]
      %v682 = vld [vmem:[%s219 + $0x82] sm:$0xff]
      %v683 = vld [vmem:[%s219 + $0x92] sm:$0xff]
      %v684 = vld [vmem:[%s219 + $0x9a] sm:$0xff]
      %v685 = vld [vmem:[%s219 + $0xaa] sm:$0xff]
      %v686 = vld [vmem:[%s219 + $0xb2] sm:$0xff]
      %v687 = vld [vmem:[#allocation2] sm:$0xff]
      %v688 = vld [vmem:[#allocation2 + $0x8] sm:$0xff]
      %v689 = vld [vmem:[#allocation2 + $0x10] sm:$0xff]
      %v690 = vld [vmem:[#allocation2 + $0x18] sm:$0xff]
      %v691 = vld [vmem:[#allocation2 + $0x20] sm:$0xff]
      %v692 = vld [vmem:[#allocation2 + $0x28] sm:$0xff]
      %v693 = vld [vmem:[#allocation2 + $0x30] sm:$0xff]
      %v694 = vld [vmem:[#allocation2 + $0x38] sm:$0xff]
      %v695 = vld [vmem:[#allocation2 + $0x40] sm:$0xff]
      %v696 = vld [vmem:[#allocation2 + $0x48] sm:$0xff]
      %v697 = vld [vmem:[#allocation2 + $0x50] sm:$0xff]
      %v698 = vld [vmem:[#allocation2 + $0x58] sm:$0xff]
      %v699 = vld [vmem:[#allocation2 + $0x60] sm:$0xff]
      %v700 = vld [vmem:[#allocation2 + $0x68] sm:$0xff]
      %v701 = vld [vmem:[#allocation2 + $0x70] sm:$0xff]
      %v702 = vld [vmem:[#allocation2 + $0x78] sm:$0xff]
      %s703 = scalar_lea.vmem %s1, 256
      %v704 = vld [vmem:[%s703] sm:$0xff]
      %v705 = vld [vmem:[%s703 + $0x8] sm:$0xff]
      %v706 = vld [vmem:[%s703 + $0x10] sm:$0xff]
      %v707 = vld [vmem:[%s703 + $0x18] sm:$0xff]
      %v708 = vld [vmem:[%s703 + $0x20] sm:$0xff]
      %v709 = vld [vmem:[%s703 + $0x28] sm:$0xff]
      %v710 = vld [vmem:[%s703 + $0x30] sm:$0xff]
      %v711 = vld [vmem:[%s703 + $0x38] sm:$0xff]
      %v712 = vld [vmem:[%s703 + $0x40] sm:$0xff]
      %v713 = vld [vmem:[%s703 + $0x48] sm:$0xff]
      %v714 = vld [vmem:[%s703 + $0x50] sm:$0xff]
      %v715 = vld [vmem:[%s703 + $0x58] sm:$0xff]
      %v716 = vld [vmem:[%s703 + $0x60] sm:$0xff]
      %v717 = vld [vmem:[%s703 + $0x68] sm:$0xff]
      %v718 = vld [vmem:[%s703 + $0x70] sm:$0xff]
      %v719 = vld [vmem:[%s703 + $0x78] sm:$0xff]
      %720 = vmatprep.subr.mxu0 0.0
      %721 = vmatpush1.msra.mxu0 %v704
      %722 = vmatprep.subr.mxu0 0.0
      %723 = vmatpush1.msra.mxu0 %v705
      %724 = vmatprep.subr.mxu0 0.0
      %725 = vmatpush1.msra.mxu0 %v706
      %726 = vmatprep.subr.mxu0 0.0
      %727 = vmatpush1.msra.mxu0 %v707
      %728 = vmatprep.subr.mxu0 0.0
      %729 = vmatpush1.msra.mxu0 %v708
      %730 = vmatprep.subr.mxu0 0.0
      %731 = vmatpush1.msra.mxu0 %v709
      %732 = vmatprep.subr.mxu0 0.0
      %733 = vmatpush1.msra.mxu0 %v710
      %734 = vmatprep.subr.mxu0 0.0
      %735 = vmatpush1.msra.mxu0 %v711
      %736 = vmatprep.subr.mxu0 0.0
      %737 = vmatpush1.msra.mxu0 %v712
      %738 = vmatprep.subr.mxu0 0.0
      %739 = vmatpush1.msra.mxu0 %v713
      %740 = vmatprep.subr.mxu0 0.0
      %741 = vmatpush1.msra.mxu0 %v714
      %742 = vmatprep.subr.mxu0 0.0
      %743 = vmatpush1.msra.mxu0 %v715
      %744 = vmatprep.subr.mxu0 0.0
      %745 = vmatpush1.msra.mxu0 %v716
      %746 = vmatprep.subr.mxu0 0.0
      %747 = vmatpush1.msra.mxu0 %v717
      %748 = vmatprep.subr.mxu0 0.0
      %749 = vmatpush1.msra.mxu0 %v718
      %750 = vmatprep.subr.mxu0 0.0
      %751 = vmatpush1.msra.mxu0 %v719
      %752 = vmatprep.subr.mxu0 0.0
      %753 = vmatpush1.msra.mxu0 0.0
      %754 = vmatprep.subr.mxu0 0.0
      %755 = vmatpush1.msra.mxu0 0.0
      %756 = vmatprep.subr.mxu0 0.0
      %757 = vmatpush1.msra.mxu0 0.0
      %758 = vmatprep.subr.mxu0 0.0
      %759 = vmatpush1.msra.mxu0 0.0
      %760 = vmatprep.subr.mxu0 0.0
      %761 = vmatpush1.msra.mxu0 0.0
      %762 = vmatprep.subr.mxu0 0.0
      %763 = vmatpush1.msra.mxu0 0.0
      %764 = vmatprep.subr.mxu0 0.0
      %765 = vmatpush1.msra.mxu0 0.0
      %766 = vmatprep.subr.mxu0 0.0
      %767 = vmatpush1.msra.mxu0 0.0
      %768 = vmatprep.subr.mxu0 0.0
      %769 = vmatpush1.msra.mxu0 0.0
      %770 = vmatprep.subr.mxu0 0.0
      %771 = vmatpush1.msra.mxu0 0.0
      %772 = vmatprep.subr.mxu0 0.0
      %773 = vmatpush1.msra.mxu0 0.0
      %774 = vmatprep.subr.mxu0 0.0
      %775 = vmatpush1.msra.mxu0 0.0
      %776 = vmatprep.subr.mxu0 0.0
      %777 = vmatpush1.msra.mxu0 0.0
      %778 = vmatprep.subr.mxu0 0.0
      %779 = vmatpush1.msra.mxu0 0.0
      %780 = vmatprep.subr.mxu0 0.0
      %781 = vmatpush1.msra.mxu0 0.0
      %782 = vmatprep.subr.mxu0 0.0
      %783 = vmatpush1.msra.mxu0 0.0
      %784 = vmatprep.mubr.f32.mxu0 0.0
      %785 = vmatmul.mubr.f32.gmra.mrb[0].mxu0 %v671
      %v786 = vpop.f32.mrb[0].mxu0
      %v787 = vadd.f32 0.0, %v786
      %v788 = vpop.f32.mrb[0].mxu0
      %789 = vmatprep.mubr.f32.mxu0 0.0
      %790 = vmatmul.mubr.f32.gmra.mrb[0].mxu0 %v672
      %v791 = vpop.f32.mrb[0].mxu0
      %v792 = vadd.f32 0.0, %v791
      %v793 = vpop.f32.mrb[0].mxu0
      %794 = vmatprep.mubr.f32.mxu0 0.0
      %795 = vmatmul.mubr.f32.gmra.mrb[0].mxu0 %v673
      %v796 = vpop.f32.mrb[0].mxu0
      %v797 = vadd.f32 0.0, %v796
      %v798 = vpop.f32.mrb[0].mxu0
      %799 = vmatprep.mubr.f32.mxu0 0.0
      %800 = vmatmul.mubr.f32.gmra.mrb[0].mxu0 %v674
      %v801 = vpop.f32.mrb[0].mxu0
      %v802 = vadd.f32 0.0, %v801
      %v803 = vpop.f32.mrb[0].mxu0
      %804 = vmatprep.mubr.f32.mxu0 0.0
      %805 = vmatmul.mubr.f32.gmra.mrb[0].mxu0 %v675
      %v806 = vpop.f32.mrb[0].mxu0
      %v807 = vadd.f32 0.0, %v806
      %v808 = vpop.f32.mrb[0].mxu0
      %809 = vmatprep.mubr.f32.mxu0 0.0
      %810 = vmatmul.mubr.f32.gmra.mrb[0].mxu0 %v676
      %v811 = vpop.f32.mrb[0].mxu0
      %v812 = vadd.f32 0.0, %v811
      %v813 = vpop.f32.mrb[0].mxu0
      %814 = vmatprep.mubr.f32.mxu0 0.0
      %815 = vmatmul.mubr.f32.gmra.mrb[0].mxu0 %v677
      %v816 = vpop.f32.mrb[0].mxu0
      %v817 = vadd.f32 0.0, %v816
      %v818 = vpop.f32.mrb[0].mxu0
      %819 = vmatprep.mubr.f32.mxu0 0.0
      %820 = vmatmul.mubr.f32.gmra.mrb[0].mxu0 %v678
      %v821 = vpop.f32.mrb[0].mxu0
      %v822 = vadd.f32 0.0, %v821
      %v823 = vpop.f32.mrb[0].mxu0
      %824 = vmatprep.mubr.f32.mxu0 0.0
      %825 = vmatmul.mubr.f32.gmra.mrb[0].mxu0 %v679
      %v826 = vpop.f32.mrb[0].mxu0
      %v827 = vadd.f32 0.0, %v826
      %v828 = vpop.f32.mrb[0].mxu0
      %829 = vmatprep.mubr.f32.mxu0 0.0
      %830 = vmatmul.mubr.f32.gmra.mrb[0].mxu0 %v680
      %v831 = vpop.f32.mrb[0].mxu0
      %v832 = vadd.f32 0.0, %v831
      %v833 = vpop.f32.mrb[0].mxu0
      %834 = vmatprep.mubr.f32.mxu0 0.0
      %835 = vmatmul.mubr.f32.gmra.mrb[0].mxu0 %v681
      %v836 = vpop.f32.mrb[0].mxu0
      %v837 = vadd.f32 0.0, %v836
      %v838 = vpop.f32.mrb[0].mxu0
      %839 = vmatprep.mubr.f32.mxu0 0.0
      %840 = vmatmul.mubr.f32.gmra.mrb[0].mxu0 %v682
      %v841 = vpop.f32.mrb[0].mxu0
      %v842 = vadd.f32 0.0, %v841
      %v843 = vpop.f32.mrb[0].mxu0
      %844 = vmatprep.mubr.f32.mxu0 0.0
      %845 = vmatmul.mubr.f32.gmra.mrb[0].mxu0 %v683
      %v846 = vpop.f32.mrb[0].mxu0
      %v847 = vadd.f32 0.0, %v846
      %v848 = vpop.f32.mrb[0].mxu0
      %849 = vmatprep.mubr.f32.mxu0 0.0
      %850 = vmatmul.mubr.f32.gmra.mrb[0].mxu0 %v684
      %v851 = vpop.f32.mrb[0].mxu0
      %v852 = vadd.f32 0.0, %v851
      %v853 = vpop.f32.mrb[0].mxu0
      %854 = vmatprep.mubr.f32.mxu0 0.0
      %855 = vmatmul.mubr.f32.gmra.mrb[0].mxu0 %v685
      %v856 = vpop.f32.mrb[0].mxu0
      %v857 = vadd.f32 0.0, %v856
      %v858 = vpop.f32.mrb[0].mxu0
      %859 = vmatprep.mubr.f32.mxu0 0.0
      %860 = vmatmul.mubr.f32.gmra.mrb[0].mxu0 %v686
      %v861 = vpop.f32.mrb[0].mxu0
      %v862 = vadd.f32 0.0, %v861
      %v863 = vpop.f32.mrb[0].mxu0
      %864 = vdwg.mxu0
      %v865 = vadd.f32 %v687, %v787
      %v866 = vadd.f32 %v688, %v792
      %v867 = vadd.f32 %v689, %v797
      %v868 = vadd.f32 %v690, %v802
      %v869 = vadd.f32 %v691, %v807
      %v870 = vadd.f32 %v692, %v812
      %v871 = vadd.f32 %v693, %v817
      %v872 = vadd.f32 %v694, %v822
      %v873 = vadd.f32 %v695, %v827
      %v874 = vadd.f32 %v696, %v832
      %v875 = vadd.f32 %v697, %v837
      %v876 = vadd.f32 %v698, %v842
      %v877 = vadd.f32 %v699, %v847
      %v878 = vadd.f32 %v700, %v852
      %v879 = vadd.f32 %v701, %v857
      %v880 = vadd.f32 %v702, %v862
      %881 = vst [vmem:[#allocation2] sm:$0xff] %v865
      %882 = vst [vmem:[#allocation2 + $0x8] sm:$0xff] %v866
      %883 = vst [vmem:[#allocation2 + $0x10] sm:$0xff] %v867
      %884 = vst [vmem:[#allocation2 + $0x18] sm:$0xff] %v868
      %885 = vst [vmem:[#allocation2 + $0x20] sm:$0xff] %v869
      %886 = vst [vmem:[#allocation2 + $0x28] sm:$0xff] %v870
      %887 = vst [vmem:[#allocation2 + $0x30] sm:$0xff] %v871
      %888 = vst [vmem:[#allocation2 + $0x38] sm:$0xff] %v872
      %889 = vst [vmem:[#allocation2 + $0x40] sm:$0xff] %v873
      %890 = vst [vmem:[#allocation2 + $0x48] sm:$0xff] %v874
      %891 = vst [vmem:[#allocation2 + $0x50] sm:$0xff] %v875
      %892 = vst [vmem:[#allocation2 + $0x58] sm:$0xff] %v876
      %893 = vst [vmem:[#allocation2 + $0x60] sm:$0xff] %v877
      %894 = vst [vmem:[#allocation2 + $0x68] sm:$0xff] %v878
      %895 = vst [vmem:[#allocation2 + $0x70] sm:$0xff] %v879
      %896 = vst [vmem:[#allocation2 + $0x78] sm:$0xff] %v880
      %s897 = sadd.s32 %s194, 1
      %s898 = smul.u32 %s897, 24
      %s899 = scalar_lea.vmem %s183, %s898
      %v900 = vld [vmem:[%s899] sm:$0xff]
      %v901 = vld [vmem:[%s899 + $0x8] sm:$0xff]
      %v902 = vld [vmem:[%s899 + $0x18] sm:$0xff]
      %v903 = vld [vmem:[%s899 + $0x20] sm:$0xff]
      %v904 = vld [vmem:[%s899 + $0x30] sm:$0xff]
      %v905 = vld [vmem:[%s899 + $0x38] sm:$0xff]
      %v906 = vld [vmem:[%s899 + $0x48] sm:$0xff]
      %v907 = vld [vmem:[%s899 + $0x50] sm:$0xff]
      %v908 = vld [vmem:[%s899 + $0x60] sm:$0xff]
      %v909 = vld [vmem:[%s899 + $0x68] sm:$0xff]
      %v910 = vld [vmem:[%s899 + $0x78] sm:$0xff]
      %v911 = vld [vmem:[%s899 + $0x80] sm:$0xff]
      %v912 = vld [vmem:[%s899 + $0x90] sm:$0xff]
      %v913 = vld [vmem:[%s899 + $0x98] sm:$0xff]
      %v914 = vld [vmem:[%s899 + $0xa8] sm:$0xff]
      %v915 = vld [vmem:[%s899 + $0xb0] sm:$0xff]
      %v916 = vld [vmem:[#allocation2] sm:$0xff]
      %v917 = vld [vmem:[#allocation2 + $0x8] sm:$0xff]
      %v918 = vld [vmem:[#allocation2 + $0x10] sm:$0xff]
      %v919 = vld [vmem:[#allocation2 + $0x18] sm:$0xff]
      %v920 = vld [vmem:[#allocation2 + $0x20] sm:$0xff]
      %v921 = vld [vmem:[#allocation2 + $0x28] sm:$0xff]
      %v922 = vld [vmem:[#allocation2 + $0x30] sm:$0xff]
      %v923 = vld [vmem:[#allocation2 + $0x38] sm:$0xff]
      %v924 = vld [vmem:[#allocation2 + $0x40] sm:$0xff]
      %v925 = vld [vmem:[#allocation2 + $0x48] sm:$0xff]
      %v926 = vld [vmem:[#allocation2 + $0x50] sm:$0xff]
      %v927 = vld [vmem:[#allocation2 + $0x58] sm:$0xff]
      %v928 = vld [vmem:[#allocation2 + $0x60] sm:$0xff]
      %v929 = vld [vmem:[#allocation2 + $0x68] sm:$0xff]
      %v930 = vld [vmem:[#allocation2 + $0x70] sm:$0xff]
      %v931 = vld [vmem:[#allocation2 + $0x78] sm:$0xff]
      %s932 = scalar_lea.vmem %s1, 384
      %v933 = vld [vmem:[%s932] sm:$0xff]
      %v934 = vld [vmem:[%s932 + $0x8] sm:$0xff]
      %v935 = vld [vmem:[%s932 + $0x10] sm:$0xff]
      %v936 = vld [vmem:[%s932 + $0x18] sm:$0xff]
      %v937 = vld [vmem:[%s932 + $0x20] sm:$0xff]
      %v938 = vld [vmem:[%s932 + $0x28] sm:$0xff]
      %v939 = vld [vmem:[%s932 + $0x30] sm:$0xff]
      %v940 = vld [vmem:[%s932 + $0x38] sm:$0xff]
      %v941 = vld [vmem:[%s932 + $0x40] sm:$0xff]
      %v942 = vld [vmem:[%s932 + $0x48] sm:$0xff]
      %v943 = vld [vmem:[%s932 + $0x50] sm:$0xff]
      %v944 = vld [vmem:[%s932 + $0x58] sm:$0xff]
      %v945 = vld [vmem:[%s932 + $0x60] sm:$0xff]
      %v946 = vld [vmem:[%s932 + $0x68] sm:$0xff]
      %v947 = vld [vmem:[%s932 + $0x70] sm:$0xff]
      %v948 = vld [vmem:[%s932 + $0x78] sm:$0xff]
      %949 = vmatprep.subr.mxu0 0.0
      %950 = vmatpush1.msra.mxu0 %v933
      %951 = vmatprep.subr.mxu0 0.0
      %952 = vmatpush1.msra.mxu0 %v934
      %953 = vmatprep.subr.mxu0 0.0
      %954 = vmatpush1.msra.mxu0 %v935
      %955 = vmatprep.subr.mxu0 0.0
      %956 = vmatpush1.msra.mxu0 %v936
      %957 = vmatprep.subr.mxu0 0.0
      %958 = vmatpush1.msra.mxu0 %v937
      %959 = vmatprep.subr.mxu0 0.0
      %960 = vmatpush1.msra.mxu0 %v938
      %961 = vmatprep.subr.mxu0 0.0
      %962 = vmatpush1.msra.mxu0 %v939
      %963 = vmatprep.subr.mxu0 0.0
      %964 = vmatpush1.msra.mxu0 %v940
      %965 = vmatprep.subr.mxu0 0.0
      %966 = vmatpush1.msra.mxu0 %v941
      %967 = vmatprep.subr.mxu0 0.0
      %968 = vmatpush1.msra.mxu0 %v942
      %969 = vmatprep.subr.mxu0 0.0
      %970 = vmatpush1.msra.mxu0 %v943
      %971 = vmatprep.subr.mxu0 0.0
      %972 = vmatpush1.msra.mxu0 %v944
      %973 = vmatprep.subr.mxu0 0.0
      %974 = vmatpush1.msra.mxu0 %v945
      %975 = vmatprep.subr.mxu0 0.0
      %976 = vmatpush1.msra.mxu0 %v946
      %977 = vmatprep.subr.mxu0 0.0
      %978 = vmatpush1.msra.mxu0 %v947
      %979 = vmatprep.subr.mxu0 0.0
      %980 = vmatpush1.msra.mxu0 %v948
      %981 = vmatprep.subr.mxu0 0.0
      %982 = vmatpush1.msra.mxu0 0.0
      %983 = vmatprep.subr.mxu0 0.0
      %984 = vmatpush1.msra.mxu0 0.0
      %985 = vmatprep.subr.mxu0 0.0
      %986 = vmatpush1.msra.mxu0 0.0
      %987 = vmatprep.subr.mxu0 0.0
      %988 = vmatpush1.msra.mxu0 0.0
      %989 = vmatprep.subr.mxu0 0.0
      %990 = vmatpush1.msra.mxu0 0.0
      %991 = vmatprep.subr.mxu0 0.0
      %992 = vmatpush1.msra.mxu0 0.0
      %993 = vmatprep.subr.mxu0 0.0
      %994 = vmatpush1.msra.mxu0 0.0
      %995 = vmatprep.subr.mxu0 0.0
      %996 = vmatpush1.msra.mxu0 0.0
      %997 = vmatprep.subr.mxu0 0.0
      %998 = vmatpush1.msra.mxu0 0.0
      %999 = vmatprep.subr.mxu0 0.0
      %1000 = vmatpush1.msra.mxu0 0.0
      %1001 = vmatprep.subr.mxu0 0.0
      %1002 = vmatpush1.msra.mxu0 0.0
      %1003 = vmatprep.subr.mxu0 0.0
      %1004 = vmatpush1.msra.mxu0 0.0
      %1005 = vmatprep.subr.mxu0 0.0
      %1006 = vmatpush1.msra.mxu0 0.0
      %1007 = vmatprep.subr.mxu0 0.0
      %1008 = vmatpush1.msra.mxu0 0.0
      %1009 = vmatprep.subr.mxu0 0.0
      %1010 = vmatpush1.msra.mxu0 0.0
      %1011 = vmatprep.subr.mxu0 0.0
      %1012 = vmatpush1.msra.mxu0 0.0
      %1013 = vmatprep.mubr.f32.mxu0 0.0
      %1014 = vmatmul.mubr.f32.gmra.mrb[0].mxu0 %v900
      %v1015 = vpop.f32.mrb[0].mxu0
      %v1016 = vadd.f32 0.0, %v1015
      %v1017 = vpop.f32.mrb[0].mxu0
      %1018 = vmatprep.mubr.f32.mxu0 0.0
      %1019 = vmatmul.mubr.f32.gmra.mrb[0].mxu0 %v901
      %v1020 = vpop.f32.mrb[0].mxu0
      %v1021 = vadd.f32 0.0, %v1020
      %v1022 = vpop.f32.mrb[0].mxu0
      %1023 = vmatprep.mubr.f32.mxu0 0.0
      %1024 = vmatmul.mubr.f32.gmra.mrb[0].mxu0 %v902
      %v1025 = vpop.f32.mrb[0].mxu0
      %v1026 = vadd.f32 0.0, %v1025
      %v1027 = vpop.f32.mrb[0].mxu0
      %1028 = vmatprep.mubr.f32.mxu0 0.0
      %1029 = vmatmul.mubr.f32.gmra.mrb[0].mxu0 %v903
      %v1030 = vpop.f32.mrb[0].mxu0
      %v1031 = vadd.f32 0.0, %v1030
      %v1032 = vpop.f32.mrb[0].mxu0
      %1033 = vmatprep.mubr.f32.mxu0 0.0
      %1034 = vmatmul.mubr.f32.gmra.mrb[0].mxu0 %v904
      %v1035 = vpop.f32.mrb[0].mxu0
      %v1036 = vadd.f32 0.0, %v1035
      %v1037 = vpop.f32.mrb[0].mxu0
      %1038 = vmatprep.mubr.f32.mxu0 0.0
      %1039 = vmatmul.mubr.f32.gmra.mrb[0].mxu0 %v905
      %v1040 = vpop.f32.mrb[0].mxu0
      %v1041 = vadd.f32 0.0, %v1040
      %v1042 = vpop.f32.mrb[0].mxu0
      %1043 = vmatprep.mubr.f32.mxu0 0.0
      %1044 = vmatmul.mubr.f32.gmra.mrb[0].mxu0 %v906
      %v1045 = vpop.f32.mrb[0].mxu0
      %v1046 = vadd.f32 0.0, %v1045
      %v1047 = vpop.f32.mrb[0].mxu0
      %1048 = vmatprep.mubr.f32.mxu0 0.0
      %1049 = vmatmul.mubr.f32.gmra.mrb[0].mxu0 %v907
      %v1050 = vpop.f32.mrb[0].mxu0
      %v1051 = vadd.f32 0.0, %v1050
      %v1052 = vpop.f32.mrb[0].mxu0
      %1053 = vmatprep.mubr.f32.mxu0 0.0
      %1054 = vmatmul.mubr.f32.gmra.mrb[0].mxu0 %v908
      %v1055 = vpop.f32.mrb[0].mxu0
      %v1056 = vadd.f32 0.0, %v1055
      %v1057 = vpop.f32.mrb[0].mxu0
      %1058 = vmatprep.mubr.f32.mxu0 0.0
      %1059 = vmatmul.mubr.f32.gmra.mrb[0].mxu0 %v909
      %v1060 = vpop.f32.mrb[0].mxu0
      %v1061 = vadd.f32 0.0, %v1060
      %v1062 = vpop.f32.mrb[0].mxu0
      %1063 = vmatprep.mubr.f32.mxu0 0.0
      %1064 = vmatmul.mubr.f32.gmra.mrb[0].mxu0 %v910
      %v1065 = vpop.f32.mrb[0].mxu0
      %v1066 = vadd.f32 0.0, %v1065
      %v1067 = vpop.f32.mrb[0].mxu0
      %1068 = vmatprep.mubr.f32.mxu0 0.0
      %1069 = vmatmul.mubr.f32.gmra.mrb[0].mxu0 %v911
      %v1070 = vpop.f32.mrb[0].mxu0
      %v1071 = vadd.f32 0.0, %v1070
      %v1072 = vpop.f32.mrb[0].mxu0
      %1073 = vmatprep.mubr.f32.mxu0 0.0
      %1074 = vmatmul.mubr.f32.gmra.mrb[0].mxu0 %v912
      %v1075 = vpop.f32.mrb[0].mxu0
      %v1076 = vadd.f32 0.0, %v1075
      %v1077 = vpop.f32.mrb[0].mxu0
      %1078 = vmatprep.mubr.f32.mxu0 0.0
      %1079 = vmatmul.mubr.f32.gmra.mrb[0].mxu0 %v913
      %v1080 = vpop.f32.mrb[0].mxu0
      %v1081 = vadd.f32 0.0, %v1080
      %v1082 = vpop.f32.mrb[0].mxu0
      %1083 = vmatprep.mubr.f32.mxu0 0.0
      %1084 = vmatmul.mubr.f32.gmra.mrb[0].mxu0 %v914
      %v1085 = vpop.f32.mrb[0].mxu0
      %v1086 = vadd.f32 0.0, %v1085
      %v1087 = vpop.f32.mrb[0].mxu0
      %1088 = vmatprep.mubr.f32.mxu0 0.0
      %1089 = vmatmul.mubr.f32.gmra.mrb[0].mxu0 %v915
      %v1090 = vpop.f32.mrb[0].mxu0
      %v1091 = vadd.f32 0.0, %v1090
      %v1092 = vpop.f32.mrb[0].mxu0
      %1093 = vdwg.mxu0
      %v1094 = vadd.f32 %v916, %v1016
      %v1095 = vadd.f32 %v917, %v1021
      %v1096 = vadd.f32 %v918, %v1026
      %v1097 = vadd.f32 %v919, %v1031
      %v1098 = vadd.f32 %v920, %v1036
      %v1099 = vadd.f32 %v921, %v1041
      %v1100 = vadd.f32 %v922, %v1046
      %v1101 = vadd.f32 %v923, %v1051
      %v1102 = vadd.f32 %v924, %v1056
      %v1103 = vadd.f32 %v925, %v1061
      %v1104 = vadd.f32 %v926, %v1066
      %v1105 = vadd.f32 %v927, %v1071
      %v1106 = vadd.f32 %v928, %v1076
      %v1107 = vadd.f32 %v929, %v1081
      %v1108 = vadd.f32 %v930, %v1086
      %v1109 = vadd.f32 %v931, %v1091
      %1110 = vst [vmem:[#allocation2] sm:$0xff] %v1094
      %1111 = vst [vmem:[#allocation2 + $0x8] sm:$0xff] %v1095
      %1112 = vst [vmem:[#allocation2 + $0x10] sm:$0xff] %v1096
      %1113 = vst [vmem:[#allocation2 + $0x18] sm:$0xff] %v1097
      %1114 = vst [vmem:[#allocation2 + $0x20] sm:$0xff] %v1098
      %1115 = vst [vmem:[#allocation2 + $0x28] sm:$0xff] %v1099
      %1116 = vst [vmem:[#allocation2 + $0x30] sm:$0xff] %v1100
      %1117 = vst [vmem:[#allocation2 + $0x38] sm:$0xff] %v1101
      %1118 = vst [vmem:[#allocation2 + $0x40] sm:$0xff] %v1102
      %1119 = vst [vmem:[#allocation2 + $0x48] sm:$0xff] %v1103
      %1120 = vst [vmem:[#allocation2 + $0x50] sm:$0xff] %v1104
      %1121 = vst [vmem:[#allocation2 + $0x58] sm:$0xff] %v1105
      %1122 = vst [vmem:[#allocation2 + $0x60] sm:$0xff] %v1106
      %1123 = vst [vmem:[#allocation2 + $0x68] sm:$0xff] %v1107
      %1124 = vst [vmem:[#allocation2 + $0x70] sm:$0xff] %v1108
      %1125 = vst [vmem:[#allocation2 + $0x78] sm:$0xff] %v1109
      %v1126 = vld [vmem:[%s899 + $0x1] sm:$0xff]
      %v1127 = vld [vmem:[%s899 + $0x9] sm:$0xff]
      %v1128 = vld [vmem:[%s899 + $0x19] sm:$0xff]
      %v1129 = vld [vmem:[%s899 + $0x21] sm:$0xff]
      %v1130 = vld [vmem:[%s899 + $0x31] sm:$0xff]
      %v1131 = vld [vmem:[%s899 + $0x39] sm:$0xff]
      %v1132 = vld [vmem:[%s899 + $0x49] sm:$0xff]
      %v1133 = vld [vmem:[%s899 + $0x51] sm:$0xff]
      %v1134 = vld [vmem:[%s899 + $0x61] sm:$0xff]
      %v1135 = vld [vmem:[%s899 + $0x69] sm:$0xff]
      %v1136 = vld [vmem:[%s899 + $0x79] sm:$0xff]
      %v1137 = vld [vmem:[%s899 + $0x81] sm:$0xff]
      %v1138 = vld [vmem:[%s899 + $0x91] sm:$0xff]
      %v1139 = vld [vmem:[%s899 + $0x99] sm:$0xff]
      %v1140 = vld [vmem:[%s899 + $0xa9] sm:$0xff]
      %v1141 = vld [vmem:[%s899 + $0xb1] sm:$0xff]
      %v1142 = vld [vmem:[#allocation2] sm:$0xff]
      %v1143 = vld [vmem:[#allocation2 + $0x8] sm:$0xff]
      %v1144 = vld [vmem:[#allocation2 + $0x10] sm:$0xff]
      %v1145 = vld [vmem:[#allocation2 + $0x18] sm:$0xff]
      %v1146 = vld [vmem:[#allocation2 + $0x20] sm:$0xff]
      %v1147 = vld [vmem:[#allocation2 + $0x28] sm:$0xff]
      %v1148 = vld [vmem:[#allocation2 + $0x30] sm:$0xff]
      %v1149 = vld [vmem:[#allocation2 + $0x38] sm:$0xff]
      %v1150 = vld [vmem:[#allocation2 + $0x40] sm:$0xff]
      %v1151 = vld [vmem:[#allocation2 + $0x48] sm:$0xff]
      %v1152 = vld [vmem:[#allocation2 + $0x50] sm:$0xff]
      %v1153 = vld [vmem:[#allocation2 + $0x58] sm:$0xff]
      %v1154 = vld [vmem:[#allocation2 + $0x60] sm:$0xff]
      %v1155 = vld [vmem:[#allocation2 + $0x68] sm:$0xff]
      %v1156 = vld [vmem:[#allocation2 + $0x70] sm:$0xff]
      %v1157 = vld [vmem:[#allocation2 + $0x78] sm:$0xff]
      %s1158 = scalar_lea.vmem %s1, 512
      %v1159 = vld [vmem:[%s1158] sm:$0xff]
      %v1160 = vld [vmem:[%s1158 + $0x8] sm:$0xff]
      %v1161 = vld [vmem:[%s1158 + $0x10] sm:$0xff]
      %v1162 = vld [vmem:[%s1158 + $0x18] sm:$0xff]
      %v1163 = vld [vmem:[%s1158 + $0x20] sm:$0xff]
      %v1164 = vld [vmem:[%s1158 + $0x28] sm:$0xff]
      %v1165 = vld [vmem:[%s1158 + $0x30] sm:$0xff]
      %v1166 = vld [vmem:[%s1158 + $0x38] sm:$0xff]
      %v1167 = vld [vmem:[%s1158 + $0x40] sm:$0xff]
      %v1168 = vld [vmem:[%s1158 + $0x48] sm:$0xff]
      %v1169 = vld [vmem:[%s1158 + $0x50] sm:$0xff]
      %v1170 = vld [vmem:[%s1158 + $0x58] sm:$0xff]
      %v1171 = vld [vmem:[%s1158 + $0x60] sm:$0xff]
      %v1172 = vld [vmem:[%s1158 + $0x68] sm:$0xff]
      %v1173 = vld [vmem:[%s1158 + $0x70] sm:$0xff]
      %v1174 = vld [vmem:[%s1158 + $0x78] sm:$0xff]
      %1175 = vmatprep.subr.mxu0 0.0
      %1176 = vmatpush1.msra.mxu0 %v1159
      %1177 = vmatprep.subr.mxu0 0.0
      %1178 = vmatpush1.msra.mxu0 %v1160
      %1179 = vmatprep.subr.mxu0 0.0
      %1180 = vmatpush1.msra.mxu0 %v1161
      %1181 = vmatprep.subr.mxu0 0.0
      %1182 = vmatpush1.msra.mxu0 %v1162
      %1183 = vmatprep.subr.mxu0 0.0
      %1184 = vmatpush1.msra.mxu0 %v1163
      %1185 = vmatprep.subr.mxu0 0.0
      %1186 = vmatpush1.msra.mxu0 %v1164
      %1187 = vmatprep.subr.mxu0 0.0
      %1188 = vmatpush1.msra.mxu0 %v1165
      %1189 = vmatprep.subr.mxu0 0.0
      %1190 = vmatpush1.msra.mxu0 %v1166
      %1191 = vmatprep.subr.mxu0 0.0
      %1192 = vmatpush1.msra.mxu0 %v1167
      %1193 = vmatprep.subr.mxu0 0.0
      %1194 = vmatpush1.msra.mxu0 %v1168
      %1195 = vmatprep.subr.mxu0 0.0
      %1196 = vmatpush1.msra.mxu0 %v1169
      %1197 = vmatprep.subr.mxu0 0.0
      %1198 = vmatpush1.msra.mxu0 %v1170
      %1199 = vmatprep.subr.mxu0 0.0
      %1200 = vmatpush1.msra.mxu0 %v1171
      %1201 = vmatprep.subr.mxu0 0.0
      %1202 = vmatpush1.msra.mxu0 %v1172
      %1203 = vmatprep.subr.mxu0 0.0
      %1204 = vmatpush1.msra.mxu0 %v1173
      %1205 = vmatprep.subr.mxu0 0.0
      %1206 = vmatpush1.msra.mxu0 %v1174
      %1207 = vmatprep.subr.mxu0 0.0
      %1208 = vmatpush1.msra.mxu0 0.0
      %1209 = vmatprep.subr.mxu0 0.0
      %1210 = vmatpush1.msra.mxu0 0.0
      %1211 = vmatprep.subr.mxu0 0.0
      %1212 = vmatpush1.msra.mxu0 0.0
      %1213 = vmatprep.subr.mxu0 0.0
      %1214 = vmatpush1.msra.mxu0 0.0
      %1215 = vmatprep.subr.mxu0 0.0
      %1216 = vmatpush1.msra.mxu0 0.0
      %1217 = vmatprep.subr.mxu0 0.0
      %1218 = vmatpush1.msra.mxu0 0.0
      %1219 = vmatprep.subr.mxu0 0.0
      %1220 = vmatpush1.msra.mxu0 0.0
      %1221 = vmatprep.subr.mxu0 0.0
      %1222 = vmatpush1.msra.mxu0 0.0
      %1223 = vmatprep.subr.mxu0 0.0
      %1224 = vmatpush1.msra.mxu0 0.0
      %1225 = vmatprep.subr.mxu0 0.0
      %1226 = vmatpush1.msra.mxu0 0.0
      %1227 = vmatprep.subr.mxu0 0.0
      %1228 = vmatpush1.msra.mxu0 0.0
      %1229 = vmatprep.subr.mxu0 0.0
      %1230 = vmatpush1.msra.mxu0 0.0
      %1231 = vmatprep.subr.mxu0 0.0
      %1232 = vmatpush1.msra.mxu0 0.0
      %1233 = vmatprep.subr.mxu0 0.0
      %1234 = vmatpush1.msra.mxu0 0.0
      %1235 = vmatprep.subr.mxu0 0.0
      %1236 = vmatpush1.msra.mxu0 0.0
      %1237 = vmatprep.subr.mxu0 0.0
      %1238 = vmatpush1.msra.mxu0 0.0
      %1239 = vmatprep.mubr.f32.mxu0 0.0
      %1240 = vmatmul.mubr.f32.gmra.mrb[0].mxu0 %v1126
      %v1241 = vpop.f32.mrb[0].mxu0
      %v1242 = vadd.f32 0.0, %v1241
      %v1243 = vpop.f32.mrb[0].mxu0
      %1244 = vmatprep.mubr.f32.mxu0 0.0
      %1245 = vmatmul.mubr.f32.gmra.mrb[0].mxu0 %v1127
      %v1246 = vpop.f32.mrb[0].mxu0
      %v1247 = vadd.f32 0.0, %v1246
      %v1248 = vpop.f32.mrb[0].mxu0
      %1249 = vmatprep.mubr.f32.mxu0 0.0
      %1250 = vmatmul.mubr.f32.gmra.mrb[0].mxu0 %v1128
      %v1251 = vpop.f32.mrb[0].mxu0
      %v1252 = vadd.f32 0.0, %v1251
      %v1253 = vpop.f32.mrb[0].mxu0
      %1254 = vmatprep.mubr.f32.mxu0 0.0
      %1255 = vmatmul.mubr.f32.gmra.mrb[0].mxu0 %v1129
      %v1256 = vpop.f32.mrb[0].mxu0
      %v1257 = vadd.f32 0.0, %v1256
      %v1258 = vpop.f32.mrb[0].mxu0
      %1259 = vmatprep.mubr.f32.mxu0 0.0
      %1260 = vmatmul.mubr.f32.gmra.mrb[0].mxu0 %v1130
      %v1261 = vpop.f32.mrb[0].mxu0
      %v1262 = vadd.f32 0.0, %v1261
      %v1263 = vpop.f32.mrb[0].mxu0
      %1264 = vmatprep.mubr.f32.mxu0 0.0
      %1265 = vmatmul.mubr.f32.gmra.mrb[0].mxu0 %v1131
      %v1266 = vpop.f32.mrb[0].mxu0
      %v1267 = vadd.f32 0.0, %v1266
      %v1268 = vpop.f32.mrb[0].mxu0
      %1269 = vmatprep.mubr.f32.mxu0 0.0
      %1270 = vmatmul.mubr.f32.gmra.mrb[0].mxu0 %v1132
      %v1271 = vpop.f32.mrb[0].mxu0
      %v1272 = vadd.f32 0.0, %v1271
      %v1273 = vpop.f32.mrb[0].mxu0
      %1274 = vmatprep.mubr.f32.mxu0 0.0
      %1275 = vmatmul.mubr.f32.gmra.mrb[0].mxu0 %v1133
      %v1276 = vpop.f32.mrb[0].mxu0
      %v1277 = vadd.f32 0.0, %v1276
      %v1278 = vpop.f32.mrb[0].mxu0
      %1279 = vmatprep.mubr.f32.mxu0 0.0
      %1280 = vmatmul.mubr.f32.gmra.mrb[0].mxu0 %v1134
      %v1281 = vpop.f32.mrb[0].mxu0
      %v1282 = vadd.f32 0.0, %v1281
      %v1283 = vpop.f32.mrb[0].mxu0
      %1284 = vmatprep.mubr.f32.mxu0 0.0
      %1285 = vmatmul.mubr.f32.gmra.mrb[0].mxu0 %v1135
      %v1286 = vpop.f32.mrb[0].mxu0
      %v1287 = vadd.f32 0.0, %v1286
      %v1288 = vpop.f32.mrb[0].mxu0
      %1289 = vmatprep.mubr.f32.mxu0 0.0
      %1290 = vmatmul.mubr.f32.gmra.mrb[0].mxu0 %v1136
      %v1291 = vpop.f32.mrb[0].mxu0
      %v1292 = vadd.f32 0.0, %v1291
      %v1293 = vpop.f32.mrb[0].mxu0
      %1294 = vmatprep.mubr.f32.mxu0 0.0
      %1295 = vmatmul.mubr.f32.gmra.mrb[0].mxu0 %v1137
      %v1296 = vpop.f32.mrb[0].mxu0
      %v1297 = vadd.f32 0.0, %v1296
      %v1298 = vpop.f32.mrb[0].mxu0
      %1299 = vmatprep.mubr.f32.mxu0 0.0
      %1300 = vmatmul.mubr.f32.gmra.mrb[0].mxu0 %v1138
      %v1301 = vpop.f32.mrb[0].mxu0
      %v1302 = vadd.f32 0.0, %v1301
      %v1303 = vpop.f32.mrb[0].mxu0
      %1304 = vmatprep.mubr.f32.mxu0 0.0
      %1305 = vmatmul.mubr.f32.gmra.mrb[0].mxu0 %v1139
      %v1306 = vpop.f32.mrb[0].mxu0
      %v1307 = vadd.f32 0.0, %v1306
      %v1308 = vpop.f32.mrb[0].mxu0
      %1309 = vmatprep.mubr.f32.mxu0 0.0
      %1310 = vmatmul.mubr.f32.gmra.mrb[0].mxu0 %v1140
      %v1311 = vpop.f32.mrb[0].mxu0
      %v1312 = vadd.f32 0.0, %v1311
      %v1313 = vpop.f32.mrb[0].mxu0
      %1314 = vmatprep.mubr.f32.mxu0 0.0
      %1315 = vmatmul.mubr.f32.gmra.mrb[0].mxu0 %v1141
      %v1316 = vpop.f32.mrb[0].mxu0
      %v1317 = vadd.f32 0.0, %v1316
      %v1318 = vpop.f32.mrb[0].mxu0
      %1319 = vdwg.mxu0
      %v1320 = vadd.f32 %v1142, %v1242
      %v1321 = vadd.f32 %v1143, %v1247
      %v1322 = vadd.f32 %v1144, %v1252
      %v1323 = vadd.f32 %v1145, %v1257
      %v1324 = vadd.f32 %v1146, %v1262
      %v1325 = vadd.f32 %v1147, %v1267
      %v1326 = vadd.f32 %v1148, %v1272
      %v1327 = vadd.f32 %v1149, %v1277
      %v1328 = vadd.f32 %v1150, %v1282
      %v1329 = vadd.f32 %v1151, %v1287
      %v1330 = vadd.f32 %v1152, %v1292
      %v1331 = vadd.f32 %v1153, %v1297
      %v1332 = vadd.f32 %v1154, %v1302
      %v1333 = vadd.f32 %v1155, %v1307
      %v1334 = vadd.f32 %v1156, %v1312
      %v1335 = vadd.f32 %v1157, %v1317
      %1336 = vst [vmem:[#allocation2] sm:$0xff] %v1320
      %1337 = vst [vmem:[#allocation2 + $0x8] sm:$0xff] %v1321
      %1338 = vst [vmem:[#allocation2 + $0x10] sm:$0xff] %v1322
      %1339 = vst [vmem:[#allocation2 + $0x18] sm:$0xff] %v1323
      %1340 = vst [vmem:[#allocation2 + $0x20] sm:$0xff] %v1324
      %1341 = vst [vmem:[#allocation2 + $0x28] sm:$0xff] %v1325
      %1342 = vst [vmem:[#allocation2 + $0x30] sm:$0xff] %v1326
      %1343 = vst [vmem:[#allocation2 + $0x38] sm:$0xff] %v1327
      %1344 = vst [vmem:[#allocation2 + $0x40] sm:$0xff] %v1328
      %1345 = vst [vmem:[#allocation2 + $0x48] sm:$0xff] %v1329
      %1346 = vst [vmem:[#allocation2 + $0x50] sm:$0xff] %v1330
      %1347 = vst [vmem:[#allocation2 + $0x58] sm:$0xff] %v1331
      %1348 = vst [vmem:[#allocation2 + $0x60] sm:$0xff] %v1332
      %1349 = vst [vmem:[#allocation2 + $0x68] sm:$0xff] %v1333
      %1350 = vst [vmem:[#allocation2 + $0x70] sm:$0xff] %v1334
      %1351 = vst [vmem:[#allocation2 + $0x78] sm:$0xff] %v1335
      %v1352 = vld [vmem:[%s899 + $0x2] sm:$0xff]
      %v1353 = vld [vmem:[%s899 + $0xa] sm:$0xff]
      %v1354 = vld [vmem:[%s899 + $0x1a] sm:$0xff]
      %v1355 = vld [vmem:[%s899 + $0x22] sm:$0xff]
      %v1356 = vld [vmem:[%s899 + $0x32] sm:$0xff]
      %v1357 = vld [vmem:[%s899 + $0x3a] sm:$0xff]
      %v1358 = vld [vmem:[%s899 + $0x4a] sm:$0xff]
      %v1359 = vld [vmem:[%s899 + $0x52] sm:$0xff]
      %v1360 = vld [vmem:[%s899 + $0x62] sm:$0xff]
      %v1361 = vld [vmem:[%s899 + $0x6a] sm:$0xff]
      %v1362 = vld [vmem:[%s899 + $0x7a] sm:$0xff]
      %v1363 = vld [vmem:[%s899 + $0x82] sm:$0xff]
      %v1364 = vld [vmem:[%s899 + $0x92] sm:$0xff]
      %v1365 = vld [vmem:[%s899 + $0x9a] sm:$0xff]
      %v1366 = vld [vmem:[%s899 + $0xaa] sm:$0xff]
      %v1367 = vld [vmem:[%s899 + $0xb2] sm:$0xff]
      %v1368 = vld [vmem:[#allocation2] sm:$0xff]
      %v1369 = vld [vmem:[#allocation2 + $0x8] sm:$0xff]
      %v1370 = vld [vmem:[#allocation2 + $0x10] sm:$0xff]
      %v1371 = vld [vmem:[#allocation2 + $0x18] sm:$0xff]
      %v1372 = vld [vmem:[#allocation2 + $0x20] sm:$0xff]
      %v1373 = vld [vmem:[#allocation2 + $0x28] sm:$0xff]
      %v1374 = vld [vmem:[#allocation2 + $0x30] sm:$0xff]
      %v1375 = vld [vmem:[#allocation2 + $0x38] sm:$0xff]
      %v1376 = vld [vmem:[#allocation2 + $0x40] sm:$0xff]
      %v1377 = vld [vmem:[#allocation2 + $0x48] sm:$0xff]
      %v1378 = vld [vmem:[#allocation2 + $0x50] sm:$0xff]
      %v1379 = vld [vmem:[#allocation2 + $0x58] sm:$0xff]
      %v1380 = vld [vmem:[#allocation2 + $0x60] sm:$0xff]
      %v1381 = vld [vmem:[#allocation2 + $0x68] sm:$0xff]
      %v1382 = vld [vmem:[#allocation2 + $0x70] sm:$0xff]
      %v1383 = vld [vmem:[#allocation2 + $0x78] sm:$0xff]
      %s1384 = scalar_lea.vmem %s1, 640
      %v1385 = vld [vmem:[%s1384] sm:$0xff]
      %v1386 = vld [vmem:[%s1384 + $0x8] sm:$0xff]
      %v1387 = vld [vmem:[%s1384 + $0x10] sm:$0xff]
      %v1388 = vld [vmem:[%s1384 + $0x18] sm:$0xff]
      %v1389 = vld [vmem:[%s1384 + $0x20] sm:$0xff]
      %v1390 = vld [vmem:[%s1384 + $0x28] sm:$0xff]
      %v1391 = vld [vmem:[%s1384 + $0x30] sm:$0xff]
      %v1392 = vld [vmem:[%s1384 + $0x38] sm:$0xff]
      %v1393 = vld [vmem:[%s1384 + $0x40] sm:$0xff]
      %v1394 = vld [vmem:[%s1384 + $0x48] sm:$0xff]
      %v1395 = vld [vmem:[%s1384 + $0x50] sm:$0xff]
      %v1396 = vld [vmem:[%s1384 + $0x58] sm:$0xff]
      %v1397 = vld [vmem:[%s1384 + $0x60] sm:$0xff]
      %v1398 = vld [vmem:[%s1384 + $0x68] sm:$0xff]
      %v1399 = vld [vmem:[%s1384 + $0x70] sm:$0xff]
      %v1400 = vld [vmem:[%s1384 + $0x78] sm:$0xff]
      %1401 = vmatprep.subr.mxu0 0.0
      %1402 = vmatpush1.msra.mxu0 %v1385
      %1403 = vmatprep.subr.mxu0 0.0
      %1404 = vmatpush1.msra.mxu0 %v1386
      %1405 = vmatprep.subr.mxu0 0.0
      %1406 = vmatpush1.msra.mxu0 %v1387
      %1407 = vmatprep.subr.mxu0 0.0
      %1408 = vmatpush1.msra.mxu0 %v1388
      %1409 = vmatprep.subr.mxu0 0.0
      %1410 = vmatpush1.msra.mxu0 %v1389
      %1411 = vmatprep.subr.mxu0 0.0
      %1412 = vmatpush1.msra.mxu0 %v1390
      %1413 = vmatprep.subr.mxu0 0.0
      %1414 = vmatpush1.msra.mxu0 %v1391
      %1415 = vmatprep.subr.mxu0 0.0
      %1416 = vmatpush1.msra.mxu0 %v1392
      %1417 = vmatprep.subr.mxu0 0.0
      %1418 = vmatpush1.msra.mxu0 %v1393
      %1419 = vmatprep.subr.mxu0 0.0
      %1420 = vmatpush1.msra.mxu0 %v1394
      %1421 = vmatprep.subr.mxu0 0.0
      %1422 = vmatpush1.msra.mxu0 %v1395
      %1423 = vmatprep.subr.mxu0 0.0
      %1424 = vmatpush1.msra.mxu0 %v1396
      %1425 = vmatprep.subr.mxu0 0.0
      %1426 = vmatpush1.msra.mxu0 %v1397
      %1427 = vmatprep.subr.mxu0 0.0
      %1428 = vmatpush1.msra.mxu0 %v1398
      %1429 = vmatprep.subr.mxu0 0.0
      %1430 = vmatpush1.msra.mxu0 %v1399
      %1431 = vmatprep.subr.mxu0 0.0
      %1432 = vmatpush1.msra.mxu0 %v1400
      %1433 = vmatprep.subr.mxu0 0.0
      %1434 = vmatpush1.msra.mxu0 0.0
      %1435 = vmatprep.subr.mxu0 0.0
      %1436 = vmatpush1.msra.mxu0 0.0
      %1437 = vmatprep.subr.mxu0 0.0
      %1438 = vmatpush1.msra.mxu0 0.0
      %1439 = vmatprep.subr.mxu0 0.0
      %1440 = vmatpush1.msra.mxu0 0.0
      %1441 = vmatprep.subr.mxu0 0.0
      %1442 = vmatpush1.msra.mxu0 0.0
      %1443 = vmatprep.subr.mxu0 0.0
      %1444 = vmatpush1.msra.mxu0 0.0
      %1445 = vmatprep.subr.mxu0 0.0
      %1446 = vmatpush1.msra.mxu0 0.0
      %1447 = vmatprep.subr.mxu0 0.0
      %1448 = vmatpush1.msra.mxu0 0.0
      %1449 = vmatprep.subr.mxu0 0.0
      %1450 = vmatpush1.msra.mxu0 0.0
      %1451 = vmatprep.subr.mxu0 0.0
      %1452 = vmatpush1.msra.mxu0 0.0
      %1453 = vmatprep.subr.mxu0 0.0
      %1454 = vmatpush1.msra.mxu0 0.0
      %1455 = vmatprep.subr.mxu0 0.0
      %1456 = vmatpush1.msra.mxu0 0.0
      %1457 = vmatprep.subr.mxu0 0.0
      %1458 = vmatpush1.msra.mxu0 0.0
      %1459 = vmatprep.subr.mxu0 0.0
      %1460 = vmatpush1.msra.mxu0 0.0
      %1461 = vmatprep.subr.mxu0 0.0
      %1462 = vmatpush1.msra.mxu0 0.0
      %1463 = vmatprep.subr.mxu0 0.0
      %1464 = vmatpush1.msra.mxu0 0.0
      %1465 = vmatprep.mubr.f32.mxu0 0.0
      %1466 = vmatmul.mubr.f32.gmra.mrb[0].mxu0 %v1352
      %v1467 = vpop.f32.mrb[0].mxu0
      %v1468 = vadd.f32 0.0, %v1467
      %v1469 = vpop.f32.mrb[0].mxu0
      %1470 = vmatprep.mubr.f32.mxu0 0.0
      %1471 = vmatmul.mubr.f32.gmra.mrb[0].mxu0 %v1353
      %v1472 = vpop.f32.mrb[0].mxu0
      %v1473 = vadd.f32 0.0, %v1472
      %v1474 = vpop.f32.mrb[0].mxu0
      %1475 = vmatprep.mubr.f32.mxu0 0.0
      %1476 = vmatmul.mubr.f32.gmra.mrb[0].mxu0 %v1354
      %v1477 = vpop.f32.mrb[0].mxu0
      %v1478 = vadd.f32 0.0, %v1477
      %v1479 = vpop.f32.mrb[0].mxu0
      %1480 = vmatprep.mubr.f32.mxu0 0.0
      %1481 = vmatmul.mubr.f32.gmra.mrb[0].mxu0 %v1355
      %v1482 = vpop.f32.mrb[0].mxu0
      %v1483 = vadd.f32 0.0, %v1482
      %v1484 = vpop.f32.mrb[0].mxu0
      %1485 = vmatprep.mubr.f32.mxu0 0.0
      %1486 = vmatmul.mubr.f32.gmra.mrb[0].mxu0 %v1356
      %v1487 = vpop.f32.mrb[0].mxu0
      %v1488 = vadd.f32 0.0, %v1487
      %v1489 = vpop.f32.mrb[0].mxu0
      %1490 = vmatprep.mubr.f32.mxu0 0.0
      %1491 = vmatmul.mubr.f32.gmra.mrb[0].mxu0 %v1357
      %v1492 = vpop.f32.mrb[0].mxu0
      %v1493 = vadd.f32 0.0, %v1492
      %v1494 = vpop.f32.mrb[0].mxu0
      %1495 = vmatprep.mubr.f32.mxu0 0.0
      %1496 = vmatmul.mubr.f32.gmra.mrb[0].mxu0 %v1358
      %v1497 = vpop.f32.mrb[0].mxu0
      %v1498 = vadd.f32 0.0, %v1497
      %v1499 = vpop.f32.mrb[0].mxu0
      %1500 = vmatprep.mubr.f32.mxu0 0.0
      %1501 = vmatmul.mubr.f32.gmra.mrb[0].mxu0 %v1359
      %v1502 = vpop.f32.mrb[0].mxu0
      %v1503 = vadd.f32 0.0, %v1502
      %v1504 = vpop.f32.mrb[0].mxu0
      %1505 = vmatprep.mubr.f32.mxu0 0.0
      %1506 = vmatmul.mubr.f32.gmra.mrb[0].mxu0 %v1360
      %v1507 = vpop.f32.mrb[0].mxu0
      %v1508 = vadd.f32 0.0, %v1507
      %v1509 = vpop.f32.mrb[0].mxu0
      %1510 = vmatprep.mubr.f32.mxu0 0.0
      %1511 = vmatmul.mubr.f32.gmra.mrb[0].mxu0 %v1361
      %v1512 = vpop.f32.mrb[0].mxu0
      %v1513 = vadd.f32 0.0, %v1512
      %v1514 = vpop.f32.mrb[0].mxu0
      %1515 = vmatprep.mubr.f32.mxu0 0.0
      %1516 = vmatmul.mubr.f32.gmra.mrb[0].mxu0 %v1362
      %v1517 = vpop.f32.mrb[0].mxu0
      %v1518 = vadd.f32 0.0, %v1517
      %v1519 = vpop.f32.mrb[0].mxu0
      %1520 = vmatprep.mubr.f32.mxu0 0.0
      %1521 = vmatmul.mubr.f32.gmra.mrb[0].mxu0 %v1363
      %v1522 = vpop.f32.mrb[0].mxu0
      %v1523 = vadd.f32 0.0, %v1522
      %v1524 = vpop.f32.mrb[0].mxu0
      %1525 = vmatprep.mubr.f32.mxu0 0.0
      %1526 = vmatmul.mubr.f32.gmra.mrb[0].mxu0 %v1364
      %v1527 = vpop.f32.mrb[0].mxu0
      %v1528 = vadd.f32 0.0, %v1527
      %v1529 = vpop.f32.mrb[0].mxu0
      %1530 = vmatprep.mubr.f32.mxu0 0.0
      %1531 = vmatmul.mubr.f32.gmra.mrb[0].mxu0 %v1365
      %v1532 = vpop.f32.mrb[0].mxu0
      %v1533 = vadd.f32 0.0, %v1532
      %v1534 = vpop.f32.mrb[0].mxu0
      %1535 = vmatprep.mubr.f32.mxu0 0.0
      %1536 = vmatmul.mubr.f32.gmra.mrb[0].mxu0 %v1366
      %v1537 = vpop.f32.mrb[0].mxu0
      %v1538 = vadd.f32 0.0, %v1537
      %v1539 = vpop.f32.mrb[0].mxu0
      %1540 = vmatprep.mubr.f32.mxu0 0.0
      %1541 = vmatmul.mubr.f32.gmra.mrb[0].mxu0 %v1367
      %v1542 = vpop.f32.mrb[0].mxu0
      %v1543 = vadd.f32 0.0, %v1542
      %v1544 = vpop.f32.mrb[0].mxu0
      %1545 = vdwg.mxu0
      %v1546 = vadd.f32 %v1368, %v1468
      %v1547 = vadd.f32 %v1369, %v1473
      %v1548 = vadd.f32 %v1370, %v1478
      %v1549 = vadd.f32 %v1371, %v1483
      %v1550 = vadd.f32 %v1372, %v1488
      %v1551 = vadd.f32 %v1373, %v1493
      %v1552 = vadd.f32 %v1374, %v1498
      %v1553 = vadd.f32 %v1375, %v1503
      %v1554 = vadd.f32 %v1376, %v1508
      %v1555 = vadd.f32 %v1377, %v1513
      %v1556 = vadd.f32 %v1378, %v1518
      %v1557 = vadd.f32 %v1379, %v1523
      %v1558 = vadd.f32 %v1380, %v1528
      %v1559 = vadd.f32 %v1381, %v1533
      %v1560 = vadd.f32 %v1382, %v1538
      %v1561 = vadd.f32 %v1383, %v1543
      %1562 = vst [vmem:[#allocation2] sm:$0xff] %v1546
      %1563 = vst [vmem:[#allocation2 + $0x8] sm:$0xff] %v1547
      %1564 = vst [vmem:[#allocation2 + $0x10] sm:$0xff] %v1548
      %1565 = vst [vmem:[#allocation2 + $0x18] sm:$0xff] %v1549
      %1566 = vst [vmem:[#allocation2 + $0x20] sm:$0xff] %v1550
      %1567 = vst [vmem:[#allocation2 + $0x28] sm:$0xff] %v1551
      %1568 = vst [vmem:[#allocation2 + $0x30] sm:$0xff] %v1552
      %1569 = vst [vmem:[#allocation2 + $0x38] sm:$0xff] %v1553
      %1570 = vst [vmem:[#allocation2 + $0x40] sm:$0xff] %v1554
      %1571 = vst [vmem:[#allocation2 + $0x48] sm:$0xff] %v1555
      %1572 = vst [vmem:[#allocation2 + $0x50] sm:$0xff] %v1556
      %1573 = vst [vmem:[#allocation2 + $0x58] sm:$0xff] %v1557
      %1574 = vst [vmem:[#allocation2 + $0x60] sm:$0xff] %v1558
      %1575 = vst [vmem:[#allocation2 + $0x68] sm:$0xff] %v1559
      %1576 = vst [vmem:[#allocation2 + $0x70] sm:$0xff] %v1560
      %1577 = vst [vmem:[#allocation2 + $0x78] sm:$0xff] %v1561
      %s1578 = sadd.s32 %s194, 2
      %s1579 = smul.u32 %s1578, 24
      %s1580 = scalar_lea.vmem %s183, %s1579
      %v1581 = vld [vmem:[%s1580] sm:$0xff]
      %v1582 = vld [vmem:[%s1580 + $0x8] sm:$0xff]
      %v1583 = vld [vmem:[%s1580 + $0x18] sm:$0xff]
      %v1584 = vld [vmem:[%s1580 + $0x20] sm:$0xff]
      %v1585 = vld [vmem:[%s1580 + $0x30] sm:$0xff]
      %v1586 = vld [vmem:[%s1580 + $0x38] sm:$0xff]
      %v1587 = vld [vmem:[%s1580 + $0x48] sm:$0xff]
      %v1588 = vld [vmem:[%s1580 + $0x50] sm:$0xff]
      %v1589 = vld [vmem:[%s1580 + $0x60] sm:$0xff]
      %v1590 = vld [vmem:[%s1580 + $0x68] sm:$0xff]
      %v1591 = vld [vmem:[%s1580 + $0x78] sm:$0xff]
      %v1592 = vld [vmem:[%s1580 + $0x80] sm:$0xff]
      %v1593 = vld [vmem:[%s1580 + $0x90] sm:$0xff]
      %v1594 = vld [vmem:[%s1580 + $0x98] sm:$0xff]
      %v1595 = vld [vmem:[%s1580 + $0xa8] sm:$0xff]
      %v1596 = vld [vmem:[%s1580 + $0xb0] sm:$0xff]
      %v1597 = vld [vmem:[#allocation2] sm:$0xff]
      %v1598 = vld [vmem:[#allocation2 + $0x8] sm:$0xff]
      %v1599 = vld [vmem:[#allocation2 + $0x10] sm:$0xff]
      %v1600 = vld [vmem:[#allocation2 + $0x18] sm:$0xff]
      %v1601 = vld [vmem:[#allocation2 + $0x20] sm:$0xff]
      %v1602 = vld [vmem:[#allocation2 + $0x28] sm:$0xff]
      %v1603 = vld [vmem:[#allocation2 + $0x30] sm:$0xff]
      %v1604 = vld [vmem:[#allocation2 + $0x38] sm:$0xff]
      %v1605 = vld [vmem:[#allocation2 + $0x40] sm:$0xff]
      %v1606 = vld [vmem:[#allocation2 + $0x48] sm:$0xff]
      %v1607 = vld [vmem:[#allocation2 + $0x50] sm:$0xff]
      %v1608 = vld [vmem:[#allocation2 + $0x58] sm:$0xff]
      %v1609 = vld [vmem:[#allocation2 + $0x60] sm:$0xff]
      %v1610 = vld [vmem:[#allocation2 + $0x68] sm:$0xff]
      %v1611 = vld [vmem:[#allocation2 + $0x70] sm:$0xff]
      %v1612 = vld [vmem:[#allocation2 + $0x78] sm:$0xff]
      %s1613 = scalar_lea.vmem %s1, 768
      %v1614 = vld [vmem:[%s1613] sm:$0xff]
      %v1615 = vld [vmem:[%s1613 + $0x8] sm:$0xff]
      %v1616 = vld [vmem:[%s1613 + $0x10] sm:$0xff]
      %v1617 = vld [vmem:[%s1613 + $0x18] sm:$0xff]
      %v1618 = vld [vmem:[%s1613 + $0x20] sm:$0xff]
      %v1619 = vld [vmem:[%s1613 + $0x28] sm:$0xff]
      %v1620 = vld [vmem:[%s1613 + $0x30] sm:$0xff]
      %v1621 = vld [vmem:[%s1613 + $0x38] sm:$0xff]
      %v1622 = vld [vmem:[%s1613 + $0x40] sm:$0xff]
      %v1623 = vld [vmem:[%s1613 + $0x48] sm:$0xff]
      %v1624 = vld [vmem:[%s1613 + $0x50] sm:$0xff]
      %v1625 = vld [vmem:[%s1613 + $0x58] sm:$0xff]
      %v1626 = vld [vmem:[%s1613 + $0x60] sm:$0xff]
      %v1627 = vld [vmem:[%s1613 + $0x68] sm:$0xff]
      %v1628 = vld [vmem:[%s1613 + $0x70] sm:$0xff]
      %v1629 = vld [vmem:[%s1613 + $0x78] sm:$0xff]
      %1630 = vmatprep.subr.mxu0 0.0
      %1631 = vmatpush1.msra.mxu0 %v1614
      %1632 = vmatprep.subr.mxu0 0.0
      %1633 = vmatpush1.msra.mxu0 %v1615
      %1634 = vmatprep.subr.mxu0 0.0
      %1635 = vmatpush1.msra.mxu0 %v1616
      %1636 = vmatprep.subr.mxu0 0.0
      %1637 = vmatpush1.msra.mxu0 %v1617
      %1638 = vmatprep.subr.mxu0 0.0
      %1639 = vmatpush1.msra.mxu0 %v1618
      %1640 = vmatprep.subr.mxu0 0.0
      %1641 = vmatpush1.msra.mxu0 %v1619
      %1642 = vmatprep.subr.mxu0 0.0
      %1643 = vmatpush1.msra.mxu0 %v1620
      %1644 = vmatprep.subr.mxu0 0.0
      %1645 = vmatpush1.msra.mxu0 %v1621
      %1646 = vmatprep.subr.mxu0 0.0
      %1647 = vmatpush1.msra.mxu0 %v1622
      %1648 = vmatprep.subr.mxu0 0.0
      %1649 = vmatpush1.msra.mxu0 %v1623
      %1650 = vmatprep.subr.mxu0 0.0
      %1651 = vmatpush1.msra.mxu0 %v1624
      %1652 = vmatprep.subr.mxu0 0.0
      %1653 = vmatpush1.msra.mxu0 %v1625
      %1654 = vmatprep.subr.mxu0 0.0
      %1655 = vmatpush1.msra.mxu0 %v1626
      %1656 = vmatprep.subr.mxu0 0.0
      %1657 = vmatpush1.msra.mxu0 %v1627
      %1658 = vmatprep.subr.mxu0 0.0
      %1659 = vmatpush1.msra.mxu0 %v1628
      %1660 = vmatprep.subr.mxu0 0.0
      %1661 = vmatpush1.msra.mxu0 %v1629
      %1662 = vmatprep.subr.mxu0 0.0
      %1663 = vmatpush1.msra.mxu0 0.0
      %1664 = vmatprep.subr.mxu0 0.0
      %1665 = vmatpush1.msra.mxu0 0.0
      %1666 = vmatprep.subr.mxu0 0.0
      %1667 = vmatpush1.msra.mxu0 0.0
      %1668 = vmatprep.subr.mxu0 0.0
      %1669 = vmatpush1.msra.mxu0 0.0
      %1670 = vmatprep.subr.mxu0 0.0
      %1671 = vmatpush1.msra.mxu0 0.0
      %1672 = vmatprep.subr.mxu0 0.0
      %1673 = vmatpush1.msra.mxu0 0.0
      %1674 = vmatprep.subr.mxu0 0.0
      %1675 = vmatpush1.msra.mxu0 0.0
      %1676 = vmatprep.subr.mxu0 0.0
      %1677 = vmatpush1.msra.mxu0 0.0
      %1678 = vmatprep.subr.mxu0 0.0
      %1679 = vmatpush1.msra.mxu0 0.0
      %1680 = vmatprep.subr.mxu0 0.0
      %1681 = vmatpush1.msra.mxu0 0.0
      %1682 = vmatprep.subr.mxu0 0.0
      %1683 = vmatpush1.msra.mxu0 0.0
      %1684 = vmatprep.subr.mxu0 0.0
      %1685 = vmatpush1.msra.mxu0 0.0
      %1686 = vmatprep.subr.mxu0 0.0
      %1687 = vmatpush1.msra.mxu0 0.0
      %1688 = vmatprep.subr.mxu0 0.0
      %1689 = vmatpush1.msra.mxu0 0.0
      %1690 = vmatprep.subr.mxu0 0.0
      %1691 = vmatpush1.msra.mxu0 0.0
      %1692 = vmatprep.subr.mxu0 0.0
      %1693 = vmatpush1.msra.mxu0 0.0
      %1694 = vmatprep.mubr.f32.mxu0 0.0
      %1695 = vmatmul.mubr.f32.gmra.mrb[0].mxu0 %v1581
      %v1696 = vpop.f32.mrb[0].mxu0
      %v1697 = vadd.f32 0.0, %v1696
      %v1698 = vpop.f32.mrb[0].mxu0
      %1699 = vmatprep.mubr.f32.mxu0 0.0
      %1700 = vmatmul.mubr.f32.gmra.mrb[0].mxu0 %v1582
      %v1701 = vpop.f32.mrb[0].mxu0
      %v1702 = vadd.f32 0.0, %v1701
      %v1703 = vpop.f32.mrb[0].mxu0
      %1704 = vmatprep.mubr.f32.mxu0 0.0
      %1705 = vmatmul.mubr.f32.gmra.mrb[0].mxu0 %v1583
      %v1706 = vpop.f32.mrb[0].mxu0
      %v1707 = vadd.f32 0.0, %v1706
      %v1708 = vpop.f32.mrb[0].mxu0
      %1709 = vmatprep.mubr.f32.mxu0 0.0
      %1710 = vmatmul.mubr.f32.gmra.mrb[0].mxu0 %v1584
      %v1711 = vpop.f32.mrb[0].mxu0
      %v1712 = vadd.f32 0.0, %v1711
      %v1713 = vpop.f32.mrb[0].mxu0
      %1714 = vmatprep.mubr.f32.mxu0 0.0
      %1715 = vmatmul.mubr.f32.gmra.mrb[0].mxu0 %v1585
      %v1716 = vpop.f32.mrb[0].mxu0
      %v1717 = vadd.f32 0.0, %v1716
      %v1718 = vpop.f32.mrb[0].mxu0
      %1719 = vmatprep.mubr.f32.mxu0 0.0
      %1720 = vmatmul.mubr.f32.gmra.mrb[0].mxu0 %v1586
      %v1721 = vpop.f32.mrb[0].mxu0
      %v1722 = vadd.f32 0.0, %v1721
      %v1723 = vpop.f32.mrb[0].mxu0
      %1724 = vmatprep.mubr.f32.mxu0 0.0
      %1725 = vmatmul.mubr.f32.gmra.mrb[0].mxu0 %v1587
      %v1726 = vpop.f32.mrb[0].mxu0
      %v1727 = vadd.f32 0.0, %v1726
      %v1728 = vpop.f32.mrb[0].mxu0
      %1729 = vmatprep.mubr.f32.mxu0 0.0
      %1730 = vmatmul.mubr.f32.gmra.mrb[0].mxu0 %v1588
      %v1731 = vpop.f32.mrb[0].mxu0
      %v1732 = vadd.f32 0.0, %v1731
      %v1733 = vpop.f32.mrb[0].mxu0
      %1734 = vmatprep.mubr.f32.mxu0 0.0
      %1735 = vmatmul.mubr.f32.gmra.mrb[0].mxu0 %v1589
      %v1736 = vpop.f32.mrb[0].mxu0
      %v1737 = vadd.f32 0.0, %v1736
      %v1738 = vpop.f32.mrb[0].mxu0
      %1739 = vmatprep.mubr.f32.mxu0 0.0
      %1740 = vmatmul.mubr.f32.gmra.mrb[0].mxu0 %v1590
      %v1741 = vpop.f32.mrb[0].mxu0
      %v1742 = vadd.f32 0.0, %v1741
      %v1743 = vpop.f32.mrb[0].mxu0
      %1744 = vmatprep.mubr.f32.mxu0 0.0
      %1745 = vmatmul.mubr.f32.gmra.mrb[0].mxu0 %v1591
      %v1746 = vpop.f32.mrb[0].mxu0
      %v1747 = vadd.f32 0.0, %v1746
      %v1748 = vpop.f32.mrb[0].mxu0
      %1749 = vmatprep.mubr.f32.mxu0 0.0
      %1750 = vmatmul.mubr.f32.gmra.mrb[0].mxu0 %v1592
      %v1751 = vpop.f32.mrb[0].mxu0
      %v1752 = vadd.f32 0.0, %v1751
      %v1753 = vpop.f32.mrb[0].mxu0
      %1754 = vmatprep.mubr.f32.mxu0 0.0
      %1755 = vmatmul.mubr.f32.gmra.mrb[0].mxu0 %v1593
      %v1756 = vpop.f32.mrb[0].mxu0
      %v1757 = vadd.f32 0.0, %v1756
      %v1758 = vpop.f32.mrb[0].mxu0
      %1759 = vmatprep.mubr.f32.mxu0 0.0
      %1760 = vmatmul.mubr.f32.gmra.mrb[0].mxu0 %v1594
      %v1761 = vpop.f32.mrb[0].mxu0
      %v1762 = vadd.f32 0.0, %v1761
      %v1763 = vpop.f32.mrb[0].mxu0
      %1764 = vmatprep.mubr.f32.mxu0 0.0
      %1765 = vmatmul.mubr.f32.gmra.mrb[0].mxu0 %v1595
      %v1766 = vpop.f32.mrb[0].mxu0
      %v1767 = vadd.f32 0.0, %v1766
      %v1768 = vpop.f32.mrb[0].mxu0
      %1769 = vmatprep.mubr.f32.mxu0 0.0
      %1770 = vmatmul.mubr.f32.gmra.mrb[0].mxu0 %v1596
      %v1771 = vpop.f32.mrb[0].mxu0
      %v1772 = vadd.f32 0.0, %v1771
      %v1773 = vpop.f32.mrb[0].mxu0
      %1774 = vdwg.mxu0
      %v1775 = vadd.f32 %v1597, %v1697
      %v1776 = vadd.f32 %v1598, %v1702
      %v1777 = vadd.f32 %v1599, %v1707
      %v1778 = vadd.f32 %v1600, %v1712
      %v1779 = vadd.f32 %v1601, %v1717
      %v1780 = vadd.f32 %v1602, %v1722
      %v1781 = vadd.f32 %v1603, %v1727
      %v1782 = vadd.f32 %v1604, %v1732
      %v1783 = vadd.f32 %v1605, %v1737
      %v1784 = vadd.f32 %v1606, %v1742
      %v1785 = vadd.f32 %v1607, %v1747
      %v1786 = vadd.f32 %v1608, %v1752
      %v1787 = vadd.f32 %v1609, %v1757
      %v1788 = vadd.f32 %v1610, %v1762
      %v1789 = vadd.f32 %v1611, %v1767
      %v1790 = vadd.f32 %v1612, %v1772
      %1791 = vst [vmem:[#allocation2] sm:$0xff] %v1775
      %1792 = vst [vmem:[#allocation2 + $0x8] sm:$0xff] %v1776
      %1793 = vst [vmem:[#allocation2 + $0x10] sm:$0xff] %v1777
      %1794 = vst [vmem:[#allocation2 + $0x18] sm:$0xff] %v1778
      %1795 = vst [vmem:[#allocation2 + $0x20] sm:$0xff] %v1779
      %1796 = vst [vmem:[#allocation2 + $0x28] sm:$0xff] %v1780
      %1797 = vst [vmem:[#allocation2 + $0x30] sm:$0xff] %v1781
      %1798 = vst [vmem:[#allocation2 + $0x38] sm:$0xff] %v1782
      %1799 = vst [vmem:[#allocation2 + $0x40] sm:$0xff] %v1783
      %1800 = vst [vmem:[#allocation2 + $0x48] sm:$0xff] %v1784
      %1801 = vst [vmem:[#allocation2 + $0x50] sm:$0xff] %v1785
      %1802 = vst [vmem:[#allocation2 + $0x58] sm:$0xff] %v1786
      %1803 = vst [vmem:[#allocation2 + $0x60] sm:$0xff] %v1787
      %1804 = vst [vmem:[#allocation2 + $0x68] sm:$0xff] %v1788
      %1805 = vst [vmem:[#allocation2 + $0x70] sm:$0xff] %v1789
      %1806 = vst [vmem:[#allocation2 + $0x78] sm:$0xff] %v1790
      %v1807 = vld [vmem:[%s1580 + $0x1] sm:$0xff]
      %v1808 = vld [vmem:[%s1580 + $0x9] sm:$0xff]
      %v1809 = vld [vmem:[%s1580 + $0x19] sm:$0xff]
      %v1810 = vld [vmem:[%s1580 + $0x21] sm:$0xff]
      %v1811 = vld [vmem:[%s1580 + $0x31] sm:$0xff]
      %v1812 = vld [vmem:[%s1580 + $0x39] sm:$0xff]
      %v1813 = vld [vmem:[%s1580 + $0x49] sm:$0xff]
      %v1814 = vld [vmem:[%s1580 + $0x51] sm:$0xff]
      %v1815 = vld [vmem:[%s1580 + $0x61] sm:$0xff]
      %v1816 = vld [vmem:[%s1580 + $0x69] sm:$0xff]
      %v1817 = vld [vmem:[%s1580 + $0x79] sm:$0xff]
      %v1818 = vld [vmem:[%s1580 + $0x81] sm:$0xff]
      %v1819 = vld [vmem:[%s1580 + $0x91] sm:$0xff]
      %v1820 = vld [vmem:[%s1580 + $0x99] sm:$0xff]
      %v1821 = vld [vmem:[%s1580 + $0xa9] sm:$0xff]
      %v1822 = vld [vmem:[%s1580 + $0xb1] sm:$0xff]
      %v1823 = vld [vmem:[#allocation2] sm:$0xff]
      %v1824 = vld [vmem:[#allocation2 + $0x8] sm:$0xff]
      %v1825 = vld [vmem:[#allocation2 + $0x10] sm:$0xff]
      %v1826 = vld [vmem:[#allocation2 + $0x18] sm:$0xff]
      %v1827 = vld [vmem:[#allocation2 + $0x20] sm:$0xff]
      %v1828 = vld [vmem:[#allocation2 + $0x28] sm:$0xff]
      %v1829 = vld [vmem:[#allocation2 + $0x30] sm:$0xff]
      %v1830 = vld [vmem:[#allocation2 + $0x38] sm:$0xff]
      %v1831 = vld [vmem:[#allocation2 + $0x40] sm:$0xff]
      %v1832 = vld [vmem:[#allocation2 + $0x48] sm:$0xff]
      %v1833 = vld [vmem:[#allocation2 + $0x50] sm:$0xff]
      %v1834 = vld [vmem:[#allocation2 + $0x58] sm:$0xff]
      %v1835 = vld [vmem:[#allocation2 + $0x60] sm:$0xff]
      %v1836 = vld [vmem:[#allocation2 + $0x68] sm:$0xff]
      %v1837 = vld [vmem:[#allocation2 + $0x70] sm:$0xff]
      %v1838 = vld [vmem:[#allocation2 + $0x78] sm:$0xff]
      %s1839 = scalar_lea.vmem %s1, 896
      %v1840 = vld [vmem:[%s1839] sm:$0xff]
      %v1841 = vld [vmem:[%s1839 + $0x8] sm:$0xff]
      %v1842 = vld [vmem:[%s1839 + $0x10] sm:$0xff]
      %v1843 = vld [vmem:[%s1839 + $0x18] sm:$0xff]
      %v1844 = vld [vmem:[%s1839 + $0x20] sm:$0xff]
      %v1845 = vld [vmem:[%s1839 + $0x28] sm:$0xff]
      %v1846 = vld [vmem:[%s1839 + $0x30] sm:$0xff]
      %v1847 = vld [vmem:[%s1839 + $0x38] sm:$0xff]
      %v1848 = vld [vmem:[%s1839 + $0x40] sm:$0xff]
      %v1849 = vld [vmem:[%s1839 + $0x48] sm:$0xff]
      %v1850 = vld [vmem:[%s1839 + $0x50] sm:$0xff]
      %v1851 = vld [vmem:[%s1839 + $0x58] sm:$0xff]
      %v1852 = vld [vmem:[%s1839 + $0x60] sm:$0xff]
      %v1853 = vld [vmem:[%s1839 + $0x68] sm:$0xff]
      %v1854 = vld [vmem:[%s1839 + $0x70] sm:$0xff]
      %v1855 = vld [vmem:[%s1839 + $0x78] sm:$0xff]
      %1856 = vmatprep.subr.mxu0 0.0
      %1857 = vmatpush1.msra.mxu0 %v1840
      %1858 = vmatprep.subr.mxu0 0.0
      %1859 = vmatpush1.msra.mxu0 %v1841
      %1860 = vmatprep.subr.mxu0 0.0
      %1861 = vmatpush1.msra.mxu0 %v1842
      %1862 = vmatprep.subr.mxu0 0.0
      %1863 = vmatpush1.msra.mxu0 %v1843
      %1864 = vmatprep.subr.mxu0 0.0
      %1865 = vmatpush1.msra.mxu0 %v1844
      %1866 = vmatprep.subr.mxu0 0.0
      %1867 = vmatpush1.msra.mxu0 %v1845
      %1868 = vmatprep.subr.mxu0 0.0
      %1869 = vmatpush1.msra.mxu0 %v1846
      %1870 = vmatprep.subr.mxu0 0.0
      %1871 = vmatpush1.msra.mxu0 %v1847
      %1872 = vmatprep.subr.mxu0 0.0
      %1873 = vmatpush1.msra.mxu0 %v1848
      %1874 = vmatprep.subr.mxu0 0.0
      %1875 = vmatpush1.msra.mxu0 %v1849
      %1876 = vmatprep.subr.mxu0 0.0
      %1877 = vmatpush1.msra.mxu0 %v1850
      %1878 = vmatprep.subr.mxu0 0.0
      %1879 = vmatpush1.msra.mxu0 %v1851
      %1880 = vmatprep.subr.mxu0 0.0
      %1881 = vmatpush1.msra.mxu0 %v1852
      %1882 = vmatprep.subr.mxu0 0.0
      %1883 = vmatpush1.msra.mxu0 %v1853
      %1884 = vmatprep.subr.mxu0 0.0
      %1885 = vmatpush1.msra.mxu0 %v1854
      %1886 = vmatprep.subr.mxu0 0.0
      %1887 = vmatpush1.msra.mxu0 %v1855
      %1888 = vmatprep.subr.mxu0 0.0
      %1889 = vmatpush1.msra.mxu0 0.0
      %1890 = vmatprep.subr.mxu0 0.0
      %1891 = vmatpush1.msra.mxu0 0.0
      %1892 = vmatprep.subr.mxu0 0.0
      %1893 = vmatpush1.msra.mxu0 0.0
      %1894 = vmatprep.subr.mxu0 0.0
      %1895 = vmatpush1.msra.mxu0 0.0
      %1896 = vmatprep.subr.mxu0 0.0
      %1897 = vmatpush1.msra.mxu0 0.0
      %1898 = vmatprep.subr.mxu0 0.0
      %1899 = vmatpush1.msra.mxu0 0.0
      %1900 = vmatprep.subr.mxu0 0.0
      %1901 = vmatpush1.msra.mxu0 0.0
      %1902 = vmatprep.subr.mxu0 0.0
      %1903 = vmatpush1.msra.mxu0 0.0
      %1904 = vmatprep.subr.mxu0 0.0
      %1905 = vmatpush1.msra.mxu0 0.0
      %1906 = vmatprep.subr.mxu0 0.0
      %1907 = vmatpush1.msra.mxu0 0.0
      %1908 = vmatprep.subr.mxu0 0.0
      %1909 = vmatpush1.msra.mxu0 0.0
      %1910 = vmatprep.subr.mxu0 0.0
      %1911 = vmatpush1.msra.mxu0 0.0
      %1912 = vmatprep.subr.mxu0 0.0
      %1913 = vmatpush1.msra.mxu0 0.0
      %1914 = vmatprep.subr.mxu0 0.0
      %1915 = vmatpush1.msra.mxu0 0.0
      %1916 = vmatprep.subr.mxu0 0.0
      %1917 = vmatpush1.msra.mxu0 0.0
      %1918 = vmatprep.subr.mxu0 0.0
      %1919 = vmatpush1.msra.mxu0 0.0
      %1920 = vmatprep.mubr.f32.mxu0 0.0
      %1921 = vmatmul.mubr.f32.gmra.mrb[0].mxu0 %v1807
      %v1922 = vpop.f32.mrb[0].mxu0
      %v1923 = vadd.f32 0.0, %v1922
      %v1924 = vpop.f32.mrb[0].mxu0
      %1925 = vmatprep.mubr.f32.mxu0 0.0
      %1926 = vmatmul.mubr.f32.gmra.mrb[0].mxu0 %v1808
      %v1927 = vpop.f32.mrb[0].mxu0
      %v1928 = vadd.f32 0.0, %v1927
      %v1929 = vpop.f32.mrb[0].mxu0
      %1930 = vmatprep.mubr.f32.mxu0 0.0
      %1931 = vmatmul.mubr.f32.gmra.mrb[0].mxu0 %v1809
      %v1932 = vpop.f32.mrb[0].mxu0
      %v1933 = vadd.f32 0.0, %v1932
      %v1934 = vpop.f32.mrb[0].mxu0
      %1935 = vmatprep.mubr.f32.mxu0 0.0
      %1936 = vmatmul.mubr.f32.gmra.mrb[0].mxu0 %v1810
      %v1937 = vpop.f32.mrb[0].mxu0
      %v1938 = vadd.f32 0.0, %v1937
      %v1939 = vpop.f32.mrb[0].mxu0
      %1940 = vmatprep.mubr.f32.mxu0 0.0
      %1941 = vmatmul.mubr.f32.gmra.mrb[0].mxu0 %v1811
      %v1942 = vpop.f32.mrb[0].mxu0
      %v1943 = vadd.f32 0.0, %v1942
      %v1944 = vpop.f32.mrb[0].mxu0
      %1945 = vmatprep.mubr.f32.mxu0 0.0
      %1946 = vmatmul.mubr.f32.gmra.mrb[0].mxu0 %v1812
      %v1947 = vpop.f32.mrb[0].mxu0
      %v1948 = vadd.f32 0.0, %v1947
      %v1949 = vpop.f32.mrb[0].mxu0
      %1950 = vmatprep.mubr.f32.mxu0 0.0
      %1951 = vmatmul.mubr.f32.gmra.mrb[0].mxu0 %v1813
      %v1952 = vpop.f32.mrb[0].mxu0
      %v1953 = vadd.f32 0.0, %v1952
      %v1954 = vpop.f32.mrb[0].mxu0
      %1955 = vmatprep.mubr.f32.mxu0 0.0
      %1956 = vmatmul.mubr.f32.gmra.mrb[0].mxu0 %v1814
      %v1957 = vpop.f32.mrb[0].mxu0
      %v1958 = vadd.f32 0.0, %v1957
      %v1959 = vpop.f32.mrb[0].mxu0
      %1960 = vmatprep.mubr.f32.mxu0 0.0
      %1961 = vmatmul.mubr.f32.gmra.mrb[0].mxu0 %v1815
      %v1962 = vpop.f32.mrb[0].mxu0
      %v1963 = vadd.f32 0.0, %v1962
      %v1964 = vpop.f32.mrb[0].mxu0
      %1965 = vmatprep.mubr.f32.mxu0 0.0
      %1966 = vmatmul.mubr.f32.gmra.mrb[0].mxu0 %v1816
      %v1967 = vpop.f32.mrb[0].mxu0
      %v1968 = vadd.f32 0.0, %v1967
      %v1969 = vpop.f32.mrb[0].mxu0
      %1970 = vmatprep.mubr.f32.mxu0 0.0
      %1971 = vmatmul.mubr.f32.gmra.mrb[0].mxu0 %v1817
      %v1972 = vpop.f32.mrb[0].mxu0
      %v1973 = vadd.f32 0.0, %v1972
      %v1974 = vpop.f32.mrb[0].mxu0
      %1975 = vmatprep.mubr.f32.mxu0 0.0
      %1976 = vmatmul.mubr.f32.gmra.mrb[0].mxu0 %v1818
      %v1977 = vpop.f32.mrb[0].mxu0
      %v1978 = vadd.f32 0.0, %v1977
      %v1979 = vpop.f32.mrb[0].mxu0
      %1980 = vmatprep.mubr.f32.mxu0 0.0
      %1981 = vmatmul.mubr.f32.gmra.mrb[0].mxu0 %v1819
      %v1982 = vpop.f32.mrb[0].mxu0
      %v1983 = vadd.f32 0.0, %v1982
      %v1984 = vpop.f32.mrb[0].mxu0
      %1985 = vmatprep.mubr.f32.mxu0 0.0
      %1986 = vmatmul.mubr.f32.gmra.mrb[0].mxu0 %v1820
      %v1987 = vpop.f32.mrb[0].mxu0
      %v1988 = vadd.f32 0.0, %v1987
      %v1989 = vpop.f32.mrb[0].mxu0
      %1990 = vmatprep.mubr.f32.mxu0 0.0
      %1991 = vmatmul.mubr.f32.gmra.mrb[0].mxu0 %v1821
      %v1992 = vpop.f32.mrb[0].mxu0
      %v1993 = vadd.f32 0.0, %v1992
      %v1994 = vpop.f32.mrb[0].mxu0
      %1995 = vmatprep.mubr.f32.mxu0 0.0
      %1996 = vmatmul.mubr.f32.gmra.mrb[0].mxu0 %v1822
      %v1997 = vpop.f32.mrb[0].mxu0
      %v1998 = vadd.f32 0.0, %v1997
      %v1999 = vpop.f32.mrb[0].mxu0
      %2000 = vdwg.mxu0
      %v2001 = vadd.f32 %v1823, %v1923
      %v2002 = vadd.f32 %v1824, %v1928
      %v2003 = vadd.f32 %v1825, %v1933
      %v2004 = vadd.f32 %v1826, %v1938
      %v2005 = vadd.f32 %v1827, %v1943
      %v2006 = vadd.f32 %v1828, %v1948
      %v2007 = vadd.f32 %v1829, %v1953
      %v2008 = vadd.f32 %v1830, %v1958
      %v2009 = vadd.f32 %v1831, %v1963
      %v2010 = vadd.f32 %v1832, %v1968
      %v2011 = vadd.f32 %v1833, %v1973
      %v2012 = vadd.f32 %v1834, %v1978
      %v2013 = vadd.f32 %v1835, %v1983
      %v2014 = vadd.f32 %v1836, %v1988
      %v2015 = vadd.f32 %v1837, %v1993
      %v2016 = vadd.f32 %v1838, %v1998
      %2017 = vst [vmem:[#allocation2] sm:$0xff] %v2001
      %2018 = vst [vmem:[#allocation2 + $0x8] sm:$0xff] %v2002
      %2019 = vst [vmem:[#allocation2 + $0x10] sm:$0xff] %v2003
      %2020 = vst [vmem:[#allocation2 + $0x18] sm:$0xff] %v2004
      %2021 = vst [vmem:[#allocation2 + $0x20] sm:$0xff] %v2005
      %2022 = vst [vmem:[#allocation2 + $0x28] sm:$0xff] %v2006
      %2023 = vst [vmem:[#allocation2 + $0x30] sm:$0xff] %v2007
      %2024 = vst [vmem:[#allocation2 + $0x38] sm:$0xff] %v2008
      %2025 = vst [vmem:[#allocation2 + $0x40] sm:$0xff] %v2009
      %2026 = vst [vmem:[#allocation2 + $0x48] sm:$0xff] %v2010
      %2027 = vst [vmem:[#allocation2 + $0x50] sm:$0xff] %v2011
      %2028 = vst [vmem:[#allocation2 + $0x58] sm:$0xff] %v2012
      %2029 = vst [vmem:[#allocation2 + $0x60] sm:$0xff] %v2013
      %2030 = vst [vmem:[#allocation2 + $0x68] sm:$0xff] %v2014
      %2031 = vst [vmem:[#allocation2 + $0x70] sm:$0xff] %v2015
      %2032 = vst [vmem:[#allocation2 + $0x78] sm:$0xff] %v2016
      %v2033 = vld [vmem:[%s1580 + $0x2] sm:$0xff]
      %v2034 = vld [vmem:[%s1580 + $0xa] sm:$0xff]
      %v2035 = vld [vmem:[%s1580 + $0x1a] sm:$0xff]
      %v2036 = vld [vmem:[%s1580 + $0x22] sm:$0xff]
      %v2037 = vld [vmem:[%s1580 + $0x32] sm:$0xff]
      %v2038 = vld [vmem:[%s1580 + $0x3a] sm:$0xff]
      %v2039 = vld [vmem:[%s1580 + $0x4a] sm:$0xff]
      %v2040 = vld [vmem:[%s1580 + $0x52] sm:$0xff]
      %v2041 = vld [vmem:[%s1580 + $0x62] sm:$0xff]
      %v2042 = vld [vmem:[%s1580 + $0x6a] sm:$0xff]
      %v2043 = vld [vmem:[%s1580 + $0x7a] sm:$0xff]
      %v2044 = vld [vmem:[%s1580 + $0x82] sm:$0xff]
      %v2045 = vld [vmem:[%s1580 + $0x92] sm:$0xff]
      %v2046 = vld [vmem:[%s1580 + $0x9a] sm:$0xff]
      %v2047 = vld [vmem:[%s1580 + $0xaa] sm:$0xff]
      %v2048 = vld [vmem:[%s1580 + $0xb2] sm:$0xff]
      %v2049 = vld [vmem:[#allocation2] sm:$0xff]
      %v2050 = vld [vmem:[#allocation2 + $0x8] sm:$0xff]
      %v2051 = vld [vmem:[#allocation2 + $0x10] sm:$0xff]
      %v2052 = vld [vmem:[#allocation2 + $0x18] sm:$0xff]
      %v2053 = vld [vmem:[#allocation2 + $0x20] sm:$0xff]
      %v2054 = vld [vmem:[#allocation2 + $0x28] sm:$0xff]
      %v2055 = vld [vmem:[#allocation2 + $0x30] sm:$0xff]
      %v2056 = vld [vmem:[#allocation2 + $0x38] sm:$0xff]
      %v2057 = vld [vmem:[#allocation2 + $0x40] sm:$0xff]
      %v2058 = vld [vmem:[#allocation2 + $0x48] sm:$0xff]
      %v2059 = vld [vmem:[#allocation2 + $0x50] sm:$0xff]
      %v2060 = vld [vmem:[#allocation2 + $0x58] sm:$0xff]
      %v2061 = vld [vmem:[#allocation2 + $0x60] sm:$0xff]
      %v2062 = vld [vmem:[#allocation2 + $0x68] sm:$0xff]
      %v2063 = vld [vmem:[#allocation2 + $0x70] sm:$0xff]
      %v2064 = vld [vmem:[#allocation2 + $0x78] sm:$0xff]
      %s2065 = scalar_lea.vmem %s1, 1024
      %v2066 = vld [vmem:[%s2065] sm:$0xff]
      %v2067 = vld [vmem:[%s2065 + $0x8] sm:$0xff]
      %v2068 = vld [vmem:[%s2065 + $0x10] sm:$0xff]
      %v2069 = vld [vmem:[%s2065 + $0x18] sm:$0xff]
      %v2070 = vld [vmem:[%s2065 + $0x20] sm:$0xff]
      %v2071 = vld [vmem:[%s2065 + $0x28] sm:$0xff]
      %v2072 = vld [vmem:[%s2065 + $0x30] sm:$0xff]
      %v2073 = vld [vmem:[%s2065 + $0x38] sm:$0xff]
      %v2074 = vld [vmem:[%s2065 + $0x40] sm:$0xff]
      %v2075 = vld [vmem:[%s2065 + $0x48] sm:$0xff]
      %v2076 = vld [vmem:[%s2065 + $0x50] sm:$0xff]
      %v2077 = vld [vmem:[%s2065 + $0x58] sm:$0xff]
      %v2078 = vld [vmem:[%s2065 + $0x60] sm:$0xff]
      %v2079 = vld [vmem:[%s2065 + $0x68] sm:$0xff]
      %v2080 = vld [vmem:[%s2065 + $0x70] sm:$0xff]
      %v2081 = vld [vmem:[%s2065 + $0x78] sm:$0xff]
      %2082 = vmatprep.subr.mxu0 0.0
      %2083 = vmatpush1.msra.mxu0 %v2066
      %2084 = vmatprep.subr.mxu0 0.0
      %2085 = vmatpush1.msra.mxu0 %v2067
      %2086 = vmatprep.subr.mxu0 0.0
      %2087 = vmatpush1.msra.mxu0 %v2068
      %2088 = vmatprep.subr.mxu0 0.0
      %2089 = vmatpush1.msra.mxu0 %v2069
      %2090 = vmatprep.subr.mxu0 0.0
      %2091 = vmatpush1.msra.mxu0 %v2070
      %2092 = vmatprep.subr.mxu0 0.0
      %2093 = vmatpush1.msra.mxu0 %v2071
      %2094 = vmatprep.subr.mxu0 0.0
      %2095 = vmatpush1.msra.mxu0 %v2072
      %2096 = vmatprep.subr.mxu0 0.0
      %2097 = vmatpush1.msra.mxu0 %v2073
      %2098 = vmatprep.subr.mxu0 0.0
      %2099 = vmatpush1.msra.mxu0 %v2074
      %2100 = vmatprep.subr.mxu0 0.0
      %2101 = vmatpush1.msra.mxu0 %v2075
      %2102 = vmatprep.subr.mxu0 0.0
      %2103 = vmatpush1.msra.mxu0 %v2076
      %2104 = vmatprep.subr.mxu0 0.0
      %2105 = vmatpush1.msra.mxu0 %v2077
      %2106 = vmatprep.subr.mxu0 0.0
      %2107 = vmatpush1.msra.mxu0 %v2078
      %2108 = vmatprep.subr.mxu0 0.0
      %2109 = vmatpush1.msra.mxu0 %v2079
      %2110 = vmatprep.subr.mxu0 0.0
      %2111 = vmatpush1.msra.mxu0 %v2080
      %2112 = vmatprep.subr.mxu0 0.0
      %2113 = vmatpush1.msra.mxu0 %v2081
      %2114 = vmatprep.subr.mxu0 0.0
      %2115 = vmatpush1.msra.mxu0 0.0
      %2116 = vmatprep.subr.mxu0 0.0
      %2117 = vmatpush1.msra.mxu0 0.0
      %2118 = vmatprep.subr.mxu0 0.0
      %2119 = vmatpush1.msra.mxu0 0.0
      %2120 = vmatprep.subr.mxu0 0.0
      %2121 = vmatpush1.msra.mxu0 0.0
      %2122 = vmatprep.subr.mxu0 0.0
      %2123 = vmatpush1.msra.mxu0 0.0
      %2124 = vmatprep.subr.mxu0 0.0
      %2125 = vmatpush1.msra.mxu0 0.0
      %2126 = vmatprep.subr.mxu0 0.0
      %2127 = vmatpush1.msra.mxu0 0.0
      %2128 = vmatprep.subr.mxu0 0.0
      %2129 = vmatpush1.msra.mxu0 0.0
      %2130 = vmatprep.subr.mxu0 0.0
      %2131 = vmatpush1.msra.mxu0 0.0
      %2132 = vmatprep.subr.mxu0 0.0
      %2133 = vmatpush1.msra.mxu0 0.0
      %2134 = vmatprep.subr.mxu0 0.0
      %2135 = vmatpush1.msra.mxu0 0.0
      %2136 = vmatprep.subr.mxu0 0.0
      %2137 = vmatpush1.msra.mxu0 0.0
      %2138 = vmatprep.subr.mxu0 0.0
      %2139 = vmatpush1.msra.mxu0 0.0
      %2140 = vmatprep.subr.mxu0 0.0
      %2141 = vmatpush1.msra.mxu0 0.0
      %2142 = vmatprep.subr.mxu0 0.0
      %2143 = vmatpush1.msra.mxu0 0.0
      %2144 = vmatprep.subr.mxu0 0.0
      %2145 = vmatpush1.msra.mxu0 0.0
      %2146 = vmatprep.mubr.f32.mxu0 0.0
      %2147 = vmatmul.mubr.f32.gmra.mrb[0].mxu0 %v2033
      %v2148 = vpop.f32.mrb[0].mxu0
      %v2149 = vadd.f32 0.0, %v2148
      %v2150 = vpop.f32.mrb[0].mxu0
      %2151 = vmatprep.mubr.f32.mxu0 0.0
      %2152 = vmatmul.mubr.f32.gmra.mrb[0].mxu0 %v2034
      %v2153 = vpop.f32.mrb[0].mxu0
      %v2154 = vadd.f32 0.0, %v2153
      %v2155 = vpop.f32.mrb[0].mxu0
      %2156 = vmatprep.mubr.f32.mxu0 0.0
      %2157 = vmatmul.mubr.f32.gmra.mrb[0].mxu0 %v2035
      %v2158 = vpop.f32.mrb[0].mxu0
      %v2159 = vadd.f32 0.0, %v2158
      %v2160 = vpop.f32.mrb[0].mxu0
      %2161 = vmatprep.mubr.f32.mxu0 0.0
      %2162 = vmatmul.mubr.f32.gmra.mrb[0].mxu0 %v2036
      %v2163 = vpop.f32.mrb[0].mxu0
      %v2164 = vadd.f32 0.0, %v2163
      %v2165 = vpop.f32.mrb[0].mxu0
      %2166 = vmatprep.mubr.f32.mxu0 0.0
      %2167 = vmatmul.mubr.f32.gmra.mrb[0].mxu0 %v2037
      %v2168 = vpop.f32.mrb[0].mxu0
      %v2169 = vadd.f32 0.0, %v2168
      %v2170 = vpop.f32.mrb[0].mxu0
      %2171 = vmatprep.mubr.f32.mxu0 0.0
      %2172 = vmatmul.mubr.f32.gmra.mrb[0].mxu0 %v2038
      %v2173 = vpop.f32.mrb[0].mxu0
      %v2174 = vadd.f32 0.0, %v2173
      %v2175 = vpop.f32.mrb[0].mxu0
      %2176 = vmatprep.mubr.f32.mxu0 0.0
      %2177 = vmatmul.mubr.f32.gmra.mrb[0].mxu0 %v2039
      %v2178 = vpop.f32.mrb[0].mxu0
      %v2179 = vadd.f32 0.0, %v2178
      %v2180 = vpop.f32.mrb[0].mxu0
      %2181 = vmatprep.mubr.f32.mxu0 0.0
      %2182 = vmatmul.mubr.f32.gmra.mrb[0].mxu0 %v2040
      %v2183 = vpop.f32.mrb[0].mxu0
      %v2184 = vadd.f32 0.0, %v2183
      %v2185 = vpop.f32.mrb[0].mxu0
      %2186 = vmatprep.mubr.f32.mxu0 0.0
      %2187 = vmatmul.mubr.f32.gmra.mrb[0].mxu0 %v2041
      %v2188 = vpop.f32.mrb[0].mxu0
      %v2189 = vadd.f32 0.0, %v2188
      %v2190 = vpop.f32.mrb[0].mxu0
      %2191 = vmatprep.mubr.f32.mxu0 0.0
      %2192 = vmatmul.mubr.f32.gmra.mrb[0].mxu0 %v2042
      %v2193 = vpop.f32.mrb[0].mxu0
      %v2194 = vadd.f32 0.0, %v2193
      %v2195 = vpop.f32.mrb[0].mxu0
      %2196 = vmatprep.mubr.f32.mxu0 0.0
      %2197 = vmatmul.mubr.f32.gmra.mrb[0].mxu0 %v2043
      %v2198 = vpop.f32.mrb[0].mxu0
      %v2199 = vadd.f32 0.0, %v2198
      %v2200 = vpop.f32.mrb[0].mxu0
      %2201 = vmatprep.mubr.f32.mxu0 0.0
      %2202 = vmatmul.mubr.f32.gmra.mrb[0].mxu0 %v2044
      %v2203 = vpop.f32.mrb[0].mxu0
      %v2204 = vadd.f32 0.0, %v2203
      %v2205 = vpop.f32.mrb[0].mxu0
      %2206 = vmatprep.mubr.f32.mxu0 0.0
      %2207 = vmatmul.mubr.f32.gmra.mrb[0].mxu0 %v2045
      %v2208 = vpop.f32.mrb[0].mxu0
      %v2209 = vadd.f32 0.0, %v2208
      %v2210 = vpop.f32.mrb[0].mxu0
      %2211 = vmatprep.mubr.f32.mxu0 0.0
      %2212 = vmatmul.mubr.f32.gmra.mrb[0].mxu0 %v2046
      %v2213 = vpop.f32.mrb[0].mxu0
      %v2214 = vadd.f32 0.0, %v2213
      %v2215 = vpop.f32.mrb[0].mxu0
      %2216 = vmatprep.mubr.f32.mxu0 0.0
      %2217 = vmatmul.mubr.f32.gmra.mrb[0].mxu0 %v2047
      %v2218 = vpop.f32.mrb[0].mxu0
      %v2219 = vadd.f32 0.0, %v2218
      %v2220 = vpop.f32.mrb[0].mxu0
      %2221 = vmatprep.mubr.f32.mxu0 0.0
      %2222 = vmatmul.mubr.f32.gmra.mrb[0].mxu0 %v2048
      %v2223 = vpop.f32.mrb[0].mxu0
      %v2224 = vadd.f32 0.0, %v2223
      %v2225 = vpop.f32.mrb[0].mxu0
      %2226 = vdwg.mxu0
      %v2227 = vadd.f32 %v2049, %v2149
      %v2228 = vadd.f32 %v2050, %v2154
      %v2229 = vadd.f32 %v2051, %v2159
      %v2230 = vadd.f32 %v2052, %v2164
      %v2231 = vadd.f32 %v2053, %v2169
      %v2232 = vadd.f32 %v2054, %v2174
      %v2233 = vadd.f32 %v2055, %v2179
      %v2234 = vadd.f32 %v2056, %v2184
      %v2235 = vadd.f32 %v2057, %v2189
      %v2236 = vadd.f32 %v2058, %v2194
      %v2237 = vadd.f32 %v2059, %v2199
      %v2238 = vadd.f32 %v2060, %v2204
      %v2239 = vadd.f32 %v2061, %v2209
      %v2240 = vadd.f32 %v2062, %v2214
      %v2241 = vadd.f32 %v2063, %v2219
      %v2242 = vadd.f32 %v2064, %v2224
      %2243 = vst [vmem:[#allocation2] sm:$0xff] %v2227
      %2244 = vst [vmem:[#allocation2 + $0x8] sm:$0xff] %v2228
      %2245 = vst [vmem:[#allocation2 + $0x10] sm:$0xff] %v2229
      %2246 = vst [vmem:[#allocation2 + $0x18] sm:$0xff] %v2230
      %2247 = vst [vmem:[#allocation2 + $0x20] sm:$0xff] %v2231
      %2248 = vst [vmem:[#allocation2 + $0x28] sm:$0xff] %v2232
      %2249 = vst [vmem:[#allocation2 + $0x30] sm:$0xff] %v2233
      %2250 = vst [vmem:[#allocation2 + $0x38] sm:$0xff] %v2234
      %2251 = vst [vmem:[#allocation2 + $0x40] sm:$0xff] %v2235
      %2252 = vst [vmem:[#allocation2 + $0x48] sm:$0xff] %v2236
      %2253 = vst [vmem:[#allocation2 + $0x50] sm:$0xff] %v2237
      %2254 = vst [vmem:[#allocation2 + $0x58] sm:$0xff] %v2238
      %2255 = vst [vmem:[#allocation2 + $0x60] sm:$0xff] %v2239
      %2256 = vst [vmem:[#allocation2 + $0x68] sm:$0xff] %v2240
      %2257 = vst [vmem:[#allocation2 + $0x70] sm:$0xff] %v2241
      %2258 = vst [vmem:[#allocation2 + $0x78] sm:$0xff] %v2242
      %v2259 = vld [vmem:[#allocation2] sm:$0xff]
      %v2260 = vld [vmem:[#allocation2 + $0x8] sm:$0xff]
      %v2261 = vld [vmem:[#allocation2 + $0x10] sm:$0xff]
      %v2262 = vld [vmem:[#allocation2 + $0x18] sm:$0xff]
      %v2263 = vld [vmem:[#allocation2 + $0x20] sm:$0xff]
      %v2264 = vld [vmem:[#allocation2 + $0x28] sm:$0xff]
      %v2265 = vld [vmem:[#allocation2 + $0x30] sm:$0xff]
      %v2266 = vld [vmem:[#allocation2 + $0x38] sm:$0xff]
      %v2267 = vld [vmem:[#allocation2 + $0x40] sm:$0xff]
      %v2268 = vld [vmem:[#allocation2 + $0x48] sm:$0xff]
      %v2269 = vld [vmem:[#allocation2 + $0x50] sm:$0xff]
      %v2270 = vld [vmem:[#allocation2 + $0x58] sm:$0xff]
      %v2271 = vld [vmem:[#allocation2 + $0x60] sm:$0xff]
      %v2272 = vld [vmem:[#allocation2 + $0x68] sm:$0xff]
      %v2273 = vld [vmem:[#allocation2 + $0x70] sm:$0xff]
      %v2274 = vld [vmem:[#allocation2 + $0x78] sm:$0xff]
      %2275 = vst [vmem:[%s192] sm:$0xff] %v2259
      %2276 = vst [vmem:[%s192 + $0x8] sm:$0xff] %v2260
      %2277 = vst [vmem:[%s192 + $0x10] sm:$0xff] %v2261
      %2278 = vst [vmem:[%s192 + $0x18] sm:$0xff] %v2262
      %2279 = vst [vmem:[%s192 + $0x20] sm:$0xff] %v2263
      %2280 = vst [vmem:[%s192 + $0x28] sm:$0xff] %v2264
      %2281 = vst [vmem:[%s192 + $0x30] sm:$0xff] %v2265
      %2282 = vst [vmem:[%s192 + $0x38] sm:$0xff] %v2266
      %2283 = vst [vmem:[%s192 + $0x40] sm:$0xff] %v2267
      %2284 = vst [vmem:[%s192 + $0x48] sm:$0xff] %v2268
      %2285 = vst [vmem:[%s192 + $0x50] sm:$0xff] %v2269
      %2286 = vst [vmem:[%s192 + $0x58] sm:$0xff] %v2270
      %2287 = vst [vmem:[%s192 + $0x60] sm:$0xff] %v2271
      %2288 = vst [vmem:[%s192 + $0x68] sm:$0xff] %v2272
      %2289 = vst [vmem:[%s192 + $0x70] sm:$0xff] %v2273
      %2290 = vst [vmem:[%s192 + $0x78] sm:$0xff] %v2274
      %s2291 = smul.u32 16, %s19
      %p2292 = scmp.lt.s32.totalorder %s18, 15
      %s2293 = scalar_select %p2292, %s18, 15
      %p2294 = scmp.lt.s32.totalorder %s2291, 31
      %s2295 = scalar_select %p2294, %s2291, 31
      %s2296 = smul.addr %s2293, 32
      %s2297 = sadd.s32 %s2295, %s2296
      %s2298 = smul.addr %s2297, 8
      %s2299 = scalar_lea.vmem %s3, %s2298
      // Predicated region
      $region33: #{spatiotemporal_conv_nobnr.2} parent=31 // pred_check
        %p2300 = pneg %p114
      $region34: #{spatiotemporal_conv_nobnr.2} parent=31 // pred_check_branch
        %2302 = sbr.rel (%p2300) target = $region36
      $region35: #{spatiotemporal_conv_nobnr.2} parent=31 // pred_region
        %s2303 = smul.u32 16, %s19
      $region36: #{spatiotemporal_conv_nobnr.2} parent=31 // pred_fallthru
        _
    $region32: #{spatiotemporal_conv_nobnr.2} parent=5 // pred_fallthru
      _
    %p2304 = scmp.le.s32.totalorder 2, %s9
    // Predicated region
    $region37: #{spatiotemporal_conv_nobnr.2} parent=5 // pred_check
      %p2305 = pneg %p2304
    $region38: #{spatiotemporal_conv_nobnr.2} parent=5 // pred_check_branch
      %2307 = sbr.rel (%p2305) target = $region40
    $region39: #{spatiotemporal_conv_nobnr.2} parent=5 // pred_region
      %s2308 = ssub.s32 %s9, 2
      // Predicated region
      $region41: #{spatiotemporal_conv_nobnr.2} parent=39 // pred_check
        %p2309 = pneg %p120
      $region42: #{spatiotemporal_conv_nobnr.2} parent=39 // pred_check_branch
        %2311 = sbr.rel (%p2309) target = $region44
      $region43: #{spatiotemporal_conv_nobnr.2} parent=39 // pred_region
        %s2312 = smul.u32 16, %s21
        %p2313 = scmp.lt.s32.totalorder %s20, 15
        %s2314 = scalar_select %p2313, %s20, 15
        %p2315 = scmp.lt.s32.totalorder %s2312, 31
        %s2316 = scalar_select %p2315, %s2312, 31
        %s2317 = smul.addr %s2314, 32
        %s2318 = sadd.s32 %s2316, %s2317
        %s2319 = smul.addr %s2318, 8
        %s2320 = scalar_lea.vmem %s3, %s2319
      $region44: #{spatiotemporal_conv_nobnr.2} parent=39 // pred_fallthru
        _
    $region40: #{spatiotemporal_conv_nobnr.2} parent=5 // pred_fallthru
      _
  $region6: #{spatiotemporal_conv_nobnr.2} parent=0 // loop_footer
    %s13 = sadd.s32 1, %s9
  $region7: #{spatiotemporal_conv_nobnr.2} parent=0 // loop_footer_branch
    %8 = sbr.rel target = $region3
  $region8: #{spatiotemporal_conv_nobnr.2} parent=0 // loop_exit
    _

// kernel: spatiotemporal_conv_nobnr.3
$region0: #{spatiotemporal_conv_nobnr.3}
  #allocation0 [shape = 'u32[]', space=smem, size = 0x4, offset = 0x4, fixed_abs, tag = 'smem constant byte address 0x4 - core index']
  #allocation1 [shape = 'u32[144,128]{1,0:T(1,128)}', space=vmem, size = 0x12000, scoped, tag = 'internal scratch']
  #allocation2 [shape = 'f32[8,128,128]{2,1,0:T(8,128)}', space=vmem, size = 0x80000, scoped, tag = 'scratch operand']
  %s0 = inlined_call_operand.vmem [shape: f32[2,8,256,128], index: 0, kind: input, shape index: {}]
  %s1 = inlined_call_operand.vmem [shape: f32[3,128,128], index: 1, kind: input, shape index: {}]
  %s2 = inlined_call_operand.vmem [shape: f32[1,128], index: 2, kind: input, shape index: {}]
  %s3 = inlined_call_operand.vmem [shape: f32[2,8,256,128], index: 3, kind: output, shape index: {}]
  %s4 = sld [smem:[#allocation0]]
  $region117: #{spatiotemporal_conv_nobnr.3} parent=0
    _
  %s6 = ssub.s32 1, %s4
  %s7 = scalar_select 0, %s6, %s4
  $region1: #{spatiotemporal_conv_nobnr.3} parent=0
    #allocation3 [shape = 'u8[1048576]{0}', space=vmem, size = 0x100000, scoped, tag = 'input window, operand 0']
    #allocation4 [shape = 'u8[1048576]{0}', space=vmem, size = 0x100000, scoped, tag = 'output window, operand 0']
    loop: start=0, step=1, limit=6
    $region2: #{spatiotemporal_conv_nobnr.3} parent=1 // loop_pre_header
      _
    $region3: #{spatiotemporal_conv_nobnr.3} parent=1 // loop_header
      %s9 = sphi 0, %s13
      %p10 = scmp.ge.s32.totalorder %s9, 6
      %s16 = sphi 0, %s28
      %s17 = sphi 0, %s24
      %s18 = sphi 0, %s16
      %s19 = sphi 0, %s17
      %s20 = sphi 0, %s18
      %s21 = sphi 0, %s19
      %s33 = sphi 0, %s35
      %s36 = sphi 0, %s33
      %s37 = sphi 0, %s36
      %s53 = sphi 0, %s37
      %s57 = sphi 0, %s57
      %s59 = sphi 0, %s57
      %s60 = sphi 0, %s59
      %s74 = sphi 0, %s60
      %s78 = sphi 0, %s78
      %s80 = sphi 0, %s78
      %s81 = sphi 0, %s80
      %s95 = sphi 0, %s81
      %s103 = sphi 0, %s105
      %s106 = sphi 0, %s103
      %s107 = sphi 0, %s106
      %s123 = sphi 0, %s107
    $region4: #{spatiotemporal_conv_nobnr.3} parent=1 // loop_header_branch
      %12 = sbr.rel (%p10) target = $region8
    $region5: #{spatiotemporal_conv_nobnr.3} parent=1 // loop_body
      %s14 = ssub.s32 %s9, 1
      %s15 = ssub.s32 %s9, 2
      %s22 = sadd.s32 1, %s17
      %p23 = scmp.ge.s32.totalorder %s22, 2
      %s24 = scalar_select %p23, 0, %s22
      %s25 = sadd.s32 1, %s16
      %s26 = scalar_select %p23, %s25, %s16
      %p27 = scmp.ge.s32.totalorder %s26, 2
      %s28 = scalar_select %p27, 0, %s26
      %s29 = ssub.s32 %s16, %s28
      %s30 = ssub.s32 %s17, %s24
      %s31 = sor.u32 %s29, %s30
      %p32 = scmp.eq.s32.totalorder %s31, 0
      %s34 = sadd.s32 %s33, 1
      %s35 = scalar_select %p32, %s33, %s34
      %p38 = pneg %p32
      %p39 = scmp.eq.s32.totalorder %s9, 3
      %p40 = por %p38, %p39
      %p41 = scmp.ne.s32.totalorder %s33, %s36
      %p42 = scmp.eq.s32.totalorder %s9, 0
      %p43 = por %p41, %p42
      %p44 = scmp.ne.s32.totalorder %s33, %s36
      %p45 = scmp.eq.s32.totalorder %s14, 3
      %p46 = por %p44, %p45
      %p47 = scmp.ne.s32.totalorder %s36, %s37
      %p48 = scmp.eq.s32.totalorder %s14, 0
      %p49 = por %p47, %p48
      %p50 = scmp.ne.s32.totalorder %s36, %s37
      %p51 = scmp.eq.s32.totalorder %s15, 3
      %p52 = por %p50, %p51
      %p54 = scmp.ne.s32.totalorder %s37, %s53
      %p55 = scmp.eq.s32.totalorder %s15, 0
      %p56 = por %p54, %p55
      %s58 = sadd.s32 %s57, 1
      %p61 = scmp.eq.s32.totalorder %s9, 3
      %p62 = scmp.ne.s32.totalorder %s57, %s59
      %p63 = scmp.eq.s32.totalorder %s9, 0
      %p64 = por %p62, %p63
      %p65 = scmp.ne.s32.totalorder %s57, %s59
      %p66 = scmp.eq.s32.totalorder %s14, 3
      %p67 = por %p65, %p66
      %p68 = scmp.ne.s32.totalorder %s59, %s60
      %p69 = scmp.eq.s32.totalorder %s14, 0
      %p70 = por %p68, %p69
      %p71 = scmp.ne.s32.totalorder %s59, %s60
      %p72 = scmp.eq.s32.totalorder %s15, 3
      %p73 = por %p71, %p72
      %p75 = scmp.ne.s32.totalorder %s60, %s74
      %p76 = scmp.eq.s32.totalorder %s15, 0
      %p77 = por %p75, %p76
      %s79 = sadd.s32 %s78, 1
      %p82 = scmp.eq.s32.totalorder %s9, 3
      %p83 = scmp.ne.s32.totalorder %s78, %s80
      %p84 = scmp.eq.s32.totalorder %s9, 0
      %p85 = por %p83, %p84
      %p86 = scmp.ne.s32.totalorder %s78, %s80
      %p87 = scmp.eq.s32.totalorder %s14, 3
      %p88 = por %p86, %p87
      %p89 = scmp.ne.s32.totalorder %s80, %s81
      %p90 = scmp.eq.s32.totalorder %s14, 0
      %p91 = por %p89, %p90
      %p92 = scmp.ne.s32.totalorder %s80, %s81
      %p93 = scmp.eq.s32.totalorder %s15, 3
      %p94 = por %p92, %p93
      %p96 = scmp.ne.s32.totalorder %s81, %s95
      %p97 = scmp.eq.s32.totalorder %s15, 0
      %p98 = por %p96, %p97
      %s99 = ssub.s32 %s16, %s28
      %s100 = ssub.s32 %s17, %s24
      %s101 = sor.u32 %s99, %s100
      %p102 = scmp.eq.s32.totalorder %s101, 0
      %s104 = sadd.s32 %s103, 1
      %s105 = scalar_select %p102, %s103, %s104
      %p108 = pneg %p102
      %p109 = scmp.eq.s32.totalorder %s9, 3
      %p110 = por %p108, %p109
      %p111 = scmp.ne.s32.totalorder %s103, %s106
      %p112 = scmp.eq.s32.totalorder %s9, 0
      %p113 = por %p111, %p112
      %p114 = scmp.ne.s32.totalorder %s103, %s106
      %p115 = scmp.eq.s32.totalorder %s14, 3
      %p116 = por %p114, %p115
      %p117 = scmp.ne.s32.totalorder %s106, %s107
      %p118 = scmp.eq.s32.totalorder %s14, 0
      %p119 = por %p117, %p118
      %p120 = scmp.ne.s32.totalorder %s106, %s107
      %p121 = scmp.eq.s32.totalorder %s15, 3
      %p122 = por %p120, %p121
      %p124 = scmp.ne.s32.totalorder %s107, %s123
      %p125 = scmp.eq.s32.totalorder %s15, 0
      %p126 = por %p124, %p125
      %p127 = scmp.le.s32.totalorder 1, %s9
      %p128 = scmp.lt.s32.totalorder %s9, 5
      %p129 = pnand %p127, %p128
      %p130 = pneg %p129
      // Predicated region
      $region9: #{spatiotemporal_conv_nobnr.3} parent=5 // pred_check
        _
      $region10: #{spatiotemporal_conv_nobnr.3} parent=5 // pred_check_branch
        %132 = sbr.rel (%p129) target = $region12
      $region11: #{spatiotemporal_conv_nobnr.3} parent=5 // pred_region
        %s133 = ssub.s32 %s9, 1
        // Predicated region
        $region13: #{spatiotemporal_conv_nobnr.3} parent=11 // pred_check
          %p134 = pneg %p70
        $region14: #{spatiotemporal_conv_nobnr.3} parent=11 // pred_check_branch
          %136 = sbr.rel (%p134) target = $region16
        $region15: #{spatiotemporal_conv_nobnr.3} parent=11 // pred_region
          _
        $region16: #{spatiotemporal_conv_nobnr.3} parent=11 // pred_fallthru
          _
        // Predicated region
        $region17: #{spatiotemporal_conv_nobnr.3} parent=11 // pred_check
          %p137 = pneg %p91
        $region18: #{spatiotemporal_conv_nobnr.3} parent=11 // pred_check_branch
          %139 = sbr.rel (%p137) target = $region20
        $region19: #{spatiotemporal_conv_nobnr.3} parent=11 // pred_region
          _
        $region20: #{spatiotemporal_conv_nobnr.3} parent=11 // pred_fallthru
          _
      $region12: #{spatiotemporal_conv_nobnr.3} parent=5 // pred_fallthru
        _
      %p140 = scmp.lt.s32.totalorder %s9, 4
      // Predicated region
      $region21: #{spatiotemporal_conv_nobnr.3} parent=5 // pred_check
        %p141 = pneg %p140
      $region22: #{spatiotemporal_conv_nobnr.3} parent=5 // pred_check_branch
        %143 = sbr.rel (%p141) target = $region24
      $region23: #{spatiotemporal_conv_nobnr.3} parent=5 // pred_region
        // Predicated region
        $region25: #{spatiotemporal_conv_nobnr.3} parent=23 // pred_check
          %p144 = pneg %p43
        $region26: #{spatiotemporal_conv_nobnr.3} parent=23 // pred_check_branch
          %146 = sbr.rel (%p144) target = $region28
        $region27: #{spatiotemporal_conv_nobnr.3} parent=23 // pred_region
          %s147 = sand.u32 %s33, 1
          %s148 = sand.u32 %s33, 1
          %s149 = smul.addr %s148, 1024
          %s150 = scalar_lea.vmem [#allocation3], %s149
          %s151 = smul.u32 16, %s17
          %s152 = smul.addr %s16, 256
          %s153 = sadd.s32 %s151, %s152
          %s154 = smul.addr %s153, 8
          %s155 = scalar_lea.vmem %s0, %s154
          // Predicated region
          $region29: #{spatiotemporal_conv_nobnr.3} parent=27 // pred_check
            _
          $region30: #{spatiotemporal_conv_nobnr.3} parent=27 // pred_check_branch
            %157 = sbr.rel (0) target = $region32
          $region31: #{spatiotemporal_conv_nobnr.3} parent=27 // pred_region
            // Predicated region
            $region33: #{spatiotemporal_conv_nobnr.3} parent=31 // pred_check
              _
            $region34: #{spatiotemporal_conv_nobnr.3} parent=31 // pred_check_branch
              %159 = sbr.rel (0) target = $region36
            $region35: #{spatiotemporal_conv_nobnr.3} parent=31 // pred_region
              // Predicated region
              $region48: #{spatiotemporal_conv_nobnr.3} parent=35 // pred_check
                _
              $region49: #{spatiotemporal_conv_nobnr.3} parent=35 // pred_check_branch
                %428 = sbr.rel (0) target = $region51
              $region50: #{spatiotemporal_conv_nobnr.3} parent=35 // pred_region
                loop: start=0, step=1, limit=1
                $region52: #{spatiotemporal_conv_nobnr.3} parent=50 // loop_pre_header
                  _
                $region53: #{spatiotemporal_conv_nobnr.3} parent=50 // loop_header
                  %s430 = sphi 0, %s434
                  %p431 = scmp.ge.s32.totalorder %s430, 1
                  %s435 = sphi %s155, %s155
                  %s436 = sphi %s150, %s150
                $region54: #{spatiotemporal_conv_nobnr.3} parent=50 // loop_header_branch
                  %433 = sbr.rel (%p431) target = $region58
                $region55: #{spatiotemporal_conv_nobnr.3} parent=50 // loop_body
                  %v437 = vld [vmem:[%s435] sm:$0xff]
                  %438 = vst [vmem:[%s436] sm:$0xff] %v437
                  %v439 = vld [vmem:[%s435 + $0x8] sm:$0xff]
                  %440 = vst [vmem:[%s436 + $0x8] sm:$0xff] %v439
                  %v441 = vld [vmem:[%s435 + $0x10] sm:$0xff]
                  %442 = vst [vmem:[%s436 + $0x10] sm:$0xff] %v441
                  %v443 = vld [vmem:[%s435 + $0x18] sm:$0xff]
                  %444 = vst [vmem:[%s436 + $0x18] sm:$0xff] %v443
                  %v445 = vld [vmem:[%s435 + $0x20] sm:$0xff]
                  %446 = vst [vmem:[%s436 + $0x20] sm:$0xff] %v445
                  %v447 = vld [vmem:[%s435 + $0x28] sm:$0xff]
                  %448 = vst [vmem:[%s436 + $0x28] sm:$0xff] %v447
                  %v449 = vld [vmem:[%s435 + $0x30] sm:$0xff]
                  %450 = vst [vmem:[%s436 + $0x30] sm:$0xff] %v449
                  %v451 = vld [vmem:[%s435 + $0x38] sm:$0xff]
                  %452 = vst [vmem:[%s436 + $0x38] sm:$0xff] %v451
                  %v453 = vld [vmem:[%s435 + $0x40] sm:$0xff]
                  %454 = vst [vmem:[%s436 + $0x40] sm:$0xff] %v453
                  %v455 = vld [vmem:[%s435 + $0x48] sm:$0xff]
                  %456 = vst [vmem:[%s436 + $0x48] sm:$0xff] %v455
                  %v457 = vld [vmem:[%s435 + $0x50] sm:$0xff]
                  %458 = vst [vmem:[%s436 + $0x50] sm:$0xff] %v457
                  %v459 = vld [vmem:[%s435 + $0x58] sm:$0xff]
                  %460 = vst [vmem:[%s436 + $0x58] sm:$0xff] %v459
                  %v461 = vld [vmem:[%s435 + $0x60] sm:$0xff]
                  %462 = vst [vmem:[%s436 + $0x60] sm:$0xff] %v461
                  %v463 = vld [vmem:[%s435 + $0x68] sm:$0xff]
                  %464 = vst [vmem:[%s436 + $0x68] sm:$0xff] %v463
                  %v465 = vld [vmem:[%s435 + $0x70] sm:$0xff]
                  %466 = vst [vmem:[%s436 + $0x70] sm:$0xff] %v465
                  %v467 = vld [vmem:[%s435 + $0x78] sm:$0xff]
                  %468 = vst [vmem:[%s436 + $0x78] sm:$0xff] %v467
                  %v469 = vld [vmem:[%s435 + $0x100] sm:$0xff]
                  %470 = vst [vmem:[%s436 + $0x80] sm:$0xff] %v469
                  %v471 = vld [vmem:[%s435 + $0x108] sm:$0xff]
                  %472 = vst [vmem:[%s436 + $0x88] sm:$0xff] %v471
                  %v473 = vld [vmem:[%s435 + $0x110] sm:$0xff]
                  %474 = vst [vmem:[%s436 + $0x90] sm:$0xff] %v473
                  %v475 = vld [vmem:[%s435 + $0x118] sm:$0xff]
                  %476 = vst [vmem:[%s436 + $0x98] sm:$0xff] %v475
                  %v477 = vld [vmem:[%s435 + $0x120] sm:$0xff]
                  %478 = vst [vmem:[%s436 + $0xa0] sm:$0xff] %v477
                  %v479 = vld [vmem:[%s435 + $0x128] sm:$0xff]
                  %480 = vst [vmem:[%s436 + $0xa8] sm:$0xff] %v479
                  %v481 = vld [vmem:[%s435 + $0x130] sm:$0xff]
                  %482 = vst [vmem:[%s436 + $0xb0] sm:$0xff] %v481
                  %v483 = vld [vmem:[%s435 + $0x138] sm:$0xff]
                  %484 = vst [vmem:[%s436 + $0xb8] sm:$0xff] %v483
                  %v485 = vld [vmem:[%s435 + $0x140] sm:$0xff]
                  %486 = vst [vmem:[%s436 + $0xc0] sm:$0xff] %v485
                  %v487 = vld [vmem:[%s435 + $0x148] sm:$0xff]
                  %488 = vst [vmem:[%s436 + $0xc8] sm:$0xff] %v487
                  %v489 = vld [vmem:[%s435 + $0x150] sm:$0xff]
                  %490 = vst [vmem:[%s436 + $0xd0] sm:$0xff] %v489
                  %v491 = vld [vmem:[%s435 + $0x158] sm:$0xff]
                  %492 = vst [vmem:[%s436 + $0xd8] sm:$0xff] %v491
                  %v493 = vld [vmem:[%s435 + $0x160] sm:$0xff]
                  %494 = vst [vmem:[%s436 + $0xe0] sm:$0xff] %v493
                  %v495 = vld [vmem:[%s435 + $0x168] sm:$0xff]
                  %496 = vst [vmem:[%s436 + $0xe8] sm:$0xff] %v495
                  %v497 = vld [vmem:[%s435 + $0x170] sm:$0xff]
                  %498 = vst [vmem:[%s436 + $0xf0] sm:$0xff] %v497
                  %v499 = vld [vmem:[%s435 + $0x178] sm:$0xff]
                  %500 = vst [vmem:[%s436 + $0xf8] sm:$0xff] %v499
                  %v501 = vld [vmem:[%s435 + $0x200] sm:$0xff]
                  %502 = vst [vmem:[%s436 + $0x100] sm:$0xff] %v501
                  %v503 = vld [vmem:[%s435 + $0x208] sm:$0xff]
                  %504 = vst [vmem:[%s436 + $0x108] sm:$0xff] %v503
                  %v505 = vld [vmem:[%s435 + $0x210] sm:$0xff]
                  %506 = vst [vmem:[%s436 + $0x110] sm:$0xff] %v505
                  %v507 = vld [vmem:[%s435 + $0x218] sm:$0xff]
                  %508 = vst [vmem:[%s436 + $0x118] sm:$0xff] %v507
                  %v509 = vld [vmem:[%s435 + $0x220] sm:$0xff]
                  %510 = vst [vmem:[%s436 + $0x120] sm:$0xff] %v509
                  %v511 = vld [vmem:[%s435 + $0x228] sm:$0xff]
                  %512 = vst [vmem:[%s436 + $0x128] sm:$0xff] %v511
                  %v513 = vld [vmem:[%s435 + $0x230] sm:$0xff]
                  %514 = vst [vmem:[%s436 + $0x130] sm:$0xff] %v513
                  %v515 = vld [vmem:[%s435 + $0x238] sm:$0xff]
                  %516 = vst [vmem:[%s436 + $0x138] sm:$0xff] %v515
                  %v517 = vld [vmem:[%s435 + $0x240] sm:$0xff]
                  %518 = vst [vmem:[%s436 + $0x140] sm:$0xff] %v517
                  %v519 = vld [vmem:[%s435 + $0x248] sm:$0xff]
                  %520 = vst [vmem:[%s436 + $0x148] sm:$0xff] %v519
                  %v521 = vld [vmem:[%s435 + $0x250] sm:$0xff]
                  %522 = vst [vmem:[%s436 + $0x150] sm:$0xff] %v521
                  %v523 = vld [vmem:[%s435 + $0x258] sm:$0xff]
                  %524 = vst [vmem:[%s436 + $0x158] sm:$0xff] %v523
                  %v525 = vld [vmem:[%s435 + $0x260] sm:$0xff]
                  %526 = vst [vmem:[%s436 + $0x160] sm:$0xff] %v525
                  %v527 = vld [vmem:[%s435 + $0x268] sm:$0xff]
                  %528 = vst [vmem:[%s436 + $0x168] sm:$0xff] %v527
                  %v529 = vld [vmem:[%s435 + $0x270] sm:$0xff]
                  %530 = vst [vmem:[%s436 + $0x170] sm:$0xff] %v529
                  %v531 = vld [vmem:[%s435 + $0x278] sm:$0xff]
                  %532 = vst [vmem:[%s436 + $0x178] sm:$0xff] %v531
                  %v533 = vld [vmem:[%s435 + $0x300] sm:$0xff]
                  %534 = vst [vmem:[%s436 + $0x180] sm:$0xff] %v533
                  %v535 = vld [vmem:[%s435 + $0x308] sm:$0xff]
                  %536 = vst [vmem:[%s436 + $0x188] sm:$0xff] %v535
                  %v537 = vld [vmem:[%s435 + $0x310] sm:$0xff]
                  %538 = vst [vmem:[%s436 + $0x190] sm:$0xff] %v537
                  %v539 = vld [vmem:[%s435 + $0x318] sm:$0xff]
                  %540 = vst [vmem:[%s436 + $0x198] sm:$0xff] %v539
                  %v541 = vld [vmem:[%s435 + $0x320] sm:$0xff]
                  %542 = vst [vmem:[%s436 + $0x1a0] sm:$0xff] %v541
                  %v543 = vld [vmem:[%s435 + $0x328] sm:$0xff]
                  %544 = vst [vmem:[%s436 + $0x1a8] sm:$0xff] %v543
                  %v545 = vld [vmem:[%s435 + $0x330] sm:$0xff]
                  %546 = vst [vmem:[%s436 + $0x1b0] sm:$0xff] %v545
                  %v547 = vld [vmem:[%s435 + $0x338] sm:$0xff]
                  %548 = vst [vmem:[%s436 + $0x1b8] sm:$0xff] %v547
                  %v549 = vld [vmem:[%s435 + $0x340] sm:$0xff]
                  %550 = vst [vmem:[%s436 + $0x1c0] sm:$0xff] %v549
                  %v551 = vld [vmem:[%s435 + $0x348] sm:$0xff]
                  %552 = vst [vmem:[%s436 + $0x1c8] sm:$0xff] %v551
                  %v553 = vld [vmem:[%s435 + $0x350] sm:$0xff]
                  %554 = vst [vmem:[%s436 + $0x1d0] sm:$0xff] %v553
                  %v555 = vld [vmem:[%s435 + $0x358] sm:$0xff]
                  %556 = vst [vmem:[%s436 + $0x1d8] sm:$0xff] %v555
                  %v557 = vld [vmem:[%s435 + $0x360] sm:$0xff]
                  %558 = vst [vmem:[%s436 + $0x1e0] sm:$0xff] %v557
                  %v559 = vld [vmem:[%s435 + $0x368] sm:$0xff]
                  %560 = vst [vmem:[%s436 + $0x1e8] sm:$0xff] %v559
                  %v561 = vld [vmem:[%s435 + $0x370] sm:$0xff]
                  %562 = vst [vmem:[%s436 + $0x1f0] sm:$0xff] %v561
                  %v563 = vld [vmem:[%s435 + $0x378] sm:$0xff]
                  %564 = vst [vmem:[%s436 + $0x1f8] sm:$0xff] %v563
                  %v565 = vld [vmem:[%s435 + $0x400] sm:$0xff]
                  %566 = vst [vmem:[%s436 + $0x200] sm:$0xff] %v565
                  %v567 = vld [vmem:[%s435 + $0x408] sm:$0xff]
                  %568 = vst [vmem:[%s436 + $0x208] sm:$0xff] %v567
                  %v569 = vld [vmem:[%s435 + $0x410] sm:$0xff]
                  %570 = vst [vmem:[%s436 + $0x210] sm:$0xff] %v569
                  %v571 = vld [vmem:[%s435 + $0x418] sm:$0xff]
                  %572 = vst [vmem:[%s436 + $0x218] sm:$0xff] %v571
                  %v573 = vld [vmem:[%s435 + $0x420] sm:$0xff]
                  %574 = vst [vmem:[%s436 + $0x220] sm:$0xff] %v573
                  %v575 = vld [vmem:[%s435 + $0x428] sm:$0xff]
                  %576 = vst [vmem:[%s436 + $0x228] sm:$0xff] %v575
                  %v577 = vld [vmem:[%s435 + $0x430] sm:$0xff]
                  %578 = vst [vmem:[%s436 + $0x230] sm:$0xff] %v577
                  %v579 = vld [vmem:[%s435 + $0x438] sm:$0xff]
                  %580 = vst [vmem:[%s436 + $0x238] sm:$0xff] %v579
                  %v581 = vld [vmem:[%s435 + $0x440] sm:$0xff]
                  %582 = vst [vmem:[%s436 + $0x240] sm:$0xff] %v581
                  %v583 = vld [vmem:[%s435 + $0x448] sm:$0xff]
                  %584 = vst [vmem:[%s436 + $0x248] sm:$0xff] %v583
                  %v585 = vld [vmem:[%s435 + $0x450] sm:$0xff]
                  %586 = vst [vmem:[%s436 + $0x250] sm:$0xff] %v585
                  %v587 = vld [vmem:[%s435 + $0x458] sm:$0xff]
                  %588 = vst [vmem:[%s436 + $0x258] sm:$0xff] %v587
                  %v589 = vld [vmem:[%s435 + $0x460] sm:$0xff]
                  %590 = vst [vmem:[%s436 + $0x260] sm:$0xff] %v589
                  %v591 = vld [vmem:[%s435 + $0x468] sm:$0xff]
                  %592 = vst [vmem:[%s436 + $0x268] sm:$0xff] %v591
                  %v593 = vld [vmem:[%s435 + $0x470] sm:$0xff]
                  %594 = vst [vmem:[%s436 + $0x270] sm:$0xff] %v593
                  %v595 = vld [vmem:[%s435 + $0x478] sm:$0xff]
                  %596 = vst [vmem:[%s436 + $0x278] sm:$0xff] %v595
                  %v597 = vld [vmem:[%s435 + $0x500] sm:$0xff]
                  %598 = vst [vmem:[%s436 + $0x280] sm:$0xff] %v597
                  %v599 = vld [vmem:[%s435 + $0x508] sm:$0xff]
                  %600 = vst [vmem:[%s436 + $0x288] sm:$0xff] %v599
                  %v601 = vld [vmem:[%s435 + $0x510] sm:$0xff]
                  %602 = vst [vmem:[%s436 + $0x290] sm:$0xff] %v601
                  %v603 = vld [vmem:[%s435 + $0x518] sm:$0xff]
                  %604 = vst [vmem:[%s436 + $0x298] sm:$0xff] %v603
                  %v605 = vld [vmem:[%s435 + $0x520] sm:$0xff]
                  %606 = vst [vmem:[%s436 + $0x2a0] sm:$0xff] %v605
                  %v607 = vld [vmem:[%s435 + $0x528] sm:$0xff]
                  %608 = vst [vmem:[%s436 + $0x2a8] sm:$0xff] %v607
                  %v609 = vld [vmem:[%s435 + $0x530] sm:$0xff]
                  %610 = vst [vmem:[%s436 + $0x2b0] sm:$0xff] %v609
                  %v611 = vld [vmem:[%s435 + $0x538] sm:$0xff]
                  %612 = vst [vmem:[%s436 + $0x2b8] sm:$0xff] %v611
                  %v613 = vld [vmem:[%s435 + $0x540] sm:$0xff]
                  %614 = vst [vmem:[%s436 + $0x2c0] sm:$0xff] %v613
                  %v615 = vld [vmem:[%s435 + $0x548] sm:$0xff]
                  %616 = vst [vmem:[%s436 + $0x2c8] sm:$0xff] %v615
                  %v617 = vld [vmem:[%s435 + $0x550] sm:$0xff]
                  %618 = vst [vmem:[%s436 + $0x2d0] sm:$0xff] %v617
                  %v619 = vld [vmem:[%s435 + $0x558] sm:$0xff]
                  %620 = vst [vmem:[%s436 + $0x2d8] sm:$0xff] %v619
                  %v621 = vld [vmem:[%s435 + $0x560] sm:$0xff]
                  %622 = vst [vmem:[%s436 + $0x2e0] sm:$0xff] %v621
                  %v623 = vld [vmem:[%s435 + $0x568] sm:$0xff]
                  %624 = vst [vmem:[%s436 + $0x2e8] sm:$0xff] %v623
                  %v625 = vld [vmem:[%s435 + $0x570] sm:$0xff]
                  %626 = vst [vmem:[%s436 + $0x2f0] sm:$0xff] %v625
                  %v627 = vld [vmem:[%s435 + $0x578] sm:$0xff]
                  %628 = vst [vmem:[%s436 + $0x2f8] sm:$0xff] %v627
                  %v629 = vld [vmem:[%s435 + $0x600] sm:$0xff]
                  %630 = vst [vmem:[%s436 + $0x300] sm:$0xff] %v629
                  %v631 = vld [vmem:[%s435 + $0x608] sm:$0xff]
                  %632 = vst [vmem:[%s436 + $0x308] sm:$0xff] %v631
                  %v633 = vld [vmem:[%s435 + $0x610] sm:$0xff]
                  %634 = vst [vmem:[%s436 + $0x310] sm:$0xff] %v633
                  %v635 = vld [vmem:[%s435 + $0x618] sm:$0xff]
                  %636 = vst [vmem:[%s436 + $0x318] sm:$0xff] %v635
                  %v637 = vld [vmem:[%s435 + $0x620] sm:$0xff]
                  %638 = vst [vmem:[%s436 + $0x320] sm:$0xff] %v637
                  %v639 = vld [vmem:[%s435 + $0x628] sm:$0xff]
                  %640 = vst [vmem:[%s436 + $0x328] sm:$0xff] %v639
                  %v641 = vld [vmem:[%s435 + $0x630] sm:$0xff]
                  %642 = vst [vmem:[%s436 + $0x330] sm:$0xff] %v641
                  %v643 = vld [vmem:[%s435 + $0x638] sm:$0xff]
                  %644 = vst [vmem:[%s436 + $0x338] sm:$0xff] %v643
                  %v645 = vld [vmem:[%s435 + $0x640] sm:$0xff]
                  %646 = vst [vmem:[%s436 + $0x340] sm:$0xff] %v645
                  %v647 = vld [vmem:[%s435 + $0x648] sm:$0xff]
                  %648 = vst [vmem:[%s436 + $0x348] sm:$0xff] %v647
                  %v649 = vld [vmem:[%s435 + $0x650] sm:$0xff]
                  %650 = vst [vmem:[%s436 + $0x350] sm:$0xff] %v649
                  %v651 = vld [vmem:[%s435 + $0x658] sm:$0xff]
                  %652 = vst [vmem:[%s436 + $0x358] sm:$0xff] %v651
                  %v653 = vld [vmem:[%s435 + $0x660] sm:$0xff]
                  %654 = vst [vmem:[%s436 + $0x360] sm:$0xff] %v653
                  %v655 = vld [vmem:[%s435 + $0x668] sm:$0xff]
                  %656 = vst [vmem:[%s436 + $0x368] sm:$0xff] %v655
                  %v657 = vld [vmem:[%s435 + $0x670] sm:$0xff]
                  %658 = vst [vmem:[%s436 + $0x370] sm:$0xff] %v657
                  %v659 = vld [vmem:[%s435 + $0x678] sm:$0xff]
                  %660 = vst [vmem:[%s436 + $0x378] sm:$0xff] %v659
                  %v661 = vld [vmem:[%s435 + $0x700] sm:$0xff]
                  %662 = vst [vmem:[%s436 + $0x380] sm:$0xff] %v661
                  %v663 = vld [vmem:[%s435 + $0x708] sm:$0xff]
                  %664 = vst [vmem:[%s436 + $0x388] sm:$0xff] %v663
                  %v665 = vld [vmem:[%s435 + $0x710] sm:$0xff]
                  %666 = vst [vmem:[%s436 + $0x390] sm:$0xff] %v665
                  %v667 = vld [vmem:[%s435 + $0x718] sm:$0xff]
                  %668 = vst [vmem:[%s436 + $0x398] sm:$0xff] %v667
                  %v669 = vld [vmem:[%s435 + $0x720] sm:$0xff]
                  %670 = vst [vmem:[%s436 + $0x3a0] sm:$0xff] %v669
                  %v671 = vld [vmem:[%s435 + $0x728] sm:$0xff]
                  %672 = vst [vmem:[%s436 + $0x3a8] sm:$0xff] %v671
                  %v673 = vld [vmem:[%s435 + $0x730] sm:$0xff]
                  %674 = vst [vmem:[%s436 + $0x3b0] sm:$0xff] %v673
                  %v675 = vld [vmem:[%s435 + $0x738] sm:$0xff]
                  %676 = vst [vmem:[%s436 + $0x3b8] sm:$0xff] %v675
                  %v677 = vld [vmem:[%s435 + $0x740] sm:$0xff]
                  %678 = vst [vmem:[%s436 + $0x3c0] sm:$0xff] %v677
                  %v679 = vld [vmem:[%s435 + $0x748] sm:$0xff]
                  %680 = vst [vmem:[%s436 + $0x3c8] sm:$0xff] %v679
                  %v681 = vld [vmem:[%s435 + $0x750] sm:$0xff]
                  %682 = vst [vmem:[%s436 + $0x3d0] sm:$0xff] %v681
                  %v683 = vld [vmem:[%s435 + $0x758] sm:$0xff]
                  %684 = vst [vmem:[%s436 + $0x3d8] sm:$0xff] %v683
                  %v685 = vld [vmem:[%s435 + $0x760] sm:$0xff]
                  %686 = vst [vmem:[%s436 + $0x3e0] sm:$0xff] %v685
                  %v687 = vld [vmem:[%s435 + $0x768] sm:$0xff]
                  %688 = vst [vmem:[%s436 + $0x3e8] sm:$0xff] %v687
                  %v689 = vld [vmem:[%s435 + $0x770] sm:$0xff]
                  %690 = vst [vmem:[%s436 + $0x3f0] sm:$0xff] %v689
                  %v691 = vld [vmem:[%s435 + $0x778] sm:$0xff]
                  %692 = vst [vmem:[%s436 + $0x3f8] sm:$0xff] %v691
                $region56: #{spatiotemporal_conv_nobnr.3} parent=50 // loop_footer
                  %s434 = sadd.s32 1, %s430
                $region57: #{spatiotemporal_conv_nobnr.3} parent=50 // loop_footer_branch
                  %429 = sbr.rel target = $region53
                $region58: #{spatiotemporal_conv_nobnr.3} parent=50 // loop_exit
                  _
              $region51: #{spatiotemporal_conv_nobnr.3} parent=35 // pred_fallthru
                _
              // Predicated region
              $region59: #{spatiotemporal_conv_nobnr.3} parent=35 // pred_check
                _
              $region60: #{spatiotemporal_conv_nobnr.3} parent=35 // pred_check_branch
                %694 = sbr.rel target = $region62
              $region61: #{spatiotemporal_conv_nobnr.3} parent=35 // pred_region
                _
              $region62: #{spatiotemporal_conv_nobnr.3} parent=35 // pred_fallthru
                _
            $region36: #{spatiotemporal_conv_nobnr.3} parent=31 // pred_fallthru
              _
            // Predicated region
            $region37: #{spatiotemporal_conv_nobnr.3} parent=31 // pred_check
              _
            $region38: #{spatiotemporal_conv_nobnr.3} parent=31 // pred_check_branch
              %161 = sbr.rel target = $region40
            $region39: #{spatiotemporal_conv_nobnr.3} parent=31 // pred_region
              loop: start=0, step=1, limit=1
              $region41: #{spatiotemporal_conv_nobnr.3} parent=39 // loop_pre_header
                _
              $region42: #{spatiotemporal_conv_nobnr.3} parent=39 // loop_header
                %s164 = sphi 0, %s168
                %p165 = scmp.ge.s32.totalorder %s164, 1
                %s169 = sphi %s155, %s155
                %s170 = sphi %s150, %s150
              $region43: #{spatiotemporal_conv_nobnr.3} parent=39 // loop_header_branch
                %167 = sbr.rel (%p165) target = $region47
              $region44: #{spatiotemporal_conv_nobnr.3} parent=39 // loop_body
                %v171 = vld [vmem:[%s169] sm:$0xff]
                %172 = vst [vmem:[%s170] sm:$0xff] %v171
                %v173 = vld [vmem:[%s169 + $0x8] sm:$0xff]
                %174 = vst [vmem:[%s170 + $0x8] sm:$0xff] %v173
                %v175 = vld [vmem:[%s169 + $0x10] sm:$0xff]
                %176 = vst [vmem:[%s170 + $0x10] sm:$0xff] %v175
                %v177 = vld [vmem:[%s169 + $0x18] sm:$0xff]
                %178 = vst [vmem:[%s170 + $0x18] sm:$0xff] %v177
                %v179 = vld [vmem:[%s169 + $0x20] sm:$0xff]
                %180 = vst [vmem:[%s170 + $0x20] sm:$0xff] %v179
                %v181 = vld [vmem:[%s169 + $0x28] sm:$0xff]
                %182 = vst [vmem:[%s170 + $0x28] sm:$0xff] %v181
                %v183 = vld [vmem:[%s169 + $0x30] sm:$0xff]
                %184 = vst [vmem:[%s170 + $0x30] sm:$0xff] %v183
                %v185 = vld [vmem:[%s169 + $0x38] sm:$0xff]
                %186 = vst [vmem:[%s170 + $0x38] sm:$0xff] %v185
                %v187 = vld [vmem:[%s169 + $0x40] sm:$0xff]
                %188 = vst [vmem:[%s170 + $0x40] sm:$0xff] %v187
                %v189 = vld [vmem:[%s169 + $0x48] sm:$0xff]
                %190 = vst [vmem:[%s170 + $0x48] sm:$0xff] %v189
                %v191 = vld [vmem:[%s169 + $0x50] sm:$0xff]
                %192 = vst [vmem:[%s170 + $0x50] sm:$0xff] %v191
                %v193 = vld [vmem:[%s169 + $0x58] sm:$0xff]
                %194 = vst [vmem:[%s170 + $0x58] sm:$0xff] %v193
                %v195 = vld [vmem:[%s169 + $0x60] sm:$0xff]
                %196 = vst [vmem:[%s170 + $0x60] sm:$0xff] %v195
                %v197 = vld [vmem:[%s169 + $0x68] sm:$0xff]
                %198 = vst [vmem:[%s170 + $0x68] sm:$0xff] %v197
                %v199 = vld [vmem:[%s169 + $0x70] sm:$0xff]
                %200 = vst [vmem:[%s170 + $0x70] sm:$0xff] %v199
                %v201 = vld [vmem:[%s169 + $0x78] sm:$0xff]
                %202 = vst [vmem:[%s170 + $0x78] sm:$0xff] %v201
                %v203 = vld [vmem:[%s169 + $0x100] sm:$0xff]
                %204 = vst [vmem:[%s170 + $0x80] sm:$0xff] %v203
                %v205 = vld [vmem:[%s169 + $0x108] sm:$0xff]
                %206 = vst [vmem:[%s170 + $0x88] sm:$0xff] %v205
                %v207 = vld [vmem:[%s169 + $0x110] sm:$0xff]
                %208 = vst [vmem:[%s170 + $0x90] sm:$0xff] %v207
                %v209 = vld [vmem:[%s169 + $0x118] sm:$0xff]
                %210 = vst [vmem:[%s170 + $0x98] sm:$0xff] %v209
                %v211 = vld [vmem:[%s169 + $0x120] sm:$0xff]
                %212 = vst [vmem:[%s170 + $0xa0] sm:$0xff] %v211
                %v213 = vld [vmem:[%s169 + $0x128] sm:$0xff]
                %214 = vst [vmem:[%s170 + $0xa8] sm:$0xff] %v213
                %v215 = vld [vmem:[%s169 + $0x130] sm:$0xff]
                %216 = vst [vmem:[%s170 + $0xb0] sm:$0xff] %v215
                %v217 = vld [vmem:[%s169 + $0x138] sm:$0xff]
                %218 = vst [vmem:[%s170 + $0xb8] sm:$0xff] %v217
                %v219 = vld [vmem:[%s169 + $0x140] sm:$0xff]
                %220 = vst [vmem:[%s170 + $0xc0] sm:$0xff] %v219
                %v221 = vld [vmem:[%s169 + $0x148] sm:$0xff]
                %222 = vst [vmem:[%s170 + $0xc8] sm:$0xff] %v221
                %v223 = vld [vmem:[%s169 + $0x150] sm:$0xff]
                %224 = vst [vmem:[%s170 + $0xd0] sm:$0xff] %v223
                %v225 = vld [vmem:[%s169 + $0x158] sm:$0xff]
                %226 = vst [vmem:[%s170 + $0xd8] sm:$0xff] %v225
                %v227 = vld [vmem:[%s169 + $0x160] sm:$0xff]
                %228 = vst [vmem:[%s170 + $0xe0] sm:$0xff] %v227
                %v229 = vld [vmem:[%s169 + $0x168] sm:$0xff]
                %230 = vst [vmem:[%s170 + $0xe8] sm:$0xff] %v229
                %v231 = vld [vmem:[%s169 + $0x170] sm:$0xff]
                %232 = vst [vmem:[%s170 + $0xf0] sm:$0xff] %v231
                %v233 = vld [vmem:[%s169 + $0x178] sm:$0xff]
                %234 = vst [vmem:[%s170 + $0xf8] sm:$0xff] %v233
                %v235 = vld [vmem:[%s169 + $0x200] sm:$0xff]
                %236 = vst [vmem:[%s170 + $0x100] sm:$0xff] %v235
                %v237 = vld [vmem:[%s169 + $0x208] sm:$0xff]
                %238 = vst [vmem:[%s170 + $0x108] sm:$0xff] %v237
                %v239 = vld [vmem:[%s169 + $0x210] sm:$0xff]
                %240 = vst [vmem:[%s170 + $0x110] sm:$0xff] %v239
                %v241 = vld [vmem:[%s169 + $0x218] sm:$0xff]
                %242 = vst [vmem:[%s170 + $0x118] sm:$0xff] %v241
                %v243 = vld [vmem:[%s169 + $0x220] sm:$0xff]
                %244 = vst [vmem:[%s170 + $0x120] sm:$0xff] %v243
                %v245 = vld [vmem:[%s169 + $0x228] sm:$0xff]
                %246 = vst [vmem:[%s170 + $0x128] sm:$0xff] %v245
                %v247 = vld [vmem:[%s169 + $0x230] sm:$0xff]
                %248 = vst [vmem:[%s170 + $0x130] sm:$0xff] %v247
                %v249 = vld [vmem:[%s169 + $0x238] sm:$0xff]
                %250 = vst [vmem:[%s170 + $0x138] sm:$0xff] %v249
                %v251 = vld [vmem:[%s169 + $0x240] sm:$0xff]
                %252 = vst [vmem:[%s170 + $0x140] sm:$0xff] %v251
                %v253 = vld [vmem:[%s169 + $0x248] sm:$0xff]
                %254 = vst [vmem:[%s170 + $0x148] sm:$0xff] %v253
                %v255 = vld [vmem:[%s169 + $0x250] sm:$0xff]
                %256 = vst [vmem:[%s170 + $0x150] sm:$0xff] %v255
                %v257 = vld [vmem:[%s169 + $0x258] sm:$0xff]
                %258 = vst [vmem:[%s170 + $0x158] sm:$0xff] %v257
                %v259 = vld [vmem:[%s169 + $0x260] sm:$0xff]
                %260 = vst [vmem:[%s170 + $0x160] sm:$0xff] %v259
                %v261 = vld [vmem:[%s169 + $0x268] sm:$0xff]
                %262 = vst [vmem:[%s170 + $0x168] sm:$0xff] %v261
                %v263 = vld [vmem:[%s169 + $0x270] sm:$0xff]
                %264 = vst [vmem:[%s170 + $0x170] sm:$0xff] %v263
                %v265 = vld [vmem:[%s169 + $0x278] sm:$0xff]
                %266 = vst [vmem:[%s170 + $0x178] sm:$0xff] %v265
                %v267 = vld [vmem:[%s169 + $0x300] sm:$0xff]
                %268 = vst [vmem:[%s170 + $0x180] sm:$0xff] %v267
                %v269 = vld [vmem:[%s169 + $0x308] sm:$0xff]
                %270 = vst [vmem:[%s170 + $0x188] sm:$0xff] %v269
                %v271 = vld [vmem:[%s169 + $0x310] sm:$0xff]
                %272 = vst [vmem:[%s170 + $0x190] sm:$0xff] %v271
                %v273 = vld [vmem:[%s169 + $0x318] sm:$0xff]
                %274 = vst [vmem:[%s170 + $0x198] sm:$0xff] %v273
                %v275 = vld [vmem:[%s169 + $0x320] sm:$0xff]
                %276 = vst [vmem:[%s170 + $0x1a0] sm:$0xff] %v275
                %v277 = vld [vmem:[%s169 + $0x328] sm:$0xff]
                %278 = vst [vmem:[%s170 + $0x1a8] sm:$0xff] %v277
                %v279 = vld [vmem:[%s169 + $0x330] sm:$0xff]
                %280 = vst [vmem:[%s170 + $0x1b0] sm:$0xff] %v279
                %v281 = vld [vmem:[%s169 + $0x338] sm:$0xff]
                %282 = vst [vmem:[%s170 + $0x1b8] sm:$0xff] %v281
                %v283 = vld [vmem:[%s169 + $0x340] sm:$0xff]
                %284 = vst [vmem:[%s170 + $0x1c0] sm:$0xff] %v283
                %v285 = vld [vmem:[%s169 + $0x348] sm:$0xff]
                %286 = vst [vmem:[%s170 + $0x1c8] sm:$0xff] %v285
                %v287 = vld [vmem:[%s169 + $0x350] sm:$0xff]
                %288 = vst [vmem:[%s170 + $0x1d0] sm:$0xff] %v287
                %v289 = vld [vmem:[%s169 + $0x358] sm:$0xff]
                %290 = vst [vmem:[%s170 + $0x1d8] sm:$0xff] %v289
                %v291 = vld [vmem:[%s169 + $0x360] sm:$0xff]
                %292 = vst [vmem:[%s170 + $0x1e0] sm:$0xff] %v291
                %v293 = vld [vmem:[%s169 + $0x368] sm:$0xff]
                %294 = vst [vmem:[%s170 + $0x1e8] sm:$0xff] %v293
                %v295 = vld [vmem:[%s169 + $0x370] sm:$0xff]
                %296 = vst [vmem:[%s170 + $0x1f0] sm:$0xff] %v295
                %v297 = vld [vmem:[%s169 + $0x378] sm:$0xff]
                %298 = vst [vmem:[%s170 + $0x1f8] sm:$0xff] %v297
                %v299 = vld [vmem:[%s169 + $0x400] sm:$0xff]
                %300 = vst [vmem:[%s170 + $0x200] sm:$0xff] %v299
                %v301 = vld [vmem:[%s169 + $0x408] sm:$0xff]
                %302 = vst [vmem:[%s170 + $0x208] sm:$0xff] %v301
                %v303 = vld [vmem:[%s169 + $0x410] sm:$0xff]
                %304 = vst [vmem:[%s170 + $0x210] sm:$0xff] %v303
                %v305 = vld [vmem:[%s169 + $0x418] sm:$0xff]
                %306 = vst [vmem:[%s170 + $0x218] sm:$0xff] %v305
                %v307 = vld [vmem:[%s169 + $0x420] sm:$0xff]
                %308 = vst [vmem:[%s170 + $0x220] sm:$0xff] %v307
                %v309 = vld [vmem:[%s169 + $0x428] sm:$0xff]
                %310 = vst [vmem:[%s170 + $0x228] sm:$0xff] %v309
                %v311 = vld [vmem:[%s169 + $0x430] sm:$0xff]
                %312 = vst [vmem:[%s170 + $0x230] sm:$0xff] %v311
                %v313 = vld [vmem:[%s169 + $0x438] sm:$0xff]
                %314 = vst [vmem:[%s170 + $0x238] sm:$0xff] %v313
                %v315 = vld [vmem:[%s169 + $0x440] sm:$0xff]
                %316 = vst [vmem:[%s170 + $0x240] sm:$0xff] %v315
                %v317 = vld [vmem:[%s169 + $0x448] sm:$0xff]
                %318 = vst [vmem:[%s170 + $0x248] sm:$0xff] %v317
                %v319 = vld [vmem:[%s169 + $0x450] sm:$0xff]
                %320 = vst [vmem:[%s170 + $0x250] sm:$0xff] %v319
                %v321 = vld [vmem:[%s169 + $0x458] sm:$0xff]
                %322 = vst [vmem:[%s170 + $0x258] sm:$0xff] %v321
                %v323 = vld [vmem:[%s169 + $0x460] sm:$0xff]
                %324 = vst [vmem:[%s170 + $0x260] sm:$0xff] %v323
                %v325 = vld [vmem:[%s169 + $0x468] sm:$0xff]
                %326 = vst [vmem:[%s170 + $0x268] sm:$0xff] %v325
                %v327 = vld [vmem:[%s169 + $0x470] sm:$0xff]
                %328 = vst [vmem:[%s170 + $0x270] sm:$0xff] %v327
                %v329 = vld [vmem:[%s169 + $0x478] sm:$0xff]
                %330 = vst [vmem:[%s170 + $0x278] sm:$0xff] %v329
                %v331 = vld [vmem:[%s169 + $0x500] sm:$0xff]
                %332 = vst [vmem:[%s170 + $0x280] sm:$0xff] %v331
                %v333 = vld [vmem:[%s169 + $0x508] sm:$0xff]
                %334 = vst [vmem:[%s170 + $0x288] sm:$0xff] %v333
                %v335 = vld [vmem:[%s169 + $0x510] sm:$0xff]
                %336 = vst [vmem:[%s170 + $0x290] sm:$0xff] %v335
                %v337 = vld [vmem:[%s169 + $0x518] sm:$0xff]
                %338 = vst [vmem:[%s170 + $0x298] sm:$0xff] %v337
                %v339 = vld [vmem:[%s169 + $0x520] sm:$0xff]
                %340 = vst [vmem:[%s170 + $0x2a0] sm:$0xff] %v339
                %v341 = vld [vmem:[%s169 + $0x528] sm:$0xff]
                %342 = vst [vmem:[%s170 + $0x2a8] sm:$0xff] %v341
                %v343 = vld [vmem:[%s169 + $0x530] sm:$0xff]
                %344 = vst [vmem:[%s170 + $0x2b0] sm:$0xff] %v343
                %v345 = vld [vmem:[%s169 + $0x538] sm:$0xff]
                %346 = vst [vmem:[%s170 + $0x2b8] sm:$0xff] %v345
                %v347 = vld [vmem:[%s169 + $0x540] sm:$0xff]
                %348 = vst [vmem:[%s170 + $0x2c0] sm:$0xff] %v347
                %v349 = vld [vmem:[%s169 + $0x548] sm:$0xff]
                %350 = vst [vmem:[%s170 + $0x2c8] sm:$0xff] %v349
                %v351 = vld [vmem:[%s169 + $0x550] sm:$0xff]
                %352 = vst [vmem:[%s170 + $0x2d0] sm:$0xff] %v351
                %v353 = vld [vmem:[%s169 + $0x558] sm:$0xff]
                %354 = vst [vmem:[%s170 + $0x2d8] sm:$0xff] %v353
                %v355 = vld [vmem:[%s169 + $0x560] sm:$0xff]
                %356 = vst [vmem:[%s170 + $0x2e0] sm:$0xff] %v355
                %v357 = vld [vmem:[%s169 + $0x568] sm:$0xff]
                %358 = vst [vmem:[%s170 + $0x2e8] sm:$0xff] %v357
                %v359 = vld [vmem:[%s169 + $0x570] sm:$0xff]
                %360 = vst [vmem:[%s170 + $0x2f0] sm:$0xff] %v359
                %v361 = vld [vmem:[%s169 + $0x578] sm:$0xff]
                %362 = vst [vmem:[%s170 + $0x2f8] sm:$0xff] %v361
                %v363 = vld [vmem:[%s169 + $0x600] sm:$0xff]
                %364 = vst [vmem:[%s170 + $0x300] sm:$0xff] %v363
                %v365 = vld [vmem:[%s169 + $0x608] sm:$0xff]
                %366 = vst [vmem:[%s170 + $0x308] sm:$0xff] %v365
                %v367 = vld [vmem:[%s169 + $0x610] sm:$0xff]
                %368 = vst [vmem:[%s170 + $0x310] sm:$0xff] %v367
                %v369 = vld [vmem:[%s169 + $0x618] sm:$0xff]
                %370 = vst [vmem:[%s170 + $0x318] sm:$0xff] %v369
                %v371 = vld [vmem:[%s169 + $0x620] sm:$0xff]
                %372 = vst [vmem:[%s170 + $0x320] sm:$0xff] %v371
                %v373 = vld [vmem:[%s169 + $0x628] sm:$0xff]
                %374 = vst [vmem:[%s170 + $0x328] sm:$0xff] %v373
                %v375 = vld [vmem:[%s169 + $0x630] sm:$0xff]
                %376 = vst [vmem:[%s170 + $0x330] sm:$0xff] %v375
                %v377 = vld [vmem:[%s169 + $0x638] sm:$0xff]
                %378 = vst [vmem:[%s170 + $0x338] sm:$0xff] %v377
                %v379 = vld [vmem:[%s169 + $0x640] sm:$0xff]
                %380 = vst [vmem:[%s170 + $0x340] sm:$0xff] %v379
                %v381 = vld [vmem:[%s169 + $0x648] sm:$0xff]
                %382 = vst [vmem:[%s170 + $0x348] sm:$0xff] %v381
                %v383 = vld [vmem:[%s169 + $0x650] sm:$0xff]
                %384 = vst [vmem:[%s170 + $0x350] sm:$0xff] %v383
                %v385 = vld [vmem:[%s169 + $0x658] sm:$0xff]
                %386 = vst [vmem:[%s170 + $0x358] sm:$0xff] %v385
                %v387 = vld [vmem:[%s169 + $0x660] sm:$0xff]
                %388 = vst [vmem:[%s170 + $0x360] sm:$0xff] %v387
                %v389 = vld [vmem:[%s169 + $0x668] sm:$0xff]
                %390 = vst [vmem:[%s170 + $0x368] sm:$0xff] %v389
                %v391 = vld [vmem:[%s169 + $0x670] sm:$0xff]
                %392 = vst [vmem:[%s170 + $0x370] sm:$0xff] %v391
                %v393 = vld [vmem:[%s169 + $0x678] sm:$0xff]
                %394 = vst [vmem:[%s170 + $0x378] sm:$0xff] %v393
                %v395 = vld [vmem:[%s169 + $0x700] sm:$0xff]
                %396 = vst [vmem:[%s170 + $0x380] sm:$0xff] %v395
                %v397 = vld [vmem:[%s169 + $0x708] sm:$0xff]
                %398 = vst [vmem:[%s170 + $0x388] sm:$0xff] %v397
                %v399 = vld [vmem:[%s169 + $0x710] sm:$0xff]
                %400 = vst [vmem:[%s170 + $0x390] sm:$0xff] %v399
                %v401 = vld [vmem:[%s169 + $0x718] sm:$0xff]
                %402 = vst [vmem:[%s170 + $0x398] sm:$0xff] %v401
                %v403 = vld [vmem:[%s169 + $0x720] sm:$0xff]
                %404 = vst [vmem:[%s170 + $0x3a0] sm:$0xff] %v403
                %v405 = vld [vmem:[%s169 + $0x728] sm:$0xff]
                %406 = vst [vmem:[%s170 + $0x3a8] sm:$0xff] %v405
                %v407 = vld [vmem:[%s169 + $0x730] sm:$0xff]
                %408 = vst [vmem:[%s170 + $0x3b0] sm:$0xff] %v407
                %v409 = vld [vmem:[%s169 + $0x738] sm:$0xff]
                %410 = vst [vmem:[%s170 + $0x3b8] sm:$0xff] %v409
                %v411 = vld [vmem:[%s169 + $0x740] sm:$0xff]
                %412 = vst [vmem:[%s170 + $0x3c0] sm:$0xff] %v411
                %v413 = vld [vmem:[%s169 + $0x748] sm:$0xff]
                %414 = vst [vmem:[%s170 + $0x3c8] sm:$0xff] %v413
                %v415 = vld [vmem:[%s169 + $0x750] sm:$0xff]
                %416 = vst [vmem:[%s170 + $0x3d0] sm:$0xff] %v415
                %v417 = vld [vmem:[%s169 + $0x758] sm:$0xff]
                %418 = vst [vmem:[%s170 + $0x3d8] sm:$0xff] %v417
                %v419 = vld [vmem:[%s169 + $0x760] sm:$0xff]
                %420 = vst [vmem:[%s170 + $0x3e0] sm:$0xff] %v419
                %v421 = vld [vmem:[%s169 + $0x768] sm:$0xff]
                %422 = vst [vmem:[%s170 + $0x3e8] sm:$0xff] %v421
                %v423 = vld [vmem:[%s169 + $0x770] sm:$0xff]
                %424 = vst [vmem:[%s170 + $0x3f0] sm:$0xff] %v423
                %v425 = vld [vmem:[%s169 + $0x778] sm:$0xff]
                %426 = vst [vmem:[%s170 + $0x3f8] sm:$0xff] %v425
              $region45: #{spatiotemporal_conv_nobnr.3} parent=39 // loop_footer
                %s168 = sadd.s32 1, %s164
              $region46: #{spatiotemporal_conv_nobnr.3} parent=39 // loop_footer_branch
                %163 = sbr.rel target = $region42
              $region47: #{spatiotemporal_conv_nobnr.3} parent=39 // loop_exit
                _
            $region40: #{spatiotemporal_conv_nobnr.3} parent=31 // pred_fallthru
              _
          $region32: #{spatiotemporal_conv_nobnr.3} parent=27 // pred_fallthru
            _
          %695 = vnop
        $region28: #{spatiotemporal_conv_nobnr.3} parent=23 // pred_fallthru
          _
      $region24: #{spatiotemporal_conv_nobnr.3} parent=5 // pred_fallthru
        _
      %p696 = scmp.le.s32.totalorder 1, %s9
      %p697 = scmp.lt.s32.totalorder %s9, 5
      %p698 = pnand %p696, %p697
      %p699 = pneg %p698
      // Predicated region
      $region63: #{spatiotemporal_conv_nobnr.3} parent=5 // pred_check
        _
      $region64: #{spatiotemporal_conv_nobnr.3} parent=5 // pred_check_branch
        %701 = sbr.rel (%p698) target = $region66
      $region65: #{spatiotemporal_conv_nobnr.3} parent=5 // pred_region
        %s702 = ssub.s32 %s9, 1
        %s703 = sand.u32 %s36, 1
        %s704 = sand.u32 %s36, 1
        %s705 = smul.addr %s704, 1024
        %s706 = scalar_lea.vmem [#allocation3], %s705
        // Predicated region
        $region67: #{spatiotemporal_conv_nobnr.3} parent=65 // pred_check
          %p707 = pneg %p49
        $region68: #{spatiotemporal_conv_nobnr.3} parent=65 // pred_check_branch
          %709 = sbr.rel (%p707) target = $region70
        $region69: #{spatiotemporal_conv_nobnr.3} parent=65 // pred_region
          _
        $region70: #{spatiotemporal_conv_nobnr.3} parent=65 // pred_fallthru
          _
        %s710 = sand.u32 %s36, 1
        %s711 = sand.u32 %s36, 1
        %s712 = smul.addr %s711, 1024
        %s713 = scalar_lea.vmem [#allocation3], %s712
        %p714 = pneg %p49
        %p715 = pneg %p46
        %p716 = pneg %p70
        %p717 = pneg %p67
        %p718 = pneg %p91
        %p719 = pneg %p88
        %p720 = pneg %p119
        %p721 = pneg %p116
        %s722 = sand.u32 %s106, 1
        %s723 = sand.u32 %s106, 1
        %s724 = smul.addr %s723, 1024
        %s725 = scalar_lea.vmem [#allocation4], %s724
        %s726 = smul.u32 16, %s19
        %s727 = smul.u32 16, %s19
        %v728 = vld [vmem:[%s2] sm:$0x1]
        %v730 = vlaneseq
        %v731 = vshrl.u32 %v730, 7
        %v732 = vsub.s32 0, %v731
        %v733 = vrot.slane %v728, %v732
        %735 = vst [vmem:[#allocation2] sm:$0xff] %v733
        %736 = vst [vmem:[#allocation2 + $0x8] sm:$0xff] %v733
        %737 = vst [vmem:[#allocation2 + $0x10] sm:$0xff] %v733
        %738 = vst [vmem:[#allocation2 + $0x18] sm:$0xff] %v733
        %739 = vst [vmem:[#allocation2 + $0x20] sm:$0xff] %v733
        %740 = vst [vmem:[#allocation2 + $0x28] sm:$0xff] %v733
        %741 = vst [vmem:[#allocation2 + $0x30] sm:$0xff] %v733
        %742 = vst [vmem:[#allocation2 + $0x38] sm:$0xff] %v733
        %743 = vst [vmem:[#allocation2 + $0x40] sm:$0xff] %v733
        %744 = vst [vmem:[#allocation2 + $0x48] sm:$0xff] %v733
        %745 = vst [vmem:[#allocation2 + $0x50] sm:$0xff] %v733
        %746 = vst [vmem:[#allocation2 + $0x58] sm:$0xff] %v733
        %747 = vst [vmem:[#allocation2 + $0x60] sm:$0xff] %v733
        %748 = vst [vmem:[#allocation2 + $0x68] sm:$0xff] %v733
        %749 = vst [vmem:[#allocation2 + $0x70] sm:$0xff] %v733
        %750 = vst [vmem:[#allocation2 + $0x78] sm:$0xff] %v733
        %751 = vst [vmem:[#allocation2 + $0x80] sm:$0xff] %v733
        %752 = vst [vmem:[#allocation2 + $0x88] sm:$0xff] %v733
        %753 = vst [vmem:[#allocation2 + $0x90] sm:$0xff] %v733
        %754 = vst [vmem:[#allocation2 + $0x98] sm:$0xff] %v733
        %755 = vst [vmem:[#allocation2 + $0xa0] sm:$0xff] %v733
        %756 = vst [vmem:[#allocation2 + $0xa8] sm:$0xff] %v733
        %757 = vst [vmem:[#allocation2 + $0xb0] sm:$0xff] %v733
        %758 = vst [vmem:[#allocation2 + $0xb8] sm:$0xff] %v733
        %759 = vst [vmem:[#allocation2 + $0xc0] sm:$0xff] %v733
        %760 = vst [vmem:[#allocation2 + $0xc8] sm:$0xff] %v733
        %761 = vst [vmem:[#allocation2 + $0xd0] sm:$0xff] %v733
        %762 = vst [vmem:[#allocation2 + $0xd8] sm:$0xff] %v733
        %763 = vst [vmem:[#allocation2 + $0xe0] sm:$0xff] %v733
        %764 = vst [vmem:[#allocation2 + $0xe8] sm:$0xff] %v733
        %765 = vst [vmem:[#allocation2 + $0xf0] sm:$0xff] %v733
        %766 = vst [vmem:[#allocation2 + $0xf8] sm:$0xff] %v733
        %767 = vst [vmem:[#allocation2 + $0x100] sm:$0xff] %v733
        %768 = vst [vmem:[#allocation2 + $0x108] sm:$0xff] %v733
        %769 = vst [vmem:[#allocation2 + $0x110] sm:$0xff] %v733
        %770 = vst [vmem:[#allocation2 + $0x118] sm:$0xff] %v733
        %771 = vst [vmem:[#allocation2 + $0x120] sm:$0xff] %v733
        %772 = vst [vmem:[#allocation2 + $0x128] sm:$0xff] %v733
        %773 = vst [vmem:[#allocation2 + $0x130] sm:$0xff] %v733
        %774 = vst [vmem:[#allocation2 + $0x138] sm:$0xff] %v733
        %775 = vst [vmem:[#allocation2 + $0x140] sm:$0xff] %v733
        %776 = vst [vmem:[#allocation2 + $0x148] sm:$0xff] %v733
        %777 = vst [vmem:[#allocation2 + $0x150] sm:$0xff] %v733
        %778 = vst [vmem:[#allocation2 + $0x158] sm:$0xff] %v733
        %779 = vst [vmem:[#allocation2 + $0x160] sm:$0xff] %v733
        %780 = vst [vmem:[#allocation2 + $0x168] sm:$0xff] %v733
        %781 = vst [vmem:[#allocation2 + $0x170] sm:$0xff] %v733
        %782 = vst [vmem:[#allocation2 + $0x178] sm:$0xff] %v733
        %783 = vst [vmem:[#allocation2 + $0x180] sm:$0xff] %v733
        %784 = vst [vmem:[#allocation2 + $0x188] sm:$0xff] %v733
        %785 = vst [vmem:[#allocation2 + $0x190] sm:$0xff] %v733
        %786 = vst [vmem:[#allocation2 + $0x198] sm:$0xff] %v733
        %787 = vst [vmem:[#allocation2 + $0x1a0] sm:$0xff] %v733
        %788 = vst [vmem:[#allocation2 + $0x1a8] sm:$0xff] %v733
        %789 = vst [vmem:[#allocation2 + $0x1b0] sm:$0xff] %v733
        %790 = vst [vmem:[#allocation2 + $0x1b8] sm:$0xff] %v733
        %791 = vst [vmem:[#allocation2 + $0x1c0] sm:$0xff] %v733
        %792 = vst [vmem:[#allocation2 + $0x1c8] sm:$0xff] %v733
        %793 = vst [vmem:[#allocation2 + $0x1d0] sm:$0xff] %v733
        %794 = vst [vmem:[#allocation2 + $0x1d8] sm:$0xff] %v733
        %795 = vst [vmem:[#allocation2 + $0x1e0] sm:$0xff] %v733
        %796 = vst [vmem:[#allocation2 + $0x1e8] sm:$0xff] %v733
        %797 = vst [vmem:[#allocation2 + $0x1f0] sm:$0xff] %v733
        %798 = vst [vmem:[#allocation2 + $0x1f8] sm:$0xff] %v733
        %799 = vst [vmem:[#allocation2 + $0x200] sm:$0xff] %v733
        %800 = vst [vmem:[#allocation2 + $0x208] sm:$0xff] %v733
        %801 = vst [vmem:[#allocation2 + $0x210] sm:$0xff] %v733
        %802 = vst [vmem:[#allocation2 + $0x218] sm:$0xff] %v733
        %803 = vst [vmem:[#allocation2 + $0x220] sm:$0xff] %v733
        %804 = vst [vmem:[#allocation2 + $0x228] sm:$0xff] %v733
        %805 = vst [vmem:[#allocation2 + $0x230] sm:$0xff] %v733
        %806 = vst [vmem:[#allocation2 + $0x238] sm:$0xff] %v733
        %807 = vst [vmem:[#allocation2 + $0x240] sm:$0xff] %v733
        %808 = vst [vmem:[#allocation2 + $0x248] sm:$0xff] %v733
        %809 = vst [vmem:[#allocation2 + $0x250] sm:$0xff] %v733
        %810 = vst [vmem:[#allocation2 + $0x258] sm:$0xff] %v733
        %811 = vst [vmem:[#allocation2 + $0x260] sm:$0xff] %v733
        %812 = vst [vmem:[#allocation2 + $0x268] sm:$0xff] %v733
        %813 = vst [vmem:[#allocation2 + $0x270] sm:$0xff] %v733
        %814 = vst [vmem:[#allocation2 + $0x278] sm:$0xff] %v733
        %815 = vst [vmem:[#allocation2 + $0x280] sm:$0xff] %v733
        %816 = vst [vmem:[#allocation2 + $0x288] sm:$0xff] %v733
        %817 = vst [vmem:[#allocation2 + $0x290] sm:$0xff] %v733
        %818 = vst [vmem:[#allocation2 + $0x298] sm:$0xff] %v733
        %819 = vst [vmem:[#allocation2 + $0x2a0] sm:$0xff] %v733
        %820 = vst [vmem:[#allocation2 + $0x2a8] sm:$0xff] %v733
        %821 = vst [vmem:[#allocation2 + $0x2b0] sm:$0xff] %v733
        %822 = vst [vmem:[#allocation2 + $0x2b8] sm:$0xff] %v733
        %823 = vst [vmem:[#allocation2 + $0x2c0] sm:$0xff] %v733
        %824 = vst [vmem:[#allocation2 + $0x2c8] sm:$0xff] %v733
        %825 = vst [vmem:[#allocation2 + $0x2d0] sm:$0xff] %v733
        %826 = vst [vmem:[#allocation2 + $0x2d8] sm:$0xff] %v733
        %827 = vst [vmem:[#allocation2 + $0x2e0] sm:$0xff] %v733
        %828 = vst [vmem:[#allocation2 + $0x2e8] sm:$0xff] %v733
        %829 = vst [vmem:[#allocation2 + $0x2f0] sm:$0xff] %v733
        %830 = vst [vmem:[#allocation2 + $0x2f8] sm:$0xff] %v733
        %831 = vst [vmem:[#allocation2 + $0x300] sm:$0xff] %v733
        %832 = vst [vmem:[#allocation2 + $0x308] sm:$0xff] %v733
        %833 = vst [vmem:[#allocation2 + $0x310] sm:$0xff] %v733
        %834 = vst [vmem:[#allocation2 + $0x318] sm:$0xff] %v733
        %835 = vst [vmem:[#allocation2 + $0x320] sm:$0xff] %v733
        %836 = vst [vmem:[#allocation2 + $0x328] sm:$0xff] %v733
        %837 = vst [vmem:[#allocation2 + $0x330] sm:$0xff] %v733
        %838 = vst [vmem:[#allocation2 + $0x338] sm:$0xff] %v733
        %839 = vst [vmem:[#allocation2 + $0x340] sm:$0xff] %v733
        %840 = vst [vmem:[#allocation2 + $0x348] sm:$0xff] %v733
        %841 = vst [vmem:[#allocation2 + $0x350] sm:$0xff] %v733
        %842 = vst [vmem:[#allocation2 + $0x358] sm:$0xff] %v733
        %843 = vst [vmem:[#allocation2 + $0x360] sm:$0xff] %v733
        %844 = vst [vmem:[#allocation2 + $0x368] sm:$0xff] %v733
        %845 = vst [vmem:[#allocation2 + $0x370] sm:$0xff] %v733
        %846 = vst [vmem:[#allocation2 + $0x378] sm:$0xff] %v733
        %847 = vst [vmem:[#allocation2 + $0x380] sm:$0xff] %v733
        %848 = vst [vmem:[#allocation2 + $0x388] sm:$0xff] %v733
        %849 = vst [vmem:[#allocation2 + $0x390] sm:$0xff] %v733
        %850 = vst [vmem:[#allocation2 + $0x398] sm:$0xff] %v733
        %851 = vst [vmem:[#allocation2 + $0x3a0] sm:$0xff] %v733
        %852 = vst [vmem:[#allocation2 + $0x3a8] sm:$0xff] %v733
        %853 = vst [vmem:[#allocation2 + $0x3b0] sm:$0xff] %v733
        %854 = vst [vmem:[#allocation2 + $0x3b8] sm:$0xff] %v733
        %855 = vst [vmem:[#allocation2 + $0x3c0] sm:$0xff] %v733
        %856 = vst [vmem:[#allocation2 + $0x3c8] sm:$0xff] %v733
        %857 = vst [vmem:[#allocation2 + $0x3d0] sm:$0xff] %v733
        %858 = vst [vmem:[#allocation2 + $0x3d8] sm:$0xff] %v733
        %859 = vst [vmem:[#allocation2 + $0x3e0] sm:$0xff] %v733
        %860 = vst [vmem:[#allocation2 + $0x3e8] sm:$0xff] %v733
        %861 = vst [vmem:[#allocation2 + $0x3f0] sm:$0xff] %v733
        %862 = vst [vmem:[#allocation2 + $0x3f8] sm:$0xff] %v733
        %v863 = vld [vmem:[%s706] sm:$0xff]
        %v864 = vld [vmem:[%s706 + $0x8] sm:$0xff]
        %v865 = vld [vmem:[%s706 + $0x10] sm:$0xff]
        %v866 = vld [vmem:[%s706 + $0x18] sm:$0xff]
        %v867 = vld [vmem:[%s706 + $0x20] sm:$0xff]
        %v868 = vld [vmem:[%s706 + $0x28] sm:$0xff]
        %v869 = vld [vmem:[%s706 + $0x30] sm:$0xff]
        %v870 = vld [vmem:[%s706 + $0x38] sm:$0xff]
        %v871 = vld [vmem:[%s706 + $0x40] sm:$0xff]
        %v872 = vld [vmem:[%s706 + $0x48] sm:$0xff]
        %v873 = vld [vmem:[%s706 + $0x50] sm:$0xff]
        %v874 = vld [vmem:[%s706 + $0x58] sm:$0xff]
        %v875 = vld [vmem:[%s706 + $0x60] sm:$0xff]
        %v876 = vld [vmem:[%s706 + $0x68] sm:$0xff]
        %v877 = vld [vmem:[%s706 + $0x70] sm:$0xff]
        %v878 = vld [vmem:[%s706 + $0x78] sm:$0xff]
        %v879 = vld [vmem:[%s706 + $0x80] sm:$0xff]
        %v880 = vld [vmem:[%s706 + $0x88] sm:$0xff]
        %v881 = vld [vmem:[%s706 + $0x90] sm:$0xff]
        %v882 = vld [vmem:[%s706 + $0x98] sm:$0xff]
        %v883 = vld [vmem:[%s706 + $0xa0] sm:$0xff]
        %v884 = vld [vmem:[%s706 + $0xa8] sm:$0xff]
        %v885 = vld [vmem:[%s706 + $0xb0] sm:$0xff]
        %v886 = vld [vmem:[%s706 + $0xb8] sm:$0xff]
        %v887 = vld [vmem:[%s706 + $0xc0] sm:$0xff]
        %v888 = vld [vmem:[%s706 + $0xc8] sm:$0xff]
        %v889 = vld [vmem:[%s706 + $0xd0] sm:$0xff]
        %v890 = vld [vmem:[%s706 + $0xd8] sm:$0xff]
        %v891 = vld [vmem:[%s706 + $0xe0] sm:$0xff]
        %v892 = vld [vmem:[%s706 + $0xe8] sm:$0xff]
        %v893 = vld [vmem:[%s706 + $0xf0] sm:$0xff]
        %v894 = vld [vmem:[%s706 + $0xf8] sm:$0xff]
        %v895 = vld [vmem:[%s706 + $0x100] sm:$0xff]
        %v896 = vld [vmem:[%s706 + $0x108] sm:$0xff]
        %v897 = vld [vmem:[%s706 + $0x110] sm:$0xff]
        %v898 = vld [vmem:[%s706 + $0x118] sm:$0xff]
        %v899 = vld [vmem:[%s706 + $0x120] sm:$0xff]
        %v900 = vld [vmem:[%s706 + $0x128] sm:$0xff]
        %v901 = vld [vmem:[%s706 + $0x130] sm:$0xff]
        %v902 = vld [vmem:[%s706 + $0x138] sm:$0xff]
        %v903 = vld [vmem:[%s706 + $0x140] sm:$0xff]
        %v904 = vld [vmem:[%s706 + $0x148] sm:$0xff]
        %v905 = vld [vmem:[%s706 + $0x150] sm:$0xff]
        %v906 = vld [vmem:[%s706 + $0x158] sm:$0xff]
        %v907 = vld [vmem:[%s706 + $0x160] sm:$0xff]
        %v908 = vld [vmem:[%s706 + $0x168] sm:$0xff]
        %v909 = vld [vmem:[%s706 + $0x170] sm:$0xff]
        %v910 = vld [vmem:[%s706 + $0x178] sm:$0xff]
        %v911 = vld [vmem:[%s706 + $0x180] sm:$0xff]
        %v912 = vld [vmem:[%s706 + $0x188] sm:$0xff]
        %v913 = vld [vmem:[%s706 + $0x190] sm:$0xff]
        %v914 = vld [vmem:[%s706 + $0x198] sm:$0xff]
        %v915 = vld [vmem:[%s706 + $0x1a0] sm:$0xff]
        %v916 = vld [vmem:[%s706 + $0x1a8] sm:$0xff]
        %v917 = vld [vmem:[%s706 + $0x1b0] sm:$0xff]
        %v918 = vld [vmem:[%s706 + $0x1b8] sm:$0xff]
        %v919 = vld [vmem:[%s706 + $0x1c0] sm:$0xff]
        %v920 = vld [vmem:[%s706 + $0x1c8] sm:$0xff]
        %v921 = vld [vmem:[%s706 + $0x1d0] sm:$0xff]
        %v922 = vld [vmem:[%s706 + $0x1d8] sm:$0xff]
        %v923 = vld [vmem:[%s706 + $0x1e0] sm:$0xff]
        %v924 = vld [vmem:[%s706 + $0x1e8] sm:$0xff]
        %v925 = vld [vmem:[%s706 + $0x1f0] sm:$0xff]
        %v926 = vld [vmem:[%s706 + $0x1f8] sm:$0xff]
        %v927 = vld [vmem:[%s706 + $0x200] sm:$0xff]
        %v928 = vld [vmem:[%s706 + $0x208] sm:$0xff]
        %v929 = vld [vmem:[%s706 + $0x210] sm:$0xff]
        %v930 = vld [vmem:[%s706 + $0x218] sm:$0xff]
        %v931 = vld [vmem:[%s706 + $0x220] sm:$0xff]
        %v932 = vld [vmem:[%s706 + $0x228] sm:$0xff]
        %v933 = vld [vmem:[%s706 + $0x230] sm:$0xff]
        %v934 = vld [vmem:[%s706 + $0x238] sm:$0xff]
        %v935 = vld [vmem:[%s706 + $0x240] sm:$0xff]
        %v936 = vld [vmem:[%s706 + $0x248] sm:$0xff]
        %v937 = vld [vmem:[%s706 + $0x250] sm:$0xff]
        %v938 = vld [vmem:[%s706 + $0x258] sm:$0xff]
        %v939 = vld [vmem:[%s706 + $0x260] sm:$0xff]
        %v940 = vld [vmem:[%s706 + $0x268] sm:$0xff]
        %v941 = vld [vmem:[%s706 + $0x270] sm:$0xff]
        %v942 = vld [vmem:[%s706 + $0x278] sm:$0xff]
        %v943 = vld [vmem:[%s706 + $0x280] sm:$0xff]
        %v944 = vld [vmem:[%s706 + $0x288] sm:$0xff]
        %v945 = vld [vmem:[%s706 + $0x290] sm:$0xff]
        %v946 = vld [vmem:[%s706 + $0x298] sm:$0xff]
        %v947 = vld [vmem:[%s706 + $0x2a0] sm:$0xff]
        %v948 = vld [vmem:[%s706 + $0x2a8] sm:$0xff]
        %v949 = vld [vmem:[%s706 + $0x2b0] sm:$0xff]
        %v950 = vld [vmem:[%s706 + $0x2b8] sm:$0xff]
        %v951 = vld [vmem:[%s706 + $0x2c0] sm:$0xff]
        %v952 = vld [vmem:[%s706 + $0x2c8] sm:$0xff]
        %v953 = vld [vmem:[%s706 + $0x2d0] sm:$0xff]
        %v954 = vld [vmem:[%s706 + $0x2d8] sm:$0xff]
        %v955 = vld [vmem:[%s706 + $0x2e0] sm:$0xff]
        %v956 = vld [vmem:[%s706 + $0x2e8] sm:$0xff]
        %v957 = vld [vmem:[%s706 + $0x2f0] sm:$0xff]
        %v958 = vld [vmem:[%s706 + $0x2f8] sm:$0xff]
        %v959 = vld [vmem:[%s706 + $0x300] sm:$0xff]
        %v960 = vld [vmem:[%s706 + $0x308] sm:$0xff]
        %v961 = vld [vmem:[%s706 + $0x310] sm:$0xff]
        %v962 = vld [vmem:[%s706 + $0x318] sm:$0xff]
        %v963 = vld [vmem:[%s706 + $0x320] sm:$0xff]
        %v964 = vld [vmem:[%s706 + $0x328] sm:$0xff]
        %v965 = vld [vmem:[%s706 + $0x330] sm:$0xff]
        %v966 = vld [vmem:[%s706 + $0x338] sm:$0xff]
        %v967 = vld [vmem:[%s706 + $0x340] sm:$0xff]
        %v968 = vld [vmem:[%s706 + $0x348] sm:$0xff]
        %v969 = vld [vmem:[%s706 + $0x350] sm:$0xff]
        %v970 = vld [vmem:[%s706 + $0x358] sm:$0xff]
        %v971 = vld [vmem:[%s706 + $0x360] sm:$0xff]
        %v972 = vld [vmem:[%s706 + $0x368] sm:$0xff]
        %v973 = vld [vmem:[%s706 + $0x370] sm:$0xff]
        %v974 = vld [vmem:[%s706 + $0x378] sm:$0xff]
        %v975 = vld [vmem:[%s1] sm:$0xff]
        %v976 = vld [vmem:[%s1 + $0x8] sm:$0xff]
        %v977 = vld [vmem:[%s1 + $0x10] sm:$0xff]
        %v978 = vld [vmem:[%s1 + $0x18] sm:$0xff]
        %v979 = vld [vmem:[%s1 + $0x20] sm:$0xff]
        %v980 = vld [vmem:[%s1 + $0x28] sm:$0xff]
        %v981 = vld [vmem:[%s1 + $0x30] sm:$0xff]
        %v982 = vld [vmem:[%s1 + $0x38] sm:$0xff]
        %v983 = vld [vmem:[%s1 + $0x40] sm:$0xff]
        %v984 = vld [vmem:[%s1 + $0x48] sm:$0xff]
        %v985 = vld [vmem:[%s1 + $0x50] sm:$0xff]
        %v986 = vld [vmem:[%s1 + $0x58] sm:$0xff]
        %v987 = vld [vmem:[%s1 + $0x60] sm:$0xff]
        %v988 = vld [vmem:[%s1 + $0x68] sm:$0xff]
        %v989 = vld [vmem:[%s1 + $0x70] sm:$0xff]
        %v990 = vld [vmem:[%s1 + $0x78] sm:$0xff]
        %991 = vmatprep.subr.mxu0 0.0
        %992 = vmatpush1.msra.mxu0 %v975
        %993 = vmatprep.subr.mxu0 0.0
        %994 = vmatpush1.msra.mxu0 %v976
        %995 = vmatprep.subr.mxu0 0.0
        %996 = vmatpush1.msra.mxu0 %v977
        %997 = vmatprep.subr.mxu0 0.0
        %998 = vmatpush1.msra.mxu0 %v978
        %999 = vmatprep.subr.mxu0 0.0
        %1000 = vmatpush1.msra.mxu0 %v979
        %1001 = vmatprep.subr.mxu0 0.0
        %1002 = vmatpush1.msra.mxu0 %v980
        %1003 = vmatprep.subr.mxu0 0.0
        %1004 = vmatpush1.msra.mxu0 %v981
        %1005 = vmatprep.subr.mxu0 0.0
        %1006 = vmatpush1.msra.mxu0 %v982
        %1007 = vmatprep.subr.mxu0 0.0
        %1008 = vmatpush1.msra.mxu0 %v983
        %1009 = vmatprep.subr.mxu0 0.0
        %1010 = vmatpush1.msra.mxu0 %v984
        %1011 = vmatprep.subr.mxu0 0.0
        %1012 = vmatpush1.msra.mxu0 %v985
        %1013 = vmatprep.subr.mxu0 0.0
        %1014 = vmatpush1.msra.mxu0 %v986
        %1015 = vmatprep.subr.mxu0 0.0
        %1016 = vmatpush1.msra.mxu0 %v987
        %1017 = vmatprep.subr.mxu0 0.0
        %1018 = vmatpush1.msra.mxu0 %v988
        %1019 = vmatprep.subr.mxu0 0.0
        %1020 = vmatpush1.msra.mxu0 %v989
        %1021 = vmatprep.subr.mxu0 0.0
        %1022 = vmatpush1.msra.mxu0 %v990
        %1023 = vmatprep.subr.mxu0 0.0
        %1024 = vmatpush1.msra.mxu0 0.0
        %1025 = vmatprep.subr.mxu0 0.0
        %1026 = vmatpush1.msra.mxu0 0.0
        %1027 = vmatprep.subr.mxu0 0.0
        %1028 = vmatpush1.msra.mxu0 0.0
        %1029 = vmatprep.subr.mxu0 0.0
        %1030 = vmatpush1.msra.mxu0 0.0
        %1031 = vmatprep.subr.mxu0 0.0
        %1032 = vmatpush1.msra.mxu0 0.0
        %1033 = vmatprep.subr.mxu0 0.0
        %1034 = vmatpush1.msra.mxu0 0.0
        %1035 = vmatprep.subr.mxu0 0.0
        %1036 = vmatpush1.msra.mxu0 0.0
        %1037 = vmatprep.subr.mxu0 0.0
        %1038 = vmatpush1.msra.mxu0 0.0
        %1039 = vmatprep.subr.mxu0 0.0
        %1040 = vmatpush1.msra.mxu0 0.0
        %1041 = vmatprep.subr.mxu0 0.0
        %1042 = vmatpush1.msra.mxu0 0.0
        %1043 = vmatprep.subr.mxu0 0.0
        %1044 = vmatpush1.msra.mxu0 0.0
        %1045 = vmatprep.subr.mxu0 0.0
        %1046 = vmatpush1.msra.mxu0 0.0
        %1047 = vmatprep.subr.mxu0 0.0
        %1048 = vmatpush1.msra.mxu0 0.0
        %1049 = vmatprep.subr.mxu0 0.0
        %1050 = vmatpush1.msra.mxu0 0.0
        %1051 = vmatprep.subr.mxu0 0.0
        %1052 = vmatpush1.msra.mxu0 0.0
        %1053 = vmatprep.subr.mxu0 0.0
        %1054 = vmatpush1.msra.mxu0 0.0
        %1055 = vmatprep.mubr.f32.mxu0 0.0
        %1056 = vmatmul.mubr.f32.gmra.mrb[0].mxu0 %v863
        %v1057 = vpop.f32.mrb[0].mxu0
        %v1058 = vadd.f32 0.0, %v1057
        %v1059 = vpop.f32.mrb[0].mxu0
        %1060 = vmatprep.mubr.f32.mxu0 0.0
        %1061 = vmatmul.mubr.f32.gmra.mrb[0].mxu0 %v864
        %v1062 = vpop.f32.mrb[0].mxu0
        %v1063 = vadd.f32 0.0, %v1062
        %v1064 = vpop.f32.mrb[0].mxu0
        %1065 = vmatprep.mubr.f32.mxu0 0.0
        %1066 = vmatmul.mubr.f32.gmra.mrb[0].mxu0 %v865
        %v1067 = vpop.f32.mrb[0].mxu0
        %v1068 = vadd.f32 0.0, %v1067
        %v1069 = vpop.f32.mrb[0].mxu0
        %1070 = vmatprep.mubr.f32.mxu0 0.0
        %1071 = vmatmul.mubr.f32.gmra.mrb[0].mxu0 %v866
        %v1072 = vpop.f32.mrb[0].mxu0
        %v1073 = vadd.f32 0.0, %v1072
        %v1074 = vpop.f32.mrb[0].mxu0
        %1075 = vmatprep.mubr.f32.mxu0 0.0
        %1076 = vmatmul.mubr.f32.gmra.mrb[0].mxu0 %v867
        %v1077 = vpop.f32.mrb[0].mxu0
        %v1078 = vadd.f32 0.0, %v1077
        %v1079 = vpop.f32.mrb[0].mxu0
        %1080 = vmatprep.mubr.f32.mxu0 0.0
        %1081 = vmatmul.mubr.f32.gmra.mrb[0].mxu0 %v868
        %v1082 = vpop.f32.mrb[0].mxu0
        %v1083 = vadd.f32 0.0, %v1082
        %v1084 = vpop.f32.mrb[0].mxu0
        %1085 = vmatprep.mubr.f32.mxu0 0.0
        %1086 = vmatmul.mubr.f32.gmra.mrb[0].mxu0 %v869
        %v1087 = vpop.f32.mrb[0].mxu0
        %v1088 = vadd.f32 0.0, %v1087
        %v1089 = vpop.f32.mrb[0].mxu0
        %1090 = vmatprep.mubr.f32.mxu0 0.0
        %1091 = vmatmul.mubr.f32.gmra.mrb[0].mxu0 %v870
        %v1092 = vpop.f32.mrb[0].mxu0
        %v1093 = vadd.f32 0.0, %v1092
        %v1094 = vpop.f32.mrb[0].mxu0
        %1095 = vmatprep.mubr.f32.mxu0 0.0
        %1096 = vmatmul.mubr.f32.gmra.mrb[0].mxu0 %v871
        %v1097 = vpop.f32.mrb[0].mxu0
        %v1098 = vadd.f32 0.0, %v1097
        %v1099 = vpop.f32.mrb[0].mxu0
        %1100 = vmatprep.mubr.f32.mxu0 0.0
        %1101 = vmatmul.mubr.f32.gmra.mrb[0].mxu0 %v872
        %v1102 = vpop.f32.mrb[0].mxu0
        %v1103 = vadd.f32 0.0, %v1102
        %v1104 = vpop.f32.mrb[0].mxu0
        %1105 = vmatprep.mubr.f32.mxu0 0.0
        %1106 = vmatmul.mubr.f32.gmra.mrb[0].mxu0 %v873
        %v1107 = vpop.f32.mrb[0].mxu0
        %v1108 = vadd.f32 0.0, %v1107
        %v1109 = vpop.f32.mrb[0].mxu0
        %1110 = vmatprep.mubr.f32.mxu0 0.0
        %1111 = vmatmul.mubr.f32.gmra.mrb[0].mxu0 %v874
        %v1112 = vpop.f32.mrb[0].mxu0
        %v1113 = vadd.f32 0.0, %v1112
        %v1114 = vpop.f32.mrb[0].mxu0
        %1115 = vmatprep.mubr.f32.mxu0 0.0
        %1116 = vmatmul.mubr.f32.gmra.mrb[0].mxu0 %v875
        %v1117 = vpop.f32.mrb[0].mxu0
        %v1118 = vadd.f32 0.0, %v1117
        %v1119 = vpop.f32.mrb[0].mxu0
        %1120 = vmatprep.mubr.f32.mxu0 0.0
        %1121 = vmatmul.mubr.f32.gmra.mrb[0].mxu0 %v876
        %v1122 = vpop.f32.mrb[0].mxu0
        %v1123 = vadd.f32 0.0, %v1122
        %v1124 = vpop.f32.mrb[0].mxu0
        %1125 = vmatprep.mubr.f32.mxu0 0.0
        %1126 = vmatmul.mubr.f32.gmra.mrb[0].mxu0 %v877
        %v1127 = vpop.f32.mrb[0].mxu0
        %v1128 = vadd.f32 0.0, %v1127
        %v1129 = vpop.f32.mrb[0].mxu0
        %1130 = vmatprep.mubr.f32.mxu0 0.0
        %1131 = vmatmul.mubr.f32.gmra.mrb[0].mxu0 %v878
        %v1132 = vpop.f32.mrb[0].mxu0
        %v1133 = vadd.f32 0.0, %v1132
        %v1134 = vpop.f32.mrb[0].mxu0
        %1135 = vmatprep.mubr.f32.mxu0 0.0
        %1136 = vmatmul.mubr.f32.gmra.mrb[0].mxu0 %v879
        %v1137 = vpop.f32.mrb[0].mxu0
        %v1138 = vadd.f32 0.0, %v1137
        %v1139 = vpop.f32.mrb[0].mxu0
        %1140 = vmatprep.mubr.f32.mxu0 0.0
        %1141 = vmatmul.mubr.f32.gmra.mrb[0].mxu0 %v880
        %v1142 = vpop.f32.mrb[0].mxu0
        %v1143 = vadd.f32 0.0, %v1142
        %v1144 = vpop.f32.mrb[0].mxu0
        %1145 = vmatprep.mubr.f32.mxu0 0.0
        %1146 = vmatmul.mubr.f32.gmra.mrb[0].mxu0 %v881
        %v1147 = vpop.f32.mrb[0].mxu0
        %v1148 = vadd.f32 0.0, %v1147
        %v1149 = vpop.f32.mrb[0].mxu0
        %1150 = vmatprep.mubr.f32.mxu0 0.0
        %1151 = vmatmul.mubr.f32.gmra.mrb[0].mxu0 %v882
        %v1152 = vpop.f32.mrb[0].mxu0
        %v1153 = vadd.f32 0.0, %v1152
        %v1154 = vpop.f32.mrb[0].mxu0
        %1155 = vmatprep.mubr.f32.mxu0 0.0
        %1156 = vmatmul.mubr.f32.gmra.mrb[0].mxu0 %v883
        %v1157 = vpop.f32.mrb[0].mxu0
        %v1158 = vadd.f32 0.0, %v1157
        %v1159 = vpop.f32.mrb[0].mxu0
        %1160 = vmatprep.mubr.f32.mxu0 0.0
        %1161 = vmatmul.mubr.f32.gmra.mrb[0].mxu0 %v884
        %v1162 = vpop.f32.mrb[0].mxu0
        %v1163 = vadd.f32 0.0, %v1162
        %v1164 = vpop.f32.mrb[0].mxu0
        %1165 = vmatprep.mubr.f32.mxu0 0.0
        %1166 = vmatmul.mubr.f32.gmra.mrb[0].mxu0 %v885
        %v1167 = vpop.f32.mrb[0].mxu0
        %v1168 = vadd.f32 0.0, %v1167
        %v1169 = vpop.f32.mrb[0].mxu0
        %1170 = vmatprep.mubr.f32.mxu0 0.0
        %1171 = vmatmul.mubr.f32.gmra.mrb[0].mxu0 %v886
        %v1172 = vpop.f32.mrb[0].mxu0
        %v1173 = vadd.f32 0.0, %v1172
        %v1174 = vpop.f32.mrb[0].mxu0
        %1175 = vmatprep.mubr.f32.mxu0 0.0
        %1176 = vmatmul.mubr.f32.gmra.mrb[0].mxu0 %v887
        %v1177 = vpop.f32.mrb[0].mxu0
        %v1178 = vadd.f32 0.0, %v1177
        %v1179 = vpop.f32.mrb[0].mxu0
        %1180 = vmatprep.mubr.f32.mxu0 0.0
        %1181 = vmatmul.mubr.f32.gmra.mrb[0].mxu0 %v888
        %v1182 = vpop.f32.mrb[0].mxu0
        %v1183 = vadd.f32 0.0, %v1182
        %v1184 = vpop.f32.mrb[0].mxu0
        %1185 = vmatprep.mubr.f32.mxu0 0.0
        %1186 = vmatmul.mubr.f32.gmra.mrb[0].mxu0 %v889
        %v1187 = vpop.f32.mrb[0].mxu0
        %v1188 = vadd.f32 0.0, %v1187
        %v1189 = vpop.f32.mrb[0].mxu0
        %1190 = vmatprep.mubr.f32.mxu0 0.0
        %1191 = vmatmul.mubr.f32.gmra.mrb[0].mxu0 %v890
        %v1192 = vpop.f32.mrb[0].mxu0
        %v1193 = vadd.f32 0.0, %v1192
        %v1194 = vpop.f32.mrb[0].mxu0
        %1195 = vmatprep.mubr.f32.mxu0 0.0
        %1196 = vmatmul.mubr.f32.gmra.mrb[0].mxu0 %v891
        %v1197 = vpop.f32.mrb[0].mxu0
        %v1198 = vadd.f32 0.0, %v1197
        %v1199 = vpop.f32.mrb[0].mxu0
        %1200 = vmatprep.mubr.f32.mxu0 0.0
        %1201 = vmatmul.mubr.f32.gmra.mrb[0].mxu0 %v892
        %v1202 = vpop.f32.mrb[0].mxu0
        %v1203 = vadd.f32 0.0, %v1202
        %v1204 = vpop.f32.mrb[0].mxu0
        %1205 = vmatprep.mubr.f32.mxu0 0.0
        %1206 = vmatmul.mubr.f32.gmra.mrb[0].mxu0 %v893
        %v1207 = vpop.f32.mrb[0].mxu0
        %v1208 = vadd.f32 0.0, %v1207
        %v1209 = vpop.f32.mrb[0].mxu0
        %1210 = vmatprep.mubr.f32.mxu0 0.0
        %1211 = vmatmul.mubr.f32.gmra.mrb[0].mxu0 %v894
        %v1212 = vpop.f32.mrb[0].mxu0
        %v1213 = vadd.f32 0.0, %v1212
        %v1214 = vpop.f32.mrb[0].mxu0
        %1215 = vmatprep.mubr.f32.mxu0 0.0
        %1216 = vmatmul.mubr.f32.gmra.mrb[0].mxu0 %v895
        %v1217 = vpop.f32.mrb[0].mxu0
        %v1218 = vadd.f32 0.0, %v1217
        %v1219 = vpop.f32.mrb[0].mxu0
        %1220 = vmatprep.mubr.f32.mxu0 0.0
        %1221 = vmatmul.mubr.f32.gmra.mrb[0].mxu0 %v896
        %v1222 = vpop.f32.mrb[0].mxu0
        %v1223 = vadd.f32 0.0, %v1222
        %v1224 = vpop.f32.mrb[0].mxu0
        %1225 = vmatprep.mubr.f32.mxu0 0.0
        %1226 = vmatmul.mubr.f32.gmra.mrb[0].mxu0 %v897
        %v1227 = vpop.f32.mrb[0].mxu0
        %v1228 = vadd.f32 0.0, %v1227
        %v1229 = vpop.f32.mrb[0].mxu0
        %1230 = vmatprep.mubr.f32.mxu0 0.0
        %1231 = vmatmul.mubr.f32.gmra.mrb[0].mxu0 %v898
        %v1232 = vpop.f32.mrb[0].mxu0
        %v1233 = vadd.f32 0.0, %v1232
        %v1234 = vpop.f32.mrb[0].mxu0
        %1235 = vmatprep.mubr.f32.mxu0 0.0
        %1236 = vmatmul.mubr.f32.gmra.mrb[0].mxu0 %v899
        %v1237 = vpop.f32.mrb[0].mxu0
        %v1238 = vadd.f32 0.0, %v1237
        %v1239 = vpop.f32.mrb[0].mxu0
        %1240 = vmatprep.mubr.f32.mxu0 0.0
        %1241 = vmatmul.mubr.f32.gmra.mrb[0].mxu0 %v900
        %v1242 = vpop.f32.mrb[0].mxu0
        %v1243 = vadd.f32 0.0, %v1242
        %v1244 = vpop.f32.mrb[0].mxu0
        %1245 = vmatprep.mubr.f32.mxu0 0.0
        %1246 = vmatmul.mubr.f32.gmra.mrb[0].mxu0 %v901
        %v1247 = vpop.f32.mrb[0].mxu0
        %v1248 = vadd.f32 0.0, %v1247
        %v1249 = vpop.f32.mrb[0].mxu0
        %1250 = vmatprep.mubr.f32.mxu0 0.0
        %1251 = vmatmul.mubr.f32.gmra.mrb[0].mxu0 %v902
        %v1252 = vpop.f32.mrb[0].mxu0
        %v1253 = vadd.f32 0.0, %v1252
        %v1254 = vpop.f32.mrb[0].mxu0
        %1255 = vmatprep.mubr.f32.mxu0 0.0
        %1256 = vmatmul.mubr.f32.gmra.mrb[0].mxu0 %v903
        %v1257 = vpop.f32.mrb[0].mxu0
        %v1258 = vadd.f32 0.0, %v1257
        %v1259 = vpop.f32.mrb[0].mxu0
        %1260 = vmatprep.mubr.f32.mxu0 0.0
        %1261 = vmatmul.mubr.f32.gmra.mrb[0].mxu0 %v904
        %v1262 = vpop.f32.mrb[0].mxu0
        %v1263 = vadd.f32 0.0, %v1262
        %v1264 = vpop.f32.mrb[0].mxu0
        %1265 = vmatprep.mubr.f32.mxu0 0.0
        %1266 = vmatmul.mubr.f32.gmra.mrb[0].mxu0 %v905
        %v1267 = vpop.f32.mrb[0].mxu0
        %v1268 = vadd.f32 0.0, %v1267
        %v1269 = vpop.f32.mrb[0].mxu0
        %1270 = vmatprep.mubr.f32.mxu0 0.0
        %1271 = vmatmul.mubr.f32.gmra.mrb[0].mxu0 %v906
        %v1272 = vpop.f32.mrb[0].mxu0
        %v1273 = vadd.f32 0.0, %v1272
        %v1274 = vpop.f32.mrb[0].mxu0
        %1275 = vmatprep.mubr.f32.mxu0 0.0
        %1276 = vmatmul.mubr.f32.gmra.mrb[0].mxu0 %v907
        %v1277 = vpop.f32.mrb[0].mxu0
        %v1278 = vadd.f32 0.0, %v1277
        %v1279 = vpop.f32.mrb[0].mxu0
        %1280 = vmatprep.mubr.f32.mxu0 0.0
        %1281 = vmatmul.mubr.f32.gmra.mrb[0].mxu0 %v908
        %v1282 = vpop.f32.mrb[0].mxu0
        %v1283 = vadd.f32 0.0, %v1282
        %v1284 = vpop.f32.mrb[0].mxu0
        %1285 = vmatprep.mubr.f32.mxu0 0.0
        %1286 = vmatmul.mubr.f32.gmra.mrb[0].mxu0 %v909
        %v1287 = vpop.f32.mrb[0].mxu0
        %v1288 = vadd.f32 0.0, %v1287
        %v1289 = vpop.f32.mrb[0].mxu0
        %1290 = vmatprep.mubr.f32.mxu0 0.0
        %1291 = vmatmul.mubr.f32.gmra.mrb[0].mxu0 %v910
        %v1292 = vpop.f32.mrb[0].mxu0
        %v1293 = vadd.f32 0.0, %v1292
        %v1294 = vpop.f32.mrb[0].mxu0
        %1295 = vmatprep.mubr.f32.mxu0 0.0
        %1296 = vmatmul.mubr.f32.gmra.mrb[0].mxu0 %v911
        %v1297 = vpop.f32.mrb[0].mxu0
        %v1298 = vadd.f32 0.0, %v1297
        %v1299 = vpop.f32.mrb[0].mxu0
        %1300 = vmatprep.mubr.f32.mxu0 0.0
        %1301 = vmatmul.mubr.f32.gmra.mrb[0].mxu0 %v912
        %v1302 = vpop.f32.mrb[0].mxu0
        %v1303 = vadd.f32 0.0, %v1302
        %v1304 = vpop.f32.mrb[0].mxu0
        %1305 = vmatprep.mubr.f32.mxu0 0.0
        %1306 = vmatmul.mubr.f32.gmra.mrb[0].mxu0 %v913
        %v1307 = vpop.f32.mrb[0].mxu0
        %v1308 = vadd.f32 0.0, %v1307
        %v1309 = vpop.f32.mrb[0].mxu0
        %1310 = vmatprep.mubr.f32.mxu0 0.0
        %1311 = vmatmul.mubr.f32.gmra.mrb[0].mxu0 %v914
        %v1312 = vpop.f32.mrb[0].mxu0
        %v1313 = vadd.f32 0.0, %v1312
        %v1314 = vpop.f32.mrb[0].mxu0
        %1315 = vmatprep.mubr.f32.mxu0 0.0
        %1316 = vmatmul.mubr.f32.gmra.mrb[0].mxu0 %v915
        %v1317 = vpop.f32.mrb[0].mxu0
        %v1318 = vadd.f32 0.0, %v1317
        %v1319 = vpop.f32.mrb[0].mxu0
        %1320 = vmatprep.mubr.f32.mxu0 0.0
        %1321 = vmatmul.mubr.f32.gmra.mrb[0].mxu0 %v916
        %v1322 = vpop.f32.mrb[0].mxu0
        %v1323 = vadd.f32 0.0, %v1322
        %v1324 = vpop.f32.mrb[0].mxu0
        %1325 = vmatprep.mubr.f32.mxu0 0.0
        %1326 = vmatmul.mubr.f32.gmra.mrb[0].mxu0 %v917
        %v1327 = vpop.f32.mrb[0].mxu0
        %v1328 = vadd.f32 0.0, %v1327
        %v1329 = vpop.f32.mrb[0].mxu0
        %1330 = vmatprep.mubr.f32.mxu0 0.0
        %1331 = vmatmul.mubr.f32.gmra.mrb[0].mxu0 %v918
        %v1332 = vpop.f32.mrb[0].mxu0
        %v1333 = vadd.f32 0.0, %v1332
        %v1334 = vpop.f32.mrb[0].mxu0
        %1335 = vmatprep.mubr.f32.mxu0 0.0
        %1336 = vmatmul.mubr.f32.gmra.mrb[0].mxu0 %v919
        %v1337 = vpop.f32.mrb[0].mxu0
        %v1338 = vadd.f32 0.0, %v1337
        %v1339 = vpop.f32.mrb[0].mxu0
        %1340 = vmatprep.mubr.f32.mxu0 0.0
        %1341 = vmatmul.mubr.f32.gmra.mrb[0].mxu0 %v920
        %v1342 = vpop.f32.mrb[0].mxu0
        %v1343 = vadd.f32 0.0, %v1342
        %v1344 = vpop.f32.mrb[0].mxu0
        %1345 = vmatprep.mubr.f32.mxu0 0.0
        %1346 = vmatmul.mubr.f32.gmra.mrb[0].mxu0 %v921
        %v1347 = vpop.f32.mrb[0].mxu0
        %v1348 = vadd.f32 0.0, %v1347
        %v1349 = vpop.f32.mrb[0].mxu0
        %1350 = vmatprep.mubr.f32.mxu0 0.0
        %1351 = vmatmul.mubr.f32.gmra.mrb[0].mxu0 %v922
        %v1352 = vpop.f32.mrb[0].mxu0
        %v1353 = vadd.f32 0.0, %v1352
        %v1354 = vpop.f32.mrb[0].mxu0
        %1355 = vmatprep.mubr.f32.mxu0 0.0
        %1356 = vmatmul.mubr.f32.gmra.mrb[0].mxu0 %v923
        %v1357 = vpop.f32.mrb[0].mxu0
        %v1358 = vadd.f32 0.0, %v1357
        %v1359 = vpop.f32.mrb[0].mxu0
        %1360 = vmatprep.mubr.f32.mxu0 0.0
        %1361 = vmatmul.mubr.f32.gmra.mrb[0].mxu0 %v924
        %v1362 = vpop.f32.mrb[0].mxu0
        %v1363 = vadd.f32 0.0, %v1362
        %v1364 = vpop.f32.mrb[0].mxu0
        %1365 = vmatprep.mubr.f32.mxu0 0.0
        %1366 = vmatmul.mubr.f32.gmra.mrb[0].mxu0 %v925
        %v1367 = vpop.f32.mrb[0].mxu0
        %v1368 = vadd.f32 0.0, %v1367
        %v1369 = vpop.f32.mrb[0].mxu0
        %1370 = vmatprep.mubr.f32.mxu0 0.0
        %1371 = vmatmul.mubr.f32.gmra.mrb[0].mxu0 %v926
        %v1372 = vpop.f32.mrb[0].mxu0
        %v1373 = vadd.f32 0.0, %v1372
        %v1374 = vpop.f32.mrb[0].mxu0
        %1375 = vmatprep.mubr.f32.mxu0 0.0
        %1376 = vmatmul.mubr.f32.gmra.mrb[0].mxu0 %v927
        %v1377 = vpop.f32.mrb[0].mxu0
        %v1378 = vadd.f32 0.0, %v1377
        %v1379 = vpop.f32.mrb[0].mxu0
        %1380 = vmatprep.mubr.f32.mxu0 0.0
        %1381 = vmatmul.mubr.f32.gmra.mrb[0].mxu0 %v928
        %v1382 = vpop.f32.mrb[0].mxu0
        %v1383 = vadd.f32 0.0, %v1382
        %v1384 = vpop.f32.mrb[0].mxu0
        %1385 = vmatprep.mubr.f32.mxu0 0.0
        %1386 = vmatmul.mubr.f32.gmra.mrb[0].mxu0 %v929
        %v1387 = vpop.f32.mrb[0].mxu0
        %v1388 = vadd.f32 0.0, %v1387
        %v1389 = vpop.f32.mrb[0].mxu0
        %1390 = vmatprep.mubr.f32.mxu0 0.0
        %1391 = vmatmul.mubr.f32.gmra.mrb[0].mxu0 %v930
        %v1392 = vpop.f32.mrb[0].mxu0
        %v1393 = vadd.f32 0.0, %v1392
        %v1394 = vpop.f32.mrb[0].mxu0
        %1395 = vmatprep.mubr.f32.mxu0 0.0
        %1396 = vmatmul.mubr.f32.gmra.mrb[0].mxu0 %v931
        %v1397 = vpop.f32.mrb[0].mxu0
        %v1398 = vadd.f32 0.0, %v1397
        %v1399 = vpop.f32.mrb[0].mxu0
        %1400 = vmatprep.mubr.f32.mxu0 0.0
        %1401 = vmatmul.mubr.f32.gmra.mrb[0].mxu0 %v932
        %v1402 = vpop.f32.mrb[0].mxu0
        %v1403 = vadd.f32 0.0, %v1402
        %v1404 = vpop.f32.mrb[0].mxu0
        %1405 = vmatprep.mubr.f32.mxu0 0.0
        %1406 = vmatmul.mubr.f32.gmra.mrb[0].mxu0 %v933
        %v1407 = vpop.f32.mrb[0].mxu0
        %v1408 = vadd.f32 0.0, %v1407
        %v1409 = vpop.f32.mrb[0].mxu0
        %1410 = vmatprep.mubr.f32.mxu0 0.0
        %1411 = vmatmul.mubr.f32.gmra.mrb[0].mxu0 %v934
        %v1412 = vpop.f32.mrb[0].mxu0
        %v1413 = vadd.f32 0.0, %v1412
        %v1414 = vpop.f32.mrb[0].mxu0
        %1415 = vmatprep.mubr.f32.mxu0 0.0
        %1416 = vmatmul.mubr.f32.gmra.mrb[0].mxu0 %v935
        %v1417 = vpop.f32.mrb[0].mxu0
        %v1418 = vadd.f32 0.0, %v1417
        %v1419 = vpop.f32.mrb[0].mxu0
        %1420 = vmatprep.mubr.f32.mxu0 0.0
        %1421 = vmatmul.mubr.f32.gmra.mrb[0].mxu0 %v936
        %v1422 = vpop.f32.mrb[0].mxu0
        %v1423 = vadd.f32 0.0, %v1422
        %v1424 = vpop.f32.mrb[0].mxu0
        %1425 = vmatprep.mubr.f32.mxu0 0.0
        %1426 = vmatmul.mubr.f32.gmra.mrb[0].mxu0 %v937
        %v1427 = vpop.f32.mrb[0].mxu0
        %v1428 = vadd.f32 0.0, %v1427
        %v1429 = vpop.f32.mrb[0].mxu0
        %1430 = vmatprep.mubr.f32.mxu0 0.0
        %1431 = vmatmul.mubr.f32.gmra.mrb[0].mxu0 %v938
        %v1432 = vpop.f32.mrb[0].mxu0
        %v1433 = vadd.f32 0.0, %v1432
        %v1434 = vpop.f32.mrb[0].mxu0
        %1435 = vmatprep.mubr.f32.mxu0 0.0
        %1436 = vmatmul.mubr.f32.gmra.mrb[0].mxu0 %v939
        %v1437 = vpop.f32.mrb[0].mxu0
        %v1438 = vadd.f32 0.0, %v1437
        %v1439 = vpop.f32.mrb[0].mxu0
        %1440 = vmatprep.mubr.f32.mxu0 0.0
        %1441 = vmatmul.mubr.f32.gmra.mrb[0].mxu0 %v940
        %v1442 = vpop.f32.mrb[0].mxu0
        %v1443 = vadd.f32 0.0, %v1442
        %v1444 = vpop.f32.mrb[0].mxu0
        %1445 = vmatprep.mubr.f32.mxu0 0.0
        %1446 = vmatmul.mubr.f32.gmra.mrb[0].mxu0 %v941
        %v1447 = vpop.f32.mrb[0].mxu0
        %v1448 = vadd.f32 0.0, %v1447
        %v1449 = vpop.f32.mrb[0].mxu0
        %1450 = vmatprep.mubr.f32.mxu0 0.0
        %1451 = vmatmul.mubr.f32.gmra.mrb[0].mxu0 %v942
        %v1452 = vpop.f32.mrb[0].mxu0
        %v1453 = vadd.f32 0.0, %v1452
        %v1454 = vpop.f32.mrb[0].mxu0
        %1455 = vmatprep.mubr.f32.mxu0 0.0
        %1456 = vmatmul.mubr.f32.gmra.mrb[0].mxu0 %v943
        %v1457 = vpop.f32.mrb[0].mxu0
        %v1458 = vadd.f32 0.0, %v1457
        %v1459 = vpop.f32.mrb[0].mxu0
        %1460 = vmatprep.mubr.f32.mxu0 0.0
        %1461 = vmatmul.mubr.f32.gmra.mrb[0].mxu0 %v944
        %v1462 = vpop.f32.mrb[0].mxu0
        %v1463 = vadd.f32 0.0, %v1462
        %v1464 = vpop.f32.mrb[0].mxu0
        %1465 = vmatprep.mubr.f32.mxu0 0.0
        %1466 = vmatmul.mubr.f32.gmra.mrb[0].mxu0 %v945
        %v1467 = vpop.f32.mrb[0].mxu0
        %v1468 = vadd.f32 0.0, %v1467
        %v1469 = vpop.f32.mrb[0].mxu0
        %1470 = vmatprep.mubr.f32.mxu0 0.0
        %1471 = vmatmul.mubr.f32.gmra.mrb[0].mxu0 %v946
        %v1472 = vpop.f32.mrb[0].mxu0
        %v1473 = vadd.f32 0.0, %v1472
        %v1474 = vpop.f32.mrb[0].mxu0
        %1475 = vmatprep.mubr.f32.mxu0 0.0
        %1476 = vmatmul.mubr.f32.gmra.mrb[0].mxu0 %v947
        %v1477 = vpop.f32.mrb[0].mxu0
        %v1478 = vadd.f32 0.0, %v1477
        %v1479 = vpop.f32.mrb[0].mxu0
        %1480 = vmatprep.mubr.f32.mxu0 0.0
        %1481 = vmatmul.mubr.f32.gmra.mrb[0].mxu0 %v948
        %v1482 = vpop.f32.mrb[0].mxu0
        %v1483 = vadd.f32 0.0, %v1482
        %v1484 = vpop.f32.mrb[0].mxu0
        %1485 = vmatprep.mubr.f32.mxu0 0.0
        %1486 = vmatmul.mubr.f32.gmra.mrb[0].mxu0 %v949
        %v1487 = vpop.f32.mrb[0].mxu0
        %v1488 = vadd.f32 0.0, %v1487
        %v1489 = vpop.f32.mrb[0].mxu0
        %1490 = vmatprep.mubr.f32.mxu0 0.0
        %1491 = vmatmul.mubr.f32.gmra.mrb[0].mxu0 %v950
        %v1492 = vpop.f32.mrb[0].mxu0
        %v1493 = vadd.f32 0.0, %v1492
        %v1494 = vpop.f32.mrb[0].mxu0
        %1495 = vmatprep.mubr.f32.mxu0 0.0
        %1496 = vmatmul.mubr.f32.gmra.mrb[0].mxu0 %v951
        %v1497 = vpop.f32.mrb[0].mxu0
        %v1498 = vadd.f32 0.0, %v1497
        %v1499 = vpop.f32.mrb[0].mxu0
        %1500 = vmatprep.mubr.f32.mxu0 0.0
        %1501 = vmatmul.mubr.f32.gmra.mrb[0].mxu0 %v952
        %v1502 = vpop.f32.mrb[0].mxu0
        %v1503 = vadd.f32 0.0, %v1502
        %v1504 = vpop.f32.mrb[0].mxu0
        %1505 = vmatprep.mubr.f32.mxu0 0.0
        %1506 = vmatmul.mubr.f32.gmra.mrb[0].mxu0 %v953
        %v1507 = vpop.f32.mrb[0].mxu0
        %v1508 = vadd.f32 0.0, %v1507
        %v1509 = vpop.f32.mrb[0].mxu0
        %1510 = vmatprep.mubr.f32.mxu0 0.0
        %1511 = vmatmul.mubr.f32.gmra.mrb[0].mxu0 %v954
        %v1512 = vpop.f32.mrb[0].mxu0
        %v1513 = vadd.f32 0.0, %v1512
        %v1514 = vpop.f32.mrb[0].mxu0
        %1515 = vmatprep.mubr.f32.mxu0 0.0
        %1516 = vmatmul.mubr.f32.gmra.mrb[0].mxu0 %v955
        %v1517 = vpop.f32.mrb[0].mxu0
        %v1518 = vadd.f32 0.0, %v1517
        %v1519 = vpop.f32.mrb[0].mxu0
        %1520 = vmatprep.mubr.f32.mxu0 0.0
        %1521 = vmatmul.mubr.f32.gmra.mrb[0].mxu0 %v956
        %v1522 = vpop.f32.mrb[0].mxu0
        %v1523 = vadd.f32 0.0, %v1522
        %v1524 = vpop.f32.mrb[0].mxu0
        %1525 = vmatprep.mubr.f32.mxu0 0.0
        %1526 = vmatmul.mubr.f32.gmra.mrb[0].mxu0 %v957
        %v1527 = vpop.f32.mrb[0].mxu0
        %v1528 = vadd.f32 0.0, %v1527
        %v1529 = vpop.f32.mrb[0].mxu0
        %1530 = vmatprep.mubr.f32.mxu0 0.0
        %1531 = vmatmul.mubr.f32.gmra.mrb[0].mxu0 %v958
        %v1532 = vpop.f32.mrb[0].mxu0
        %v1533 = vadd.f32 0.0, %v1532
        %v1534 = vpop.f32.mrb[0].mxu0
        %1535 = vmatprep.mubr.f32.mxu0 0.0
        %1536 = vmatmul.mubr.f32.gmra.mrb[0].mxu0 %v959
        %v1537 = vpop.f32.mrb[0].mxu0
        %v1538 = vadd.f32 0.0, %v1537
        %v1539 = vpop.f32.mrb[0].mxu0
        %1540 = vmatprep.mubr.f32.mxu0 0.0
        %1541 = vmatmul.mubr.f32.gmra.mrb[0].mxu0 %v960
        %v1542 = vpop.f32.mrb[0].mxu0
        %v1543 = vadd.f32 0.0, %v1542
        %v1544 = vpop.f32.mrb[0].mxu0
        %1545 = vmatprep.mubr.f32.mxu0 0.0
        %1546 = vmatmul.mubr.f32.gmra.mrb[0].mxu0 %v961
        %v1547 = vpop.f32.mrb[0].mxu0
        %v1548 = vadd.f32 0.0, %v1547
        %v1549 = vpop.f32.mrb[0].mxu0
        %1550 = vmatprep.mubr.f32.mxu0 0.0
        %1551 = vmatmul.mubr.f32.gmra.mrb[0].mxu0 %v962
        %v1552 = vpop.f32.mrb[0].mxu0
        %v1553 = vadd.f32 0.0, %v1552
        %v1554 = vpop.f32.mrb[0].mxu0
        %1555 = vmatprep.mubr.f32.mxu0 0.0
        %1556 = vmatmul.mubr.f32.gmra.mrb[0].mxu0 %v963
        %v1557 = vpop.f32.mrb[0].mxu0
        %v1558 = vadd.f32 0.0, %v1557
        %v1559 = vpop.f32.mrb[0].mxu0
        %1560 = vmatprep.mubr.f32.mxu0 0.0
        %1561 = vmatmul.mubr.f32.gmra.mrb[0].mxu0 %v964
        %v1562 = vpop.f32.mrb[0].mxu0
        %v1563 = vadd.f32 0.0, %v1562
        %v1564 = vpop.f32.mrb[0].mxu0
        %1565 = vmatprep.mubr.f32.mxu0 0.0
        %1566 = vmatmul.mubr.f32.gmra.mrb[0].mxu0 %v965
        %v1567 = vpop.f32.mrb[0].mxu0
        %v1568 = vadd.f32 0.0, %v1567
        %v1569 = vpop.f32.mrb[0].mxu0
        %1570 = vmatprep.mubr.f32.mxu0 0.0
        %1571 = vmatmul.mubr.f32.gmra.mrb[0].mxu0 %v966
        %v1572 = vpop.f32.mrb[0].mxu0
        %v1573 = vadd.f32 0.0, %v1572
        %v1574 = vpop.f32.mrb[0].mxu0
        %1575 = vmatprep.mubr.f32.mxu0 0.0
        %1576 = vmatmul.mubr.f32.gmra.mrb[0].mxu0 %v967
        %v1577 = vpop.f32.mrb[0].mxu0
        %v1578 = vadd.f32 0.0, %v1577
        %v1579 = vpop.f32.mrb[0].mxu0
        %1580 = vmatprep.mubr.f32.mxu0 0.0
        %1581 = vmatmul.mubr.f32.gmra.mrb[0].mxu0 %v968
        %v1582 = vpop.f32.mrb[0].mxu0
        %v1583 = vadd.f32 0.0, %v1582
        %v1584 = vpop.f32.mrb[0].mxu0
        %1585 = vmatprep.mubr.f32.mxu0 0.0
        %1586 = vmatmul.mubr.f32.gmra.mrb[0].mxu0 %v969
        %v1587 = vpop.f32.mrb[0].mxu0
        %v1588 = vadd.f32 0.0, %v1587
        %v1589 = vpop.f32.mrb[0].mxu0
        %1590 = vmatprep.mubr.f32.mxu0 0.0
        %1591 = vmatmul.mubr.f32.gmra.mrb[0].mxu0 %v970
        %v1592 = vpop.f32.mrb[0].mxu0
        %v1593 = vadd.f32 0.0, %v1592
        %v1594 = vpop.f32.mrb[0].mxu0
        %1595 = vmatprep.mubr.f32.mxu0 0.0
        %1596 = vmatmul.mubr.f32.gmra.mrb[0].mxu0 %v971
        %v1597 = vpop.f32.mrb[0].mxu0
        %v1598 = vadd.f32 0.0, %v1597
        %v1599 = vpop.f32.mrb[0].mxu0
        %1600 = vmatprep.mubr.f32.mxu0 0.0
        %1601 = vmatmul.mubr.f32.gmra.mrb[0].mxu0 %v972
        %v1602 = vpop.f32.mrb[0].mxu0
        %v1603 = vadd.f32 0.0, %v1602
        %v1604 = vpop.f32.mrb[0].mxu0
        %1605 = vmatprep.mubr.f32.mxu0 0.0
        %1606 = vmatmul.mubr.f32.gmra.mrb[0].mxu0 %v973
        %v1607 = vpop.f32.mrb[0].mxu0
        %v1608 = vadd.f32 0.0, %v1607
        %v1609 = vpop.f32.mrb[0].mxu0
        %1610 = vmatprep.mubr.f32.mxu0 0.0
        %1611 = vmatmul.mubr.f32.gmra.mrb[0].mxu0 %v974
        %v1612 = vpop.f32.mrb[0].mxu0
        %v1613 = vadd.f32 0.0, %v1612
        %v1614 = vpop.f32.mrb[0].mxu0
        %1615 = vdwg.mxu0
        %s1616 = scalar_lea.vmem [#allocation2], 128
        %v1617 = vld [vmem:[%s1616] sm:$0xff]
        %v1618 = vld [vmem:[%s1616 + $0x8] sm:$0xff]
        %v1619 = vld [vmem:[%s1616 + $0x10] sm:$0xff]
        %v1620 = vld [vmem:[%s1616 + $0x18] sm:$0xff]
        %v1621 = vld [vmem:[%s1616 + $0x20] sm:$0xff]
        %v1622 = vld [vmem:[%s1616 + $0x28] sm:$0xff]
        %v1623 = vld [vmem:[%s1616 + $0x30] sm:$0xff]
        %v1624 = vld [vmem:[%s1616 + $0x38] sm:$0xff]
        %v1625 = vld [vmem:[%s1616 + $0x40] sm:$0xff]
        %v1626 = vld [vmem:[%s1616 + $0x48] sm:$0xff]
        %v1627 = vld [vmem:[%s1616 + $0x50] sm:$0xff]
        %v1628 = vld [vmem:[%s1616 + $0x58] sm:$0xff]
        %v1629 = vld [vmem:[%s1616 + $0x60] sm:$0xff]
        %v1630 = vld [vmem:[%s1616 + $0x68] sm:$0xff]
        %v1631 = vld [vmem:[%s1616 + $0x70] sm:$0xff]
        %v1632 = vld [vmem:[%s1616 + $0x78] sm:$0xff]
        %v1633 = vld [vmem:[%s1616 + $0x80] sm:$0xff]
        %v1634 = vld [vmem:[%s1616 + $0x88] sm:$0xff]
        %v1635 = vld [vmem:[%s1616 + $0x90] sm:$0xff]
        %v1636 = vld [vmem:[%s1616 + $0x98] sm:$0xff]
        %v1637 = vld [vmem:[%s1616 + $0xa0] sm:$0xff]
        %v1638 = vld [vmem:[%s1616 + $0xa8] sm:$0xff]
        %v1639 = vld [vmem:[%s1616 + $0xb0] sm:$0xff]
        %v1640 = vld [vmem:[%s1616 + $0xb8] sm:$0xff]
        %v1641 = vld [vmem:[%s1616 + $0xc0] sm:$0xff]
        %v1642 = vld [vmem:[%s1616 + $0xc8] sm:$0xff]
        %v1643 = vld [vmem:[%s1616 + $0xd0] sm:$0xff]
        %v1644 = vld [vmem:[%s1616 + $0xd8] sm:$0xff]
        %v1645 = vld [vmem:[%s1616 + $0xe0] sm:$0xff]
        %v1646 = vld [vmem:[%s1616 + $0xe8] sm:$0xff]
        %v1647 = vld [vmem:[%s1616 + $0xf0] sm:$0xff]
        %v1648 = vld [vmem:[%s1616 + $0xf8] sm:$0xff]
        %v1649 = vld [vmem:[%s1616 + $0x100] sm:$0xff]
        %v1650 = vld [vmem:[%s1616 + $0x108] sm:$0xff]
        %v1651 = vld [vmem:[%s1616 + $0x110] sm:$0xff]
        %v1652 = vld [vmem:[%s1616 + $0x118] sm:$0xff]
        %v1653 = vld [vmem:[%s1616 + $0x120] sm:$0xff]
        %v1654 = vld [vmem:[%s1616 + $0x128] sm:$0xff]
        %v1655 = vld [vmem:[%s1616 + $0x130] sm:$0xff]
        %v1656 = vld [vmem:[%s1616 + $0x138] sm:$0xff]
        %v1657 = vld [vmem:[%s1616 + $0x140] sm:$0xff]
        %v1658 = vld [vmem:[%s1616 + $0x148] sm:$0xff]
        %v1659 = vld [vmem:[%s1616 + $0x150] sm:$0xff]
        %v1660 = vld [vmem:[%s1616 + $0x158] sm:$0xff]
        %v1661 = vld [vmem:[%s1616 + $0x160] sm:$0xff]
        %v1662 = vld [vmem:[%s1616 + $0x168] sm:$0xff]
        %v1663 = vld [vmem:[%s1616 + $0x170] sm:$0xff]
        %v1664 = vld [vmem:[%s1616 + $0x178] sm:$0xff]
        %v1665 = vld [vmem:[%s1616 + $0x180] sm:$0xff]
        %v1666 = vld [vmem:[%s1616 + $0x188] sm:$0xff]
        %v1667 = vld [vmem:[%s1616 + $0x190] sm:$0xff]
        %v1668 = vld [vmem:[%s1616 + $0x198] sm:$0xff]
        %v1669 = vld [vmem:[%s1616 + $0x1a0] sm:$0xff]
        %v1670 = vld [vmem:[%s1616 + $0x1a8] sm:$0xff]
        %v1671 = vld [vmem:[%s1616 + $0x1b0] sm:$0xff]
        %v1672 = vld [vmem:[%s1616 + $0x1b8] sm:$0xff]
        %v1673 = vld [vmem:[%s1616 + $0x1c0] sm:$0xff]
        %v1674 = vld [vmem:[%s1616 + $0x1c8] sm:$0xff]
        %v1675 = vld [vmem:[%s1616 + $0x1d0] sm:$0xff]
        %v1676 = vld [vmem:[%s1616 + $0x1d8] sm:$0xff]
        %v1677 = vld [vmem:[%s1616 + $0x1e0] sm:$0xff]
        %v1678 = vld [vmem:[%s1616 + $0x1e8] sm:$0xff]
        %v1679 = vld [vmem:[%s1616 + $0x1f0] sm:$0xff]
        %v1680 = vld [vmem:[%s1616 + $0x1f8] sm:$0xff]
        %v1681 = vld [vmem:[%s1616 + $0x200] sm:$0xff]
        %v1682 = vld [vmem:[%s1616 + $0x208] sm:$0xff]
        %v1683 = vld [vmem:[%s1616 + $0x210] sm:$0xff]
        %v1684 = vld [vmem:[%s1616 + $0x218] sm:$0xff]
        %v1685 = vld [vmem:[%s1616 + $0x220] sm:$0xff]
        %v1686 = vld [vmem:[%s1616 + $0x228] sm:$0xff]
        %v1687 = vld [vmem:[%s1616 + $0x230] sm:$0xff]
        %v1688 = vld [vmem:[%s1616 + $0x238] sm:$0xff]
        %v1689 = vld [vmem:[%s1616 + $0x240] sm:$0xff]
        %v1690 = vld [vmem:[%s1616 + $0x248] sm:$0xff]
        %v1691 = vld [vmem:[%s1616 + $0x250] sm:$0xff]
        %v1692 = vld [vmem:[%s1616 + $0x258] sm:$0xff]
        %v1693 = vld [vmem:[%s1616 + $0x260] sm:$0xff]
        %v1694 = vld [vmem:[%s1616 + $0x268] sm:$0xff]
        %v1695 = vld [vmem:[%s1616 + $0x270] sm:$0xff]
        %v1696 = vld [vmem:[%s1616 + $0x278] sm:$0xff]
        %v1697 = vld [vmem:[%s1616 + $0x280] sm:$0xff]
        %v1698 = vld [vmem:[%s1616 + $0x288] sm:$0xff]
        %v1699 = vld [vmem:[%s1616 + $0x290] sm:$0xff]
        %v1700 = vld [vmem:[%s1616 + $0x298] sm:$0xff]
        %v1701 = vld [vmem:[%s1616 + $0x2a0] sm:$0xff]
        %v1702 = vld [vmem:[%s1616 + $0x2a8] sm:$0xff]
        %v1703 = vld [vmem:[%s1616 + $0x2b0] sm:$0xff]
        %v1704 = vld [vmem:[%s1616 + $0x2b8] sm:$0xff]
        %v1705 = vld [vmem:[%s1616 + $0x2c0] sm:$0xff]
        %v1706 = vld [vmem:[%s1616 + $0x2c8] sm:$0xff]
        %v1707 = vld [vmem:[%s1616 + $0x2d0] sm:$0xff]
        %v1708 = vld [vmem:[%s1616 + $0x2d8] sm:$0xff]
        %v1709 = vld [vmem:[%s1616 + $0x2e0] sm:$0xff]
        %v1710 = vld [vmem:[%s1616 + $0x2e8] sm:$0xff]
        %v1711 = vld [vmem:[%s1616 + $0x2f0] sm:$0xff]
        %v1712 = vld [vmem:[%s1616 + $0x2f8] sm:$0xff]
        %v1713 = vld [vmem:[%s1616 + $0x300] sm:$0xff]
        %v1714 = vld [vmem:[%s1616 + $0x308] sm:$0xff]
        %v1715 = vld [vmem:[%s1616 + $0x310] sm:$0xff]
        %v1716 = vld [vmem:[%s1616 + $0x318] sm:$0xff]
        %v1717 = vld [vmem:[%s1616 + $0x320] sm:$0xff]
        %v1718 = vld [vmem:[%s1616 + $0x328] sm:$0xff]
        %v1719 = vld [vmem:[%s1616 + $0x330] sm:$0xff]
        %v1720 = vld [vmem:[%s1616 + $0x338] sm:$0xff]
        %v1721 = vld [vmem:[%s1616 + $0x340] sm:$0xff]
        %v1722 = vld [vmem:[%s1616 + $0x348] sm:$0xff]
        %v1723 = vld [vmem:[%s1616 + $0x350] sm:$0xff]
        %v1724 = vld [vmem:[%s1616 + $0x358] sm:$0xff]
        %v1725 = vld [vmem:[%s1616 + $0x360] sm:$0xff]
        %v1726 = vld [vmem:[%s1616 + $0x368] sm:$0xff]
        %v1727 = vld [vmem:[%s1616 + $0x370] sm:$0xff]
        %v1728 = vld [vmem:[%s1616 + $0x378] sm:$0xff]
        %v1729 = vadd.f32 %v1617, %v1058
        %v1730 = vadd.f32 %v1618, %v1063
        %v1731 = vadd.f32 %v1619, %v1068
        %v1732 = vadd.f32 %v1620, %v1073
        %v1733 = vadd.f32 %v1621, %v1078
        %v1734 = vadd.f32 %v1622, %v1083
        %v1735 = vadd.f32 %v1623, %v1088
        %v1736 = vadd.f32 %v1624, %v1093
        %v1737 = vadd.f32 %v1625, %v1098
        %v1738 = vadd.f32 %v1626, %v1103
        %v1739 = vadd.f32 %v1627, %v1108
        %v1740 = vadd.f32 %v1628, %v1113
        %v1741 = vadd.f32 %v1629, %v1118
        %v1742 = vadd.f32 %v1630, %v1123
        %v1743 = vadd.f32 %v1631, %v1128
        %v1744 = vadd.f32 %v1632, %v1133
        %v1745 = vadd.f32 %v1633, %v1138
        %v1746 = vadd.f32 %v1634, %v1143
        %v1747 = vadd.f32 %v1635, %v1148
        %v1748 = vadd.f32 %v1636, %v1153
        %v1749 = vadd.f32 %v1637, %v1158
        %v1750 = vadd.f32 %v1638, %v1163
        %v1751 = vadd.f32 %v1639, %v1168
        %v1752 = vadd.f32 %v1640, %v1173
        %v1753 = vadd.f32 %v1641, %v1178
        %v1754 = vadd.f32 %v1642, %v1183
        %v1755 = vadd.f32 %v1643, %v1188
        %v1756 = vadd.f32 %v1644, %v1193
        %v1757 = vadd.f32 %v1645, %v1198
        %v1758 = vadd.f32 %v1646, %v1203
        %v1759 = vadd.f32 %v1647, %v1208
        %v1760 = vadd.f32 %v1648, %v1213
        %v1761 = vadd.f32 %v1649, %v1218
        %v1762 = vadd.f32 %v1650, %v1223
        %v1763 = vadd.f32 %v1651, %v1228
        %v1764 = vadd.f32 %v1652, %v1233
        %v1765 = vadd.f32 %v1653, %v1238
        %v1766 = vadd.f32 %v1654, %v1243
        %v1767 = vadd.f32 %v1655, %v1248
        %v1768 = vadd.f32 %v1656, %v1253
        %v1769 = vadd.f32 %v1657, %v1258
        %v1770 = vadd.f32 %v1658, %v1263
        %v1771 = vadd.f32 %v1659, %v1268
        %v1772 = vadd.f32 %v1660, %v1273
        %v1773 = vadd.f32 %v1661, %v1278
        %v1774 = vadd.f32 %v1662, %v1283
        %v1775 = vadd.f32 %v1663, %v1288
        %v1776 = vadd.f32 %v1664, %v1293
        %v1777 = vadd.f32 %v1665, %v1298
        %v1778 = vadd.f32 %v1666, %v1303
        %v1779 = vadd.f32 %v1667, %v1308
        %v1780 = vadd.f32 %v1668, %v1313
        %v1781 = vadd.f32 %v1669, %v1318
        %v1782 = vadd.f32 %v1670, %v1323
        %v1783 = vadd.f32 %v1671, %v1328
        %v1784 = vadd.f32 %v1672, %v1333
        %v1785 = vadd.f32 %v1673, %v1338
        %v1786 = vadd.f32 %v1674, %v1343
        %v1787 = vadd.f32 %v1675, %v1348
        %v1788 = vadd.f32 %v1676, %v1353
        %v1789 = vadd.f32 %v1677, %v1358
        %v1790 = vadd.f32 %v1678, %v1363
        %v1791 = vadd.f32 %v1679, %v1368
        %v1792 = vadd.f32 %v1680, %v1373
        %v1793 = vadd.f32 %v1681, %v1378
        %v1794 = vadd.f32 %v1682, %v1383
        %v1795 = vadd.f32 %v1683, %v1388
        %v1796 = vadd.f32 %v1684, %v1393
        %v1797 = vadd.f32 %v1685, %v1398
        %v1798 = vadd.f32 %v1686, %v1403
        %v1799 = vadd.f32 %v1687, %v1408
        %v1800 = vadd.f32 %v1688, %v1413
        %v1801 = vadd.f32 %v1689, %v1418
        %v1802 = vadd.f32 %v1690, %v1423
        %v1803 = vadd.f32 %v1691, %v1428
        %v1804 = vadd.f32 %v1692, %v1433
        %v1805 = vadd.f32 %v1693, %v1438
        %v1806 = vadd.f32 %v1694, %v1443
        %v1807 = vadd.f32 %v1695, %v1448
        %v1808 = vadd.f32 %v1696, %v1453
        %v1809 = vadd.f32 %v1697, %v1458
        %v1810 = vadd.f32 %v1698, %v1463
        %v1811 = vadd.f32 %v1699, %v1468
        %v1812 = vadd.f32 %v1700, %v1473
        %v1813 = vadd.f32 %v1701, %v1478
        %v1814 = vadd.f32 %v1702, %v1483
        %v1815 = vadd.f32 %v1703, %v1488
        %v1816 = vadd.f32 %v1704, %v1493
        %v1817 = vadd.f32 %v1705, %v1498
        %v1818 = vadd.f32 %v1706, %v1503
        %v1819 = vadd.f32 %v1707, %v1508
        %v1820 = vadd.f32 %v1708, %v1513
        %v1821 = vadd.f32 %v1709, %v1518
        %v1822 = vadd.f32 %v1710, %v1523
        %v1823 = vadd.f32 %v1711, %v1528
        %v1824 = vadd.f32 %v1712, %v1533
        %v1825 = vadd.f32 %v1713, %v1538
        %v1826 = vadd.f32 %v1714, %v1543
        %v1827 = vadd.f32 %v1715, %v1548
        %v1828 = vadd.f32 %v1716, %v1553
        %v1829 = vadd.f32 %v1717, %v1558
        %v1830 = vadd.f32 %v1718, %v1563
        %v1831 = vadd.f32 %v1719, %v1568
        %v1832 = vadd.f32 %v1720, %v1573
        %v1833 = vadd.f32 %v1721, %v1578
        %v1834 = vadd.f32 %v1722, %v1583
        %v1835 = vadd.f32 %v1723, %v1588
        %v1836 = vadd.f32 %v1724, %v1593
        %v1837 = vadd.f32 %v1725, %v1598
        %v1838 = vadd.f32 %v1726, %v1603
        %v1839 = vadd.f32 %v1727, %v1608
        %v1840 = vadd.f32 %v1728, %v1613
        %1841 = vst [vmem:[%s1616] sm:$0xff] %v1729
        %1842 = vst [vmem:[%s1616 + $0x8] sm:$0xff] %v1730
        %1843 = vst [vmem:[%s1616 + $0x10] sm:$0xff] %v1731
        %1844 = vst [vmem:[%s1616 + $0x18] sm:$0xff] %v1732
        %1845 = vst [vmem:[%s1616 + $0x20] sm:$0xff] %v1733
        %1846 = vst [vmem:[%s1616 + $0x28] sm:$0xff] %v1734
        %1847 = vst [vmem:[%s1616 + $0x30] sm:$0xff] %v1735
        %1848 = vst [vmem:[%s1616 + $0x38] sm:$0xff] %v1736
        %1849 = vst [vmem:[%s1616 + $0x40] sm:$0xff] %v1737
        %1850 = vst [vmem:[%s1616 + $0x48] sm:$0xff] %v1738
        %1851 = vst [vmem:[%s1616 + $0x50] sm:$0xff] %v1739
        %1852 = vst [vmem:[%s1616 + $0x58] sm:$0xff] %v1740
        %1853 = vst [vmem:[%s1616 + $0x60] sm:$0xff] %v1741
        %1854 = vst [vmem:[%s1616 + $0x68] sm:$0xff] %v1742
        %1855 = vst [vmem:[%s1616 + $0x70] sm:$0xff] %v1743
        %1856 = vst [vmem:[%s1616 + $0x78] sm:$0xff] %v1744
        %1857 = vst [vmem:[%s1616 + $0x80] sm:$0xff] %v1745
        %1858 = vst [vmem:[%s1616 + $0x88] sm:$0xff] %v1746
        %1859 = vst [vmem:[%s1616 + $0x90] sm:$0xff] %v1747
        %1860 = vst [vmem:[%s1616 + $0x98] sm:$0xff] %v1748
        %1861 = vst [vmem:[%s1616 + $0xa0] sm:$0xff] %v1749
        %1862 = vst [vmem:[%s1616 + $0xa8] sm:$0xff] %v1750
        %1863 = vst [vmem:[%s1616 + $0xb0] sm:$0xff] %v1751
        %1864 = vst [vmem:[%s1616 + $0xb8] sm:$0xff] %v1752
        %1865 = vst [vmem:[%s1616 + $0xc0] sm:$0xff] %v1753
        %1866 = vst [vmem:[%s1616 + $0xc8] sm:$0xff] %v1754
        %1867 = vst [vmem:[%s1616 + $0xd0] sm:$0xff] %v1755
        %1868 = vst [vmem:[%s1616 + $0xd8] sm:$0xff] %v1756
        %1869 = vst [vmem:[%s1616 + $0xe0] sm:$0xff] %v1757
        %1870 = vst [vmem:[%s1616 + $0xe8] sm:$0xff] %v1758
        %1871 = vst [vmem:[%s1616 + $0xf0] sm:$0xff] %v1759
        %1872 = vst [vmem:[%s1616 + $0xf8] sm:$0xff] %v1760
        %1873 = vst [vmem:[%s1616 + $0x100] sm:$0xff] %v1761
        %1874 = vst [vmem:[%s1616 + $0x108] sm:$0xff] %v1762
        %1875 = vst [vmem:[%s1616 + $0x110] sm:$0xff] %v1763
        %1876 = vst [vmem:[%s1616 + $0x118] sm:$0xff] %v1764
        %1877 = vst [vmem:[%s1616 + $0x120] sm:$0xff] %v1765
        %1878 = vst [vmem:[%s1616 + $0x128] sm:$0xff] %v1766
        %1879 = vst [vmem:[%s1616 + $0x130] sm:$0xff] %v1767
        %1880 = vst [vmem:[%s1616 + $0x138] sm:$0xff] %v1768
        %1881 = vst [vmem:[%s1616 + $0x140] sm:$0xff] %v1769
        %1882 = vst [vmem:[%s1616 + $0x148] sm:$0xff] %v1770
        %1883 = vst [vmem:[%s1616 + $0x150] sm:$0xff] %v1771
        %1884 = vst [vmem:[%s1616 + $0x158] sm:$0xff] %v1772
        %1885 = vst [vmem:[%s1616 + $0x160] sm:$0xff] %v1773
        %1886 = vst [vmem:[%s1616 + $0x168] sm:$0xff] %v1774
        %1887 = vst [vmem:[%s1616 + $0x170] sm:$0xff] %v1775
        %1888 = vst [vmem:[%s1616 + $0x178] sm:$0xff] %v1776
        %1889 = vst [vmem:[%s1616 + $0x180] sm:$0xff] %v1777
        %1890 = vst [vmem:[%s1616 + $0x188] sm:$0xff] %v1778
        %1891 = vst [vmem:[%s1616 + $0x190] sm:$0xff] %v1779
        %1892 = vst [vmem:[%s1616 + $0x198] sm:$0xff] %v1780
        %1893 = vst [vmem:[%s1616 + $0x1a0] sm:$0xff] %v1781
        %1894 = vst [vmem:[%s1616 + $0x1a8] sm:$0xff] %v1782
        %1895 = vst [vmem:[%s1616 + $0x1b0] sm:$0xff] %v1783
        %1896 = vst [vmem:[%s1616 + $0x1b8] sm:$0xff] %v1784
        %1897 = vst [vmem:[%s1616 + $0x1c0] sm:$0xff] %v1785
        %1898 = vst [vmem:[%s1616 + $0x1c8] sm:$0xff] %v1786
        %1899 = vst [vmem:[%s1616 + $0x1d0] sm:$0xff] %v1787
        %1900 = vst [vmem:[%s1616 + $0x1d8] sm:$0xff] %v1788
        %1901 = vst [vmem:[%s1616 + $0x1e0] sm:$0xff] %v1789
        %1902 = vst [vmem:[%s1616 + $0x1e8] sm:$0xff] %v1790
        %1903 = vst [vmem:[%s1616 + $0x1f0] sm:$0xff] %v1791
        %1904 = vst [vmem:[%s1616 + $0x1f8] sm:$0xff] %v1792
        %1905 = vst [vmem:[%s1616 + $0x200] sm:$0xff] %v1793
        %1906 = vst [vmem:[%s1616 + $0x208] sm:$0xff] %v1794
        %1907 = vst [vmem:[%s1616 + $0x210] sm:$0xff] %v1795
        %1908 = vst [vmem:[%s1616 + $0x218] sm:$0xff] %v1796
        %1909 = vst [vmem:[%s1616 + $0x220] sm:$0xff] %v1797
        %1910 = vst [vmem:[%s1616 + $0x228] sm:$0xff] %v1798
        %1911 = vst [vmem:[%s1616 + $0x230] sm:$0xff] %v1799
        %1912 = vst [vmem:[%s1616 + $0x238] sm:$0xff] %v1800
        %1913 = vst [vmem:[%s1616 + $0x240] sm:$0xff] %v1801
        %1914 = vst [vmem:[%s1616 + $0x248] sm:$0xff] %v1802
        %1915 = vst [vmem:[%s1616 + $0x250] sm:$0xff] %v1803
        %1916 = vst [vmem:[%s1616 + $0x258] sm:$0xff] %v1804
        %1917 = vst [vmem:[%s1616 + $0x260] sm:$0xff] %v1805
        %1918 = vst [vmem:[%s1616 + $0x268] sm:$0xff] %v1806
        %1919 = vst [vmem:[%s1616 + $0x270] sm:$0xff] %v1807
        %1920 = vst [vmem:[%s1616 + $0x278] sm:$0xff] %v1808
        %1921 = vst [vmem:[%s1616 + $0x280] sm:$0xff] %v1809
        %1922 = vst [vmem:[%s1616 + $0x288] sm:$0xff] %v1810
        %1923 = vst [vmem:[%s1616 + $0x290] sm:$0xff] %v1811
        %1924 = vst [vmem:[%s1616 + $0x298] sm:$0xff] %v1812
        %1925 = vst [vmem:[%s1616 + $0x2a0] sm:$0xff] %v1813
        %1926 = vst [vmem:[%s1616 + $0x2a8] sm:$0xff] %v1814
        %1927 = vst [vmem:[%s1616 + $0x2b0] sm:$0xff] %v1815
        %1928 = vst [vmem:[%s1616 + $0x2b8] sm:$0xff] %v1816
        %1929 = vst [vmem:[%s1616 + $0x2c0] sm:$0xff] %v1817
        %1930 = vst [vmem:[%s1616 + $0x2c8] sm:$0xff] %v1818
        %1931 = vst [vmem:[%s1616 + $0x2d0] sm:$0xff] %v1819
        %1932 = vst [vmem:[%s1616 + $0x2d8] sm:$0xff] %v1820
        %1933 = vst [vmem:[%s1616 + $0x2e0] sm:$0xff] %v1821
        %1934 = vst [vmem:[%s1616 + $0x2e8] sm:$0xff] %v1822
        %1935 = vst [vmem:[%s1616 + $0x2f0] sm:$0xff] %v1823
        %1936 = vst [vmem:[%s1616 + $0x2f8] sm:$0xff] %v1824
        %1937 = vst [vmem:[%s1616 + $0x300] sm:$0xff] %v1825
        %1938 = vst [vmem:[%s1616 + $0x308] sm:$0xff] %v1826
        %1939 = vst [vmem:[%s1616 + $0x310] sm:$0xff] %v1827
        %1940 = vst [vmem:[%s1616 + $0x318] sm:$0xff] %v1828
        %1941 = vst [vmem:[%s1616 + $0x320] sm:$0xff] %v1829
        %1942 = vst [vmem:[%s1616 + $0x328] sm:$0xff] %v1830
        %1943 = vst [vmem:[%s1616 + $0x330] sm:$0xff] %v1831
        %1944 = vst [vmem:[%s1616 + $0x338] sm:$0xff] %v1832
        %1945 = vst [vmem:[%s1616 + $0x340] sm:$0xff] %v1833
        %1946 = vst [vmem:[%s1616 + $0x348] sm:$0xff] %v1834
        %1947 = vst [vmem:[%s1616 + $0x350] sm:$0xff] %v1835
        %1948 = vst [vmem:[%s1616 + $0x358] sm:$0xff] %v1836
        %1949 = vst [vmem:[%s1616 + $0x360] sm:$0xff] %v1837
        %1950 = vst [vmem:[%s1616 + $0x368] sm:$0xff] %v1838
        %1951 = vst [vmem:[%s1616 + $0x370] sm:$0xff] %v1839
        %1952 = vst [vmem:[%s1616 + $0x378] sm:$0xff] %v1840
        %v1953 = vld [vmem:[%s706] sm:$0xff]
        %v1954 = vld [vmem:[%s706 + $0x8] sm:$0xff]
        %v1955 = vld [vmem:[%s706 + $0x10] sm:$0xff]
        %v1956 = vld [vmem:[%s706 + $0x18] sm:$0xff]
        %v1957 = vld [vmem:[%s706 + $0x20] sm:$0xff]
        %v1958 = vld [vmem:[%s706 + $0x28] sm:$0xff]
        %v1959 = vld [vmem:[%s706 + $0x30] sm:$0xff]
        %v1960 = vld [vmem:[%s706 + $0x38] sm:$0xff]
        %v1961 = vld [vmem:[%s706 + $0x40] sm:$0xff]
        %v1962 = vld [vmem:[%s706 + $0x48] sm:$0xff]
        %v1963 = vld [vmem:[%s706 + $0x50] sm:$0xff]
        %v1964 = vld [vmem:[%s706 + $0x58] sm:$0xff]
        %v1965 = vld [vmem:[%s706 + $0x60] sm:$0xff]
        %v1966 = vld [vmem:[%s706 + $0x68] sm:$0xff]
        %v1967 = vld [vmem:[%s706 + $0x70] sm:$0xff]
        %v1968 = vld [vmem:[%s706 + $0x78] sm:$0xff]
        %v1969 = vld [vmem:[%s706 + $0x80] sm:$0xff]
        %v1970 = vld [vmem:[%s706 + $0x88] sm:$0xff]
        %v1971 = vld [vmem:[%s706 + $0x90] sm:$0xff]
        %v1972 = vld [vmem:[%s706 + $0x98] sm:$0xff]
        %v1973 = vld [vmem:[%s706 + $0xa0] sm:$0xff]
        %v1974 = vld [vmem:[%s706 + $0xa8] sm:$0xff]
        %v1975 = vld [vmem:[%s706 + $0xb0] sm:$0xff]
        %v1976 = vld [vmem:[%s706 + $0xb8] sm:$0xff]
        %v1977 = vld [vmem:[%s706 + $0xc0] sm:$0xff]
        %v1978 = vld [vmem:[%s706 + $0xc8] sm:$0xff]
        %v1979 = vld [vmem:[%s706 + $0xd0] sm:$0xff]
        %v1980 = vld [vmem:[%s706 + $0xd8] sm:$0xff]
        %v1981 = vld [vmem:[%s706 + $0xe0] sm:$0xff]
        %v1982 = vld [vmem:[%s706 + $0xe8] sm:$0xff]
        %v1983 = vld [vmem:[%s706 + $0xf0] sm:$0xff]
        %v1984 = vld [vmem:[%s706 + $0xf8] sm:$0xff]
        %v1985 = vld [vmem:[%s706 + $0x100] sm:$0xff]
        %v1986 = vld [vmem:[%s706 + $0x108] sm:$0xff]
        %v1987 = vld [vmem:[%s706 + $0x110] sm:$0xff]
        %v1988 = vld [vmem:[%s706 + $0x118] sm:$0xff]
        %v1989 = vld [vmem:[%s706 + $0x120] sm:$0xff]
        %v1990 = vld [vmem:[%s706 + $0x128] sm:$0xff]
        %v1991 = vld [vmem:[%s706 + $0x130] sm:$0xff]
        %v1992 = vld [vmem:[%s706 + $0x138] sm:$0xff]
        %v1993 = vld [vmem:[%s706 + $0x140] sm:$0xff]
        %v1994 = vld [vmem:[%s706 + $0x148] sm:$0xff]
        %v1995 = vld [vmem:[%s706 + $0x150] sm:$0xff]
        %v1996 = vld [vmem:[%s706 + $0x158] sm:$0xff]
        %v1997 = vld [vmem:[%s706 + $0x160] sm:$0xff]
        %v1998 = vld [vmem:[%s706 + $0x168] sm:$0xff]
        %v1999 = vld [vmem:[%s706 + $0x170] sm:$0xff]
        %v2000 = vld [vmem:[%s706 + $0x178] sm:$0xff]
        %v2001 = vld [vmem:[%s706 + $0x180] sm:$0xff]
        %v2002 = vld [vmem:[%s706 + $0x188] sm:$0xff]
        %v2003 = vld [vmem:[%s706 + $0x190] sm:$0xff]
        %v2004 = vld [vmem:[%s706 + $0x198] sm:$0xff]
        %v2005 = vld [vmem:[%s706 + $0x1a0] sm:$0xff]
        %v2006 = vld [vmem:[%s706 + $0x1a8] sm:$0xff]
        %v2007 = vld [vmem:[%s706 + $0x1b0] sm:$0xff]
        %v2008 = vld [vmem:[%s706 + $0x1b8] sm:$0xff]
        %v2009 = vld [vmem:[%s706 + $0x1c0] sm:$0xff]
        %v2010 = vld [vmem:[%s706 + $0x1c8] sm:$0xff]
        %v2011 = vld [vmem:[%s706 + $0x1d0] sm:$0xff]
        %v2012 = vld [vmem:[%s706 + $0x1d8] sm:$0xff]
        %v2013 = vld [vmem:[%s706 + $0x1e0] sm:$0xff]
        %v2014 = vld [vmem:[%s706 + $0x1e8] sm:$0xff]
        %v2015 = vld [vmem:[%s706 + $0x1f0] sm:$0xff]
        %v2016 = vld [vmem:[%s706 + $0x1f8] sm:$0xff]
        %v2017 = vld [vmem:[%s706 + $0x200] sm:$0xff]
        %v2018 = vld [vmem:[%s706 + $0x208] sm:$0xff]
        %v2019 = vld [vmem:[%s706 + $0x210] sm:$0xff]
        %v2020 = vld [vmem:[%s706 + $0x218] sm:$0xff]
        %v2021 = vld [vmem:[%s706 + $0x220] sm:$0xff]
        %v2022 = vld [vmem:[%s706 + $0x228] sm:$0xff]
        %v2023 = vld [vmem:[%s706 + $0x230] sm:$0xff]
        %v2024 = vld [vmem:[%s706 + $0x238] sm:$0xff]
        %v2025 = vld [vmem:[%s706 + $0x240] sm:$0xff]
        %v2026 = vld [vmem:[%s706 + $0x248] sm:$0xff]
        %v2027 = vld [vmem:[%s706 + $0x250] sm:$0xff]
        %v2028 = vld [vmem:[%s706 + $0x258] sm:$0xff]
        %v2029 = vld [vmem:[%s706 + $0x260] sm:$0xff]
        %v2030 = vld [vmem:[%s706 + $0x268] sm:$0xff]
        %v2031 = vld [vmem:[%s706 + $0x270] sm:$0xff]
        %v2032 = vld [vmem:[%s706 + $0x278] sm:$0xff]
        %v2033 = vld [vmem:[%s706 + $0x280] sm:$0xff]
        %v2034 = vld [vmem:[%s706 + $0x288] sm:$0xff]
        %v2035 = vld [vmem:[%s706 + $0x290] sm:$0xff]
        %v2036 = vld [vmem:[%s706 + $0x298] sm:$0xff]
        %v2037 = vld [vmem:[%s706 + $0x2a0] sm:$0xff]
        %v2038 = vld [vmem:[%s706 + $0x2a8] sm:$0xff]
        %v2039 = vld [vmem:[%s706 + $0x2b0] sm:$0xff]
        %v2040 = vld [vmem:[%s706 + $0x2b8] sm:$0xff]
        %v2041 = vld [vmem:[%s706 + $0x2c0] sm:$0xff]
        %v2042 = vld [vmem:[%s706 + $0x2c8] sm:$0xff]
        %v2043 = vld [vmem:[%s706 + $0x2d0] sm:$0xff]
        %v2044 = vld [vmem:[%s706 + $0x2d8] sm:$0xff]
        %v2045 = vld [vmem:[%s706 + $0x2e0] sm:$0xff]
        %v2046 = vld [vmem:[%s706 + $0x2e8] sm:$0xff]
        %v2047 = vld [vmem:[%s706 + $0x2f0] sm:$0xff]
        %v2048 = vld [vmem:[%s706 + $0x2f8] sm:$0xff]
        %v2049 = vld [vmem:[%s706 + $0x300] sm:$0xff]
        %v2050 = vld [vmem:[%s706 + $0x308] sm:$0xff]
        %v2051 = vld [vmem:[%s706 + $0x310] sm:$0xff]
        %v2052 = vld [vmem:[%s706 + $0x318] sm:$0xff]
        %v2053 = vld [vmem:[%s706 + $0x320] sm:$0xff]
        %v2054 = vld [vmem:[%s706 + $0x328] sm:$0xff]
        %v2055 = vld [vmem:[%s706 + $0x330] sm:$0xff]
        %v2056 = vld [vmem:[%s706 + $0x338] sm:$0xff]
        %v2057 = vld [vmem:[%s706 + $0x340] sm:$0xff]
        %v2058 = vld [vmem:[%s706 + $0x348] sm:$0xff]
        %v2059 = vld [vmem:[%s706 + $0x350] sm:$0xff]
        %v2060 = vld [vmem:[%s706 + $0x358] sm:$0xff]
        %v2061 = vld [vmem:[%s706 + $0x360] sm:$0xff]
        %v2062 = vld [vmem:[%s706 + $0x368] sm:$0xff]
        %v2063 = vld [vmem:[%s706 + $0x370] sm:$0xff]
        %v2064 = vld [vmem:[%s706 + $0x378] sm:$0xff]
        %v2065 = vld [vmem:[%s706 + $0x380] sm:$0xff]
        %v2066 = vld [vmem:[%s706 + $0x388] sm:$0xff]
        %v2067 = vld [vmem:[%s706 + $0x390] sm:$0xff]
        %v2068 = vld [vmem:[%s706 + $0x398] sm:$0xff]
        %v2069 = vld [vmem:[%s706 + $0x3a0] sm:$0xff]
        %v2070 = vld [vmem:[%s706 + $0x3a8] sm:$0xff]
        %v2071 = vld [vmem:[%s706 + $0x3b0] sm:$0xff]
        %v2072 = vld [vmem:[%s706 + $0x3b8] sm:$0xff]
        %v2073 = vld [vmem:[%s706 + $0x3c0] sm:$0xff]
        %v2074 = vld [vmem:[%s706 + $0x3c8] sm:$0xff]
        %v2075 = vld [vmem:[%s706 + $0x3d0] sm:$0xff]
        %v2076 = vld [vmem:[%s706 + $0x3d8] sm:$0xff]
        %v2077 = vld [vmem:[%s706 + $0x3e0] sm:$0xff]
        %v2078 = vld [vmem:[%s706 + $0x3e8] sm:$0xff]
        %v2079 = vld [vmem:[%s706 + $0x3f0] sm:$0xff]
        %v2080 = vld [vmem:[%s706 + $0x3f8] sm:$0xff]
        %s2081 = scalar_lea.vmem %s1, 128
        %v2082 = vld [vmem:[%s2081] sm:$0xff]
        %v2083 = vld [vmem:[%s2081 + $0x8] sm:$0xff]
        %v2084 = vld [vmem:[%s2081 + $0x10] sm:$0xff]
        %v2085 = vld [vmem:[%s2081 + $0x18] sm:$0xff]
        %v2086 = vld [vmem:[%s2081 + $0x20] sm:$0xff]
        %v2087 = vld [vmem:[%s2081 + $0x28] sm:$0xff]
        %v2088 = vld [vmem:[%s2081 + $0x30] sm:$0xff]
        %v2089 = vld [vmem:[%s2081 + $0x38] sm:$0xff]
        %v2090 = vld [vmem:[%s2081 + $0x40] sm:$0xff]
        %v2091 = vld [vmem:[%s2081 + $0x48] sm:$0xff]
        %v2092 = vld [vmem:[%s2081 + $0x50] sm:$0xff]
        %v2093 = vld [vmem:[%s2081 + $0x58] sm:$0xff]
        %v2094 = vld [vmem:[%s2081 + $0x60] sm:$0xff]
        %v2095 = vld [vmem:[%s2081 + $0x68] sm:$0xff]
        %v2096 = vld [vmem:[%s2081 + $0x70] sm:$0xff]
        %v2097 = vld [vmem:[%s2081 + $0x78] sm:$0xff]
        %2098 = vmatprep.subr.mxu0 0.0
        %2099 = vmatpush1.msra.mxu0 %v2082
        %2100 = vmatprep.subr.mxu0 0.0
        %2101 = vmatpush1.msra.mxu0 %v2083
        %2102 = vmatprep.subr.mxu0 0.0
        %2103 = vmatpush1.msra.mxu0 %v2084
        %2104 = vmatprep.subr.mxu0 0.0
        %2105 = vmatpush1.msra.mxu0 %v2085
        %2106 = vmatprep.subr.mxu0 0.0
        %2107 = vmatpush1.msra.mxu0 %v2086
        %2108 = vmatprep.subr.mxu0 0.0
        %2109 = vmatpush1.msra.mxu0 %v2087
        %2110 = vmatprep.subr.mxu0 0.0
        %2111 = vmatpush1.msra.mxu0 %v2088
        %2112 = vmatprep.subr.mxu0 0.0
        %2113 = vmatpush1.msra.mxu0 %v2089
        %2114 = vmatprep.subr.mxu0 0.0
        %2115 = vmatpush1.msra.mxu0 %v2090
        %2116 = vmatprep.subr.mxu0 0.0
        %2117 = vmatpush1.msra.mxu0 %v2091
        %2118 = vmatprep.subr.mxu0 0.0
        %2119 = vmatpush1.msra.mxu0 %v2092
        %2120 = vmatprep.subr.mxu0 0.0
        %2121 = vmatpush1.msra.mxu0 %v2093
        %2122 = vmatprep.subr.mxu0 0.0
        %2123 = vmatpush1.msra.mxu0 %v2094
        %2124 = vmatprep.subr.mxu0 0.0
        %2125 = vmatpush1.msra.mxu0 %v2095
        %2126 = vmatprep.subr.mxu0 0.0
        %2127 = vmatpush1.msra.mxu0 %v2096
        %2128 = vmatprep.subr.mxu0 0.0
        %2129 = vmatpush1.msra.mxu0 %v2097
        %2130 = vmatprep.subr.mxu0 0.0
        %2131 = vmatpush1.msra.mxu0 0.0
        %2132 = vmatprep.subr.mxu0 0.0
        %2133 = vmatpush1.msra.mxu0 0.0
        %2134 = vmatprep.subr.mxu0 0.0
        %2135 = vmatpush1.msra.mxu0 0.0
        %2136 = vmatprep.subr.mxu0 0.0
        %2137 = vmatpush1.msra.mxu0 0.0
        %2138 = vmatprep.subr.mxu0 0.0
        %2139 = vmatpush1.msra.mxu0 0.0
        %2140 = vmatprep.subr.mxu0 0.0
        %2141 = vmatpush1.msra.mxu0 0.0
        %2142 = vmatprep.subr.mxu0 0.0
        %2143 = vmatpush1.msra.mxu0 0.0
        %2144 = vmatprep.subr.mxu0 0.0
        %2145 = vmatpush1.msra.mxu0 0.0
        %2146 = vmatprep.subr.mxu0 0.0
        %2147 = vmatpush1.msra.mxu0 0.0
        %2148 = vmatprep.subr.mxu0 0.0
        %2149 = vmatpush1.msra.mxu0 0.0
        %2150 = vmatprep.subr.mxu0 0.0
        %2151 = vmatpush1.msra.mxu0 0.0
        %2152 = vmatprep.subr.mxu0 0.0
        %2153 = vmatpush1.msra.mxu0 0.0
        %2154 = vmatprep.subr.mxu0 0.0
        %2155 = vmatpush1.msra.mxu0 0.0
        %2156 = vmatprep.subr.mxu0 0.0
        %2157 = vmatpush1.msra.mxu0 0.0
        %2158 = vmatprep.subr.mxu0 0.0
        %2159 = vmatpush1.msra.mxu0 0.0
        %2160 = vmatprep.subr.mxu0 0.0
        %2161 = vmatpush1.msra.mxu0 0.0
        %2162 = vmatprep.mubr.f32.mxu0 0.0
        %2163 = vmatmul.mubr.f32.gmra.mrb[0].mxu0 %v1953
        %v2164 = vpop.f32.mrb[0].mxu0
        %v2165 = vadd.f32 0.0, %v2164
        %v2166 = vpop.f32.mrb[0].mxu0
        %2167 = vmatprep.mubr.f32.mxu0 0.0
        %2168 = vmatmul.mubr.f32.gmra.mrb[0].mxu0 %v1954
        %v2169 = vpop.f32.mrb[0].mxu0
        %v2170 = vadd.f32 0.0, %v2169
        %v2171 = vpop.f32.mrb[0].mxu0
        %2172 = vmatprep.mubr.f32.mxu0 0.0
        %2173 = vmatmul.mubr.f32.gmra.mrb[0].mxu0 %v1955
        %v2174 = vpop.f32.mrb[0].mxu0
        %v2175 = vadd.f32 0.0, %v2174
        %v2176 = vpop.f32.mrb[0].mxu0
        %2177 = vmatprep.mubr.f32.mxu0 0.0
        %2178 = vmatmul.mubr.f32.gmra.mrb[0].mxu0 %v1956
        %v2179 = vpop.f32.mrb[0].mxu0
        %v2180 = vadd.f32 0.0, %v2179
        %v2181 = vpop.f32.mrb[0].mxu0
        %2182 = vmatprep.mubr.f32.mxu0 0.0
        %2183 = vmatmul.mubr.f32.gmra.mrb[0].mxu0 %v1957
        %v2184 = vpop.f32.mrb[0].mxu0
        %v2185 = vadd.f32 0.0, %v2184
        %v2186 = vpop.f32.mrb[0].mxu0
        %2187 = vmatprep.mubr.f32.mxu0 0.0
        %2188 = vmatmul.mubr.f32.gmra.mrb[0].mxu0 %v1958
        %v2189 = vpop.f32.mrb[0].mxu0
        %v2190 = vadd.f32 0.0, %v2189
        %v2191 = vpop.f32.mrb[0].mxu0
        %2192 = vmatprep.mubr.f32.mxu0 0.0
        %2193 = vmatmul.mubr.f32.gmra.mrb[0].mxu0 %v1959
        %v2194 = vpop.f32.mrb[0].mxu0
        %v2195 = vadd.f32 0.0, %v2194
        %v2196 = vpop.f32.mrb[0].mxu0
        %2197 = vmatprep.mubr.f32.mxu0 0.0
        %2198 = vmatmul.mubr.f32.gmra.mrb[0].mxu0 %v1960
        %v2199 = vpop.f32.mrb[0].mxu0
        %v2200 = vadd.f32 0.0, %v2199
        %v2201 = vpop.f32.mrb[0].mxu0
        %2202 = vmatprep.mubr.f32.mxu0 0.0
        %2203 = vmatmul.mubr.f32.gmra.mrb[0].mxu0 %v1961
        %v2204 = vpop.f32.mrb[0].mxu0
        %v2205 = vadd.f32 0.0, %v2204
        %v2206 = vpop.f32.mrb[0].mxu0
        %2207 = vmatprep.mubr.f32.mxu0 0.0
        %2208 = vmatmul.mubr.f32.gmra.mrb[0].mxu0 %v1962
        %v2209 = vpop.f32.mrb[0].mxu0
        %v2210 = vadd.f32 0.0, %v2209
        %v2211 = vpop.f32.mrb[0].mxu0
        %2212 = vmatprep.mubr.f32.mxu0 0.0
        %2213 = vmatmul.mubr.f32.gmra.mrb[0].mxu0 %v1963
        %v2214 = vpop.f32.mrb[0].mxu0
        %v2215 = vadd.f32 0.0, %v2214
        %v2216 = vpop.f32.mrb[0].mxu0
        %2217 = vmatprep.mubr.f32.mxu0 0.0
        %2218 = vmatmul.mubr.f32.gmra.mrb[0].mxu0 %v1964
        %v2219 = vpop.f32.mrb[0].mxu0
        %v2220 = vadd.f32 0.0, %v2219
        %v2221 = vpop.f32.mrb[0].mxu0
        %2222 = vmatprep.mubr.f32.mxu0 0.0
        %2223 = vmatmul.mubr.f32.gmra.mrb[0].mxu0 %v1965
        %v2224 = vpop.f32.mrb[0].mxu0
        %v2225 = vadd.f32 0.0, %v2224
        %v2226 = vpop.f32.mrb[0].mxu0
        %2227 = vmatprep.mubr.f32.mxu0 0.0
        %2228 = vmatmul.mubr.f32.gmra.mrb[0].mxu0 %v1966
        %v2229 = vpop.f32.mrb[0].mxu0
        %v2230 = vadd.f32 0.0, %v2229
        %v2231 = vpop.f32.mrb[0].mxu0
        %2232 = vmatprep.mubr.f32.mxu0 0.0
        %2233 = vmatmul.mubr.f32.gmra.mrb[0].mxu0 %v1967
        %v2234 = vpop.f32.mrb[0].mxu0
        %v2235 = vadd.f32 0.0, %v2234
        %v2236 = vpop.f32.mrb[0].mxu0
        %2237 = vmatprep.mubr.f32.mxu0 0.0
        %2238 = vmatmul.mubr.f32.gmra.mrb[0].mxu0 %v1968
        %v2239 = vpop.f32.mrb[0].mxu0
        %v2240 = vadd.f32 0.0, %v2239
        %v2241 = vpop.f32.mrb[0].mxu0
        %2242 = vmatprep.mubr.f32.mxu0 0.0
        %2243 = vmatmul.mubr.f32.gmra.mrb[0].mxu0 %v1969
        %v2244 = vpop.f32.mrb[0].mxu0
        %v2245 = vadd.f32 0.0, %v2244
        %v2246 = vpop.f32.mrb[0].mxu0
        %2247 = vmatprep.mubr.f32.mxu0 0.0
        %2248 = vmatmul.mubr.f32.gmra.mrb[0].mxu0 %v1970
        %v2249 = vpop.f32.mrb[0].mxu0
        %v2250 = vadd.f32 0.0, %v2249
        %v2251 = vpop.f32.mrb[0].mxu0
        %2252 = vmatprep.mubr.f32.mxu0 0.0
        %2253 = vmatmul.mubr.f32.gmra.mrb[0].mxu0 %v1971
        %v2254 = vpop.f32.mrb[0].mxu0
        %v2255 = vadd.f32 0.0, %v2254
        %v2256 = vpop.f32.mrb[0].mxu0
        %2257 = vmatprep.mubr.f32.mxu0 0.0
        %2258 = vmatmul.mubr.f32.gmra.mrb[0].mxu0 %v1972
        %v2259 = vpop.f32.mrb[0].mxu0
        %v2260 = vadd.f32 0.0, %v2259
        %v2261 = vpop.f32.mrb[0].mxu0
        %2262 = vmatprep.mubr.f32.mxu0 0.0
        %2263 = vmatmul.mubr.f32.gmra.mrb[0].mxu0 %v1973
        %v2264 = vpop.f32.mrb[0].mxu0
        %v2265 = vadd.f32 0.0, %v2264
        %v2266 = vpop.f32.mrb[0].mxu0
        %2267 = vmatprep.mubr.f32.mxu0 0.0
        %2268 = vmatmul.mubr.f32.gmra.mrb[0].mxu0 %v1974
        %v2269 = vpop.f32.mrb[0].mxu0
        %v2270 = vadd.f32 0.0, %v2269
        %v2271 = vpop.f32.mrb[0].mxu0
        %2272 = vmatprep.mubr.f32.mxu0 0.0
        %2273 = vmatmul.mubr.f32.gmra.mrb[0].mxu0 %v1975
        %v2274 = vpop.f32.mrb[0].mxu0
        %v2275 = vadd.f32 0.0, %v2274
        %v2276 = vpop.f32.mrb[0].mxu0
        %2277 = vmatprep.mubr.f32.mxu0 0.0
        %2278 = vmatmul.mubr.f32.gmra.mrb[0].mxu0 %v1976
        %v2279 = vpop.f32.mrb[0].mxu0
        %v2280 = vadd.f32 0.0, %v2279
        %v2281 = vpop.f32.mrb[0].mxu0
        %2282 = vmatprep.mubr.f32.mxu0 0.0
        %2283 = vmatmul.mubr.f32.gmra.mrb[0].mxu0 %v1977
        %v2284 = vpop.f32.mrb[0].mxu0
        %v2285 = vadd.f32 0.0, %v2284
        %v2286 = vpop.f32.mrb[0].mxu0
        %2287 = vmatprep.mubr.f32.mxu0 0.0
        %2288 = vmatmul.mubr.f32.gmra.mrb[0].mxu0 %v1978
        %v2289 = vpop.f32.mrb[0].mxu0
        %v2290 = vadd.f32 0.0, %v2289
        %v2291 = vpop.f32.mrb[0].mxu0
        %2292 = vmatprep.mubr.f32.mxu0 0.0
        %2293 = vmatmul.mubr.f32.gmra.mrb[0].mxu0 %v1979
        %v2294 = vpop.f32.mrb[0].mxu0
        %v2295 = vadd.f32 0.0, %v2294
        %v2296 = vpop.f32.mrb[0].mxu0
        %2297 = vmatprep.mubr.f32.mxu0 0.0
        %2298 = vmatmul.mubr.f32.gmra.mrb[0].mxu0 %v1980
        %v2299 = vpop.f32.mrb[0].mxu0
        %v2300 = vadd.f32 0.0, %v2299
        %v2301 = vpop.f32.mrb[0].mxu0
        %2302 = vmatprep.mubr.f32.mxu0 0.0
        %2303 = vmatmul.mubr.f32.gmra.mrb[0].mxu0 %v1981
        %v2304 = vpop.f32.mrb[0].mxu0
        %v2305 = vadd.f32 0.0, %v2304
        %v2306 = vpop.f32.mrb[0].mxu0
        %2307 = vmatprep.mubr.f32.mxu0 0.0
        %2308 = vmatmul.mubr.f32.gmra.mrb[0].mxu0 %v1982
        %v2309 = vpop.f32.mrb[0].mxu0
        %v2310 = vadd.f32 0.0, %v2309
        %v2311 = vpop.f32.mrb[0].mxu0
        %2312 = vmatprep.mubr.f32.mxu0 0.0
        %2313 = vmatmul.mubr.f32.gmra.mrb[0].mxu0 %v1983
        %v2314 = vpop.f32.mrb[0].mxu0
        %v2315 = vadd.f32 0.0, %v2314
        %v2316 = vpop.f32.mrb[0].mxu0
        %2317 = vmatprep.mubr.f32.mxu0 0.0
        %2318 = vmatmul.mubr.f32.gmra.mrb[0].mxu0 %v1984
        %v2319 = vpop.f32.mrb[0].mxu0
        %v2320 = vadd.f32 0.0, %v2319
        %v2321 = vpop.f32.mrb[0].mxu0
        %2322 = vmatprep.mubr.f32.mxu0 0.0
        %2323 = vmatmul.mubr.f32.gmra.mrb[0].mxu0 %v1985
        %v2324 = vpop.f32.mrb[0].mxu0
        %v2325 = vadd.f32 0.0, %v2324
        %v2326 = vpop.f32.mrb[0].mxu0
        %2327 = vmatprep.mubr.f32.mxu0 0.0
        %2328 = vmatmul.mubr.f32.gmra.mrb[0].mxu0 %v1986
        %v2329 = vpop.f32.mrb[0].mxu0
        %v2330 = vadd.f32 0.0, %v2329
        %v2331 = vpop.f32.mrb[0].mxu0
        %2332 = vmatprep.mubr.f32.mxu0 0.0
        %2333 = vmatmul.mubr.f32.gmra.mrb[0].mxu0 %v1987
        %v2334 = vpop.f32.mrb[0].mxu0
        %v2335 = vadd.f32 0.0, %v2334
        %v2336 = vpop.f32.mrb[0].mxu0
        %2337 = vmatprep.mubr.f32.mxu0 0.0
        %2338 = vmatmul.mubr.f32.gmra.mrb[0].mxu0 %v1988
        %v2339 = vpop.f32.mrb[0].mxu0
        %v2340 = vadd.f32 0.0, %v2339
        %v2341 = vpop.f32.mrb[0].mxu0
        %2342 = vmatprep.mubr.f32.mxu0 0.0
        %2343 = vmatmul.mubr.f32.gmra.mrb[0].mxu0 %v1989
        %v2344 = vpop.f32.mrb[0].mxu0
        %v2345 = vadd.f32 0.0, %v2344
        %v2346 = vpop.f32.mrb[0].mxu0
        %2347 = vmatprep.mubr.f32.mxu0 0.0
        %2348 = vmatmul.mubr.f32.gmra.mrb[0].mxu0 %v1990
        %v2349 = vpop.f32.mrb[0].mxu0
        %v2350 = vadd.f32 0.0, %v2349
        %v2351 = vpop.f32.mrb[0].mxu0
        %2352 = vmatprep.mubr.f32.mxu0 0.0
        %2353 = vmatmul.mubr.f32.gmra.mrb[0].mxu0 %v1991
        %v2354 = vpop.f32.mrb[0].mxu0
        %v2355 = vadd.f32 0.0, %v2354
        %v2356 = vpop.f32.mrb[0].mxu0
        %2357 = vmatprep.mubr.f32.mxu0 0.0
        %2358 = vmatmul.mubr.f32.gmra.mrb[0].mxu0 %v1992
        %v2359 = vpop.f32.mrb[0].mxu0
        %v2360 = vadd.f32 0.0, %v2359
        %v2361 = vpop.f32.mrb[0].mxu0
        %2362 = vmatprep.mubr.f32.mxu0 0.0
        %2363 = vmatmul.mubr.f32.gmra.mrb[0].mxu0 %v1993
        %v2364 = vpop.f32.mrb[0].mxu0
        %v2365 = vadd.f32 0.0, %v2364
        %v2366 = vpop.f32.mrb[0].mxu0
        %2367 = vmatprep.mubr.f32.mxu0 0.0
        %2368 = vmatmul.mubr.f32.gmra.mrb[0].mxu0 %v1994
        %v2369 = vpop.f32.mrb[0].mxu0
        %v2370 = vadd.f32 0.0, %v2369
        %v2371 = vpop.f32.mrb[0].mxu0
        %2372 = vmatprep.mubr.f32.mxu0 0.0
        %2373 = vmatmul.mubr.f32.gmra.mrb[0].mxu0 %v1995
        %v2374 = vpop.f32.mrb[0].mxu0
        %v2375 = vadd.f32 0.0, %v2374
        %v2376 = vpop.f32.mrb[0].mxu0
        %2377 = vmatprep.mubr.f32.mxu0 0.0
        %2378 = vmatmul.mubr.f32.gmra.mrb[0].mxu0 %v1996
        %v2379 = vpop.f32.mrb[0].mxu0
        %v2380 = vadd.f32 0.0, %v2379
        %v2381 = vpop.f32.mrb[0].mxu0
        %2382 = vmatprep.mubr.f32.mxu0 0.0
        %2383 = vmatmul.mubr.f32.gmra.mrb[0].mxu0 %v1997
        %v2384 = vpop.f32.mrb[0].mxu0
        %v2385 = vadd.f32 0.0, %v2384
        %v2386 = vpop.f32.mrb[0].mxu0
        %2387 = vmatprep.mubr.f32.mxu0 0.0
        %2388 = vmatmul.mubr.f32.gmra.mrb[0].mxu0 %v1998
        %v2389 = vpop.f32.mrb[0].mxu0
        %v2390 = vadd.f32 0.0, %v2389
        %v2391 = vpop.f32.mrb[0].mxu0
        %2392 = vmatprep.mubr.f32.mxu0 0.0
        %2393 = vmatmul.mubr.f32.gmra.mrb[0].mxu0 %v1999
        %v2394 = vpop.f32.mrb[0].mxu0
        %v2395 = vadd.f32 0.0, %v2394
        %v2396 = vpop.f32.mrb[0].mxu0
        %2397 = vmatprep.mubr.f32.mxu0 0.0
        %2398 = vmatmul.mubr.f32.gmra.mrb[0].mxu0 %v2000
        %v2399 = vpop.f32.mrb[0].mxu0
        %v2400 = vadd.f32 0.0, %v2399
        %v2401 = vpop.f32.mrb[0].mxu0
        %2402 = vmatprep.mubr.f32.mxu0 0.0
        %2403 = vmatmul.mubr.f32.gmra.mrb[0].mxu0 %v2001
        %v2404 = vpop.f32.mrb[0].mxu0
        %v2405 = vadd.f32 0.0, %v2404
        %v2406 = vpop.f32.mrb[0].mxu0
        %2407 = vmatprep.mubr.f32.mxu0 0.0
        %2408 = vmatmul.mubr.f32.gmra.mrb[0].mxu0 %v2002
        %v2409 = vpop.f32.mrb[0].mxu0
        %v2410 = vadd.f32 0.0, %v2409
        %v2411 = vpop.f32.mrb[0].mxu0
        %2412 = vmatprep.mubr.f32.mxu0 0.0
        %2413 = vmatmul.mubr.f32.gmra.mrb[0].mxu0 %v2003
        %v2414 = vpop.f32.mrb[0].mxu0
        %v2415 = vadd.f32 0.0, %v2414
        %v2416 = vpop.f32.mrb[0].mxu0
        %2417 = vmatprep.mubr.f32.mxu0 0.0
        %2418 = vmatmul.mubr.f32.gmra.mrb[0].mxu0 %v2004
        %v2419 = vpop.f32.mrb[0].mxu0
        %v2420 = vadd.f32 0.0, %v2419
        %v2421 = vpop.f32.mrb[0].mxu0
        %2422 = vmatprep.mubr.f32.mxu0 0.0
        %2423 = vmatmul.mubr.f32.gmra.mrb[0].mxu0 %v2005
        %v2424 = vpop.f32.mrb[0].mxu0
        %v2425 = vadd.f32 0.0, %v2424
        %v2426 = vpop.f32.mrb[0].mxu0
        %2427 = vmatprep.mubr.f32.mxu0 0.0
        %2428 = vmatmul.mubr.f32.gmra.mrb[0].mxu0 %v2006
        %v2429 = vpop.f32.mrb[0].mxu0
        %v2430 = vadd.f32 0.0, %v2429
        %v2431 = vpop.f32.mrb[0].mxu0
        %2432 = vmatprep.mubr.f32.mxu0 0.0
        %2433 = vmatmul.mubr.f32.gmra.mrb[0].mxu0 %v2007
        %v2434 = vpop.f32.mrb[0].mxu0
        %v2435 = vadd.f32 0.0, %v2434
        %v2436 = vpop.f32.mrb[0].mxu0
        %2437 = vmatprep.mubr.f32.mxu0 0.0
        %2438 = vmatmul.mubr.f32.gmra.mrb[0].mxu0 %v2008
        %v2439 = vpop.f32.mrb[0].mxu0
        %v2440 = vadd.f32 0.0, %v2439
        %v2441 = vpop.f32.mrb[0].mxu0
        %2442 = vmatprep.mubr.f32.mxu0 0.0
        %2443 = vmatmul.mubr.f32.gmra.mrb[0].mxu0 %v2009
        %v2444 = vpop.f32.mrb[0].mxu0
        %v2445 = vadd.f32 0.0, %v2444
        %v2446 = vpop.f32.mrb[0].mxu0
        %2447 = vmatprep.mubr.f32.mxu0 0.0
        %2448 = vmatmul.mubr.f32.gmra.mrb[0].mxu0 %v2010
        %v2449 = vpop.f32.mrb[0].mxu0
        %v2450 = vadd.f32 0.0, %v2449
        %v2451 = vpop.f32.mrb[0].mxu0
        %2452 = vmatprep.mubr.f32.mxu0 0.0
        %2453 = vmatmul.mubr.f32.gmra.mrb[0].mxu0 %v2011
        %v2454 = vpop.f32.mrb[0].mxu0
        %v2455 = vadd.f32 0.0, %v2454
        %v2456 = vpop.f32.mrb[0].mxu0
        %2457 = vmatprep.mubr.f32.mxu0 0.0
        %2458 = vmatmul.mubr.f32.gmra.mrb[0].mxu0 %v2012
        %v2459 = vpop.f32.mrb[0].mxu0
        %v2460 = vadd.f32 0.0, %v2459
        %v2461 = vpop.f32.mrb[0].mxu0
        %2462 = vmatprep.mubr.f32.mxu0 0.0
        %2463 = vmatmul.mubr.f32.gmra.mrb[0].mxu0 %v2013
        %v2464 = vpop.f32.mrb[0].mxu0
        %v2465 = vadd.f32 0.0, %v2464
        %v2466 = vpop.f32.mrb[0].mxu0
        %2467 = vmatprep.mubr.f32.mxu0 0.0
        %2468 = vmatmul.mubr.f32.gmra.mrb[0].mxu0 %v2014
        %v2469 = vpop.f32.mrb[0].mxu0
        %v2470 = vadd.f32 0.0, %v2469
        %v2471 = vpop.f32.mrb[0].mxu0
        %2472 = vmatprep.mubr.f32.mxu0 0.0
        %2473 = vmatmul.mubr.f32.gmra.mrb[0].mxu0 %v2015
        %v2474 = vpop.f32.mrb[0].mxu0
        %v2475 = vadd.f32 0.0, %v2474
        %v2476 = vpop.f32.mrb[0].mxu0
        %2477 = vmatprep.mubr.f32.mxu0 0.0
        %2478 = vmatmul.mubr.f32.gmra.mrb[0].mxu0 %v2016
        %v2479 = vpop.f32.mrb[0].mxu0
        %v2480 = vadd.f32 0.0, %v2479
        %v2481 = vpop.f32.mrb[0].mxu0
        %2482 = vmatprep.mubr.f32.mxu0 0.0
        %2483 = vmatmul.mubr.f32.gmra.mrb[0].mxu0 %v2017
        %v2484 = vpop.f32.mrb[0].mxu0
        %v2485 = vadd.f32 0.0, %v2484
        %v2486 = vpop.f32.mrb[0].mxu0
        %2487 = vmatprep.mubr.f32.mxu0 0.0
        %2488 = vmatmul.mubr.f32.gmra.mrb[0].mxu0 %v2018
        %v2489 = vpop.f32.mrb[0].mxu0
        %v2490 = vadd.f32 0.0, %v2489
        %v2491 = vpop.f32.mrb[0].mxu0
        %2492 = vmatprep.mubr.f32.mxu0 0.0
        %2493 = vmatmul.mubr.f32.gmra.mrb[0].mxu0 %v2019
        %v2494 = vpop.f32.mrb[0].mxu0
        %v2495 = vadd.f32 0.0, %v2494
        %v2496 = vpop.f32.mrb[0].mxu0
        %2497 = vmatprep.mubr.f32.mxu0 0.0
        %2498 = vmatmul.mubr.f32.gmra.mrb[0].mxu0 %v2020
        %v2499 = vpop.f32.mrb[0].mxu0
        %v2500 = vadd.f32 0.0, %v2499
        %v2501 = vpop.f32.mrb[0].mxu0
        %2502 = vmatprep.mubr.f32.mxu0 0.0
        %2503 = vmatmul.mubr.f32.gmra.mrb[0].mxu0 %v2021
        %v2504 = vpop.f32.mrb[0].mxu0
        %v2505 = vadd.f32 0.0, %v2504
        %v2506 = vpop.f32.mrb[0].mxu0
        %2507 = vmatprep.mubr.f32.mxu0 0.0
        %2508 = vmatmul.mubr.f32.gmra.mrb[0].mxu0 %v2022
        %v2509 = vpop.f32.mrb[0].mxu0
        %v2510 = vadd.f32 0.0, %v2509
        %v2511 = vpop.f32.mrb[0].mxu0
        %2512 = vmatprep.mubr.f32.mxu0 0.0
        %2513 = vmatmul.mubr.f32.gmra.mrb[0].mxu0 %v2023
        %v2514 = vpop.f32.mrb[0].mxu0
        %v2515 = vadd.f32 0.0, %v2514
        %v2516 = vpop.f32.mrb[0].mxu0
        %2517 = vmatprep.mubr.f32.mxu0 0.0
        %2518 = vmatmul.mubr.f32.gmra.mrb[0].mxu0 %v2024
        %v2519 = vpop.f32.mrb[0].mxu0
        %v2520 = vadd.f32 0.0, %v2519
        %v2521 = vpop.f32.mrb[0].mxu0
        %2522 = vmatprep.mubr.f32.mxu0 0.0
        %2523 = vmatmul.mubr.f32.gmra.mrb[0].mxu0 %v2025
        %v2524 = vpop.f32.mrb[0].mxu0
        %v2525 = vadd.f32 0.0, %v2524
        %v2526 = vpop.f32.mrb[0].mxu0
        %2527 = vmatprep.mubr.f32.mxu0 0.0
        %2528 = vmatmul.mubr.f32.gmra.mrb[0].mxu0 %v2026
        %v2529 = vpop.f32.mrb[0].mxu0
        %v2530 = vadd.f32 0.0, %v2529
        %v2531 = vpop.f32.mrb[0].mxu0
        %2532 = vmatprep.mubr.f32.mxu0 0.0
        %2533 = vmatmul.mubr.f32.gmra.mrb[0].mxu0 %v2027
        %v2534 = vpop.f32.mrb[0].mxu0
        %v2535 = vadd.f32 0.0, %v2534
        %v2536 = vpop.f32.mrb[0].mxu0
        %2537 = vmatprep.mubr.f32.mxu0 0.0
        %2538 = vmatmul.mubr.f32.gmra.mrb[0].mxu0 %v2028
        %v2539 = vpop.f32.mrb[0].mxu0
        %v2540 = vadd.f32 0.0, %v2539
        %v2541 = vpop.f32.mrb[0].mxu0
        %2542 = vmatprep.mubr.f32.mxu0 0.0
        %2543 = vmatmul.mubr.f32.gmra.mrb[0].mxu0 %v2029
        %v2544 = vpop.f32.mrb[0].mxu0
        %v2545 = vadd.f32 0.0, %v2544
        %v2546 = vpop.f32.mrb[0].mxu0
        %2547 = vmatprep.mubr.f32.mxu0 0.0
        %2548 = vmatmul.mubr.f32.gmra.mrb[0].mxu0 %v2030
        %v2549 = vpop.f32.mrb[0].mxu0
        %v2550 = vadd.f32 0.0, %v2549
        %v2551 = vpop.f32.mrb[0].mxu0
        %2552 = vmatprep.mubr.f32.mxu0 0.0
        %2553 = vmatmul.mubr.f32.gmra.mrb[0].mxu0 %v2031
        %v2554 = vpop.f32.mrb[0].mxu0
        %v2555 = vadd.f32 0.0, %v2554
        %v2556 = vpop.f32.mrb[0].mxu0
        %2557 = vmatprep.mubr.f32.mxu0 0.0
        %2558 = vmatmul.mubr.f32.gmra.mrb[0].mxu0 %v2032
        %v2559 = vpop.f32.mrb[0].mxu0
        %v2560 = vadd.f32 0.0, %v2559
        %v2561 = vpop.f32.mrb[0].mxu0
        %2562 = vmatprep.mubr.f32.mxu0 0.0
        %2563 = vmatmul.mubr.f32.gmra.mrb[0].mxu0 %v2033
        %v2564 = vpop.f32.mrb[0].mxu0
        %v2565 = vadd.f32 0.0, %v2564
        %v2566 = vpop.f32.mrb[0].mxu0
        %2567 = vmatprep.mubr.f32.mxu0 0.0
        %2568 = vmatmul.mubr.f32.gmra.mrb[0].mxu0 %v2034
        %v2569 = vpop.f32.mrb[0].mxu0
        %v2570 = vadd.f32 0.0, %v2569
        %v2571 = vpop.f32.mrb[0].mxu0
        %2572 = vmatprep.mubr.f32.mxu0 0.0
        %2573 = vmatmul.mubr.f32.gmra.mrb[0].mxu0 %v2035
        %v2574 = vpop.f32.mrb[0].mxu0
        %v2575 = vadd.f32 0.0, %v2574
        %v2576 = vpop.f32.mrb[0].mxu0
        %2577 = vmatprep.mubr.f32.mxu0 0.0
        %2578 = vmatmul.mubr.f32.gmra.mrb[0].mxu0 %v2036
        %v2579 = vpop.f32.mrb[0].mxu0
        %v2580 = vadd.f32 0.0, %v2579
        %v2581 = vpop.f32.mrb[0].mxu0
        %2582 = vmatprep.mubr.f32.mxu0 0.0
        %2583 = vmatmul.mubr.f32.gmra.mrb[0].mxu0 %v2037
        %v2584 = vpop.f32.mrb[0].mxu0
        %v2585 = vadd.f32 0.0, %v2584
        %v2586 = vpop.f32.mrb[0].mxu0
        %2587 = vmatprep.mubr.f32.mxu0 0.0
        %2588 = vmatmul.mubr.f32.gmra.mrb[0].mxu0 %v2038
        %v2589 = vpop.f32.mrb[0].mxu0
        %v2590 = vadd.f32 0.0, %v2589
        %v2591 = vpop.f32.mrb[0].mxu0
        %2592 = vmatprep.mubr.f32.mxu0 0.0
        %2593 = vmatmul.mubr.f32.gmra.mrb[0].mxu0 %v2039
        %v2594 = vpop.f32.mrb[0].mxu0
        %v2595 = vadd.f32 0.0, %v2594
        %v2596 = vpop.f32.mrb[0].mxu0
        %2597 = vmatprep.mubr.f32.mxu0 0.0
        %2598 = vmatmul.mubr.f32.gmra.mrb[0].mxu0 %v2040
        %v2599 = vpop.f32.mrb[0].mxu0
        %v2600 = vadd.f32 0.0, %v2599
        %v2601 = vpop.f32.mrb[0].mxu0
        %2602 = vmatprep.mubr.f32.mxu0 0.0
        %2603 = vmatmul.mubr.f32.gmra.mrb[0].mxu0 %v2041
        %v2604 = vpop.f32.mrb[0].mxu0
        %v2605 = vadd.f32 0.0, %v2604
        %v2606 = vpop.f32.mrb[0].mxu0
        %2607 = vmatprep.mubr.f32.mxu0 0.0
        %2608 = vmatmul.mubr.f32.gmra.mrb[0].mxu0 %v2042
        %v2609 = vpop.f32.mrb[0].mxu0
        %v2610 = vadd.f32 0.0, %v2609
        %v2611 = vpop.f32.mrb[0].mxu0
        %2612 = vmatprep.mubr.f32.mxu0 0.0
        %2613 = vmatmul.mubr.f32.gmra.mrb[0].mxu0 %v2043
        %v2614 = vpop.f32.mrb[0].mxu0
        %v2615 = vadd.f32 0.0, %v2614
        %v2616 = vpop.f32.mrb[0].mxu0
        %2617 = vmatprep.mubr.f32.mxu0 0.0
        %2618 = vmatmul.mubr.f32.gmra.mrb[0].mxu0 %v2044
        %v2619 = vpop.f32.mrb[0].mxu0
        %v2620 = vadd.f32 0.0, %v2619
        %v2621 = vpop.f32.mrb[0].mxu0
        %2622 = vmatprep.mubr.f32.mxu0 0.0
        %2623 = vmatmul.mubr.f32.gmra.mrb[0].mxu0 %v2045
        %v2624 = vpop.f32.mrb[0].mxu0
        %v2625 = vadd.f32 0.0, %v2624
        %v2626 = vpop.f32.mrb[0].mxu0
        %2627 = vmatprep.mubr.f32.mxu0 0.0
        %2628 = vmatmul.mubr.f32.gmra.mrb[0].mxu0 %v2046
        %v2629 = vpop.f32.mrb[0].mxu0
        %v2630 = vadd.f32 0.0, %v2629
        %v2631 = vpop.f32.mrb[0].mxu0
        %2632 = vmatprep.mubr.f32.mxu0 0.0
        %2633 = vmatmul.mubr.f32.gmra.mrb[0].mxu0 %v2047
        %v2634 = vpop.f32.mrb[0].mxu0
        %v2635 = vadd.f32 0.0, %v2634
        %v2636 = vpop.f32.mrb[0].mxu0
        %2637 = vmatprep.mubr.f32.mxu0 0.0
        %2638 = vmatmul.mubr.f32.gmra.mrb[0].mxu0 %v2048
        %v2639 = vpop.f32.mrb[0].mxu0
        %v2640 = vadd.f32 0.0, %v2639
        %v2641 = vpop.f32.mrb[0].mxu0
        %2642 = vmatprep.mubr.f32.mxu0 0.0
        %2643 = vmatmul.mubr.f32.gmra.mrb[0].mxu0 %v2049
        %v2644 = vpop.f32.mrb[0].mxu0
        %v2645 = vadd.f32 0.0, %v2644
        %v2646 = vpop.f32.mrb[0].mxu0
        %2647 = vmatprep.mubr.f32.mxu0 0.0
        %2648 = vmatmul.mubr.f32.gmra.mrb[0].mxu0 %v2050
        %v2649 = vpop.f32.mrb[0].mxu0
        %v2650 = vadd.f32 0.0, %v2649
        %v2651 = vpop.f32.mrb[0].mxu0
        %2652 = vmatprep.mubr.f32.mxu0 0.0
        %2653 = vmatmul.mubr.f32.gmra.mrb[0].mxu0 %v2051
        %v2654 = vpop.f32.mrb[0].mxu0
        %v2655 = vadd.f32 0.0, %v2654
        %v2656 = vpop.f32.mrb[0].mxu0
        %2657 = vmatprep.mubr.f32.mxu0 0.0
        %2658 = vmatmul.mubr.f32.gmra.mrb[0].mxu0 %v2052
        %v2659 = vpop.f32.mrb[0].mxu0
        %v2660 = vadd.f32 0.0, %v2659
        %v2661 = vpop.f32.mrb[0].mxu0
        %2662 = vmatprep.mubr.f32.mxu0 0.0
        %2663 = vmatmul.mubr.f32.gmra.mrb[0].mxu0 %v2053
        %v2664 = vpop.f32.mrb[0].mxu0
        %v2665 = vadd.f32 0.0, %v2664
        %v2666 = vpop.f32.mrb[0].mxu0
        %2667 = vmatprep.mubr.f32.mxu0 0.0
        %2668 = vmatmul.mubr.f32.gmra.mrb[0].mxu0 %v2054
        %v2669 = vpop.f32.mrb[0].mxu0
        %v2670 = vadd.f32 0.0, %v2669
        %v2671 = vpop.f32.mrb[0].mxu0
        %2672 = vmatprep.mubr.f32.mxu0 0.0
        %2673 = vmatmul.mubr.f32.gmra.mrb[0].mxu0 %v2055
        %v2674 = vpop.f32.mrb[0].mxu0
        %v2675 = vadd.f32 0.0, %v2674
        %v2676 = vpop.f32.mrb[0].mxu0
        %2677 = vmatprep.mubr.f32.mxu0 0.0
        %2678 = vmatmul.mubr.f32.gmra.mrb[0].mxu0 %v2056
        %v2679 = vpop.f32.mrb[0].mxu0
        %v2680 = vadd.f32 0.0, %v2679
        %v2681 = vpop.f32.mrb[0].mxu0
        %2682 = vmatprep.mubr.f32.mxu0 0.0
        %2683 = vmatmul.mubr.f32.gmra.mrb[0].mxu0 %v2057
        %v2684 = vpop.f32.mrb[0].mxu0
        %v2685 = vadd.f32 0.0, %v2684
        %v2686 = vpop.f32.mrb[0].mxu0
        %2687 = vmatprep.mubr.f32.mxu0 0.0
        %2688 = vmatmul.mubr.f32.gmra.mrb[0].mxu0 %v2058
        %v2689 = vpop.f32.mrb[0].mxu0
        %v2690 = vadd.f32 0.0, %v2689
        %v2691 = vpop.f32.mrb[0].mxu0
        %2692 = vmatprep.mubr.f32.mxu0 0.0
        %2693 = vmatmul.mubr.f32.gmra.mrb[0].mxu0 %v2059
        %v2694 = vpop.f32.mrb[0].mxu0
        %v2695 = vadd.f32 0.0, %v2694
        %v2696 = vpop.f32.mrb[0].mxu0
        %2697 = vmatprep.mubr.f32.mxu0 0.0
        %2698 = vmatmul.mubr.f32.gmra.mrb[0].mxu0 %v2060
        %v2699 = vpop.f32.mrb[0].mxu0
        %v2700 = vadd.f32 0.0, %v2699
        %v2701 = vpop.f32.mrb[0].mxu0
        %2702 = vmatprep.mubr.f32.mxu0 0.0
        %2703 = vmatmul.mubr.f32.gmra.mrb[0].mxu0 %v2061
        %v2704 = vpop.f32.mrb[0].mxu0
        %v2705 = vadd.f32 0.0, %v2704
        %v2706 = vpop.f32.mrb[0].mxu0
        %2707 = vmatprep.mubr.f32.mxu0 0.0
        %2708 = vmatmul.mubr.f32.gmra.mrb[0].mxu0 %v2062
        %v2709 = vpop.f32.mrb[0].mxu0
        %v2710 = vadd.f32 0.0, %v2709
        %v2711 = vpop.f32.mrb[0].mxu0
        %2712 = vmatprep.mubr.f32.mxu0 0.0
        %2713 = vmatmul.mubr.f32.gmra.mrb[0].mxu0 %v2063
        %v2714 = vpop.f32.mrb[0].mxu0
        %v2715 = vadd.f32 0.0, %v2714
        %v2716 = vpop.f32.mrb[0].mxu0
        %2717 = vmatprep.mubr.f32.mxu0 0.0
        %2718 = vmatmul.mubr.f32.gmra.mrb[0].mxu0 %v2064
        %v2719 = vpop.f32.mrb[0].mxu0
        %v2720 = vadd.f32 0.0, %v2719
        %v2721 = vpop.f32.mrb[0].mxu0
        %2722 = vmatprep.mubr.f32.mxu0 0.0
        %2723 = vmatmul.mubr.f32.gmra.mrb[0].mxu0 %v2065
        %v2724 = vpop.f32.mrb[0].mxu0
        %v2725 = vadd.f32 0.0, %v2724
        %v2726 = vpop.f32.mrb[0].mxu0
        %2727 = vmatprep.mubr.f32.mxu0 0.0
        %2728 = vmatmul.mubr.f32.gmra.mrb[0].mxu0 %v2066
        %v2729 = vpop.f32.mrb[0].mxu0
        %v2730 = vadd.f32 0.0, %v2729
        %v2731 = vpop.f32.mrb[0].mxu0
        %2732 = vmatprep.mubr.f32.mxu0 0.0
        %2733 = vmatmul.mubr.f32.gmra.mrb[0].mxu0 %v2067
        %v2734 = vpop.f32.mrb[0].mxu0
        %v2735 = vadd.f32 0.0, %v2734
        %v2736 = vpop.f32.mrb[0].mxu0
        %2737 = vmatprep.mubr.f32.mxu0 0.0
        %2738 = vmatmul.mubr.f32.gmra.mrb[0].mxu0 %v2068
        %v2739 = vpop.f32.mrb[0].mxu0
        %v2740 = vadd.f32 0.0, %v2739
        %v2741 = vpop.f32.mrb[0].mxu0
        %2742 = vmatprep.mubr.f32.mxu0 0.0
        %2743 = vmatmul.mubr.f32.gmra.mrb[0].mxu0 %v2069
        %v2744 = vpop.f32.mrb[0].mxu0
        %v2745 = vadd.f32 0.0, %v2744
        %v2746 = vpop.f32.mrb[0].mxu0
        %2747 = vmatprep.mubr.f32.mxu0 0.0
        %2748 = vmatmul.mubr.f32.gmra.mrb[0].mxu0 %v2070
        %v2749 = vpop.f32.mrb[0].mxu0
        %v2750 = vadd.f32 0.0, %v2749
        %v2751 = vpop.f32.mrb[0].mxu0
        %2752 = vmatprep.mubr.f32.mxu0 0.0
        %2753 = vmatmul.mubr.f32.gmra.mrb[0].mxu0 %v2071
        %v2754 = vpop.f32.mrb[0].mxu0
        %v2755 = vadd.f32 0.0, %v2754
        %v2756 = vpop.f32.mrb[0].mxu0
        %2757 = vmatprep.mubr.f32.mxu0 0.0
        %2758 = vmatmul.mubr.f32.gmra.mrb[0].mxu0 %v2072
        %v2759 = vpop.f32.mrb[0].mxu0
        %v2760 = vadd.f32 0.0, %v2759
        %v2761 = vpop.f32.mrb[0].mxu0
        %2762 = vmatprep.mubr.f32.mxu0 0.0
        %2763 = vmatmul.mubr.f32.gmra.mrb[0].mxu0 %v2073
        %v2764 = vpop.f32.mrb[0].mxu0
        %v2765 = vadd.f32 0.0, %v2764
        %v2766 = vpop.f32.mrb[0].mxu0
        %2767 = vmatprep.mubr.f32.mxu0 0.0
        %2768 = vmatmul.mubr.f32.gmra.mrb[0].mxu0 %v2074
        %v2769 = vpop.f32.mrb[0].mxu0
        %v2770 = vadd.f32 0.0, %v2769
        %v2771 = vpop.f32.mrb[0].mxu0
        %2772 = vmatprep.mubr.f32.mxu0 0.0
        %2773 = vmatmul.mubr.f32.gmra.mrb[0].mxu0 %v2075
        %v2774 = vpop.f32.mrb[0].mxu0
        %v2775 = vadd.f32 0.0, %v2774
        %v2776 = vpop.f32.mrb[0].mxu0
        %2777 = vmatprep.mubr.f32.mxu0 0.0
        %2778 = vmatmul.mubr.f32.gmra.mrb[0].mxu0 %v2076
        %v2779 = vpop.f32.mrb[0].mxu0
        %v2780 = vadd.f32 0.0, %v2779
        %v2781 = vpop.f32.mrb[0].mxu0
        %2782 = vmatprep.mubr.f32.mxu0 0.0
        %2783 = vmatmul.mubr.f32.gmra.mrb[0].mxu0 %v2077
        %v2784 = vpop.f32.mrb[0].mxu0
        %v2785 = vadd.f32 0.0, %v2784
        %v2786 = vpop.f32.mrb[0].mxu0
        %2787 = vmatprep.mubr.f32.mxu0 0.0
        %2788 = vmatmul.mubr.f32.gmra.mrb[0].mxu0 %v2078
        %v2789 = vpop.f32.mrb[0].mxu0
        %v2790 = vadd.f32 0.0, %v2789
        %v2791 = vpop.f32.mrb[0].mxu0
        %2792 = vmatprep.mubr.f32.mxu0 0.0
        %2793 = vmatmul.mubr.f32.gmra.mrb[0].mxu0 %v2079
        %v2794 = vpop.f32.mrb[0].mxu0
        %v2795 = vadd.f32 0.0, %v2794
        %v2796 = vpop.f32.mrb[0].mxu0
        %2797 = vmatprep.mubr.f32.mxu0 0.0
        %2798 = vmatmul.mubr.f32.gmra.mrb[0].mxu0 %v2080
        %v2799 = vpop.f32.mrb[0].mxu0
        %v2800 = vadd.f32 0.0, %v2799
        %v2801 = vpop.f32.mrb[0].mxu0
        %2802 = vdwg.mxu0
        %v2803 = vld [vmem:[#allocation2] sm:$0xff]
        %v2804 = vld [vmem:[#allocation2 + $0x8] sm:$0xff]
        %v2805 = vld [vmem:[#allocation2 + $0x10] sm:$0xff]
        %v2806 = vld [vmem:[#allocation2 + $0x18] sm:$0xff]
        %v2807 = vld [vmem:[#allocation2 + $0x20] sm:$0xff]
        %v2808 = vld [vmem:[#allocation2 + $0x28] sm:$0xff]
        %v2809 = vld [vmem:[#allocation2 + $0x30] sm:$0xff]
        %v2810 = vld [vmem:[#allocation2 + $0x38] sm:$0xff]
        %v2811 = vld [vmem:[#allocation2 + $0x40] sm:$0xff]
        %v2812 = vld [vmem:[#allocation2 + $0x48] sm:$0xff]
        %v2813 = vld [vmem:[#allocation2 + $0x50] sm:$0xff]
        %v2814 = vld [vmem:[#allocation2 + $0x58] sm:$0xff]
        %v2815 = vld [vmem:[#allocation2 + $0x60] sm:$0xff]
        %v2816 = vld [vmem:[#allocation2 + $0x68] sm:$0xff]
        %v2817 = vld [vmem:[#allocation2 + $0x70] sm:$0xff]
        %v2818 = vld [vmem:[#allocation2 + $0x78] sm:$0xff]
        %v2819 = vld [vmem:[#allocation2 + $0x80] sm:$0xff]
        %v2820 = vld [vmem:[#allocation2 + $0x88] sm:$0xff]
        %v2821 = vld [vmem:[#allocation2 + $0x90] sm:$0xff]
        %v2822 = vld [vmem:[#allocation2 + $0x98] sm:$0xff]
        %v2823 = vld [vmem:[#allocation2 + $0xa0] sm:$0xff]
        %v2824 = vld [vmem:[#allocation2 + $0xa8] sm:$0xff]
        %v2825 = vld [vmem:[#allocation2 + $0xb0] sm:$0xff]
        %v2826 = vld [vmem:[#allocation2 + $0xb8] sm:$0xff]
        %v2827 = vld [vmem:[#allocation2 + $0xc0] sm:$0xff]
        %v2828 = vld [vmem:[#allocation2 + $0xc8] sm:$0xff]
        %v2829 = vld [vmem:[#allocation2 + $0xd0] sm:$0xff]
        %v2830 = vld [vmem:[#allocation2 + $0xd8] sm:$0xff]
        %v2831 = vld [vmem:[#allocation2 + $0xe0] sm:$0xff]
        %v2832 = vld [vmem:[#allocation2 + $0xe8] sm:$0xff]
        %v2833 = vld [vmem:[#allocation2 + $0xf0] sm:$0xff]
        %v2834 = vld [vmem:[#allocation2 + $0xf8] sm:$0xff]
        %v2835 = vld [vmem:[#allocation2 + $0x100] sm:$0xff]
        %v2836 = vld [vmem:[#allocation2 + $0x108] sm:$0xff]
        %v2837 = vld [vmem:[#allocation2 + $0x110] sm:$0xff]
        %v2838 = vld [vmem:[#allocation2 + $0x118] sm:$0xff]
        %v2839 = vld [vmem:[#allocation2 + $0x120] sm:$0xff]
        %v2840 = vld [vmem:[#allocation2 + $0x128] sm:$0xff]
        %v2841 = vld [vmem:[#allocation2 + $0x130] sm:$0xff]
        %v2842 = vld [vmem:[#allocation2 + $0x138] sm:$0xff]
        %v2843 = vld [vmem:[#allocation2 + $0x140] sm:$0xff]
        %v2844 = vld [vmem:[#allocation2 + $0x148] sm:$0xff]
        %v2845 = vld [vmem:[#allocation2 + $0x150] sm:$0xff]
        %v2846 = vld [vmem:[#allocation2 + $0x158] sm:$0xff]
        %v2847 = vld [vmem:[#allocation2 + $0x160] sm:$0xff]
        %v2848 = vld [vmem:[#allocation2 + $0x168] sm:$0xff]
        %v2849 = vld [vmem:[#allocation2 + $0x170] sm:$0xff]
        %v2850 = vld [vmem:[#allocation2 + $0x178] sm:$0xff]
        %v2851 = vld [vmem:[#allocation2 + $0x180] sm:$0xff]
        %v2852 = vld [vmem:[#allocation2 + $0x188] sm:$0xff]
        %v2853 = vld [vmem:[#allocation2 + $0x190] sm:$0xff]
        %v2854 = vld [vmem:[#allocation2 + $0x198] sm:$0xff]
        %v2855 = vld [vmem:[#allocation2 + $0x1a0] sm:$0xff]
        %v2856 = vld [vmem:[#allocation2 + $0x1a8] sm:$0xff]
        %v2857 = vld [vmem:[#allocation2 + $0x1b0] sm:$0xff]
        %v2858 = vld [vmem:[#allocation2 + $0x1b8] sm:$0xff]
        %v2859 = vld [vmem:[#allocation2 + $0x1c0] sm:$0xff]
        %v2860 = vld [vmem:[#allocation2 + $0x1c8] sm:$0xff]
        %v2861 = vld [vmem:[#allocation2 + $0x1d0] sm:$0xff]
        %v2862 = vld [vmem:[#allocation2 + $0x1d8] sm:$0xff]
        %v2863 = vld [vmem:[#allocation2 + $0x1e0] sm:$0xff]
        %v2864 = vld [vmem:[#allocation2 + $0x1e8] sm:$0xff]
        %v2865 = vld [vmem:[#allocation2 + $0x1f0] sm:$0xff]
        %v2866 = vld [vmem:[#allocation2 + $0x1f8] sm:$0xff]
        %v2867 = vld [vmem:[#allocation2 + $0x200] sm:$0xff]
        %v2868 = vld [vmem:[#allocation2 + $0x208] sm:$0xff]
        %v2869 = vld [vmem:[#allocation2 + $0x210] sm:$0xff]
        %v2870 = vld [vmem:[#allocation2 + $0x218] sm:$0xff]
        %v2871 = vld [vmem:[#allocation2 + $0x220] sm:$0xff]
        %v2872 = vld [vmem:[#allocation2 + $0x228] sm:$0xff]
        %v2873 = vld [vmem:[#allocation2 + $0x230] sm:$0xff]
        %v2874 = vld [vmem:[#allocation2 + $0x238] sm:$0xff]
        %v2875 = vld [vmem:[#allocation2 + $0x240] sm:$0xff]
        %v2876 = vld [vmem:[#allocation2 + $0x248] sm:$0xff]
        %v2877 = vld [vmem:[#allocation2 + $0x250] sm:$0xff]
        %v2878 = vld [vmem:[#allocation2 + $0x258] sm:$0xff]
        %v2879 = vld [vmem:[#allocation2 + $0x260] sm:$0xff]
        %v2880 = vld [vmem:[#allocation2 + $0x268] sm:$0xff]
        %v2881 = vld [vmem:[#allocation2 + $0x270] sm:$0xff]
        %v2882 = vld [vmem:[#allocation2 + $0x278] sm:$0xff]
        %v2883 = vld [vmem:[#allocation2 + $0x280] sm:$0xff]
        %v2884 = vld [vmem:[#allocation2 + $0x288] sm:$0xff]
        %v2885 = vld [vmem:[#allocation2 + $0x290] sm:$0xff]
        %v2886 = vld [vmem:[#allocation2 + $0x298] sm:$0xff]
        %v2887 = vld [vmem:[#allocation2 + $0x2a0] sm:$0xff]
        %v2888 = vld [vmem:[#allocation2 + $0x2a8] sm:$0xff]
        %v2889 = vld [vmem:[#allocation2 + $0x2b0] sm:$0xff]
        %v2890 = vld [vmem:[#allocation2 + $0x2b8] sm:$0xff]
        %v2891 = vld [vmem:[#allocation2 + $0x2c0] sm:$0xff]
        %v2892 = vld [vmem:[#allocation2 + $0x2c8] sm:$0xff]
        %v2893 = vld [vmem:[#allocation2 + $0x2d0] sm:$0xff]
        %v2894 = vld [vmem:[#allocation2 + $0x2d8] sm:$0xff]
        %v2895 = vld [vmem:[#allocation2 + $0x2e0] sm:$0xff]
        %v2896 = vld [vmem:[#allocation2 + $0x2e8] sm:$0xff]
        %v2897 = vld [vmem:[#allocation2 + $0x2f0] sm:$0xff]
        %v2898 = vld [vmem:[#allocation2 + $0x2f8] sm:$0xff]
        %v2899 = vld [vmem:[#allocation2 + $0x300] sm:$0xff]
        %v2900 = vld [vmem:[#allocation2 + $0x308] sm:$0xff]
        %v2901 = vld [vmem:[#allocation2 + $0x310] sm:$0xff]
        %v2902 = vld [vmem:[#allocation2 + $0x318] sm:$0xff]
        %v2903 = vld [vmem:[#allocation2 + $0x320] sm:$0xff]
        %v2904 = vld [vmem:[#allocation2 + $0x328] sm:$0xff]
        %v2905 = vld [vmem:[#allocation2 + $0x330] sm:$0xff]
        %v2906 = vld [vmem:[#allocation2 + $0x338] sm:$0xff]
        %v2907 = vld [vmem:[#allocation2 + $0x340] sm:$0xff]
        %v2908 = vld [vmem:[#allocation2 + $0x348] sm:$0xff]
        %v2909 = vld [vmem:[#allocation2 + $0x350] sm:$0xff]
        %v2910 = vld [vmem:[#allocation2 + $0x358] sm:$0xff]
        %v2911 = vld [vmem:[#allocation2 + $0x360] sm:$0xff]
        %v2912 = vld [vmem:[#allocation2 + $0x368] sm:$0xff]
        %v2913 = vld [vmem:[#allocation2 + $0x370] sm:$0xff]
        %v2914 = vld [vmem:[#allocation2 + $0x378] sm:$0xff]
        %v2915 = vld [vmem:[#allocation2 + $0x380] sm:$0xff]
        %v2916 = vld [vmem:[#allocation2 + $0x388] sm:$0xff]
        %v2917 = vld [vmem:[#allocation2 + $0x390] sm:$0xff]
        %v2918 = vld [vmem:[#allocation2 + $0x398] sm:$0xff]
        %v2919 = vld [vmem:[#allocation2 + $0x3a0] sm:$0xff]
        %v2920 = vld [vmem:[#allocation2 + $0x3a8] sm:$0xff]
        %v2921 = vld [vmem:[#allocation2 + $0x3b0] sm:$0xff]
        %v2922 = vld [vmem:[#allocation2 + $0x3b8] sm:$0xff]
        %v2923 = vld [vmem:[#allocation2 + $0x3c0] sm:$0xff]
        %v2924 = vld [vmem:[#allocation2 + $0x3c8] sm:$0xff]
        %v2925 = vld [vmem:[#allocation2 + $0x3d0] sm:$0xff]
        %v2926 = vld [vmem:[#allocation2 + $0x3d8] sm:$0xff]
        %v2927 = vld [vmem:[#allocation2 + $0x3e0] sm:$0xff]
        %v2928 = vld [vmem:[#allocation2 + $0x3e8] sm:$0xff]
        %v2929 = vld [vmem:[#allocation2 + $0x3f0] sm:$0xff]
        %v2930 = vld [vmem:[#allocation2 + $0x3f8] sm:$0xff]
        %v2931 = vadd.f32 %v2803, %v2165
        %v2932 = vadd.f32 %v2804, %v2170
        %v2933 = vadd.f32 %v2805, %v2175
        %v2934 = vadd.f32 %v2806, %v2180
        %v2935 = vadd.f32 %v2807, %v2185
        %v2936 = vadd.f32 %v2808, %v2190
        %v2937 = vadd.f32 %v2809, %v2195
        %v2938 = vadd.f32 %v2810, %v2200
        %v2939 = vadd.f32 %v2811, %v2205
        %v2940 = vadd.f32 %v2812, %v2210
        %v2941 = vadd.f32 %v2813, %v2215
        %v2942 = vadd.f32 %v2814, %v2220
        %v2943 = vadd.f32 %v2815, %v2225
        %v2944 = vadd.f32 %v2816, %v2230
        %v2945 = vadd.f32 %v2817, %v2235
        %v2946 = vadd.f32 %v2818, %v2240
        %v2947 = vadd.f32 %v2819, %v2245
        %v2948 = vadd.f32 %v2820, %v2250
        %v2949 = vadd.f32 %v2821, %v2255
        %v2950 = vadd.f32 %v2822, %v2260
        %v2951 = vadd.f32 %v2823, %v2265
        %v2952 = vadd.f32 %v2824, %v2270
        %v2953 = vadd.f32 %v2825, %v2275
        %v2954 = vadd.f32 %v2826, %v2280
        %v2955 = vadd.f32 %v2827, %v2285
        %v2956 = vadd.f32 %v2828, %v2290
        %v2957 = vadd.f32 %v2829, %v2295
        %v2958 = vadd.f32 %v2830, %v2300
        %v2959 = vadd.f32 %v2831, %v2305
        %v2960 = vadd.f32 %v2832, %v2310
        %v2961 = vadd.f32 %v2833, %v2315
        %v2962 = vadd.f32 %v2834, %v2320
        %v2963 = vadd.f32 %v2835, %v2325
        %v2964 = vadd.f32 %v2836, %v2330
        %v2965 = vadd.f32 %v2837, %v2335
        %v2966 = vadd.f32 %v2838, %v2340
        %v2967 = vadd.f32 %v2839, %v2345
        %v2968 = vadd.f32 %v2840, %v2350
        %v2969 = vadd.f32 %v2841, %v2355
        %v2970 = vadd.f32 %v2842, %v2360
        %v2971 = vadd.f32 %v2843, %v2365
        %v2972 = vadd.f32 %v2844, %v2370
        %v2973 = vadd.f32 %v2845, %v2375
        %v2974 = vadd.f32 %v2846, %v2380
        %v2975 = vadd.f32 %v2847, %v2385
        %v2976 = vadd.f32 %v2848, %v2390
        %v2977 = vadd.f32 %v2849, %v2395
        %v2978 = vadd.f32 %v2850, %v2400
        %v2979 = vadd.f32 %v2851, %v2405
        %v2980 = vadd.f32 %v2852, %v2410
        %v2981 = vadd.f32 %v2853, %v2415
        %v2982 = vadd.f32 %v2854, %v2420
        %v2983 = vadd.f32 %v2855, %v2425
        %v2984 = vadd.f32 %v2856, %v2430
        %v2985 = vadd.f32 %v2857, %v2435
        %v2986 = vadd.f32 %v2858, %v2440
        %v2987 = vadd.f32 %v2859, %v2445
        %v2988 = vadd.f32 %v2860, %v2450
        %v2989 = vadd.f32 %v2861, %v2455
        %v2990 = vadd.f32 %v2862, %v2460
        %v2991 = vadd.f32 %v2863, %v2465
        %v2992 = vadd.f32 %v2864, %v2470
        %v2993 = vadd.f32 %v2865, %v2475
        %v2994 = vadd.f32 %v2866, %v2480
        %v2995 = vadd.f32 %v2867, %v2485
        %v2996 = vadd.f32 %v2868, %v2490
        %v2997 = vadd.f32 %v2869, %v2495
        %v2998 = vadd.f32 %v2870, %v2500
        %v2999 = vadd.f32 %v2871, %v2505
        %v3000 = vadd.f32 %v2872, %v2510
        %v3001 = vadd.f32 %v2873, %v2515
        %v3002 = vadd.f32 %v2874, %v2520
        %v3003 = vadd.f32 %v2875, %v2525
        %v3004 = vadd.f32 %v2876, %v2530
        %v3005 = vadd.f32 %v2877, %v2535
        %v3006 = vadd.f32 %v2878, %v2540
        %v3007 = vadd.f32 %v2879, %v2545
        %v3008 = vadd.f32 %v2880, %v2550
        %v3009 = vadd.f32 %v2881, %v2555
        %v3010 = vadd.f32 %v2882, %v2560
        %v3011 = vadd.f32 %v2883, %v2565
        %v3012 = vadd.f32 %v2884, %v2570
        %v3013 = vadd.f32 %v2885, %v2575
        %v3014 = vadd.f32 %v2886, %v2580
        %v3015 = vadd.f32 %v2887, %v2585
        %v3016 = vadd.f32 %v2888, %v2590
        %v3017 = vadd.f32 %v2889, %v2595
        %v3018 = vadd.f32 %v2890, %v2600
        %v3019 = vadd.f32 %v2891, %v2605
        %v3020 = vadd.f32 %v2892, %v2610
        %v3021 = vadd.f32 %v2893, %v2615
        %v3022 = vadd.f32 %v2894, %v2620
        %v3023 = vadd.f32 %v2895, %v2625
        %v3024 = vadd.f32 %v2896, %v2630
        %v3025 = vadd.f32 %v2897, %v2635
        %v3026 = vadd.f32 %v2898, %v2640
        %v3027 = vadd.f32 %v2899, %v2645
        %v3028 = vadd.f32 %v2900, %v2650
        %v3029 = vadd.f32 %v2901, %v2655
        %v3030 = vadd.f32 %v2902, %v2660
        %v3031 = vadd.f32 %v2903, %v2665
        %v3032 = vadd.f32 %v2904, %v2670
        %v3033 = vadd.f32 %v2905, %v2675
        %v3034 = vadd.f32 %v2906, %v2680
        %v3035 = vadd.f32 %v2907, %v2685
        %v3036 = vadd.f32 %v2908, %v2690
        %v3037 = vadd.f32 %v2909, %v2695
        %v3038 = vadd.f32 %v2910, %v2700
        %v3039 = vadd.f32 %v2911, %v2705
        %v3040 = vadd.f32 %v2912, %v2710
        %v3041 = vadd.f32 %v2913, %v2715
        %v3042 = vadd.f32 %v2914, %v2720
        %v3043 = vadd.f32 %v2915, %v2725
        %v3044 = vadd.f32 %v2916, %v2730
        %v3045 = vadd.f32 %v2917, %v2735
        %v3046 = vadd.f32 %v2918, %v2740
        %v3047 = vadd.f32 %v2919, %v2745
        %v3048 = vadd.f32 %v2920, %v2750
        %v3049 = vadd.f32 %v2921, %v2755
        %v3050 = vadd.f32 %v2922, %v2760
        %v3051 = vadd.f32 %v2923, %v2765
        %v3052 = vadd.f32 %v2924, %v2770
        %v3053 = vadd.f32 %v2925, %v2775
        %v3054 = vadd.f32 %v2926, %v2780
        %v3055 = vadd.f32 %v2927, %v2785
        %v3056 = vadd.f32 %v2928, %v2790
        %v3057 = vadd.f32 %v2929, %v2795
        %v3058 = vadd.f32 %v2930, %v2800
        %3059 = vst [vmem:[#allocation2] sm:$0xff] %v2931
        %3060 = vst [vmem:[#allocation2 + $0x8] sm:$0xff] %v2932
        %3061 = vst [vmem:[#allocation2 + $0x10] sm:$0xff] %v2933
        %3062 = vst [vmem:[#allocation2 + $0x18] sm:$0xff] %v2934
        %3063 = vst [vmem:[#allocation2 + $0x20] sm:$0xff] %v2935
        %3064 = vst [vmem:[#allocation2 + $0x28] sm:$0xff] %v2936
        %3065 = vst [vmem:[#allocation2 + $0x30] sm:$0xff] %v2937
        %3066 = vst [vmem:[#allocation2 + $0x38] sm:$0xff] %v2938
        %3067 = vst [vmem:[#allocation2 + $0x40] sm:$0xff] %v2939
        %3068 = vst [vmem:[#allocation2 + $0x48] sm:$0xff] %v2940
        %3069 = vst [vmem:[#allocation2 + $0x50] sm:$0xff] %v2941
        %3070 = vst [vmem:[#allocation2 + $0x58] sm:$0xff] %v2942
        %3071 = vst [vmem:[#allocation2 + $0x60] sm:$0xff] %v2943
        %3072 = vst [vmem:[#allocation2 + $0x68] sm:$0xff] %v2944
        %3073 = vst [vmem:[#allocation2 + $0x70] sm:$0xff] %v2945
        %3074 = vst [vmem:[#allocation2 + $0x78] sm:$0xff] %v2946
        %3075 = vst [vmem:[#allocation2 + $0x80] sm:$0xff] %v2947
        %3076 = vst [vmem:[#allocation2 + $0x88] sm:$0xff] %v2948
        %3077 = vst [vmem:[#allocation2 + $0x90] sm:$0xff] %v2949
        %3078 = vst [vmem:[#allocation2 + $0x98] sm:$0xff] %v2950
        %3079 = vst [vmem:[#allocation2 + $0xa0] sm:$0xff] %v2951
        %3080 = vst [vmem:[#allocation2 + $0xa8] sm:$0xff] %v2952
        %3081 = vst [vmem:[#allocation2 + $0xb0] sm:$0xff] %v2953
        %3082 = vst [vmem:[#allocation2 + $0xb8] sm:$0xff] %v2954
        %3083 = vst [vmem:[#allocation2 + $0xc0] sm:$0xff] %v2955
        %3084 = vst [vmem:[#allocation2 + $0xc8] sm:$0xff] %v2956
        %3085 = vst [vmem:[#allocation2 + $0xd0] sm:$0xff] %v2957
        %3086 = vst [vmem:[#allocation2 + $0xd8] sm:$0xff] %v2958
        %3087 = vst [vmem:[#allocation2 + $0xe0] sm:$0xff] %v2959
        %3088 = vst [vmem:[#allocation2 + $0xe8] sm:$0xff] %v2960
        %3089 = vst [vmem:[#allocation2 + $0xf0] sm:$0xff] %v2961
        %3090 = vst [vmem:[#allocation2 + $0xf8] sm:$0xff] %v2962
        %3091 = vst [vmem:[#allocation2 + $0x100] sm:$0xff] %v2963
        %3092 = vst [vmem:[#allocation2 + $0x108] sm:$0xff] %v2964
        %3093 = vst [vmem:[#allocation2 + $0x110] sm:$0xff] %v2965
        %3094 = vst [vmem:[#allocation2 + $0x118] sm:$0xff] %v2966
        %3095 = vst [vmem:[#allocation2 + $0x120] sm:$0xff] %v2967
        %3096 = vst [vmem:[#allocation2 + $0x128] sm:$0xff] %v2968
        %3097 = vst [vmem:[#allocation2 + $0x130] sm:$0xff] %v2969
        %3098 = vst [vmem:[#allocation2 + $0x138] sm:$0xff] %v2970
        %3099 = vst [vmem:[#allocation2 + $0x140] sm:$0xff] %v2971
        %3100 = vst [vmem:[#allocation2 + $0x148] sm:$0xff] %v2972
        %3101 = vst [vmem:[#allocation2 + $0x150] sm:$0xff] %v2973
        %3102 = vst [vmem:[#allocation2 + $0x158] sm:$0xff] %v2974
        %3103 = vst [vmem:[#allocation2 + $0x160] sm:$0xff] %v2975
        %3104 = vst [vmem:[#allocation2 + $0x168] sm:$0xff] %v2976
        %3105 = vst [vmem:[#allocation2 + $0x170] sm:$0xff] %v2977
        %3106 = vst [vmem:[#allocation2 + $0x178] sm:$0xff] %v2978
        %3107 = vst [vmem:[#allocation2 + $0x180] sm:$0xff] %v2979
        %3108 = vst [vmem:[#allocation2 + $0x188] sm:$0xff] %v2980
        %3109 = vst [vmem:[#allocation2 + $0x190] sm:$0xff] %v2981
        %3110 = vst [vmem:[#allocation2 + $0x198] sm:$0xff] %v2982
        %3111 = vst [vmem:[#allocation2 + $0x1a0] sm:$0xff] %v2983
        %3112 = vst [vmem:[#allocation2 + $0x1a8] sm:$0xff] %v2984
        %3113 = vst [vmem:[#allocation2 + $0x1b0] sm:$0xff] %v2985
        %3114 = vst [vmem:[#allocation2 + $0x1b8] sm:$0xff] %v2986
        %3115 = vst [vmem:[#allocation2 + $0x1c0] sm:$0xff] %v2987
        %3116 = vst [vmem:[#allocation2 + $0x1c8] sm:$0xff] %v2988
        %3117 = vst [vmem:[#allocation2 + $0x1d0] sm:$0xff] %v2989
        %3118 = vst [vmem:[#allocation2 + $0x1d8] sm:$0xff] %v2990
        %3119 = vst [vmem:[#allocation2 + $0x1e0] sm:$0xff] %v2991
        %3120 = vst [vmem:[#allocation2 + $0x1e8] sm:$0xff] %v2992
        %3121 = vst [vmem:[#allocation2 + $0x1f0] sm:$0xff] %v2993
        %3122 = vst [vmem:[#allocation2 + $0x1f8] sm:$0xff] %v2994
        %3123 = vst [vmem:[#allocation2 + $0x200] sm:$0xff] %v2995
        %3124 = vst [vmem:[#allocation2 + $0x208] sm:$0xff] %v2996
        %3125 = vst [vmem:[#allocation2 + $0x210] sm:$0xff] %v2997
        %3126 = vst [vmem:[#allocation2 + $0x218] sm:$0xff] %v2998
        %3127 = vst [vmem:[#allocation2 + $0x220] sm:$0xff] %v2999
        %3128 = vst [vmem:[#allocation2 + $0x228] sm:$0xff] %v3000
        %3129 = vst [vmem:[#allocation2 + $0x230] sm:$0xff] %v3001
        %3130 = vst [vmem:[#allocation2 + $0x238] sm:$0xff] %v3002
        %3131 = vst [vmem:[#allocation2 + $0x240] sm:$0xff] %v3003
        %3132 = vst [vmem:[#allocation2 + $0x248] sm:$0xff] %v3004
        %3133 = vst [vmem:[#allocation2 + $0x250] sm:$0xff] %v3005
        %3134 = vst [vmem:[#allocation2 + $0x258] sm:$0xff] %v3006
        %3135 = vst [vmem:[#allocation2 + $0x260] sm:$0xff] %v3007
        %3136 = vst [vmem:[#allocation2 + $0x268] sm:$0xff] %v3008
        %3137 = vst [vmem:[#allocation2 + $0x270] sm:$0xff] %v3009
        %3138 = vst [vmem:[#allocation2 + $0x278] sm:$0xff] %v3010
        %3139 = vst [vmem:[#allocation2 + $0x280] sm:$0xff] %v3011
        %3140 = vst [vmem:[#allocation2 + $0x288] sm:$0xff] %v3012
        %3141 = vst [vmem:[#allocation2 + $0x290] sm:$0xff] %v3013
        %3142 = vst [vmem:[#allocation2 + $0x298] sm:$0xff] %v3014
        %3143 = vst [vmem:[#allocation2 + $0x2a0] sm:$0xff] %v3015
        %3144 = vst [vmem:[#allocation2 + $0x2a8] sm:$0xff] %v3016
        %3145 = vst [vmem:[#allocation2 + $0x2b0] sm:$0xff] %v3017
        %3146 = vst [vmem:[#allocation2 + $0x2b8] sm:$0xff] %v3018
        %3147 = vst [vmem:[#allocation2 + $0x2c0] sm:$0xff] %v3019
        %3148 = vst [vmem:[#allocation2 + $0x2c8] sm:$0xff] %v3020
        %3149 = vst [vmem:[#allocation2 + $0x2d0] sm:$0xff] %v3021
        %3150 = vst [vmem:[#allocation2 + $0x2d8] sm:$0xff] %v3022
        %3151 = vst [vmem:[#allocation2 + $0x2e0] sm:$0xff] %v3023
        %3152 = vst [vmem:[#allocation2 + $0x2e8] sm:$0xff] %v3024
        %3153 = vst [vmem:[#allocation2 + $0x2f0] sm:$0xff] %v3025
        %3154 = vst [vmem:[#allocation2 + $0x2f8] sm:$0xff] %v3026
        %3155 = vst [vmem:[#allocation2 + $0x300] sm:$0xff] %v3027
        %3156 = vst [vmem:[#allocation2 + $0x308] sm:$0xff] %v3028
        %3157 = vst [vmem:[#allocation2 + $0x310] sm:$0xff] %v3029
        %3158 = vst [vmem:[#allocation2 + $0x318] sm:$0xff] %v3030
        %3159 = vst [vmem:[#allocation2 + $0x320] sm:$0xff] %v3031
        %3160 = vst [vmem:[#allocation2 + $0x328] sm:$0xff] %v3032
        %3161 = vst [vmem:[#allocation2 + $0x330] sm:$0xff] %v3033
        %3162 = vst [vmem:[#allocation2 + $0x338] sm:$0xff] %v3034
        %3163 = vst [vmem:[#allocation2 + $0x340] sm:$0xff] %v3035
        %3164 = vst [vmem:[#allocation2 + $0x348] sm:$0xff] %v3036
        %3165 = vst [vmem:[#allocation2 + $0x350] sm:$0xff] %v3037
        %3166 = vst [vmem:[#allocation2 + $0x358] sm:$0xff] %v3038
        %3167 = vst [vmem:[#allocation2 + $0x360] sm:$0xff] %v3039
        %3168 = vst [vmem:[#allocation2 + $0x368] sm:$0xff] %v3040
        %3169 = vst [vmem:[#allocation2 + $0x370] sm:$0xff] %v3041
        %3170 = vst [vmem:[#allocation2 + $0x378] sm:$0xff] %v3042
        %3171 = vst [vmem:[#allocation2 + $0x380] sm:$0xff] %v3043
        %3172 = vst [vmem:[#allocation2 + $0x388] sm:$0xff] %v3044
        %3173 = vst [vmem:[#allocation2 + $0x390] sm:$0xff] %v3045
        %3174 = vst [vmem:[#allocation2 + $0x398] sm:$0xff] %v3046
        %3175 = vst [vmem:[#allocation2 + $0x3a0] sm:$0xff] %v3047
        %3176 = vst [vmem:[#allocation2 + $0x3a8] sm:$0xff] %v3048
        %3177 = vst [vmem:[#allocation2 + $0x3b0] sm:$0xff] %v3049
        %3178 = vst [vmem:[#allocation2 + $0x3b8] sm:$0xff] %v3050
        %3179 = vst [vmem:[#allocation2 + $0x3c0] sm:$0xff] %v3051
        %3180 = vst [vmem:[#allocation2 + $0x3c8] sm:$0xff] %v3052
        %3181 = vst [vmem:[#allocation2 + $0x3d0] sm:$0xff] %v3053
        %3182 = vst [vmem:[#allocation2 + $0x3d8] sm:$0xff] %v3054
        %3183 = vst [vmem:[#allocation2 + $0x3e0] sm:$0xff] %v3055
        %3184 = vst [vmem:[#allocation2 + $0x3e8] sm:$0xff] %v3056
        %3185 = vst [vmem:[#allocation2 + $0x3f0] sm:$0xff] %v3057
        %3186 = vst [vmem:[#allocation2 + $0x3f8] sm:$0xff] %v3058
        %s3187 = scalar_lea.vmem %s706, 128 [#allocation3]
        %v3188 = vld [vmem:[%s3187] sm:$0xff]
        %v3189 = vld [vmem:[%s3187 + $0x8] sm:$0xff]
        %v3190 = vld [vmem:[%s3187 + $0x10] sm:$0xff]
        %v3191 = vld [vmem:[%s3187 + $0x18] sm:$0xff]
        %v3192 = vld [vmem:[%s3187 + $0x20] sm:$0xff]
        %v3193 = vld [vmem:[%s3187 + $0x28] sm:$0xff]
        %v3194 = vld [vmem:[%s3187 + $0x30] sm:$0xff]
        %v3195 = vld [vmem:[%s3187 + $0x38] sm:$0xff]
        %v3196 = vld [vmem:[%s3187 + $0x40] sm:$0xff]
        %v3197 = vld [vmem:[%s3187 + $0x48] sm:$0xff]
        %v3198 = vld [vmem:[%s3187 + $0x50] sm:$0xff]
        %v3199 = vld [vmem:[%s3187 + $0x58] sm:$0xff]
        %v3200 = vld [vmem:[%s3187 + $0x60] sm:$0xff]
        %v3201 = vld [vmem:[%s3187 + $0x68] sm:$0xff]
        %v3202 = vld [vmem:[%s3187 + $0x70] sm:$0xff]
        %v3203 = vld [vmem:[%s3187 + $0x78] sm:$0xff]
        %v3204 = vld [vmem:[%s3187 + $0x80] sm:$0xff]
        %v3205 = vld [vmem:[%s3187 + $0x88] sm:$0xff]
        %v3206 = vld [vmem:[%s3187 + $0x90] sm:$0xff]
        %v3207 = vld [vmem:[%s3187 + $0x98] sm:$0xff]
        %v3208 = vld [vmem:[%s3187 + $0xa0] sm:$0xff]
        %v3209 = vld [vmem:[%s3187 + $0xa8] sm:$0xff]
        %v3210 = vld [vmem:[%s3187 + $0xb0] sm:$0xff]
        %v3211 = vld [vmem:[%s3187 + $0xb8] sm:$0xff]
        %v3212 = vld [vmem:[%s3187 + $0xc0] sm:$0xff]
        %v3213 = vld [vmem:[%s3187 + $0xc8] sm:$0xff]
        %v3214 = vld [vmem:[%s3187 + $0xd0] sm:$0xff]
        %v3215 = vld [vmem:[%s3187 + $0xd8] sm:$0xff]
        %v3216 = vld [vmem:[%s3187 + $0xe0] sm:$0xff]
        %v3217 = vld [vmem:[%s3187 + $0xe8] sm:$0xff]
        %v3218 = vld [vmem:[%s3187 + $0xf0] sm:$0xff]
        %v3219 = vld [vmem:[%s3187 + $0xf8] sm:$0xff]
        %v3220 = vld [vmem:[%s3187 + $0x100] sm:$0xff]
        %v3221 = vld [vmem:[%s3187 + $0x108] sm:$0xff]
        %v3222 = vld [vmem:[%s3187 + $0x110] sm:$0xff]
        %v3223 = vld [vmem:[%s3187 + $0x118] sm:$0xff]
        %v3224 = vld [vmem:[%s3187 + $0x120] sm:$0xff]
        %v3225 = vld [vmem:[%s3187 + $0x128] sm:$0xff]
        %v3226 = vld [vmem:[%s3187 + $0x130] sm:$0xff]
        %v3227 = vld [vmem:[%s3187 + $0x138] sm:$0xff]
        %v3228 = vld [vmem:[%s3187 + $0x140] sm:$0xff]
        %v3229 = vld [vmem:[%s3187 + $0x148] sm:$0xff]
        %v3230 = vld [vmem:[%s3187 + $0x150] sm:$0xff]
        %v3231 = vld [vmem:[%s3187 + $0x158] sm:$0xff]
        %v3232 = vld [vmem:[%s3187 + $0x160] sm:$0xff]
        %v3233 = vld [vmem:[%s3187 + $0x168] sm:$0xff]
        %v3234 = vld [vmem:[%s3187 + $0x170] sm:$0xff]
        %v3235 = vld [vmem:[%s3187 + $0x178] sm:$0xff]
        %v3236 = vld [vmem:[%s3187 + $0x180] sm:$0xff]
        %v3237 = vld [vmem:[%s3187 + $0x188] sm:$0xff]
        %v3238 = vld [vmem:[%s3187 + $0x190] sm:$0xff]
        %v3239 = vld [vmem:[%s3187 + $0x198] sm:$0xff]
        %v3240 = vld [vmem:[%s3187 + $0x1a0] sm:$0xff]
        %v3241 = vld [vmem:[%s3187 + $0x1a8] sm:$0xff]
        %v3242 = vld [vmem:[%s3187 + $0x1b0] sm:$0xff]
        %v3243 = vld [vmem:[%s3187 + $0x1b8] sm:$0xff]
        %v3244 = vld [vmem:[%s3187 + $0x1c0] sm:$0xff]
        %v3245 = vld [vmem:[%s3187 + $0x1c8] sm:$0xff]
        %v3246 = vld [vmem:[%s3187 + $0x1d0] sm:$0xff]
        %v3247 = vld [vmem:[%s3187 + $0x1d8] sm:$0xff]
        %v3248 = vld [vmem:[%s3187 + $0x1e0] sm:$0xff]
        %v3249 = vld [vmem:[%s3187 + $0x1e8] sm:$0xff]
        %v3250 = vld [vmem:[%s3187 + $0x1f0] sm:$0xff]
        %v3251 = vld [vmem:[%s3187 + $0x1f8] sm:$0xff]
        %v3252 = vld [vmem:[%s3187 + $0x200] sm:$0xff]
        %v3253 = vld [vmem:[%s3187 + $0x208] sm:$0xff]
        %v3254 = vld [vmem:[%s3187 + $0x210] sm:$0xff]
        %v3255 = vld [vmem:[%s3187 + $0x218] sm:$0xff]
        %v3256 = vld [vmem:[%s3187 + $0x220] sm:$0xff]
        %v3257 = vld [vmem:[%s3187 + $0x228] sm:$0xff]
        %v3258 = vld [vmem:[%s3187 + $0x230] sm:$0xff]
        %v3259 = vld [vmem:[%s3187 + $0x238] sm:$0xff]
        %v3260 = vld [vmem:[%s3187 + $0x240] sm:$0xff]
        %v3261 = vld [vmem:[%s3187 + $0x248] sm:$0xff]
        %v3262 = vld [vmem:[%s3187 + $0x250] sm:$0xff]
        %v3263 = vld [vmem:[%s3187 + $0x258] sm:$0xff]
        %v3264 = vld [vmem:[%s3187 + $0x260] sm:$0xff]
        %v3265 = vld [vmem:[%s3187 + $0x268] sm:$0xff]
        %v3266 = vld [vmem:[%s3187 + $0x270] sm:$0xff]
        %v3267 = vld [vmem:[%s3187 + $0x278] sm:$0xff]
        %v3268 = vld [vmem:[%s3187 + $0x280] sm:$0xff]
        %v3269 = vld [vmem:[%s3187 + $0x288] sm:$0xff]
        %v3270 = vld [vmem:[%s3187 + $0x290] sm:$0xff]
        %v3271 = vld [vmem:[%s3187 + $0x298] sm:$0xff]
        %v3272 = vld [vmem:[%s3187 + $0x2a0] sm:$0xff]
        %v3273 = vld [vmem:[%s3187 + $0x2a8] sm:$0xff]
        %v3274 = vld [vmem:[%s3187 + $0x2b0] sm:$0xff]
        %v3275 = vld [vmem:[%s3187 + $0x2b8] sm:$0xff]
        %v3276 = vld [vmem:[%s3187 + $0x2c0] sm:$0xff]
        %v3277 = vld [vmem:[%s3187 + $0x2c8] sm:$0xff]
        %v3278 = vld [vmem:[%s3187 + $0x2d0] sm:$0xff]
        %v3279 = vld [vmem:[%s3187 + $0x2d8] sm:$0xff]
        %v3280 = vld [vmem:[%s3187 + $0x2e0] sm:$0xff]
        %v3281 = vld [vmem:[%s3187 + $0x2e8] sm:$0xff]
        %v3282 = vld [vmem:[%s3187 + $0x2f0] sm:$0xff]
        %v3283 = vld [vmem:[%s3187 + $0x2f8] sm:$0xff]
        %v3284 = vld [vmem:[%s3187 + $0x300] sm:$0xff]
        %v3285 = vld [vmem:[%s3187 + $0x308] sm:$0xff]
        %v3286 = vld [vmem:[%s3187 + $0x310] sm:$0xff]
        %v3287 = vld [vmem:[%s3187 + $0x318] sm:$0xff]
        %v3288 = vld [vmem:[%s3187 + $0x320] sm:$0xff]
        %v3289 = vld [vmem:[%s3187 + $0x328] sm:$0xff]
        %v3290 = vld [vmem:[%s3187 + $0x330] sm:$0xff]
        %v3291 = vld [vmem:[%s3187 + $0x338] sm:$0xff]
        %v3292 = vld [vmem:[%s3187 + $0x340] sm:$0xff]
        %v3293 = vld [vmem:[%s3187 + $0x348] sm:$0xff]
        %v3294 = vld [vmem:[%s3187 + $0x350] sm:$0xff]
        %v3295 = vld [vmem:[%s3187 + $0x358] sm:$0xff]
        %v3296 = vld [vmem:[%s3187 + $0x360] sm:$0xff]
        %v3297 = vld [vmem:[%s3187 + $0x368] sm:$0xff]
        %v3298 = vld [vmem:[%s3187 + $0x370] sm:$0xff]
        %v3299 = vld [vmem:[%s3187 + $0x378] sm:$0xff]
        %s3300 = scalar_lea.vmem %s1, 256
        %v3301 = vld [vmem:[%s3300] sm:$0xff]
        %v3302 = vld [vmem:[%s3300 + $0x8] sm:$0xff]
        %v3303 = vld [vmem:[%s3300 + $0x10] sm:$0xff]
        %v3304 = vld [vmem:[%s3300 + $0x18] sm:$0xff]
        %v3305 = vld [vmem:[%s3300 + $0x20] sm:$0xff]
        %v3306 = vld [vmem:[%s3300 + $0x28] sm:$0xff]
        %v3307 = vld [vmem:[%s3300 + $0x30] sm:$0xff]
        %v3308 = vld [vmem:[%s3300 + $0x38] sm:$0xff]
        %v3309 = vld [vmem:[%s3300 + $0x40] sm:$0xff]
        %v3310 = vld [vmem:[%s3300 + $0x48] sm:$0xff]
        %v3311 = vld [vmem:[%s3300 + $0x50] sm:$0xff]
        %v3312 = vld [vmem:[%s3300 + $0x58] sm:$0xff]
        %v3313 = vld [vmem:[%s3300 + $0x60] sm:$0xff]
        %v3314 = vld [vmem:[%s3300 + $0x68] sm:$0xff]
        %v3315 = vld [vmem:[%s3300 + $0x70] sm:$0xff]
        %v3316 = vld [vmem:[%s3300 + $0x78] sm:$0xff]
        %3317 = vmatprep.subr.mxu0 0.0
        %3318 = vmatpush1.msra.mxu0 %v3301
        %3319 = vmatprep.subr.mxu0 0.0
        %3320 = vmatpush1.msra.mxu0 %v3302
        %3321 = vmatprep.subr.mxu0 0.0
        %3322 = vmatpush1.msra.mxu0 %v3303
        %3323 = vmatprep.subr.mxu0 0.0
        %3324 = vmatpush1.msra.mxu0 %v3304
        %3325 = vmatprep.subr.mxu0 0.0
        %3326 = vmatpush1.msra.mxu0 %v3305
        %3327 = vmatprep.subr.mxu0 0.0
        %3328 = vmatpush1.msra.mxu0 %v3306
        %3329 = vmatprep.subr.mxu0 0.0
        %3330 = vmatpush1.msra.mxu0 %v3307
        %3331 = vmatprep.subr.mxu0 0.0
        %3332 = vmatpush1.msra.mxu0 %v3308
        %3333 = vmatprep.subr.mxu0 0.0
        %3334 = vmatpush1.msra.mxu0 %v3309
        %3335 = vmatprep.subr.mxu0 0.0
        %3336 = vmatpush1.msra.mxu0 %v3310
        %3337 = vmatprep.subr.mxu0 0.0
        %3338 = vmatpush1.msra.mxu0 %v3311
        %3339 = vmatprep.subr.mxu0 0.0
        %3340 = vmatpush1.msra.mxu0 %v3312
        %3341 = vmatprep.subr.mxu0 0.0
        %3342 = vmatpush1.msra.mxu0 %v3313
        %3343 = vmatprep.subr.mxu0 0.0
        %3344 = vmatpush1.msra.mxu0 %v3314
        %3345 = vmatprep.subr.mxu0 0.0
        %3346 = vmatpush1.msra.mxu0 %v3315
        %3347 = vmatprep.subr.mxu0 0.0
        %3348 = vmatpush1.msra.mxu0 %v3316
        %3349 = vmatprep.subr.mxu0 0.0
        %3350 = vmatpush1.msra.mxu0 0.0
        %3351 = vmatprep.subr.mxu0 0.0
        %3352 = vmatpush1.msra.mxu0 0.0
        %3353 = vmatprep.subr.mxu0 0.0
        %3354 = vmatpush1.msra.mxu0 0.0
        %3355 = vmatprep.subr.mxu0 0.0
        %3356 = vmatpush1.msra.mxu0 0.0
        %3357 = vmatprep.subr.mxu0 0.0
        %3358 = vmatpush1.msra.mxu0 0.0
        %3359 = vmatprep.subr.mxu0 0.0
        %3360 = vmatpush1.msra.mxu0 0.0
        %3361 = vmatprep.subr.mxu0 0.0
        %3362 = vmatpush1.msra.mxu0 0.0
        %3363 = vmatprep.subr.mxu0 0.0
        %3364 = vmatpush1.msra.mxu0 0.0
        %3365 = vmatprep.subr.mxu0 0.0
        %3366 = vmatpush1.msra.mxu0 0.0
        %3367 = vmatprep.subr.mxu0 0.0
        %3368 = vmatpush1.msra.mxu0 0.0
        %3369 = vmatprep.subr.mxu0 0.0
        %3370 = vmatpush1.msra.mxu0 0.0
        %3371 = vmatprep.subr.mxu0 0.0
        %3372 = vmatpush1.msra.mxu0 0.0
        %3373 = vmatprep.subr.mxu0 0.0
        %3374 = vmatpush1.msra.mxu0 0.0
        %3375 = vmatprep.subr.mxu0 0.0
        %3376 = vmatpush1.msra.mxu0 0.0
        %3377 = vmatprep.subr.mxu0 0.0
        %3378 = vmatpush1.msra.mxu0 0.0
        %3379 = vmatprep.subr.mxu0 0.0
        %3380 = vmatpush1.msra.mxu0 0.0
        %3381 = vmatprep.mubr.f32.mxu0 0.0
        %3382 = vmatmul.mubr.f32.gmra.mrb[0].mxu0 %v3188
        %v3383 = vpop.f32.mrb[0].mxu0
        %v3384 = vadd.f32 0.0, %v3383
        %v3385 = vpop.f32.mrb[0].mxu0
        %3386 = vmatprep.mubr.f32.mxu0 0.0
        %3387 = vmatmul.mubr.f32.gmra.mrb[0].mxu0 %v3189
        %v3388 = vpop.f32.mrb[0].mxu0
        %v3389 = vadd.f32 0.0, %v3388
        %v3390 = vpop.f32.mrb[0].mxu0
        %3391 = vmatprep.mubr.f32.mxu0 0.0
        %3392 = vmatmul.mubr.f32.gmra.mrb[0].mxu0 %v3190
        %v3393 = vpop.f32.mrb[0].mxu0
        %v3394 = vadd.f32 0.0, %v3393
        %v3395 = vpop.f32.mrb[0].mxu0
        %3396 = vmatprep.mubr.f32.mxu0 0.0
        %3397 = vmatmul.mubr.f32.gmra.mrb[0].mxu0 %v3191
        %v3398 = vpop.f32.mrb[0].mxu0
        %v3399 = vadd.f32 0.0, %v3398
        %v3400 = vpop.f32.mrb[0].mxu0
        %3401 = vmatprep.mubr.f32.mxu0 0.0
        %3402 = vmatmul.mubr.f32.gmra.mrb[0].mxu0 %v3192
        %v3403 = vpop.f32.mrb[0].mxu0
        %v3404 = vadd.f32 0.0, %v3403
        %v3405 = vpop.f32.mrb[0].mxu0
        %3406 = vmatprep.mubr.f32.mxu0 0.0
        %3407 = vmatmul.mubr.f32.gmra.mrb[0].mxu0 %v3193
        %v3408 = vpop.f32.mrb[0].mxu0
        %v3409 = vadd.f32 0.0, %v3408
        %v3410 = vpop.f32.mrb[0].mxu0
        %3411 = vmatprep.mubr.f32.mxu0 0.0
        %3412 = vmatmul.mubr.f32.gmra.mrb[0].mxu0 %v3194
        %v3413 = vpop.f32.mrb[0].mxu0
        %v3414 = vadd.f32 0.0, %v3413
        %v3415 = vpop.f32.mrb[0].mxu0
        %3416 = vmatprep.mubr.f32.mxu0 0.0
        %3417 = vmatmul.mubr.f32.gmra.mrb[0].mxu0 %v3195
        %v3418 = vpop.f32.mrb[0].mxu0
        %v3419 = vadd.f32 0.0, %v3418
        %v3420 = vpop.f32.mrb[0].mxu0
        %3421 = vmatprep.mubr.f32.mxu0 0.0
        %3422 = vmatmul.mubr.f32.gmra.mrb[0].mxu0 %v3196
        %v3423 = vpop.f32.mrb[0].mxu0
        %v3424 = vadd.f32 0.0, %v3423
        %v3425 = vpop.f32.mrb[0].mxu0
        %3426 = vmatprep.mubr.f32.mxu0 0.0
        %3427 = vmatmul.mubr.f32.gmra.mrb[0].mxu0 %v3197
        %v3428 = vpop.f32.mrb[0].mxu0
        %v3429 = vadd.f32 0.0, %v3428
        %v3430 = vpop.f32.mrb[0].mxu0
        %3431 = vmatprep.mubr.f32.mxu0 0.0
        %3432 = vmatmul.mubr.f32.gmra.mrb[0].mxu0 %v3198
        %v3433 = vpop.f32.mrb[0].mxu0
        %v3434 = vadd.f32 0.0, %v3433
        %v3435 = vpop.f32.mrb[0].mxu0
        %3436 = vmatprep.mubr.f32.mxu0 0.0
        %3437 = vmatmul.mubr.f32.gmra.mrb[0].mxu0 %v3199
        %v3438 = vpop.f32.mrb[0].mxu0
        %v3439 = vadd.f32 0.0, %v3438
        %v3440 = vpop.f32.mrb[0].mxu0
        %3441 = vmatprep.mubr.f32.mxu0 0.0
        %3442 = vmatmul.mubr.f32.gmra.mrb[0].mxu0 %v3200
        %v3443 = vpop.f32.mrb[0].mxu0
        %v3444 = vadd.f32 0.0, %v3443
        %v3445 = vpop.f32.mrb[0].mxu0
        %3446 = vmatprep.mubr.f32.mxu0 0.0
        %3447 = vmatmul.mubr.f32.gmra.mrb[0].mxu0 %v3201
        %v3448 = vpop.f32.mrb[0].mxu0
        %v3449 = vadd.f32 0.0, %v3448
        %v3450 = vpop.f32.mrb[0].mxu0
        %3451 = vmatprep.mubr.f32.mxu0 0.0
        %3452 = vmatmul.mubr.f32.gmra.mrb[0].mxu0 %v3202
        %v3453 = vpop.f32.mrb[0].mxu0
        %v3454 = vadd.f32 0.0, %v3453
        %v3455 = vpop.f32.mrb[0].mxu0
        %3456 = vmatprep.mubr.f32.mxu0 0.0
        %3457 = vmatmul.mubr.f32.gmra.mrb[0].mxu0 %v3203
        %v3458 = vpop.f32.mrb[0].mxu0
        %v3459 = vadd.f32 0.0, %v3458
        %v3460 = vpop.f32.mrb[0].mxu0
        %3461 = vmatprep.mubr.f32.mxu0 0.0
        %3462 = vmatmul.mubr.f32.gmra.mrb[0].mxu0 %v3204
        %v3463 = vpop.f32.mrb[0].mxu0
        %v3464 = vadd.f32 0.0, %v3463
        %v3465 = vpop.f32.mrb[0].mxu0
        %3466 = vmatprep.mubr.f32.mxu0 0.0
        %3467 = vmatmul.mubr.f32.gmra.mrb[0].mxu0 %v3205
        %v3468 = vpop.f32.mrb[0].mxu0
        %v3469 = vadd.f32 0.0, %v3468
        %v3470 = vpop.f32.mrb[0].mxu0
        %3471 = vmatprep.mubr.f32.mxu0 0.0
        %3472 = vmatmul.mubr.f32.gmra.mrb[0].mxu0 %v3206
        %v3473 = vpop.f32.mrb[0].mxu0
        %v3474 = vadd.f32 0.0, %v3473
        %v3475 = vpop.f32.mrb[0].mxu0
        %3476 = vmatprep.mubr.f32.mxu0 0.0
        %3477 = vmatmul.mubr.f32.gmra.mrb[0].mxu0 %v3207
        %v3478 = vpop.f32.mrb[0].mxu0
        %v3479 = vadd.f32 0.0, %v3478
        %v3480 = vpop.f32.mrb[0].mxu0
        %3481 = vmatprep.mubr.f32.mxu0 0.0
        %3482 = vmatmul.mubr.f32.gmra.mrb[0].mxu0 %v3208
        %v3483 = vpop.f32.mrb[0].mxu0
        %v3484 = vadd.f32 0.0, %v3483
        %v3485 = vpop.f32.mrb[0].mxu0
        %3486 = vmatprep.mubr.f32.mxu0 0.0
        %3487 = vmatmul.mubr.f32.gmra.mrb[0].mxu0 %v3209
        %v3488 = vpop.f32.mrb[0].mxu0
        %v3489 = vadd.f32 0.0, %v3488
        %v3490 = vpop.f32.mrb[0].mxu0
        %3491 = vmatprep.mubr.f32.mxu0 0.0
        %3492 = vmatmul.mubr.f32.gmra.mrb[0].mxu0 %v3210
        %v3493 = vpop.f32.mrb[0].mxu0
        %v3494 = vadd.f32 0.0, %v3493
        %v3495 = vpop.f32.mrb[0].mxu0
        %3496 = vmatprep.mubr.f32.mxu0 0.0
        %3497 = vmatmul.mubr.f32.gmra.mrb[0].mxu0 %v3211
        %v3498 = vpop.f32.mrb[0].mxu0
        %v3499 = vadd.f32 0.0, %v3498
        %v3500 = vpop.f32.mrb[0].mxu0
        %3501 = vmatprep.mubr.f32.mxu0 0.0
        %3502 = vmatmul.mubr.f32.gmra.mrb[0].mxu0 %v3212
        %v3503 = vpop.f32.mrb[0].mxu0
        %v3504 = vadd.f32 0.0, %v3503
        %v3505 = vpop.f32.mrb[0].mxu0
        %3506 = vmatprep.mubr.f32.mxu0 0.0
        %3507 = vmatmul.mubr.f32.gmra.mrb[0].mxu0 %v3213
        %v3508 = vpop.f32.mrb[0].mxu0
        %v3509 = vadd.f32 0.0, %v3508
        %v3510 = vpop.f32.mrb[0].mxu0
        %3511 = vmatprep.mubr.f32.mxu0 0.0
        %3512 = vmatmul.mubr.f32.gmra.mrb[0].mxu0 %v3214
        %v3513 = vpop.f32.mrb[0].mxu0
        %v3514 = vadd.f32 0.0, %v3513
        %v3515 = vpop.f32.mrb[0].mxu0
        %3516 = vmatprep.mubr.f32.mxu0 0.0
        %3517 = vmatmul.mubr.f32.gmra.mrb[0].mxu0 %v3215
        %v3518 = vpop.f32.mrb[0].mxu0
        %v3519 = vadd.f32 0.0, %v3518
        %v3520 = vpop.f32.mrb[0].mxu0
        %3521 = vmatprep.mubr.f32.mxu0 0.0
        %3522 = vmatmul.mubr.f32.gmra.mrb[0].mxu0 %v3216
        %v3523 = vpop.f32.mrb[0].mxu0
        %v3524 = vadd.f32 0.0, %v3523
        %v3525 = vpop.f32.mrb[0].mxu0
        %3526 = vmatprep.mubr.f32.mxu0 0.0
        %3527 = vmatmul.mubr.f32.gmra.mrb[0].mxu0 %v3217
        %v3528 = vpop.f32.mrb[0].mxu0
        %v3529 = vadd.f32 0.0, %v3528
        %v3530 = vpop.f32.mrb[0].mxu0
        %3531 = vmatprep.mubr.f32.mxu0 0.0
        %3532 = vmatmul.mubr.f32.gmra.mrb[0].mxu0 %v3218
        %v3533 = vpop.f32.mrb[0].mxu0
        %v3534 = vadd.f32 0.0, %v3533
        %v3535 = vpop.f32.mrb[0].mxu0
        %3536 = vmatprep.mubr.f32.mxu0 0.0
        %3537 = vmatmul.mubr.f32.gmra.mrb[0].mxu0 %v3219
        %v3538 = vpop.f32.mrb[0].mxu0
        %v3539 = vadd.f32 0.0, %v3538
        %v3540 = vpop.f32.mrb[0].mxu0
        %3541 = vmatprep.mubr.f32.mxu0 0.0
        %3542 = vmatmul.mubr.f32.gmra.mrb[0].mxu0 %v3220
        %v3543 = vpop.f32.mrb[0].mxu0
        %v3544 = vadd.f32 0.0, %v3543
        %v3545 = vpop.f32.mrb[0].mxu0
        %3546 = vmatprep.mubr.f32.mxu0 0.0
        %3547 = vmatmul.mubr.f32.gmra.mrb[0].mxu0 %v3221
        %v3548 = vpop.f32.mrb[0].mxu0
        %v3549 = vadd.f32 0.0, %v3548
        %v3550 = vpop.f32.mrb[0].mxu0
        %3551 = vmatprep.mubr.f32.mxu0 0.0
        %3552 = vmatmul.mubr.f32.gmra.mrb[0].mxu0 %v3222
        %v3553 = vpop.f32.mrb[0].mxu0
        %v3554 = vadd.f32 0.0, %v3553
        %v3555 = vpop.f32.mrb[0].mxu0
        %3556 = vmatprep.mubr.f32.mxu0 0.0
        %3557 = vmatmul.mubr.f32.gmra.mrb[0].mxu0 %v3223
        %v3558 = vpop.f32.mrb[0].mxu0
        %v3559 = vadd.f32 0.0, %v3558
        %v3560 = vpop.f32.mrb[0].mxu0
        %3561 = vmatprep.mubr.f32.mxu0 0.0
        %3562 = vmatmul.mubr.f32.gmra.mrb[0].mxu0 %v3224
        %v3563 = vpop.f32.mrb[0].mxu0
        %v3564 = vadd.f32 0.0, %v3563
        %v3565 = vpop.f32.mrb[0].mxu0
        %3566 = vmatprep.mubr.f32.mxu0 0.0
        %3567 = vmatmul.mubr.f32.gmra.mrb[0].mxu0 %v3225
        %v3568 = vpop.f32.mrb[0].mxu0
        %v3569 = vadd.f32 0.0, %v3568
        %v3570 = vpop.f32.mrb[0].mxu0
        %3571 = vmatprep.mubr.f32.mxu0 0.0
        %3572 = vmatmul.mubr.f32.gmra.mrb[0].mxu0 %v3226
        %v3573 = vpop.f32.mrb[0].mxu0
        %v3574 = vadd.f32 0.0, %v3573
        %v3575 = vpop.f32.mrb[0].mxu0
        %3576 = vmatprep.mubr.f32.mxu0 0.0
        %3577 = vmatmul.mubr.f32.gmra.mrb[0].mxu0 %v3227
        %v3578 = vpop.f32.mrb[0].mxu0
        %v3579 = vadd.f32 0.0, %v3578
        %v3580 = vpop.f32.mrb[0].mxu0
        %3581 = vmatprep.mubr.f32.mxu0 0.0
        %3582 = vmatmul.mubr.f32.gmra.mrb[0].mxu0 %v3228
        %v3583 = vpop.f32.mrb[0].mxu0
        %v3584 = vadd.f32 0.0, %v3583
        %v3585 = vpop.f32.mrb[0].mxu0
        %3586 = vmatprep.mubr.f32.mxu0 0.0
        %3587 = vmatmul.mubr.f32.gmra.mrb[0].mxu0 %v3229
        %v3588 = vpop.f32.mrb[0].mxu0
        %v3589 = vadd.f32 0.0, %v3588
        %v3590 = vpop.f32.mrb[0].mxu0
        %3591 = vmatprep.mubr.f32.mxu0 0.0
        %3592 = vmatmul.mubr.f32.gmra.mrb[0].mxu0 %v3230
        %v3593 = vpop.f32.mrb[0].mxu0
        %v3594 = vadd.f32 0.0, %v3593
        %v3595 = vpop.f32.mrb[0].mxu0
        %3596 = vmatprep.mubr.f32.mxu0 0.0
        %3597 = vmatmul.mubr.f32.gmra.mrb[0].mxu0 %v3231
        %v3598 = vpop.f32.mrb[0].mxu0
        %v3599 = vadd.f32 0.0, %v3598
        %v3600 = vpop.f32.mrb[0].mxu0
        %3601 = vmatprep.mubr.f32.mxu0 0.0
        %3602 = vmatmul.mubr.f32.gmra.mrb[0].mxu0 %v3232
        %v3603 = vpop.f32.mrb[0].mxu0
        %v3604 = vadd.f32 0.0, %v3603
        %v3605 = vpop.f32.mrb[0].mxu0
        %3606 = vmatprep.mubr.f32.mxu0 0.0
        %3607 = vmatmul.mubr.f32.gmra.mrb[0].mxu0 %v3233
        %v3608 = vpop.f32.mrb[0].mxu0
        %v3609 = vadd.f32 0.0, %v3608
        %v3610 = vpop.f32.mrb[0].mxu0
        %3611 = vmatprep.mubr.f32.mxu0 0.0
        %3612 = vmatmul.mubr.f32.gmra.mrb[0].mxu0 %v3234
        %v3613 = vpop.f32.mrb[0].mxu0
        %v3614 = vadd.f32 0.0, %v3613
        %v3615 = vpop.f32.mrb[0].mxu0
        %3616 = vmatprep.mubr.f32.mxu0 0.0
        %3617 = vmatmul.mubr.f32.gmra.mrb[0].mxu0 %v3235
        %v3618 = vpop.f32.mrb[0].mxu0
        %v3619 = vadd.f32 0.0, %v3618
        %v3620 = vpop.f32.mrb[0].mxu0
        %3621 = vmatprep.mubr.f32.mxu0 0.0
        %3622 = vmatmul.mubr.f32.gmra.mrb[0].mxu0 %v3236
        %v3623 = vpop.f32.mrb[0].mxu0
        %v3624 = vadd.f32 0.0, %v3623
        %v3625 = vpop.f32.mrb[0].mxu0
        %3626 = vmatprep.mubr.f32.mxu0 0.0
        %3627 = vmatmul.mubr.f32.gmra.mrb[0].mxu0 %v3237
        %v3628 = vpop.f32.mrb[0].mxu0
        %v3629 = vadd.f32 0.0, %v3628
        %v3630 = vpop.f32.mrb[0].mxu0
        %3631 = vmatprep.mubr.f32.mxu0 0.0
        %3632 = vmatmul.mubr.f32.gmra.mrb[0].mxu0 %v3238
        %v3633 = vpop.f32.mrb[0].mxu0
        %v3634 = vadd.f32 0.0, %v3633
        %v3635 = vpop.f32.mrb[0].mxu0
        %3636 = vmatprep.mubr.f32.mxu0 0.0
        %3637 = vmatmul.mubr.f32.gmra.mrb[0].mxu0 %v3239
        %v3638 = vpop.f32.mrb[0].mxu0
        %v3639 = vadd.f32 0.0, %v3638
        %v3640 = vpop.f32.mrb[0].mxu0
        %3641 = vmatprep.mubr.f32.mxu0 0.0
        %3642 = vmatmul.mubr.f32.gmra.mrb[0].mxu0 %v3240
        %v3643 = vpop.f32.mrb[0].mxu0
        %v3644 = vadd.f32 0.0, %v3643
        %v3645 = vpop.f32.mrb[0].mxu0
        %3646 = vmatprep.mubr.f32.mxu0 0.0
        %3647 = vmatmul.mubr.f32.gmra.mrb[0].mxu0 %v3241
        %v3648 = vpop.f32.mrb[0].mxu0
        %v3649 = vadd.f32 0.0, %v3648
        %v3650 = vpop.f32.mrb[0].mxu0
        %3651 = vmatprep.mubr.f32.mxu0 0.0
        %3652 = vmatmul.mubr.f32.gmra.mrb[0].mxu0 %v3242
        %v3653 = vpop.f32.mrb[0].mxu0
        %v3654 = vadd.f32 0.0, %v3653
        %v3655 = vpop.f32.mrb[0].mxu0
        %3656 = vmatprep.mubr.f32.mxu0 0.0
        %3657 = vmatmul.mubr.f32.gmra.mrb[0].mxu0 %v3243
        %v3658 = vpop.f32.mrb[0].mxu0
        %v3659 = vadd.f32 0.0, %v3658
        %v3660 = vpop.f32.mrb[0].mxu0
        %3661 = vmatprep.mubr.f32.mxu0 0.0
        %3662 = vmatmul.mubr.f32.gmra.mrb[0].mxu0 %v3244
        %v3663 = vpop.f32.mrb[0].mxu0
        %v3664 = vadd.f32 0.0, %v3663
        %v3665 = vpop.f32.mrb[0].mxu0
        %3666 = vmatprep.mubr.f32.mxu0 0.0
        %3667 = vmatmul.mubr.f32.gmra.mrb[0].mxu0 %v3245
        %v3668 = vpop.f32.mrb[0].mxu0
        %v3669 = vadd.f32 0.0, %v3668
        %v3670 = vpop.f32.mrb[0].mxu0
        %3671 = vmatprep.mubr.f32.mxu0 0.0
        %3672 = vmatmul.mubr.f32.gmra.mrb[0].mxu0 %v3246
        %v3673 = vpop.f32.mrb[0].mxu0
        %v3674 = vadd.f32 0.0, %v3673
        %v3675 = vpop.f32.mrb[0].mxu0
        %3676 = vmatprep.mubr.f32.mxu0 0.0
        %3677 = vmatmul.mubr.f32.gmra.mrb[0].mxu0 %v3247
        %v3678 = vpop.f32.mrb[0].mxu0
        %v3679 = vadd.f32 0.0, %v3678
        %v3680 = vpop.f32.mrb[0].mxu0
        %3681 = vmatprep.mubr.f32.mxu0 0.0
        %3682 = vmatmul.mubr.f32.gmra.mrb[0].mxu0 %v3248
        %v3683 = vpop.f32.mrb[0].mxu0
        %v3684 = vadd.f32 0.0, %v3683
        %v3685 = vpop.f32.mrb[0].mxu0
        %3686 = vmatprep.mubr.f32.mxu0 0.0
        %3687 = vmatmul.mubr.f32.gmra.mrb[0].mxu0 %v3249
        %v3688 = vpop.f32.mrb[0].mxu0
        %v3689 = vadd.f32 0.0, %v3688
        %v3690 = vpop.f32.mrb[0].mxu0
        %3691 = vmatprep.mubr.f32.mxu0 0.0
        %3692 = vmatmul.mubr.f32.gmra.mrb[0].mxu0 %v3250
        %v3693 = vpop.f32.mrb[0].mxu0
        %v3694 = vadd.f32 0.0, %v3693
        %v3695 = vpop.f32.mrb[0].mxu0
        %3696 = vmatprep.mubr.f32.mxu0 0.0
        %3697 = vmatmul.mubr.f32.gmra.mrb[0].mxu0 %v3251
        %v3698 = vpop.f32.mrb[0].mxu0
        %v3699 = vadd.f32 0.0, %v3698
        %v3700 = vpop.f32.mrb[0].mxu0
        %3701 = vmatprep.mubr.f32.mxu0 0.0
        %3702 = vmatmul.mubr.f32.gmra.mrb[0].mxu0 %v3252
        %v3703 = vpop.f32.mrb[0].mxu0
        %v3704 = vadd.f32 0.0, %v3703
        %v3705 = vpop.f32.mrb[0].mxu0
        %3706 = vmatprep.mubr.f32.mxu0 0.0
        %3707 = vmatmul.mubr.f32.gmra.mrb[0].mxu0 %v3253
        %v3708 = vpop.f32.mrb[0].mxu0
        %v3709 = vadd.f32 0.0, %v3708
        %v3710 = vpop.f32.mrb[0].mxu0
        %3711 = vmatprep.mubr.f32.mxu0 0.0
        %3712 = vmatmul.mubr.f32.gmra.mrb[0].mxu0 %v3254
        %v3713 = vpop.f32.mrb[0].mxu0
        %v3714 = vadd.f32 0.0, %v3713
        %v3715 = vpop.f32.mrb[0].mxu0
        %3716 = vmatprep.mubr.f32.mxu0 0.0
        %3717 = vmatmul.mubr.f32.gmra.mrb[0].mxu0 %v3255
        %v3718 = vpop.f32.mrb[0].mxu0
        %v3719 = vadd.f32 0.0, %v3718
        %v3720 = vpop.f32.mrb[0].mxu0
        %3721 = vmatprep.mubr.f32.mxu0 0.0
        %3722 = vmatmul.mubr.f32.gmra.mrb[0].mxu0 %v3256
        %v3723 = vpop.f32.mrb[0].mxu0
        %v3724 = vadd.f32 0.0, %v3723
        %v3725 = vpop.f32.mrb[0].mxu0
        %3726 = vmatprep.mubr.f32.mxu0 0.0
        %3727 = vmatmul.mubr.f32.gmra.mrb[0].mxu0 %v3257
        %v3728 = vpop.f32.mrb[0].mxu0
        %v3729 = vadd.f32 0.0, %v3728
        %v3730 = vpop.f32.mrb[0].mxu0
        %3731 = vmatprep.mubr.f32.mxu0 0.0
        %3732 = vmatmul.mubr.f32.gmra.mrb[0].mxu0 %v3258
        %v3733 = vpop.f32.mrb[0].mxu0
        %v3734 = vadd.f32 0.0, %v3733
        %v3735 = vpop.f32.mrb[0].mxu0
        %3736 = vmatprep.mubr.f32.mxu0 0.0
        %3737 = vmatmul.mubr.f32.gmra.mrb[0].mxu0 %v3259
        %v3738 = vpop.f32.mrb[0].mxu0
        %v3739 = vadd.f32 0.0, %v3738
        %v3740 = vpop.f32.mrb[0].mxu0
        %3741 = vmatprep.mubr.f32.mxu0 0.0
        %3742 = vmatmul.mubr.f32.gmra.mrb[0].mxu0 %v3260
        %v3743 = vpop.f32.mrb[0].mxu0
        %v3744 = vadd.f32 0.0, %v3743
        %v3745 = vpop.f32.mrb[0].mxu0
        %3746 = vmatprep.mubr.f32.mxu0 0.0
        %3747 = vmatmul.mubr.f32.gmra.mrb[0].mxu0 %v3261
        %v3748 = vpop.f32.mrb[0].mxu0
        %v3749 = vadd.f32 0.0, %v3748
        %v3750 = vpop.f32.mrb[0].mxu0
        %3751 = vmatprep.mubr.f32.mxu0 0.0
        %3752 = vmatmul.mubr.f32.gmra.mrb[0].mxu0 %v3262
        %v3753 = vpop.f32.mrb[0].mxu0
        %v3754 = vadd.f32 0.0, %v3753
        %v3755 = vpop.f32.mrb[0].mxu0
        %3756 = vmatprep.mubr.f32.mxu0 0.0
        %3757 = vmatmul.mubr.f32.gmra.mrb[0].mxu0 %v3263
        %v3758 = vpop.f32.mrb[0].mxu0
        %v3759 = vadd.f32 0.0, %v3758
        %v3760 = vpop.f32.mrb[0].mxu0
        %3761 = vmatprep.mubr.f32.mxu0 0.0
        %3762 = vmatmul.mubr.f32.gmra.mrb[0].mxu0 %v3264
        %v3763 = vpop.f32.mrb[0].mxu0
        %v3764 = vadd.f32 0.0, %v3763
        %v3765 = vpop.f32.mrb[0].mxu0
        %3766 = vmatprep.mubr.f32.mxu0 0.0
        %3767 = vmatmul.mubr.f32.gmra.mrb[0].mxu0 %v3265
        %v3768 = vpop.f32.mrb[0].mxu0
        %v3769 = vadd.f32 0.0, %v3768
        %v3770 = vpop.f32.mrb[0].mxu0
        %3771 = vmatprep.mubr.f32.mxu0 0.0
        %3772 = vmatmul.mubr.f32.gmra.mrb[0].mxu0 %v3266
        %v3773 = vpop.f32.mrb[0].mxu0
        %v3774 = vadd.f32 0.0, %v3773
        %v3775 = vpop.f32.mrb[0].mxu0
        %3776 = vmatprep.mubr.f32.mxu0 0.0
        %3777 = vmatmul.mubr.f32.gmra.mrb[0].mxu0 %v3267
        %v3778 = vpop.f32.mrb[0].mxu0
        %v3779 = vadd.f32 0.0, %v3778
        %v3780 = vpop.f32.mrb[0].mxu0
        %3781 = vmatprep.mubr.f32.mxu0 0.0
        %3782 = vmatmul.mubr.f32.gmra.mrb[0].mxu0 %v3268
        %v3783 = vpop.f32.mrb[0].mxu0
        %v3784 = vadd.f32 0.0, %v3783
        %v3785 = vpop.f32.mrb[0].mxu0
        %3786 = vmatprep.mubr.f32.mxu0 0.0
        %3787 = vmatmul.mubr.f32.gmra.mrb[0].mxu0 %v3269
        %v3788 = vpop.f32.mrb[0].mxu0
        %v3789 = vadd.f32 0.0, %v3788
        %v3790 = vpop.f32.mrb[0].mxu0
        %3791 = vmatprep.mubr.f32.mxu0 0.0
        %3792 = vmatmul.mubr.f32.gmra.mrb[0].mxu0 %v3270
        %v3793 = vpop.f32.mrb[0].mxu0
        %v3794 = vadd.f32 0.0, %v3793
        %v3795 = vpop.f32.mrb[0].mxu0
        %3796 = vmatprep.mubr.f32.mxu0 0.0
        %3797 = vmatmul.mubr.f32.gmra.mrb[0].mxu0 %v3271
        %v3798 = vpop.f32.mrb[0].mxu0
        %v3799 = vadd.f32 0.0, %v3798
        %v3800 = vpop.f32.mrb[0].mxu0
        %3801 = vmatprep.mubr.f32.mxu0 0.0
        %3802 = vmatmul.mubr.f32.gmra.mrb[0].mxu0 %v3272
        %v3803 = vpop.f32.mrb[0].mxu0
        %v3804 = vadd.f32 0.0, %v3803
        %v3805 = vpop.f32.mrb[0].mxu0
        %3806 = vmatprep.mubr.f32.mxu0 0.0
        %3807 = vmatmul.mubr.f32.gmra.mrb[0].mxu0 %v3273
        %v3808 = vpop.f32.mrb[0].mxu0
        %v3809 = vadd.f32 0.0, %v3808
        %v3810 = vpop.f32.mrb[0].mxu0
        %3811 = vmatprep.mubr.f32.mxu0 0.0
        %3812 = vmatmul.mubr.f32.gmra.mrb[0].mxu0 %v3274
        %v3813 = vpop.f32.mrb[0].mxu0
        %v3814 = vadd.f32 0.0, %v3813
        %v3815 = vpop.f32.mrb[0].mxu0
        %3816 = vmatprep.mubr.f32.mxu0 0.0
        %3817 = vmatmul.mubr.f32.gmra.mrb[0].mxu0 %v3275
        %v3818 = vpop.f32.mrb[0].mxu0
        %v3819 = vadd.f32 0.0, %v3818
        %v3820 = vpop.f32.mrb[0].mxu0
        %3821 = vmatprep.mubr.f32.mxu0 0.0
        %3822 = vmatmul.mubr.f32.gmra.mrb[0].mxu0 %v3276
        %v3823 = vpop.f32.mrb[0].mxu0
        %v3824 = vadd.f32 0.0, %v3823
        %v3825 = vpop.f32.mrb[0].mxu0
        %3826 = vmatprep.mubr.f32.mxu0 0.0
        %3827 = vmatmul.mubr.f32.gmra.mrb[0].mxu0 %v3277
        %v3828 = vpop.f32.mrb[0].mxu0
        %v3829 = vadd.f32 0.0, %v3828
        %v3830 = vpop.f32.mrb[0].mxu0
        %3831 = vmatprep.mubr.f32.mxu0 0.0
        %3832 = vmatmul.mubr.f32.gmra.mrb[0].mxu0 %v3278
        %v3833 = vpop.f32.mrb[0].mxu0
        %v3834 = vadd.f32 0.0, %v3833
        %v3835 = vpop.f32.mrb[0].mxu0
        %3836 = vmatprep.mubr.f32.mxu0 0.0
        %3837 = vmatmul.mubr.f32.gmra.mrb[0].mxu0 %v3279
        %v3838 = vpop.f32.mrb[0].mxu0
        %v3839 = vadd.f32 0.0, %v3838
        %v3840 = vpop.f32.mrb[0].mxu0
        %3841 = vmatprep.mubr.f32.mxu0 0.0
        %3842 = vmatmul.mubr.f32.gmra.mrb[0].mxu0 %v3280
        %v3843 = vpop.f32.mrb[0].mxu0
        %v3844 = vadd.f32 0.0, %v3843
        %v3845 = vpop.f32.mrb[0].mxu0
        %3846 = vmatprep.mubr.f32.mxu0 0.0
        %3847 = vmatmul.mubr.f32.gmra.mrb[0].mxu0 %v3281
        %v3848 = vpop.f32.mrb[0].mxu0
        %v3849 = vadd.f32 0.0, %v3848
        %v3850 = vpop.f32.mrb[0].mxu0
        %3851 = vmatprep.mubr.f32.mxu0 0.0
        %3852 = vmatmul.mubr.f32.gmra.mrb[0].mxu0 %v3282
        %v3853 = vpop.f32.mrb[0].mxu0
        %v3854 = vadd.f32 0.0, %v3853
        %v3855 = vpop.f32.mrb[0].mxu0
        %3856 = vmatprep.mubr.f32.mxu0 0.0
        %3857 = vmatmul.mubr.f32.gmra.mrb[0].mxu0 %v3283
        %v3858 = vpop.f32.mrb[0].mxu0
        %v3859 = vadd.f32 0.0, %v3858
        %v3860 = vpop.f32.mrb[0].mxu0
        %3861 = vmatprep.mubr.f32.mxu0 0.0
        %3862 = vmatmul.mubr.f32.gmra.mrb[0].mxu0 %v3284
        %v3863 = vpop.f32.mrb[0].mxu0
        %v3864 = vadd.f32 0.0, %v3863
        %v3865 = vpop.f32.mrb[0].mxu0
        %3866 = vmatprep.mubr.f32.mxu0 0.0
        %3867 = vmatmul.mubr.f32.gmra.mrb[0].mxu0 %v3285
        %v3868 = vpop.f32.mrb[0].mxu0
        %v3869 = vadd.f32 0.0, %v3868
        %v3870 = vpop.f32.mrb[0].mxu0
        %3871 = vmatprep.mubr.f32.mxu0 0.0
        %3872 = vmatmul.mubr.f32.gmra.mrb[0].mxu0 %v3286
        %v3873 = vpop.f32.mrb[0].mxu0
        %v3874 = vadd.f32 0.0, %v3873
        %v3875 = vpop.f32.mrb[0].mxu0
        %3876 = vmatprep.mubr.f32.mxu0 0.0
        %3877 = vmatmul.mubr.f32.gmra.mrb[0].mxu0 %v3287
        %v3878 = vpop.f32.mrb[0].mxu0
        %v3879 = vadd.f32 0.0, %v3878
        %v3880 = vpop.f32.mrb[0].mxu0
        %3881 = vmatprep.mubr.f32.mxu0 0.0
        %3882 = vmatmul.mubr.f32.gmra.mrb[0].mxu0 %v3288
        %v3883 = vpop.f32.mrb[0].mxu0
        %v3884 = vadd.f32 0.0, %v3883
        %v3885 = vpop.f32.mrb[0].mxu0
        %3886 = vmatprep.mubr.f32.mxu0 0.0
        %3887 = vmatmul.mubr.f32.gmra.mrb[0].mxu0 %v3289
        %v3888 = vpop.f32.mrb[0].mxu0
        %v3889 = vadd.f32 0.0, %v3888
        %v3890 = vpop.f32.mrb[0].mxu0
        %3891 = vmatprep.mubr.f32.mxu0 0.0
        %3892 = vmatmul.mubr.f32.gmra.mrb[0].mxu0 %v3290
        %v3893 = vpop.f32.mrb[0].mxu0
        %v3894 = vadd.f32 0.0, %v3893
        %v3895 = vpop.f32.mrb[0].mxu0
        %3896 = vmatprep.mubr.f32.mxu0 0.0
        %3897 = vmatmul.mubr.f32.gmra.mrb[0].mxu0 %v3291
        %v3898 = vpop.f32.mrb[0].mxu0
        %v3899 = vadd.f32 0.0, %v3898
        %v3900 = vpop.f32.mrb[0].mxu0
        %3901 = vmatprep.mubr.f32.mxu0 0.0
        %3902 = vmatmul.mubr.f32.gmra.mrb[0].mxu0 %v3292
        %v3903 = vpop.f32.mrb[0].mxu0
        %v3904 = vadd.f32 0.0, %v3903
        %v3905 = vpop.f32.mrb[0].mxu0
        %3906 = vmatprep.mubr.f32.mxu0 0.0
        %3907 = vmatmul.mubr.f32.gmra.mrb[0].mxu0 %v3293
        %v3908 = vpop.f32.mrb[0].mxu0
        %v3909 = vadd.f32 0.0, %v3908
        %v3910 = vpop.f32.mrb[0].mxu0
        %3911 = vmatprep.mubr.f32.mxu0 0.0
        %3912 = vmatmul.mubr.f32.gmra.mrb[0].mxu0 %v3294
        %v3913 = vpop.f32.mrb[0].mxu0
        %v3914 = vadd.f32 0.0, %v3913
        %v3915 = vpop.f32.mrb[0].mxu0
        %3916 = vmatprep.mubr.f32.mxu0 0.0
        %3917 = vmatmul.mubr.f32.gmra.mrb[0].mxu0 %v3295
        %v3918 = vpop.f32.mrb[0].mxu0
        %v3919 = vadd.f32 0.0, %v3918
        %v3920 = vpop.f32.mrb[0].mxu0
        %3921 = vmatprep.mubr.f32.mxu0 0.0
        %3922 = vmatmul.mubr.f32.gmra.mrb[0].mxu0 %v3296
        %v3923 = vpop.f32.mrb[0].mxu0
        %v3924 = vadd.f32 0.0, %v3923
        %v3925 = vpop.f32.mrb[0].mxu0
        %3926 = vmatprep.mubr.f32.mxu0 0.0
        %3927 = vmatmul.mubr.f32.gmra.mrb[0].mxu0 %v3297
        %v3928 = vpop.f32.mrb[0].mxu0
        %v3929 = vadd.f32 0.0, %v3928
        %v3930 = vpop.f32.mrb[0].mxu0
        %3931 = vmatprep.mubr.f32.mxu0 0.0
        %3932 = vmatmul.mubr.f32.gmra.mrb[0].mxu0 %v3298
        %v3933 = vpop.f32.mrb[0].mxu0
        %v3934 = vadd.f32 0.0, %v3933
        %v3935 = vpop.f32.mrb[0].mxu0
        %3936 = vmatprep.mubr.f32.mxu0 0.0
        %3937 = vmatmul.mubr.f32.gmra.mrb[0].mxu0 %v3299
        %v3938 = vpop.f32.mrb[0].mxu0
        %v3939 = vadd.f32 0.0, %v3938
        %v3940 = vpop.f32.mrb[0].mxu0
        %3941 = vdwg.mxu0
        %v3942 = vld [vmem:[#allocation2] sm:$0xff]
        %v3943 = vld [vmem:[#allocation2 + $0x8] sm:$0xff]
        %v3944 = vld [vmem:[#allocation2 + $0x10] sm:$0xff]
        %v3945 = vld [vmem:[#allocation2 + $0x18] sm:$0xff]
        %v3946 = vld [vmem:[#allocation2 + $0x20] sm:$0xff]
        %v3947 = vld [vmem:[#allocation2 + $0x28] sm:$0xff]
        %v3948 = vld [vmem:[#allocation2 + $0x30] sm:$0xff]
        %v3949 = vld [vmem:[#allocation2 + $0x38] sm:$0xff]
        %v3950 = vld [vmem:[#allocation2 + $0x40] sm:$0xff]
        %v3951 = vld [vmem:[#allocation2 + $0x48] sm:$0xff]
        %v3952 = vld [vmem:[#allocation2 + $0x50] sm:$0xff]
        %v3953 = vld [vmem:[#allocation2 + $0x58] sm:$0xff]
        %v3954 = vld [vmem:[#allocation2 + $0x60] sm:$0xff]
        %v3955 = vld [vmem:[#allocation2 + $0x68] sm:$0xff]
        %v3956 = vld [vmem:[#allocation2 + $0x70] sm:$0xff]
        %v3957 = vld [vmem:[#allocation2 + $0x78] sm:$0xff]
        %v3958 = vld [vmem:[#allocation2 + $0x80] sm:$0xff]
        %v3959 = vld [vmem:[#allocation2 + $0x88] sm:$0xff]
        %v3960 = vld [vmem:[#allocation2 + $0x90] sm:$0xff]
        %v3961 = vld [vmem:[#allocation2 + $0x98] sm:$0xff]
        %v3962 = vld [vmem:[#allocation2 + $0xa0] sm:$0xff]
        %v3963 = vld [vmem:[#allocation2 + $0xa8] sm:$0xff]
        %v3964 = vld [vmem:[#allocation2 + $0xb0] sm:$0xff]
        %v3965 = vld [vmem:[#allocation2 + $0xb8] sm:$0xff]
        %v3966 = vld [vmem:[#allocation2 + $0xc0] sm:$0xff]
        %v3967 = vld [vmem:[#allocation2 + $0xc8] sm:$0xff]
        %v3968 = vld [vmem:[#allocation2 + $0xd0] sm:$0xff]
        %v3969 = vld [vmem:[#allocation2 + $0xd8] sm:$0xff]
        %v3970 = vld [vmem:[#allocation2 + $0xe0] sm:$0xff]
        %v3971 = vld [vmem:[#allocation2 + $0xe8] sm:$0xff]
        %v3972 = vld [vmem:[#allocation2 + $0xf0] sm:$0xff]
        %v3973 = vld [vmem:[#allocation2 + $0xf8] sm:$0xff]
        %v3974 = vld [vmem:[#allocation2 + $0x100] sm:$0xff]
        %v3975 = vld [vmem:[#allocation2 + $0x108] sm:$0xff]
        %v3976 = vld [vmem:[#allocation2 + $0x110] sm:$0xff]
        %v3977 = vld [vmem:[#allocation2 + $0x118] sm:$0xff]
        %v3978 = vld [vmem:[#allocation2 + $0x120] sm:$0xff]
        %v3979 = vld [vmem:[#allocation2 + $0x128] sm:$0xff]
        %v3980 = vld [vmem:[#allocation2 + $0x130] sm:$0xff]
        %v3981 = vld [vmem:[#allocation2 + $0x138] sm:$0xff]
        %v3982 = vld [vmem:[#allocation2 + $0x140] sm:$0xff]
        %v3983 = vld [vmem:[#allocation2 + $0x148] sm:$0xff]
        %v3984 = vld [vmem:[#allocation2 + $0x150] sm:$0xff]
        %v3985 = vld [vmem:[#allocation2 + $0x158] sm:$0xff]
        %v3986 = vld [vmem:[#allocation2 + $0x160] sm:$0xff]
        %v3987 = vld [vmem:[#allocation2 + $0x168] sm:$0xff]
        %v3988 = vld [vmem:[#allocation2 + $0x170] sm:$0xff]
        %v3989 = vld [vmem:[#allocation2 + $0x178] sm:$0xff]
        %v3990 = vld [vmem:[#allocation2 + $0x180] sm:$0xff]
        %v3991 = vld [vmem:[#allocation2 + $0x188] sm:$0xff]
        %v3992 = vld [vmem:[#allocation2 + $0x190] sm:$0xff]
        %v3993 = vld [vmem:[#allocation2 + $0x198] sm:$0xff]
        %v3994 = vld [vmem:[#allocation2 + $0x1a0] sm:$0xff]
        %v3995 = vld [vmem:[#allocation2 + $0x1a8] sm:$0xff]
        %v3996 = vld [vmem:[#allocation2 + $0x1b0] sm:$0xff]
        %v3997 = vld [vmem:[#allocation2 + $0x1b8] sm:$0xff]
        %v3998 = vld [vmem:[#allocation2 + $0x1c0] sm:$0xff]
        %v3999 = vld [vmem:[#allocation2 + $0x1c8] sm:$0xff]
        %v4000 = vld [vmem:[#allocation2 + $0x1d0] sm:$0xff]
        %v4001 = vld [vmem:[#allocation2 + $0x1d8] sm:$0xff]
        %v4002 = vld [vmem:[#allocation2 + $0x1e0] sm:$0xff]
        %v4003 = vld [vmem:[#allocation2 + $0x1e8] sm:$0xff]
        %v4004 = vld [vmem:[#allocation2 + $0x1f0] sm:$0xff]
        %v4005 = vld [vmem:[#allocation2 + $0x1f8] sm:$0xff]
        %v4006 = vld [vmem:[#allocation2 + $0x200] sm:$0xff]
        %v4007 = vld [vmem:[#allocation2 + $0x208] sm:$0xff]
        %v4008 = vld [vmem:[#allocation2 + $0x210] sm:$0xff]
        %v4009 = vld [vmem:[#allocation2 + $0x218] sm:$0xff]
        %v4010 = vld [vmem:[#allocation2 + $0x220] sm:$0xff]
        %v4011 = vld [vmem:[#allocation2 + $0x228] sm:$0xff]
        %v4012 = vld [vmem:[#allocation2 + $0x230] sm:$0xff]
        %v4013 = vld [vmem:[#allocation2 + $0x238] sm:$0xff]
        %v4014 = vld [vmem:[#allocation2 + $0x240] sm:$0xff]
        %v4015 = vld [vmem:[#allocation2 + $0x248] sm:$0xff]
        %v4016 = vld [vmem:[#allocation2 + $0x250] sm:$0xff]
        %v4017 = vld [vmem:[#allocation2 + $0x258] sm:$0xff]
        %v4018 = vld [vmem:[#allocation2 + $0x260] sm:$0xff]
        %v4019 = vld [vmem:[#allocation2 + $0x268] sm:$0xff]
        %v4020 = vld [vmem:[#allocation2 + $0x270] sm:$0xff]
        %v4021 = vld [vmem:[#allocation2 + $0x278] sm:$0xff]
        %v4022 = vld [vmem:[#allocation2 + $0x280] sm:$0xff]
        %v4023 = vld [vmem:[#allocation2 + $0x288] sm:$0xff]
        %v4024 = vld [vmem:[#allocation2 + $0x290] sm:$0xff]
        %v4025 = vld [vmem:[#allocation2 + $0x298] sm:$0xff]
        %v4026 = vld [vmem:[#allocation2 + $0x2a0] sm:$0xff]
        %v4027 = vld [vmem:[#allocation2 + $0x2a8] sm:$0xff]
        %v4028 = vld [vmem:[#allocation2 + $0x2b0] sm:$0xff]
        %v4029 = vld [vmem:[#allocation2 + $0x2b8] sm:$0xff]
        %v4030 = vld [vmem:[#allocation2 + $0x2c0] sm:$0xff]
        %v4031 = vld [vmem:[#allocation2 + $0x2c8] sm:$0xff]
        %v4032 = vld [vmem:[#allocation2 + $0x2d0] sm:$0xff]
        %v4033 = vld [vmem:[#allocation2 + $0x2d8] sm:$0xff]
        %v4034 = vld [vmem:[#allocation2 + $0x2e0] sm:$0xff]
        %v4035 = vld [vmem:[#allocation2 + $0x2e8] sm:$0xff]
        %v4036 = vld [vmem:[#allocation2 + $0x2f0] sm:$0xff]
        %v4037 = vld [vmem:[#allocation2 + $0x2f8] sm:$0xff]
        %v4038 = vld [vmem:[#allocation2 + $0x300] sm:$0xff]
        %v4039 = vld [vmem:[#allocation2 + $0x308] sm:$0xff]
        %v4040 = vld [vmem:[#allocation2 + $0x310] sm:$0xff]
        %v4041 = vld [vmem:[#allocation2 + $0x318] sm:$0xff]
        %v4042 = vld [vmem:[#allocation2 + $0x320] sm:$0xff]
        %v4043 = vld [vmem:[#allocation2 + $0x328] sm:$0xff]
        %v4044 = vld [vmem:[#allocation2 + $0x330] sm:$0xff]
        %v4045 = vld [vmem:[#allocation2 + $0x338] sm:$0xff]
        %v4046 = vld [vmem:[#allocation2 + $0x340] sm:$0xff]
        %v4047 = vld [vmem:[#allocation2 + $0x348] sm:$0xff]
        %v4048 = vld [vmem:[#allocation2 + $0x350] sm:$0xff]
        %v4049 = vld [vmem:[#allocation2 + $0x358] sm:$0xff]
        %v4050 = vld [vmem:[#allocation2 + $0x360] sm:$0xff]
        %v4051 = vld [vmem:[#allocation2 + $0x368] sm:$0xff]
        %v4052 = vld [vmem:[#allocation2 + $0x370] sm:$0xff]
        %v4053 = vld [vmem:[#allocation2 + $0x378] sm:$0xff]
        %v4054 = vadd.f32 %v3942, %v3384
        %v4055 = vadd.f32 %v3943, %v3389
        %v4056 = vadd.f32 %v3944, %v3394
        %v4057 = vadd.f32 %v3945, %v3399
        %v4058 = vadd.f32 %v3946, %v3404
        %v4059 = vadd.f32 %v3947, %v3409
        %v4060 = vadd.f32 %v3948, %v3414
        %v4061 = vadd.f32 %v3949, %v3419
        %v4062 = vadd.f32 %v3950, %v3424
        %v4063 = vadd.f32 %v3951, %v3429
        %v4064 = vadd.f32 %v3952, %v3434
        %v4065 = vadd.f32 %v3953, %v3439
        %v4066 = vadd.f32 %v3954, %v3444
        %v4067 = vadd.f32 %v3955, %v3449
        %v4068 = vadd.f32 %v3956, %v3454
        %v4069 = vadd.f32 %v3957, %v3459
        %v4070 = vadd.f32 %v3958, %v3464
        %v4071 = vadd.f32 %v3959, %v3469
        %v4072 = vadd.f32 %v3960, %v3474
        %v4073 = vadd.f32 %v3961, %v3479
        %v4074 = vadd.f32 %v3962, %v3484
        %v4075 = vadd.f32 %v3963, %v3489
        %v4076 = vadd.f32 %v3964, %v3494
        %v4077 = vadd.f32 %v3965, %v3499
        %v4078 = vadd.f32 %v3966, %v3504
        %v4079 = vadd.f32 %v3967, %v3509
        %v4080 = vadd.f32 %v3968, %v3514
        %v4081 = vadd.f32 %v3969, %v3519
        %v4082 = vadd.f32 %v3970, %v3524
        %v4083 = vadd.f32 %v3971, %v3529
        %v4084 = vadd.f32 %v3972, %v3534
        %v4085 = vadd.f32 %v3973, %v3539
        %v4086 = vadd.f32 %v3974, %v3544
        %v4087 = vadd.f32 %v3975, %v3549
        %v4088 = vadd.f32 %v3976, %v3554
        %v4089 = vadd.f32 %v3977, %v3559
        %v4090 = vadd.f32 %v3978, %v3564
        %v4091 = vadd.f32 %v3979, %v3569
        %v4092 = vadd.f32 %v3980, %v3574
        %v4093 = vadd.f32 %v3981, %v3579
        %v4094 = vadd.f32 %v3982, %v3584
        %v4095 = vadd.f32 %v3983, %v3589
        %v4096 = vadd.f32 %v3984, %v3594
        %v4097 = vadd.f32 %v3985, %v3599
        %v4098 = vadd.f32 %v3986, %v3604
        %v4099 = vadd.f32 %v3987, %v3609
        %v4100 = vadd.f32 %v3988, %v3614
        %v4101 = vadd.f32 %v3989, %v3619
        %v4102 = vadd.f32 %v3990, %v3624
        %v4103 = vadd.f32 %v3991, %v3629
        %v4104 = vadd.f32 %v3992, %v3634
        %v4105 = vadd.f32 %v3993, %v3639
        %v4106 = vadd.f32 %v3994, %v3644
        %v4107 = vadd.f32 %v3995, %v3649
        %v4108 = vadd.f32 %v3996, %v3654
        %v4109 = vadd.f32 %v3997, %v3659
        %v4110 = vadd.f32 %v3998, %v3664
        %v4111 = vadd.f32 %v3999, %v3669
        %v4112 = vadd.f32 %v4000, %v3674
        %v4113 = vadd.f32 %v4001, %v3679
        %v4114 = vadd.f32 %v4002, %v3684
        %v4115 = vadd.f32 %v4003, %v3689
        %v4116 = vadd.f32 %v4004, %v3694
        %v4117 = vadd.f32 %v4005, %v3699
        %v4118 = vadd.f32 %v4006, %v3704
        %v4119 = vadd.f32 %v4007, %v3709
        %v4120 = vadd.f32 %v4008, %v3714
        %v4121 = vadd.f32 %v4009, %v3719
        %v4122 = vadd.f32 %v4010, %v3724
        %v4123 = vadd.f32 %v4011, %v3729
        %v4124 = vadd.f32 %v4012, %v3734
        %v4125 = vadd.f32 %v4013, %v3739
        %v4126 = vadd.f32 %v4014, %v3744
        %v4127 = vadd.f32 %v4015, %v3749
        %v4128 = vadd.f32 %v4016, %v3754
        %v4129 = vadd.f32 %v4017, %v3759
        %v4130 = vadd.f32 %v4018, %v3764
        %v4131 = vadd.f32 %v4019, %v3769
        %v4132 = vadd.f32 %v4020, %v3774
        %v4133 = vadd.f32 %v4021, %v3779
        %v4134 = vadd.f32 %v4022, %v3784
        %v4135 = vadd.f32 %v4023, %v3789
        %v4136 = vadd.f32 %v4024, %v3794
        %v4137 = vadd.f32 %v4025, %v3799
        %v4138 = vadd.f32 %v4026, %v3804
        %v4139 = vadd.f32 %v4027, %v3809
        %v4140 = vadd.f32 %v4028, %v3814
        %v4141 = vadd.f32 %v4029, %v3819
        %v4142 = vadd.f32 %v4030, %v3824
        %v4143 = vadd.f32 %v4031, %v3829
        %v4144 = vadd.f32 %v4032, %v3834
        %v4145 = vadd.f32 %v4033, %v3839
        %v4146 = vadd.f32 %v4034, %v3844
        %v4147 = vadd.f32 %v4035, %v3849
        %v4148 = vadd.f32 %v4036, %v3854
        %v4149 = vadd.f32 %v4037, %v3859
        %v4150 = vadd.f32 %v4038, %v3864
        %v4151 = vadd.f32 %v4039, %v3869
        %v4152 = vadd.f32 %v4040, %v3874
        %v4153 = vadd.f32 %v4041, %v3879
        %v4154 = vadd.f32 %v4042, %v3884
        %v4155 = vadd.f32 %v4043, %v3889
        %v4156 = vadd.f32 %v4044, %v3894
        %v4157 = vadd.f32 %v4045, %v3899
        %v4158 = vadd.f32 %v4046, %v3904
        %v4159 = vadd.f32 %v4047, %v3909
        %v4160 = vadd.f32 %v4048, %v3914
        %v4161 = vadd.f32 %v4049, %v3919
        %v4162 = vadd.f32 %v4050, %v3924
        %v4163 = vadd.f32 %v4051, %v3929
        %v4164 = vadd.f32 %v4052, %v3934
        %v4165 = vadd.f32 %v4053, %v3939
        %4166 = vst [vmem:[#allocation2] sm:$0xff] %v4054
        %4167 = vst [vmem:[#allocation2 + $0x8] sm:$0xff] %v4055
        %4168 = vst [vmem:[#allocation2 + $0x10] sm:$0xff] %v4056
        %4169 = vst [vmem:[#allocation2 + $0x18] sm:$0xff] %v4057
        %4170 = vst [vmem:[#allocation2 + $0x20] sm:$0xff] %v4058
        %4171 = vst [vmem:[#allocation2 + $0x28] sm:$0xff] %v4059
        %4172 = vst [vmem:[#allocation2 + $0x30] sm:$0xff] %v4060
        %4173 = vst [vmem:[#allocation2 + $0x38] sm:$0xff] %v4061
        %4174 = vst [vmem:[#allocation2 + $0x40] sm:$0xff] %v4062
        %4175 = vst [vmem:[#allocation2 + $0x48] sm:$0xff] %v4063
        %4176 = vst [vmem:[#allocation2 + $0x50] sm:$0xff] %v4064
        %4177 = vst [vmem:[#allocation2 + $0x58] sm:$0xff] %v4065
        %4178 = vst [vmem:[#allocation2 + $0x60] sm:$0xff] %v4066
        %4179 = vst [vmem:[#allocation2 + $0x68] sm:$0xff] %v4067
        %4180 = vst [vmem:[#allocation2 + $0x70] sm:$0xff] %v4068
        %4181 = vst [vmem:[#allocation2 + $0x78] sm:$0xff] %v4069
        %4182 = vst [vmem:[#allocation2 + $0x80] sm:$0xff] %v4070
        %4183 = vst [vmem:[#allocation2 + $0x88] sm:$0xff] %v4071
        %4184 = vst [vmem:[#allocation2 + $0x90] sm:$0xff] %v4072
        %4185 = vst [vmem:[#allocation2 + $0x98] sm:$0xff] %v4073
        %4186 = vst [vmem:[#allocation2 + $0xa0] sm:$0xff] %v4074
        %4187 = vst [vmem:[#allocation2 + $0xa8] sm:$0xff] %v4075
        %4188 = vst [vmem:[#allocation2 + $0xb0] sm:$0xff] %v4076
        %4189 = vst [vmem:[#allocation2 + $0xb8] sm:$0xff] %v4077
        %4190 = vst [vmem:[#allocation2 + $0xc0] sm:$0xff] %v4078
        %4191 = vst [vmem:[#allocation2 + $0xc8] sm:$0xff] %v4079
        %4192 = vst [vmem:[#allocation2 + $0xd0] sm:$0xff] %v4080
        %4193 = vst [vmem:[#allocation2 + $0xd8] sm:$0xff] %v4081
        %4194 = vst [vmem:[#allocation2 + $0xe0] sm:$0xff] %v4082
        %4195 = vst [vmem:[#allocation2 + $0xe8] sm:$0xff] %v4083
        %4196 = vst [vmem:[#allocation2 + $0xf0] sm:$0xff] %v4084
        %4197 = vst [vmem:[#allocation2 + $0xf8] sm:$0xff] %v4085
        %4198 = vst [vmem:[#allocation2 + $0x100] sm:$0xff] %v4086
        %4199 = vst [vmem:[#allocation2 + $0x108] sm:$0xff] %v4087
        %4200 = vst [vmem:[#allocation2 + $0x110] sm:$0xff] %v4088
        %4201 = vst [vmem:[#allocation2 + $0x118] sm:$0xff] %v4089
        %4202 = vst [vmem:[#allocation2 + $0x120] sm:$0xff] %v4090
        %4203 = vst [vmem:[#allocation2 + $0x128] sm:$0xff] %v4091
        %4204 = vst [vmem:[#allocation2 + $0x130] sm:$0xff] %v4092
        %4205 = vst [vmem:[#allocation2 + $0x138] sm:$0xff] %v4093
        %4206 = vst [vmem:[#allocation2 + $0x140] sm:$0xff] %v4094
        %4207 = vst [vmem:[#allocation2 + $0x148] sm:$0xff] %v4095
        %4208 = vst [vmem:[#allocation2 + $0x150] sm:$0xff] %v4096
        %4209 = vst [vmem:[#allocation2 + $0x158] sm:$0xff] %v4097
        %4210 = vst [vmem:[#allocation2 + $0x160] sm:$0xff] %v4098
        %4211 = vst [vmem:[#allocation2 + $0x168] sm:$0xff] %v4099
        %4212 = vst [vmem:[#allocation2 + $0x170] sm:$0xff] %v4100
        %4213 = vst [vmem:[#allocation2 + $0x178] sm:$0xff] %v4101
        %4214 = vst [vmem:[#allocation2 + $0x180] sm:$0xff] %v4102
        %4215 = vst [vmem:[#allocation2 + $0x188] sm:$0xff] %v4103
        %4216 = vst [vmem:[#allocation2 + $0x190] sm:$0xff] %v4104
        %4217 = vst [vmem:[#allocation2 + $0x198] sm:$0xff] %v4105
        %4218 = vst [vmem:[#allocation2 + $0x1a0] sm:$0xff] %v4106
        %4219 = vst [vmem:[#allocation2 + $0x1a8] sm:$0xff] %v4107
        %4220 = vst [vmem:[#allocation2 + $0x1b0] sm:$0xff] %v4108
        %4221 = vst [vmem:[#allocation2 + $0x1b8] sm:$0xff] %v4109
        %4222 = vst [vmem:[#allocation2 + $0x1c0] sm:$0xff] %v4110
        %4223 = vst [vmem:[#allocation2 + $0x1c8] sm:$0xff] %v4111
        %4224 = vst [vmem:[#allocation2 + $0x1d0] sm:$0xff] %v4112
        %4225 = vst [vmem:[#allocation2 + $0x1d8] sm:$0xff] %v4113
        %4226 = vst [vmem:[#allocation2 + $0x1e0] sm:$0xff] %v4114
        %4227 = vst [vmem:[#allocation2 + $0x1e8] sm:$0xff] %v4115
        %4228 = vst [vmem:[#allocation2 + $0x1f0] sm:$0xff] %v4116
        %4229 = vst [vmem:[#allocation2 + $0x1f8] sm:$0xff] %v4117
        %4230 = vst [vmem:[#allocation2 + $0x200] sm:$0xff] %v4118
        %4231 = vst [vmem:[#allocation2 + $0x208] sm:$0xff] %v4119
        %4232 = vst [vmem:[#allocation2 + $0x210] sm:$0xff] %v4120
        %4233 = vst [vmem:[#allocation2 + $0x218] sm:$0xff] %v4121
        %4234 = vst [vmem:[#allocation2 + $0x220] sm:$0xff] %v4122
        %4235 = vst [vmem:[#allocation2 + $0x228] sm:$0xff] %v4123
        %4236 = vst [vmem:[#allocation2 + $0x230] sm:$0xff] %v4124
        %4237 = vst [vmem:[#allocation2 + $0x238] sm:$0xff] %v4125
        %4238 = vst [vmem:[#allocation2 + $0x240] sm:$0xff] %v4126
        %4239 = vst [vmem:[#allocation2 + $0x248] sm:$0xff] %v4127
        %4240 = vst [vmem:[#allocation2 + $0x250] sm:$0xff] %v4128
        %4241 = vst [vmem:[#allocation2 + $0x258] sm:$0xff] %v4129
        %4242 = vst [vmem:[#allocation2 + $0x260] sm:$0xff] %v4130
        %4243 = vst [vmem:[#allocation2 + $0x268] sm:$0xff] %v4131
        %4244 = vst [vmem:[#allocation2 + $0x270] sm:$0xff] %v4132
        %4245 = vst [vmem:[#allocation2 + $0x278] sm:$0xff] %v4133
        %4246 = vst [vmem:[#allocation2 + $0x280] sm:$0xff] %v4134
        %4247 = vst [vmem:[#allocation2 + $0x288] sm:$0xff] %v4135
        %4248 = vst [vmem:[#allocation2 + $0x290] sm:$0xff] %v4136
        %4249 = vst [vmem:[#allocation2 + $0x298] sm:$0xff] %v4137
        %4250 = vst [vmem:[#allocation2 + $0x2a0] sm:$0xff] %v4138
        %4251 = vst [vmem:[#allocation2 + $0x2a8] sm:$0xff] %v4139
        %4252 = vst [vmem:[#allocation2 + $0x2b0] sm:$0xff] %v4140
        %4253 = vst [vmem:[#allocation2 + $0x2b8] sm:$0xff] %v4141
        %4254 = vst [vmem:[#allocation2 + $0x2c0] sm:$0xff] %v4142
        %4255 = vst [vmem:[#allocation2 + $0x2c8] sm:$0xff] %v4143
        %4256 = vst [vmem:[#allocation2 + $0x2d0] sm:$0xff] %v4144
        %4257 = vst [vmem:[#allocation2 + $0x2d8] sm:$0xff] %v4145
        %4258 = vst [vmem:[#allocation2 + $0x2e0] sm:$0xff] %v4146
        %4259 = vst [vmem:[#allocation2 + $0x2e8] sm:$0xff] %v4147
        %4260 = vst [vmem:[#allocation2 + $0x2f0] sm:$0xff] %v4148
        %4261 = vst [vmem:[#allocation2 + $0x2f8] sm:$0xff] %v4149
        %4262 = vst [vmem:[#allocation2 + $0x300] sm:$0xff] %v4150
        %4263 = vst [vmem:[#allocation2 + $0x308] sm:$0xff] %v4151
        %4264 = vst [vmem:[#allocation2 + $0x310] sm:$0xff] %v4152
        %4265 = vst [vmem:[#allocation2 + $0x318] sm:$0xff] %v4153
        %4266 = vst [vmem:[#allocation2 + $0x320] sm:$0xff] %v4154
        %4267 = vst [vmem:[#allocation2 + $0x328] sm:$0xff] %v4155
        %4268 = vst [vmem:[#allocation2 + $0x330] sm:$0xff] %v4156
        %4269 = vst [vmem:[#allocation2 + $0x338] sm:$0xff] %v4157
        %4270 = vst [vmem:[#allocation2 + $0x340] sm:$0xff] %v4158
        %4271 = vst [vmem:[#allocation2 + $0x348] sm:$0xff] %v4159
        %4272 = vst [vmem:[#allocation2 + $0x350] sm:$0xff] %v4160
        %4273 = vst [vmem:[#allocation2 + $0x358] sm:$0xff] %v4161
        %4274 = vst [vmem:[#allocation2 + $0x360] sm:$0xff] %v4162
        %4275 = vst [vmem:[#allocation2 + $0x368] sm:$0xff] %v4163
        %4276 = vst [vmem:[#allocation2 + $0x370] sm:$0xff] %v4164
        %4277 = vst [vmem:[#allocation2 + $0x378] sm:$0xff] %v4165
        %v4278 = vld [vmem:[#allocation2] sm:$0xff]
        %v4279 = vld [vmem:[#allocation2 + $0x8] sm:$0xff]
        %v4280 = vld [vmem:[#allocation2 + $0x10] sm:$0xff]
        %v4281 = vld [vmem:[#allocation2 + $0x18] sm:$0xff]
        %v4282 = vld [vmem:[#allocation2 + $0x20] sm:$0xff]
        %v4283 = vld [vmem:[#allocation2 + $0x28] sm:$0xff]
        %v4284 = vld [vmem:[#allocation2 + $0x30] sm:$0xff]
        %v4285 = vld [vmem:[#allocation2 + $0x38] sm:$0xff]
        %v4286 = vld [vmem:[#allocation2 + $0x40] sm:$0xff]
        %v4287 = vld [vmem:[#allocation2 + $0x48] sm:$0xff]
        %v4288 = vld [vmem:[#allocation2 + $0x50] sm:$0xff]
        %v4289 = vld [vmem:[#allocation2 + $0x58] sm:$0xff]
        %v4290 = vld [vmem:[#allocation2 + $0x60] sm:$0xff]
        %v4291 = vld [vmem:[#allocation2 + $0x68] sm:$0xff]
        %v4292 = vld [vmem:[#allocation2 + $0x70] sm:$0xff]
        %v4293 = vld [vmem:[#allocation2 + $0x78] sm:$0xff]
        %v4294 = vld [vmem:[#allocation2 + $0x80] sm:$0xff]
        %v4295 = vld [vmem:[#allocation2 + $0x88] sm:$0xff]
        %v4296 = vld [vmem:[#allocation2 + $0x90] sm:$0xff]
        %v4297 = vld [vmem:[#allocation2 + $0x98] sm:$0xff]
        %v4298 = vld [vmem:[#allocation2 + $0xa0] sm:$0xff]
        %v4299 = vld [vmem:[#allocation2 + $0xa8] sm:$0xff]
        %v4300 = vld [vmem:[#allocation2 + $0xb0] sm:$0xff]
        %v4301 = vld [vmem:[#allocation2 + $0xb8] sm:$0xff]
        %v4302 = vld [vmem:[#allocation2 + $0xc0] sm:$0xff]
        %v4303 = vld [vmem:[#allocation2 + $0xc8] sm:$0xff]
        %v4304 = vld [vmem:[#allocation2 + $0xd0] sm:$0xff]
        %v4305 = vld [vmem:[#allocation2 + $0xd8] sm:$0xff]
        %v4306 = vld [vmem:[#allocation2 + $0xe0] sm:$0xff]
        %v4307 = vld [vmem:[#allocation2 + $0xe8] sm:$0xff]
        %v4308 = vld [vmem:[#allocation2 + $0xf0] sm:$0xff]
        %v4309 = vld [vmem:[#allocation2 + $0xf8] sm:$0xff]
        %v4310 = vld [vmem:[#allocation2 + $0x100] sm:$0xff]
        %v4311 = vld [vmem:[#allocation2 + $0x108] sm:$0xff]
        %v4312 = vld [vmem:[#allocation2 + $0x110] sm:$0xff]
        %v4313 = vld [vmem:[#allocation2 + $0x118] sm:$0xff]
        %v4314 = vld [vmem:[#allocation2 + $0x120] sm:$0xff]
        %v4315 = vld [vmem:[#allocation2 + $0x128] sm:$0xff]
        %v4316 = vld [vmem:[#allocation2 + $0x130] sm:$0xff]
        %v4317 = vld [vmem:[#allocation2 + $0x138] sm:$0xff]
        %v4318 = vld [vmem:[#allocation2 + $0x140] sm:$0xff]
        %v4319 = vld [vmem:[#allocation2 + $0x148] sm:$0xff]
        %v4320 = vld [vmem:[#allocation2 + $0x150] sm:$0xff]
        %v4321 = vld [vmem:[#allocation2 + $0x158] sm:$0xff]
        %v4322 = vld [vmem:[#allocation2 + $0x160] sm:$0xff]
        %v4323 = vld [vmem:[#allocation2 + $0x168] sm:$0xff]
        %v4324 = vld [vmem:[#allocation2 + $0x170] sm:$0xff]
        %v4325 = vld [vmem:[#allocation2 + $0x178] sm:$0xff]
        %v4326 = vld [vmem:[#allocation2 + $0x180] sm:$0xff]
        %v4327 = vld [vmem:[#allocation2 + $0x188] sm:$0xff]
        %v4328 = vld [vmem:[#allocation2 + $0x190] sm:$0xff]
        %v4329 = vld [vmem:[#allocation2 + $0x198] sm:$0xff]
        %v4330 = vld [vmem:[#allocation2 + $0x1a0] sm:$0xff]
        %v4331 = vld [vmem:[#allocation2 + $0x1a8] sm:$0xff]
        %v4332 = vld [vmem:[#allocation2 + $0x1b0] sm:$0xff]
        %v4333 = vld [vmem:[#allocation2 + $0x1b8] sm:$0xff]
        %v4334 = vld [vmem:[#allocation2 + $0x1c0] sm:$0xff]
        %v4335 = vld [vmem:[#allocation2 + $0x1c8] sm:$0xff]
        %v4336 = vld [vmem:[#allocation2 + $0x1d0] sm:$0xff]
        %v4337 = vld [vmem:[#allocation2 + $0x1d8] sm:$0xff]
        %v4338 = vld [vmem:[#allocation2 + $0x1e0] sm:$0xff]
        %v4339 = vld [vmem:[#allocation2 + $0x1e8] sm:$0xff]
        %v4340 = vld [vmem:[#allocation2 + $0x1f0] sm:$0xff]
        %v4341 = vld [vmem:[#allocation2 + $0x1f8] sm:$0xff]
        %v4342 = vld [vmem:[#allocation2 + $0x200] sm:$0xff]
        %v4343 = vld [vmem:[#allocation2 + $0x208] sm:$0xff]
        %v4344 = vld [vmem:[#allocation2 + $0x210] sm:$0xff]
        %v4345 = vld [vmem:[#allocation2 + $0x218] sm:$0xff]
        %v4346 = vld [vmem:[#allocation2 + $0x220] sm:$0xff]
        %v4347 = vld [vmem:[#allocation2 + $0x228] sm:$0xff]
        %v4348 = vld [vmem:[#allocation2 + $0x230] sm:$0xff]
        %v4349 = vld [vmem:[#allocation2 + $0x238] sm:$0xff]
        %v4350 = vld [vmem:[#allocation2 + $0x240] sm:$0xff]
        %v4351 = vld [vmem:[#allocation2 + $0x248] sm:$0xff]
        %v4352 = vld [vmem:[#allocation2 + $0x250] sm:$0xff]
        %v4353 = vld [vmem:[#allocation2 + $0x258] sm:$0xff]
        %v4354 = vld [vmem:[#allocation2 + $0x260] sm:$0xff]
        %v4355 = vld [vmem:[#allocation2 + $0x268] sm:$0xff]
        %v4356 = vld [vmem:[#allocation2 + $0x270] sm:$0xff]
        %v4357 = vld [vmem:[#allocation2 + $0x278] sm:$0xff]
        %v4358 = vld [vmem:[#allocation2 + $0x280] sm:$0xff]
        %v4359 = vld [vmem:[#allocation2 + $0x288] sm:$0xff]
        %v4360 = vld [vmem:[#allocation2 + $0x290] sm:$0xff]
        %v4361 = vld [vmem:[#allocation2 + $0x298] sm:$0xff]
        %v4362 = vld [vmem:[#allocation2 + $0x2a0] sm:$0xff]
        %v4363 = vld [vmem:[#allocation2 + $0x2a8] sm:$0xff]
        %v4364 = vld [vmem:[#allocation2 + $0x2b0] sm:$0xff]
        %v4365 = vld [vmem:[#allocation2 + $0x2b8] sm:$0xff]
        %v4366 = vld [vmem:[#allocation2 + $0x2c0] sm:$0xff]
        %v4367 = vld [vmem:[#allocation2 + $0x2c8] sm:$0xff]
        %v4368 = vld [vmem:[#allocation2 + $0x2d0] sm:$0xff]
        %v4369 = vld [vmem:[#allocation2 + $0x2d8] sm:$0xff]
        %v4370 = vld [vmem:[#allocation2 + $0x2e0] sm:$0xff]
        %v4371 = vld [vmem:[#allocation2 + $0x2e8] sm:$0xff]
        %v4372 = vld [vmem:[#allocation2 + $0x2f0] sm:$0xff]
        %v4373 = vld [vmem:[#allocation2 + $0x2f8] sm:$0xff]
        %v4374 = vld [vmem:[#allocation2 + $0x300] sm:$0xff]
        %v4375 = vld [vmem:[#allocation2 + $0x308] sm:$0xff]
        %v4376 = vld [vmem:[#allocation2 + $0x310] sm:$0xff]
        %v4377 = vld [vmem:[#allocation2 + $0x318] sm:$0xff]
        %v4378 = vld [vmem:[#allocation2 + $0x320] sm:$0xff]
        %v4379 = vld [vmem:[#allocation2 + $0x328] sm:$0xff]
        %v4380 = vld [vmem:[#allocation2 + $0x330] sm:$0xff]
        %v4381 = vld [vmem:[#allocation2 + $0x338] sm:$0xff]
        %v4382 = vld [vmem:[#allocation2 + $0x340] sm:$0xff]
        %v4383 = vld [vmem:[#allocation2 + $0x348] sm:$0xff]
        %v4384 = vld [vmem:[#allocation2 + $0x350] sm:$0xff]
        %v4385 = vld [vmem:[#allocation2 + $0x358] sm:$0xff]
        %v4386 = vld [vmem:[#allocation2 + $0x360] sm:$0xff]
        %v4387 = vld [vmem:[#allocation2 + $0x368] sm:$0xff]
        %v4388 = vld [vmem:[#allocation2 + $0x370] sm:$0xff]
        %v4389 = vld [vmem:[#allocation2 + $0x378] sm:$0xff]
        %v4390 = vld [vmem:[#allocation2 + $0x380] sm:$0xff]
        %v4391 = vld [vmem:[#allocation2 + $0x388] sm:$0xff]
        %v4392 = vld [vmem:[#allocation2 + $0x390] sm:$0xff]
        %v4393 = vld [vmem:[#allocation2 + $0x398] sm:$0xff]
        %v4394 = vld [vmem:[#allocation2 + $0x3a0] sm:$0xff]
        %v4395 = vld [vmem:[#allocation2 + $0x3a8] sm:$0xff]
        %v4396 = vld [vmem:[#allocation2 + $0x3b0] sm:$0xff]
        %v4397 = vld [vmem:[#allocation2 + $0x3b8] sm:$0xff]
        %v4398 = vld [vmem:[#allocation2 + $0x3c0] sm:$0xff]
        %v4399 = vld [vmem:[#allocation2 + $0x3c8] sm:$0xff]
        %v4400 = vld [vmem:[#allocation2 + $0x3d0] sm:$0xff]
        %v4401 = vld [vmem:[#allocation2 + $0x3d8] sm:$0xff]
        %v4402 = vld [vmem:[#allocation2 + $0x3e0] sm:$0xff]
        %v4403 = vld [vmem:[#allocation2 + $0x3e8] sm:$0xff]
        %v4404 = vld [vmem:[#allocation2 + $0x3f0] sm:$0xff]
        %v4405 = vld [vmem:[#allocation2 + $0x3f8] sm:$0xff]
        %4406 = vst [vmem:[%s725] sm:$0xff] %v4278
        %4407 = vst [vmem:[%s725 + $0x8] sm:$0xff] %v4279
        %4408 = vst [vmem:[%s725 + $0x10] sm:$0xff] %v4280
        %4409 = vst [vmem:[%s725 + $0x18] sm:$0xff] %v4281
        %4410 = vst [vmem:[%s725 + $0x20] sm:$0xff] %v4282
        %4411 = vst [vmem:[%s725 + $0x28] sm:$0xff] %v4283
        %4412 = vst [vmem:[%s725 + $0x30] sm:$0xff] %v4284
        %4413 = vst [vmem:[%s725 + $0x38] sm:$0xff] %v4285
        %4414 = vst [vmem:[%s725 + $0x40] sm:$0xff] %v4286
        %4415 = vst [vmem:[%s725 + $0x48] sm:$0xff] %v4287
        %4416 = vst [vmem:[%s725 + $0x50] sm:$0xff] %v4288
        %4417 = vst [vmem:[%s725 + $0x58] sm:$0xff] %v4289
        %4418 = vst [vmem:[%s725 + $0x60] sm:$0xff] %v4290
        %4419 = vst [vmem:[%s725 + $0x68] sm:$0xff] %v4291
        %4420 = vst [vmem:[%s725 + $0x70] sm:$0xff] %v4292
        %4421 = vst [vmem:[%s725 + $0x78] sm:$0xff] %v4293
        %4422 = vst [vmem:[%s725 + $0x80] sm:$0xff] %v4294
        %4423 = vst [vmem:[%s725 + $0x88] sm:$0xff] %v4295
        %4424 = vst [vmem:[%s725 + $0x90] sm:$0xff] %v4296
        %4425 = vst [vmem:[%s725 + $0x98] sm:$0xff] %v4297
        %4426 = vst [vmem:[%s725 + $0xa0] sm:$0xff] %v4298
        %4427 = vst [vmem:[%s725 + $0xa8] sm:$0xff] %v4299
        %4428 = vst [vmem:[%s725 + $0xb0] sm:$0xff] %v4300
        %4429 = vst [vmem:[%s725 + $0xb8] sm:$0xff] %v4301
        %4430 = vst [vmem:[%s725 + $0xc0] sm:$0xff] %v4302
        %4431 = vst [vmem:[%s725 + $0xc8] sm:$0xff] %v4303
        %4432 = vst [vmem:[%s725 + $0xd0] sm:$0xff] %v4304
        %4433 = vst [vmem:[%s725 + $0xd8] sm:$0xff] %v4305
        %4434 = vst [vmem:[%s725 + $0xe0] sm:$0xff] %v4306
        %4435 = vst [vmem:[%s725 + $0xe8] sm:$0xff] %v4307
        %4436 = vst [vmem:[%s725 + $0xf0] sm:$0xff] %v4308
        %4437 = vst [vmem:[%s725 + $0xf8] sm:$0xff] %v4309
        %4438 = vst [vmem:[%s725 + $0x100] sm:$0xff] %v4310
        %4439 = vst [vmem:[%s725 + $0x108] sm:$0xff] %v4311
        %4440 = vst [vmem:[%s725 + $0x110] sm:$0xff] %v4312
        %4441 = vst [vmem:[%s725 + $0x118] sm:$0xff] %v4313
        %4442 = vst [vmem:[%s725 + $0x120] sm:$0xff] %v4314
        %4443 = vst [vmem:[%s725 + $0x128] sm:$0xff] %v4315
        %4444 = vst [vmem:[%s725 + $0x130] sm:$0xff] %v4316
        %4445 = vst [vmem:[%s725 + $0x138] sm:$0xff] %v4317
        %4446 = vst [vmem:[%s725 + $0x140] sm:$0xff] %v4318
        %4447 = vst [vmem:[%s725 + $0x148] sm:$0xff] %v4319
        %4448 = vst [vmem:[%s725 + $0x150] sm:$0xff] %v4320
        %4449 = vst [vmem:[%s725 + $0x158] sm:$0xff] %v4321
        %4450 = vst [vmem:[%s725 + $0x160] sm:$0xff] %v4322
        %4451 = vst [vmem:[%s725 + $0x168] sm:$0xff] %v4323
        %4452 = vst [vmem:[%s725 + $0x170] sm:$0xff] %v4324
        %4453 = vst [vmem:[%s725 + $0x178] sm:$0xff] %v4325
        %4454 = vst [vmem:[%s725 + $0x180] sm:$0xff] %v4326
        %4455 = vst [vmem:[%s725 + $0x188] sm:$0xff] %v4327
        %4456 = vst [vmem:[%s725 + $0x190] sm:$0xff] %v4328
        %4457 = vst [vmem:[%s725 + $0x198] sm:$0xff] %v4329
        %4458 = vst [vmem:[%s725 + $0x1a0] sm:$0xff] %v4330
        %4459 = vst [vmem:[%s725 + $0x1a8] sm:$0xff] %v4331
        %4460 = vst [vmem:[%s725 + $0x1b0] sm:$0xff] %v4332
        %4461 = vst [vmem:[%s725 + $0x1b8] sm:$0xff] %v4333
        %4462 = vst [vmem:[%s725 + $0x1c0] sm:$0xff] %v4334
        %4463 = vst [vmem:[%s725 + $0x1c8] sm:$0xff] %v4335
        %4464 = vst [vmem:[%s725 + $0x1d0] sm:$0xff] %v4336
        %4465 = vst [vmem:[%s725 + $0x1d8] sm:$0xff] %v4337
        %4466 = vst [vmem:[%s725 + $0x1e0] sm:$0xff] %v4338
        %4467 = vst [vmem:[%s725 + $0x1e8] sm:$0xff] %v4339
        %4468 = vst [vmem:[%s725 + $0x1f0] sm:$0xff] %v4340
        %4469 = vst [vmem:[%s725 + $0x1f8] sm:$0xff] %v4341
        %4470 = vst [vmem:[%s725 + $0x200] sm:$0xff] %v4342
        %4471 = vst [vmem:[%s725 + $0x208] sm:$0xff] %v4343
        %4472 = vst [vmem:[%s725 + $0x210] sm:$0xff] %v4344
        %4473 = vst [vmem:[%s725 + $0x218] sm:$0xff] %v4345
        %4474 = vst [vmem:[%s725 + $0x220] sm:$0xff] %v4346
        %4475 = vst [vmem:[%s725 + $0x228] sm:$0xff] %v4347
        %4476 = vst [vmem:[%s725 + $0x230] sm:$0xff] %v4348
        %4477 = vst [vmem:[%s725 + $0x238] sm:$0xff] %v4349
        %4478 = vst [vmem:[%s725 + $0x240] sm:$0xff] %v4350
        %4479 = vst [vmem:[%s725 + $0x248] sm:$0xff] %v4351
        %4480 = vst [vmem:[%s725 + $0x250] sm:$0xff] %v4352
        %4481 = vst [vmem:[%s725 + $0x258] sm:$0xff] %v4353
        %4482 = vst [vmem:[%s725 + $0x260] sm:$0xff] %v4354
        %4483 = vst [vmem:[%s725 + $0x268] sm:$0xff] %v4355
        %4484 = vst [vmem:[%s725 + $0x270] sm:$0xff] %v4356
        %4485 = vst [vmem:[%s725 + $0x278] sm:$0xff] %v4357
        %4486 = vst [vmem:[%s725 + $0x280] sm:$0xff] %v4358
        %4487 = vst [vmem:[%s725 + $0x288] sm:$0xff] %v4359
        %4488 = vst [vmem:[%s725 + $0x290] sm:$0xff] %v4360
        %4489 = vst [vmem:[%s725 + $0x298] sm:$0xff] %v4361
        %4490 = vst [vmem:[%s725 + $0x2a0] sm:$0xff] %v4362
        %4491 = vst [vmem:[%s725 + $0x2a8] sm:$0xff] %v4363
        %4492 = vst [vmem:[%s725 + $0x2b0] sm:$0xff] %v4364
        %4493 = vst [vmem:[%s725 + $0x2b8] sm:$0xff] %v4365
        %4494 = vst [vmem:[%s725 + $0x2c0] sm:$0xff] %v4366
        %4495 = vst [vmem:[%s725 + $0x2c8] sm:$0xff] %v4367
        %4496 = vst [vmem:[%s725 + $0x2d0] sm:$0xff] %v4368
        %4497 = vst [vmem:[%s725 + $0x2d8] sm:$0xff] %v4369
        %4498 = vst [vmem:[%s725 + $0x2e0] sm:$0xff] %v4370
        %4499 = vst [vmem:[%s725 + $0x2e8] sm:$0xff] %v4371
        %4500 = vst [vmem:[%s725 + $0x2f0] sm:$0xff] %v4372
        %4501 = vst [vmem:[%s725 + $0x2f8] sm:$0xff] %v4373
        %4502 = vst [vmem:[%s725 + $0x300] sm:$0xff] %v4374
        %4503 = vst [vmem:[%s725 + $0x308] sm:$0xff] %v4375
        %4504 = vst [vmem:[%s725 + $0x310] sm:$0xff] %v4376
        %4505 = vst [vmem:[%s725 + $0x318] sm:$0xff] %v4377
        %4506 = vst [vmem:[%s725 + $0x320] sm:$0xff] %v4378
        %4507 = vst [vmem:[%s725 + $0x328] sm:$0xff] %v4379
        %4508 = vst [vmem:[%s725 + $0x330] sm:$0xff] %v4380
        %4509 = vst [vmem:[%s725 + $0x338] sm:$0xff] %v4381
        %4510 = vst [vmem:[%s725 + $0x340] sm:$0xff] %v4382
        %4511 = vst [vmem:[%s725 + $0x348] sm:$0xff] %v4383
        %4512 = vst [vmem:[%s725 + $0x350] sm:$0xff] %v4384
        %4513 = vst [vmem:[%s725 + $0x358] sm:$0xff] %v4385
        %4514 = vst [vmem:[%s725 + $0x360] sm:$0xff] %v4386
        %4515 = vst [vmem:[%s725 + $0x368] sm:$0xff] %v4387
        %4516 = vst [vmem:[%s725 + $0x370] sm:$0xff] %v4388
        %4517 = vst [vmem:[%s725 + $0x378] sm:$0xff] %v4389
        %4518 = vst [vmem:[%s725 + $0x380] sm:$0xff] %v4390
        %4519 = vst [vmem:[%s725 + $0x388] sm:$0xff] %v4391
        %4520 = vst [vmem:[%s725 + $0x390] sm:$0xff] %v4392
        %4521 = vst [vmem:[%s725 + $0x398] sm:$0xff] %v4393
        %4522 = vst [vmem:[%s725 + $0x3a0] sm:$0xff] %v4394
        %4523 = vst [vmem:[%s725 + $0x3a8] sm:$0xff] %v4395
        %4524 = vst [vmem:[%s725 + $0x3b0] sm:$0xff] %v4396
        %4525 = vst [vmem:[%s725 + $0x3b8] sm:$0xff] %v4397
        %4526 = vst [vmem:[%s725 + $0x3c0] sm:$0xff] %v4398
        %4527 = vst [vmem:[%s725 + $0x3c8] sm:$0xff] %v4399
        %4528 = vst [vmem:[%s725 + $0x3d0] sm:$0xff] %v4400
        %4529 = vst [vmem:[%s725 + $0x3d8] sm:$0xff] %v4401
        %4530 = vst [vmem:[%s725 + $0x3e0] sm:$0xff] %v4402
        %4531 = vst [vmem:[%s725 + $0x3e8] sm:$0xff] %v4403
        %4532 = vst [vmem:[%s725 + $0x3f0] sm:$0xff] %v4404
        %4533 = vst [vmem:[%s725 + $0x3f8] sm:$0xff] %v4405
        %s4534 = sand.u32 %s106, 1
        %s4535 = sand.u32 %s106, 1
        %s4536 = smul.addr %s4535, 1024
        %s4537 = scalar_lea.vmem [#allocation4], %s4536
        // Predicated region
        $region71: #{spatiotemporal_conv_nobnr.3} parent=65 // pred_check
          %p4538 = pneg %p116
        $region72: #{spatiotemporal_conv_nobnr.3} parent=65 // pred_check_branch
          %4540 = sbr.rel (%p4538) target = $region74
        $region73: #{spatiotemporal_conv_nobnr.3} parent=65 // pred_region
          %s4541 = smul.u32 16, %s19
          %s4542 = smul.addr %s18, 256
          %s4543 = sadd.s32 %s4541, %s4542
          %s4544 = smul.addr %s4543, 8
          %s4545 = scalar_lea.vmem %s3, %s4544
          // Predicated region
          $region75: #{spatiotemporal_conv_nobnr.3} parent=73 // pred_check
            _
          $region76: #{spatiotemporal_conv_nobnr.3} parent=73 // pred_check_branch
            %4547 = sbr.rel (0) target = $region78
          $region77: #{spatiotemporal_conv_nobnr.3} parent=73 // pred_region
            // Predicated region
            $region79: #{spatiotemporal_conv_nobnr.3} parent=77 // pred_check
              _
            $region80: #{spatiotemporal_conv_nobnr.3} parent=77 // pred_check_branch
              %4549 = sbr.rel (0) target = $region82
            $region81: #{spatiotemporal_conv_nobnr.3} parent=77 // pred_region
              // Predicated region
              $region94: #{spatiotemporal_conv_nobnr.3} parent=81 // pred_check
                _
              $region95: #{spatiotemporal_conv_nobnr.3} parent=81 // pred_check_branch
                %4818 = sbr.rel (0) target = $region97
              $region96: #{spatiotemporal_conv_nobnr.3} parent=81 // pred_region
                loop: start=0, step=1, limit=1
                $region98: #{spatiotemporal_conv_nobnr.3} parent=96 // loop_pre_header
                  _
                $region99: #{spatiotemporal_conv_nobnr.3} parent=96 // loop_header
                  %s4820 = sphi 0, %s4824
                  %p4821 = scmp.ge.s32.totalorder %s4820, 1
                  %s4825 = sphi %s4537, %s4537
                  %s4826 = sphi %s4545, %s4545
                $region100: #{spatiotemporal_conv_nobnr.3} parent=96 // loop_header_branch
                  %4823 = sbr.rel (%p4821) target = $region104
                $region101: #{spatiotemporal_conv_nobnr.3} parent=96 // loop_body
                  %v4827 = vld [vmem:[%s4825] sm:$0xff]
                  %4828 = vst [vmem:[%s4826] sm:$0xff] %v4827
                  %v4829 = vld [vmem:[%s4825 + $0x8] sm:$0xff]
                  %4830 = vst [vmem:[%s4826 + $0x8] sm:$0xff] %v4829
                  %v4831 = vld [vmem:[%s4825 + $0x10] sm:$0xff]
                  %4832 = vst [vmem:[%s4826 + $0x10] sm:$0xff] %v4831
                  %v4833 = vld [vmem:[%s4825 + $0x18] sm:$0xff]
                  %4834 = vst [vmem:[%s4826 + $0x18] sm:$0xff] %v4833
                  %v4835 = vld [vmem:[%s4825 + $0x20] sm:$0xff]
                  %4836 = vst [vmem:[%s4826 + $0x20] sm:$0xff] %v4835
                  %v4837 = vld [vmem:[%s4825 + $0x28] sm:$0xff]
                  %4838 = vst [vmem:[%s4826 + $0x28] sm:$0xff] %v4837
                  %v4839 = vld [vmem:[%s4825 + $0x30] sm:$0xff]
                  %4840 = vst [vmem:[%s4826 + $0x30] sm:$0xff] %v4839
                  %v4841 = vld [vmem:[%s4825 + $0x38] sm:$0xff]
                  %4842 = vst [vmem:[%s4826 + $0x38] sm:$0xff] %v4841
                  %v4843 = vld [vmem:[%s4825 + $0x40] sm:$0xff]
                  %4844 = vst [vmem:[%s4826 + $0x40] sm:$0xff] %v4843
                  %v4845 = vld [vmem:[%s4825 + $0x48] sm:$0xff]
                  %4846 = vst [vmem:[%s4826 + $0x48] sm:$0xff] %v4845
                  %v4847 = vld [vmem:[%s4825 + $0x50] sm:$0xff]
                  %4848 = vst [vmem:[%s4826 + $0x50] sm:$0xff] %v4847
                  %v4849 = vld [vmem:[%s4825 + $0x58] sm:$0xff]
                  %4850 = vst [vmem:[%s4826 + $0x58] sm:$0xff] %v4849
                  %v4851 = vld [vmem:[%s4825 + $0x60] sm:$0xff]
                  %4852 = vst [vmem:[%s4826 + $0x60] sm:$0xff] %v4851
                  %v4853 = vld [vmem:[%s4825 + $0x68] sm:$0xff]
                  %4854 = vst [vmem:[%s4826 + $0x68] sm:$0xff] %v4853
                  %v4855 = vld [vmem:[%s4825 + $0x70] sm:$0xff]
                  %4856 = vst [vmem:[%s4826 + $0x70] sm:$0xff] %v4855
                  %v4857 = vld [vmem:[%s4825 + $0x78] sm:$0xff]
                  %4858 = vst [vmem:[%s4826 + $0x78] sm:$0xff] %v4857
                  %v4859 = vld [vmem:[%s4825 + $0x80] sm:$0xff]
                  %4860 = vst [vmem:[%s4826 + $0x100] sm:$0xff] %v4859
                  %v4861 = vld [vmem:[%s4825 + $0x88] sm:$0xff]
                  %4862 = vst [vmem:[%s4826 + $0x108] sm:$0xff] %v4861
                  %v4863 = vld [vmem:[%s4825 + $0x90] sm:$0xff]
                  %4864 = vst [vmem:[%s4826 + $0x110] sm:$0xff] %v4863
                  %v4865 = vld [vmem:[%s4825 + $0x98] sm:$0xff]
                  %4866 = vst [vmem:[%s4826 + $0x118] sm:$0xff] %v4865
                  %v4867 = vld [vmem:[%s4825 + $0xa0] sm:$0xff]
                  %4868 = vst [vmem:[%s4826 + $0x120] sm:$0xff] %v4867
                  %v4869 = vld [vmem:[%s4825 + $0xa8] sm:$0xff]
                  %4870 = vst [vmem:[%s4826 + $0x128] sm:$0xff] %v4869
                  %v4871 = vld [vmem:[%s4825 + $0xb0] sm:$0xff]
                  %4872 = vst [vmem:[%s4826 + $0x130] sm:$0xff] %v4871
                  %v4873 = vld [vmem:[%s4825 + $0xb8] sm:$0xff]
                  %4874 = vst [vmem:[%s4826 + $0x138] sm:$0xff] %v4873
                  %v4875 = vld [vmem:[%s4825 + $0xc0] sm:$0xff]
                  %4876 = vst [vmem:[%s4826 + $0x140] sm:$0xff] %v4875
                  %v4877 = vld [vmem:[%s4825 + $0xc8] sm:$0xff]
                  %4878 = vst [vmem:[%s4826 + $0x148] sm:$0xff] %v4877
                  %v4879 = vld [vmem:[%s4825 + $0xd0] sm:$0xff]
                  %4880 = vst [vmem:[%s4826 + $0x150] sm:$0xff] %v4879
                  %v4881 = vld [vmem:[%s4825 + $0xd8] sm:$0xff]
                  %4882 = vst [vmem:[%s4826 + $0x158] sm:$0xff] %v4881
                  %v4883 = vld [vmem:[%s4825 + $0xe0] sm:$0xff]
                  %4884 = vst [vmem:[%s4826 + $0x160] sm:$0xff] %v4883
                  %v4885 = vld [vmem:[%s4825 + $0xe8] sm:$0xff]
                  %4886 = vst [vmem:[%s4826 + $0x168] sm:$0xff] %v4885
                  %v4887 = vld [vmem:[%s4825 + $0xf0] sm:$0xff]
                  %4888 = vst [vmem:[%s4826 + $0x170] sm:$0xff] %v4887
                  %v4889 = vld [vmem:[%s4825 + $0xf8] sm:$0xff]
                  %4890 = vst [vmem:[%s4826 + $0x178] sm:$0xff] %v4889
                  %v4891 = vld [vmem:[%s4825 + $0x100] sm:$0xff]
                  %4892 = vst [vmem:[%s4826 + $0x200] sm:$0xff] %v4891
                  %v4893 = vld [vmem:[%s4825 + $0x108] sm:$0xff]
                  %4894 = vst [vmem:[%s4826 + $0x208] sm:$0xff] %v4893
                  %v4895 = vld [vmem:[%s4825 + $0x110] sm:$0xff]
                  %4896 = vst [vmem:[%s4826 + $0x210] sm:$0xff] %v4895
                  %v4897 = vld [vmem:[%s4825 + $0x118] sm:$0xff]
                  %4898 = vst [vmem:[%s4826 + $0x218] sm:$0xff] %v4897
                  %v4899 = vld [vmem:[%s4825 + $0x120] sm:$0xff]
                  %4900 = vst [vmem:[%s4826 + $0x220] sm:$0xff] %v4899
                  %v4901 = vld [vmem:[%s4825 + $0x128] sm:$0xff]
                  %4902 = vst [vmem:[%s4826 + $0x228] sm:$0xff] %v4901
                  %v4903 = vld [vmem:[%s4825 + $0x130] sm:$0xff]
                  %4904 = vst [vmem:[%s4826 + $0x230] sm:$0xff] %v4903
                  %v4905 = vld [vmem:[%s4825 + $0x138] sm:$0xff]
                  %4906 = vst [vmem:[%s4826 + $0x238] sm:$0xff] %v4905
                  %v4907 = vld [vmem:[%s4825 + $0x140] sm:$0xff]
                  %4908 = vst [vmem:[%s4826 + $0x240] sm:$0xff] %v4907
                  %v4909 = vld [vmem:[%s4825 + $0x148] sm:$0xff]
                  %4910 = vst [vmem:[%s4826 + $0x248] sm:$0xff] %v4909
                  %v4911 = vld [vmem:[%s4825 + $0x150] sm:$0xff]
                  %4912 = vst [vmem:[%s4826 + $0x250] sm:$0xff] %v4911
                  %v4913 = vld [vmem:[%s4825 + $0x158] sm:$0xff]
                  %4914 = vst [vmem:[%s4826 + $0x258] sm:$0xff] %v4913
                  %v4915 = vld [vmem:[%s4825 + $0x160] sm:$0xff]
                  %4916 = vst [vmem:[%s4826 + $0x260] sm:$0xff] %v4915
                  %v4917 = vld [vmem:[%s4825 + $0x168] sm:$0xff]
                  %4918 = vst [vmem:[%s4826 + $0x268] sm:$0xff] %v4917
                  %v4919 = vld [vmem:[%s4825 + $0x170] sm:$0xff]
                  %4920 = vst [vmem:[%s4826 + $0x270] sm:$0xff] %v4919
                  %v4921 = vld [vmem:[%s4825 + $0x178] sm:$0xff]
                  %4922 = vst [vmem:[%s4826 + $0x278] sm:$0xff] %v4921
                  %v4923 = vld [vmem:[%s4825 + $0x180] sm:$0xff]
                  %4924 = vst [vmem:[%s4826 + $0x300] sm:$0xff] %v4923
                  %v4925 = vld [vmem:[%s4825 + $0x188] sm:$0xff]
                  %4926 = vst [vmem:[%s4826 + $0x308] sm:$0xff] %v4925
                  %v4927 = vld [vmem:[%s4825 + $0x190] sm:$0xff]
                  %4928 = vst [vmem:[%s4826 + $0x310] sm:$0xff] %v4927
                  %v4929 = vld [vmem:[%s4825 + $0x198] sm:$0xff]
                  %4930 = vst [vmem:[%s4826 + $0x318] sm:$0xff] %v4929
                  %v4931 = vld [vmem:[%s4825 + $0x1a0] sm:$0xff]
                  %4932 = vst [vmem:[%s4826 + $0x320] sm:$0xff] %v4931
                  %v4933 = vld [vmem:[%s4825 + $0x1a8] sm:$0xff]
                  %4934 = vst [vmem:[%s4826 + $0x328] sm:$0xff] %v4933
                  %v4935 = vld [vmem:[%s4825 + $0x1b0] sm:$0xff]
                  %4936 = vst [vmem:[%s4826 + $0x330] sm:$0xff] %v4935
                  %v4937 = vld [vmem:[%s4825 + $0x1b8] sm:$0xff]
                  %4938 = vst [vmem:[%s4826 + $0x338] sm:$0xff] %v4937
                  %v4939 = vld [vmem:[%s4825 + $0x1c0] sm:$0xff]
                  %4940 = vst [vmem:[%s4826 + $0x340] sm:$0xff] %v4939
                  %v4941 = vld [vmem:[%s4825 + $0x1c8] sm:$0xff]
                  %4942 = vst [vmem:[%s4826 + $0x348] sm:$0xff] %v4941
                  %v4943 = vld [vmem:[%s4825 + $0x1d0] sm:$0xff]
                  %4944 = vst [vmem:[%s4826 + $0x350] sm:$0xff] %v4943
                  %v4945 = vld [vmem:[%s4825 + $0x1d8] sm:$0xff]
                  %4946 = vst [vmem:[%s4826 + $0x358] sm:$0xff] %v4945
                  %v4947 = vld [vmem:[%s4825 + $0x1e0] sm:$0xff]
                  %4948 = vst [vmem:[%s4826 + $0x360] sm:$0xff] %v4947
                  %v4949 = vld [vmem:[%s4825 + $0x1e8] sm:$0xff]
                  %4950 = vst [vmem:[%s4826 + $0x368] sm:$0xff] %v4949
                  %v4951 = vld [vmem:[%s4825 + $0x1f0] sm:$0xff]
                  %4952 = vst [vmem:[%s4826 + $0x370] sm:$0xff] %v4951
                  %v4953 = vld [vmem:[%s4825 + $0x1f8] sm:$0xff]
                  %4954 = vst [vmem:[%s4826 + $0x378] sm:$0xff] %v4953
                  %v4955 = vld [vmem:[%s4825 + $0x200] sm:$0xff]
                  %4956 = vst [vmem:[%s4826 + $0x400] sm:$0xff] %v4955
                  %v4957 = vld [vmem:[%s4825 + $0x208] sm:$0xff]
                  %4958 = vst [vmem:[%s4826 + $0x408] sm:$0xff] %v4957
                  %v4959 = vld [vmem:[%s4825 + $0x210] sm:$0xff]
                  %4960 = vst [vmem:[%s4826 + $0x410] sm:$0xff] %v4959
                  %v4961 = vld [vmem:[%s4825 + $0x218] sm:$0xff]
                  %4962 = vst [vmem:[%s4826 + $0x418] sm:$0xff] %v4961
                  %v4963 = vld [vmem:[%s4825 + $0x220] sm:$0xff]
                  %4964 = vst [vmem:[%s4826 + $0x420] sm:$0xff] %v4963
                  %v4965 = vld [vmem:[%s4825 + $0x228] sm:$0xff]
                  %4966 = vst [vmem:[%s4826 + $0x428] sm:$0xff] %v4965
                  %v4967 = vld [vmem:[%s4825 + $0x230] sm:$0xff]
                  %4968 = vst [vmem:[%s4826 + $0x430] sm:$0xff] %v4967
                  %v4969 = vld [vmem:[%s4825 + $0x238] sm:$0xff]
                  %4970 = vst [vmem:[%s4826 + $0x438] sm:$0xff] %v4969
                  %v4971 = vld [vmem:[%s4825 + $0x240] sm:$0xff]
                  %4972 = vst [vmem:[%s4826 + $0x440] sm:$0xff] %v4971
                  %v4973 = vld [vmem:[%s4825 + $0x248] sm:$0xff]
                  %4974 = vst [vmem:[%s4826 + $0x448] sm:$0xff] %v4973
                  %v4975 = vld [vmem:[%s4825 + $0x250] sm:$0xff]
                  %4976 = vst [vmem:[%s4826 + $0x450] sm:$0xff] %v4975
                  %v4977 = vld [vmem:[%s4825 + $0x258] sm:$0xff]
                  %4978 = vst [vmem:[%s4826 + $0x458] sm:$0xff] %v4977
                  %v4979 = vld [vmem:[%s4825 + $0x260] sm:$0xff]
                  %4980 = vst [vmem:[%s4826 + $0x460] sm:$0xff] %v4979
                  %v4981 = vld [vmem:[%s4825 + $0x268] sm:$0xff]
                  %4982 = vst [vmem:[%s4826 + $0x468] sm:$0xff] %v4981
                  %v4983 = vld [vmem:[%s4825 + $0x270] sm:$0xff]
                  %4984 = vst [vmem:[%s4826 + $0x470] sm:$0xff] %v4983
                  %v4985 = vld [vmem:[%s4825 + $0x278] sm:$0xff]
                  %4986 = vst [vmem:[%s4826 + $0x478] sm:$0xff] %v4985
                  %v4987 = vld [vmem:[%s4825 + $0x280] sm:$0xff]
                  %4988 = vst [vmem:[%s4826 + $0x500] sm:$0xff] %v4987
                  %v4989 = vld [vmem:[%s4825 + $0x288] sm:$0xff]
                  %4990 = vst [vmem:[%s4826 + $0x508] sm:$0xff] %v4989
                  %v4991 = vld [vmem:[%s4825 + $0x290] sm:$0xff]
                  %4992 = vst [vmem:[%s4826 + $0x510] sm:$0xff] %v4991
                  %v4993 = vld [vmem:[%s4825 + $0x298] sm:$0xff]
                  %4994 = vst [vmem:[%s4826 + $0x518] sm:$0xff] %v4993
                  %v4995 = vld [vmem:[%s4825 + $0x2a0] sm:$0xff]
                  %4996 = vst [vmem:[%s4826 + $0x520] sm:$0xff] %v4995
                  %v4997 = vld [vmem:[%s4825 + $0x2a8] sm:$0xff]
                  %4998 = vst [vmem:[%s4826 + $0x528] sm:$0xff] %v4997
                  %v4999 = vld [vmem:[%s4825 + $0x2b0] sm:$0xff]
                  %5000 = vst [vmem:[%s4826 + $0x530] sm:$0xff] %v4999
                  %v5001 = vld [vmem:[%s4825 + $0x2b8] sm:$0xff]
                  %5002 = vst [vmem:[%s4826 + $0x538] sm:$0xff] %v5001
                  %v5003 = vld [vmem:[%s4825 + $0x2c0] sm:$0xff]
                  %5004 = vst [vmem:[%s4826 + $0x540] sm:$0xff] %v5003
                  %v5005 = vld [vmem:[%s4825 + $0x2c8] sm:$0xff]
                  %5006 = vst [vmem:[%s4826 + $0x548] sm:$0xff] %v5005
                  %v5007 = vld [vmem:[%s4825 + $0x2d0] sm:$0xff]
                  %5008 = vst [vmem:[%s4826 + $0x550] sm:$0xff] %v5007
                  %v5009 = vld [vmem:[%s4825 + $0x2d8] sm:$0xff]
                  %5010 = vst [vmem:[%s4826 + $0x558] sm:$0xff] %v5009
                  %v5011 = vld [vmem:[%s4825 + $0x2e0] sm:$0xff]
                  %5012 = vst [vmem:[%s4826 + $0x560] sm:$0xff] %v5011
                  %v5013 = vld [vmem:[%s4825 + $0x2e8] sm:$0xff]
                  %5014 = vst [vmem:[%s4826 + $0x568] sm:$0xff] %v5013
                  %v5015 = vld [vmem:[%s4825 + $0x2f0] sm:$0xff]
                  %5016 = vst [vmem:[%s4826 + $0x570] sm:$0xff] %v5015
                  %v5017 = vld [vmem:[%s4825 + $0x2f8] sm:$0xff]
                  %5018 = vst [vmem:[%s4826 + $0x578] sm:$0xff] %v5017
                  %v5019 = vld [vmem:[%s4825 + $0x300] sm:$0xff]
                  %5020 = vst [vmem:[%s4826 + $0x600] sm:$0xff] %v5019
                  %v5021 = vld [vmem:[%s4825 + $0x308] sm:$0xff]
                  %5022 = vst [vmem:[%s4826 + $0x608] sm:$0xff] %v5021
                  %v5023 = vld [vmem:[%s4825 + $0x310] sm:$0xff]
                  %5024 = vst [vmem:[%s4826 + $0x610] sm:$0xff] %v5023
                  %v5025 = vld [vmem:[%s4825 + $0x318] sm:$0xff]
                  %5026 = vst [vmem:[%s4826 + $0x618] sm:$0xff] %v5025
                  %v5027 = vld [vmem:[%s4825 + $0x320] sm:$0xff]
                  %5028 = vst [vmem:[%s4826 + $0x620] sm:$0xff] %v5027
                  %v5029 = vld [vmem:[%s4825 + $0x328] sm:$0xff]
                  %5030 = vst [vmem:[%s4826 + $0x628] sm:$0xff] %v5029
                  %v5031 = vld [vmem:[%s4825 + $0x330] sm:$0xff]
                  %5032 = vst [vmem:[%s4826 + $0x630] sm:$0xff] %v5031
                  %v5033 = vld [vmem:[%s4825 + $0x338] sm:$0xff]
                  %5034 = vst [vmem:[%s4826 + $0x638] sm:$0xff] %v5033
                  %v5035 = vld [vmem:[%s4825 + $0x340] sm:$0xff]
                  %5036 = vst [vmem:[%s4826 + $0x640] sm:$0xff] %v5035
                  %v5037 = vld [vmem:[%s4825 + $0x348] sm:$0xff]
                  %5038 = vst [vmem:[%s4826 + $0x648] sm:$0xff] %v5037
                  %v5039 = vld [vmem:[%s4825 + $0x350] sm:$0xff]
                  %5040 = vst [vmem:[%s4826 + $0x650] sm:$0xff] %v5039
                  %v5041 = vld [vmem:[%s4825 + $0x358] sm:$0xff]
                  %5042 = vst [vmem:[%s4826 + $0x658] sm:$0xff] %v5041
                  %v5043 = vld [vmem:[%s4825 + $0x360] sm:$0xff]
                  %5044 = vst [vmem:[%s4826 + $0x660] sm:$0xff] %v5043
                  %v5045 = vld [vmem:[%s4825 + $0x368] sm:$0xff]
                  %5046 = vst [vmem:[%s4826 + $0x668] sm:$0xff] %v5045
                  %v5047 = vld [vmem:[%s4825 + $0x370] sm:$0xff]
                  %5048 = vst [vmem:[%s4826 + $0x670] sm:$0xff] %v5047
                  %v5049 = vld [vmem:[%s4825 + $0x378] sm:$0xff]
                  %5050 = vst [vmem:[%s4826 + $0x678] sm:$0xff] %v5049
                  %v5051 = vld [vmem:[%s4825 + $0x380] sm:$0xff]
                  %5052 = vst [vmem:[%s4826 + $0x700] sm:$0xff] %v5051
                  %v5053 = vld [vmem:[%s4825 + $0x388] sm:$0xff]
                  %5054 = vst [vmem:[%s4826 + $0x708] sm:$0xff] %v5053
                  %v5055 = vld [vmem:[%s4825 + $0x390] sm:$0xff]
                  %5056 = vst [vmem:[%s4826 + $0x710] sm:$0xff] %v5055
                  %v5057 = vld [vmem:[%s4825 + $0x398] sm:$0xff]
                  %5058 = vst [vmem:[%s4826 + $0x718] sm:$0xff] %v5057
                  %v5059 = vld [vmem:[%s4825 + $0x3a0] sm:$0xff]
                  %5060 = vst [vmem:[%s4826 + $0x720] sm:$0xff] %v5059
                  %v5061 = vld [vmem:[%s4825 + $0x3a8] sm:$0xff]
                  %5062 = vst [vmem:[%s4826 + $0x728] sm:$0xff] %v5061
                  %v5063 = vld [vmem:[%s4825 + $0x3b0] sm:$0xff]
                  %5064 = vst [vmem:[%s4826 + $0x730] sm:$0xff] %v5063
                  %v5065 = vld [vmem:[%s4825 + $0x3b8] sm:$0xff]
                  %5066 = vst [vmem:[%s4826 + $0x738] sm:$0xff] %v5065
                  %v5067 = vld [vmem:[%s4825 + $0x3c0] sm:$0xff]
                  %5068 = vst [vmem:[%s4826 + $0x740] sm:$0xff] %v5067
                  %v5069 = vld [vmem:[%s4825 + $0x3c8] sm:$0xff]
                  %5070 = vst [vmem:[%s4826 + $0x748] sm:$0xff] %v5069
                  %v5071 = vld [vmem:[%s4825 + $0x3d0] sm:$0xff]
                  %5072 = vst [vmem:[%s4826 + $0x750] sm:$0xff] %v5071
                  %v5073 = vld [vmem:[%s4825 + $0x3d8] sm:$0xff]
                  %5074 = vst [vmem:[%s4826 + $0x758] sm:$0xff] %v5073
                  %v5075 = vld [vmem:[%s4825 + $0x3e0] sm:$0xff]
                  %5076 = vst [vmem:[%s4826 + $0x760] sm:$0xff] %v5075
                  %v5077 = vld [vmem:[%s4825 + $0x3e8] sm:$0xff]
                  %5078 = vst [vmem:[%s4826 + $0x768] sm:$0xff] %v5077
                  %v5079 = vld [vmem:[%s4825 + $0x3f0] sm:$0xff]
                  %5080 = vst [vmem:[%s4826 + $0x770] sm:$0xff] %v5079
                  %v5081 = vld [vmem:[%s4825 + $0x3f8] sm:$0xff]
                  %5082 = vst [vmem:[%s4826 + $0x778] sm:$0xff] %v5081
                $region102: #{spatiotemporal_conv_nobnr.3} parent=96 // loop_footer
                  %s4824 = sadd.s32 1, %s4820
                $region103: #{spatiotemporal_conv_nobnr.3} parent=96 // loop_footer_branch
                  %4819 = sbr.rel target = $region99
                $region104: #{spatiotemporal_conv_nobnr.3} parent=96 // loop_exit
                  _
              $region97: #{spatiotemporal_conv_nobnr.3} parent=81 // pred_fallthru
                _
              // Predicated region
              $region105: #{spatiotemporal_conv_nobnr.3} parent=81 // pred_check
                _
              $region106: #{spatiotemporal_conv_nobnr.3} parent=81 // pred_check_branch
                %5084 = sbr.rel target = $region108
              $region107: #{spatiotemporal_conv_nobnr.3} parent=81 // pred_region
                _
              $region108: #{spatiotemporal_conv_nobnr.3} parent=81 // pred_fallthru
                _
            $region82: #{spatiotemporal_conv_nobnr.3} parent=77 // pred_fallthru
              _
            // Predicated region
            $region83: #{spatiotemporal_conv_nobnr.3} parent=77 // pred_check
              _
            $region84: #{spatiotemporal_conv_nobnr.3} parent=77 // pred_check_branch
              %4551 = sbr.rel target = $region86
            $region85: #{spatiotemporal_conv_nobnr.3} parent=77 // pred_region
              loop: start=0, step=1, limit=1
              $region87: #{spatiotemporal_conv_nobnr.3} parent=85 // loop_pre_header
                _
              $region88: #{spatiotemporal_conv_nobnr.3} parent=85 // loop_header
                %s4554 = sphi 0, %s4558
                %p4555 = scmp.ge.s32.totalorder %s4554, 1
                %s4559 = sphi %s4537, %s4537
                %s4560 = sphi %s4545, %s4545
              $region89: #{spatiotemporal_conv_nobnr.3} parent=85 // loop_header_branch
                %4557 = sbr.rel (%p4555) target = $region93
              $region90: #{spatiotemporal_conv_nobnr.3} parent=85 // loop_body
                %v4561 = vld [vmem:[%s4559] sm:$0xff]
                %4562 = vst [vmem:[%s4560] sm:$0xff] %v4561
                %v4563 = vld [vmem:[%s4559 + $0x8] sm:$0xff]
                %4564 = vst [vmem:[%s4560 + $0x8] sm:$0xff] %v4563
                %v4565 = vld [vmem:[%s4559 + $0x10] sm:$0xff]
                %4566 = vst [vmem:[%s4560 + $0x10] sm:$0xff] %v4565
                %v4567 = vld [vmem:[%s4559 + $0x18] sm:$0xff]
                %4568 = vst [vmem:[%s4560 + $0x18] sm:$0xff] %v4567
                %v4569 = vld [vmem:[%s4559 + $0x20] sm:$0xff]
                %4570 = vst [vmem:[%s4560 + $0x20] sm:$0xff] %v4569
                %v4571 = vld [vmem:[%s4559 + $0x28] sm:$0xff]
                %4572 = vst [vmem:[%s4560 + $0x28] sm:$0xff] %v4571
                %v4573 = vld [vmem:[%s4559 + $0x30] sm:$0xff]
                %4574 = vst [vmem:[%s4560 + $0x30] sm:$0xff] %v4573
                %v4575 = vld [vmem:[%s4559 + $0x38] sm:$0xff]
                %4576 = vst [vmem:[%s4560 + $0x38] sm:$0xff] %v4575
                %v4577 = vld [vmem:[%s4559 + $0x40] sm:$0xff]
                %4578 = vst [vmem:[%s4560 + $0x40] sm:$0xff] %v4577
                %v4579 = vld [vmem:[%s4559 + $0x48] sm:$0xff]
                %4580 = vst [vmem:[%s4560 + $0x48] sm:$0xff] %v4579
                %v4581 = vld [vmem:[%s4559 + $0x50] sm:$0xff]
                %4582 = vst [vmem:[%s4560 + $0x50] sm:$0xff] %v4581
                %v4583 = vld [vmem:[%s4559 + $0x58] sm:$0xff]
                %4584 = vst [vmem:[%s4560 + $0x58] sm:$0xff] %v4583
                %v4585 = vld [vmem:[%s4559 + $0x60] sm:$0xff]
                %4586 = vst [vmem:[%s4560 + $0x60] sm:$0xff] %v4585
                %v4587 = vld [vmem:[%s4559 + $0x68] sm:$0xff]
                %4588 = vst [vmem:[%s4560 + $0x68] sm:$0xff] %v4587
                %v4589 = vld [vmem:[%s4559 + $0x70] sm:$0xff]
                %4590 = vst [vmem:[%s4560 + $0x70] sm:$0xff] %v4589
                %v4591 = vld [vmem:[%s4559 + $0x78] sm:$0xff]
                %4592 = vst [vmem:[%s4560 + $0x78] sm:$0xff] %v4591
                %v4593 = vld [vmem:[%s4559 + $0x80] sm:$0xff]
                %4594 = vst [vmem:[%s4560 + $0x100] sm:$0xff] %v4593
                %v4595 = vld [vmem:[%s4559 + $0x88] sm:$0xff]
                %4596 = vst [vmem:[%s4560 + $0x108] sm:$0xff] %v4595
                %v4597 = vld [vmem:[%s4559 + $0x90] sm:$0xff]
                %4598 = vst [vmem:[%s4560 + $0x110] sm:$0xff] %v4597
                %v4599 = vld [vmem:[%s4559 + $0x98] sm:$0xff]
                %4600 = vst [vmem:[%s4560 + $0x118] sm:$0xff] %v4599
                %v4601 = vld [vmem:[%s4559 + $0xa0] sm:$0xff]
                %4602 = vst [vmem:[%s4560 + $0x120] sm:$0xff] %v4601
                %v4603 = vld [vmem:[%s4559 + $0xa8] sm:$0xff]
                %4604 = vst [vmem:[%s4560 + $0x128] sm:$0xff] %v4603
                %v4605 = vld [vmem:[%s4559 + $0xb0] sm:$0xff]
                %4606 = vst [vmem:[%s4560 + $0x130] sm:$0xff] %v4605
                %v4607 = vld [vmem:[%s4559 + $0xb8] sm:$0xff]
                %4608 = vst [vmem:[%s4560 + $0x138] sm:$0xff] %v4607
                %v4609 = vld [vmem:[%s4559 + $0xc0] sm:$0xff]
                %4610 = vst [vmem:[%s4560 + $0x140] sm:$0xff] %v4609
                %v4611 = vld [vmem:[%s4559 + $0xc8] sm:$0xff]
                %4612 = vst [vmem:[%s4560 + $0x148] sm:$0xff] %v4611
                %v4613 = vld [vmem:[%s4559 + $0xd0] sm:$0xff]
                %4614 = vst [vmem:[%s4560 + $0x150] sm:$0xff] %v4613
                %v4615 = vld [vmem:[%s4559 + $0xd8] sm:$0xff]
                %4616 = vst [vmem:[%s4560 + $0x158] sm:$0xff] %v4615
                %v4617 = vld [vmem:[%s4559 + $0xe0] sm:$0xff]
                %4618 = vst [vmem:[%s4560 + $0x160] sm:$0xff] %v4617
                %v4619 = vld [vmem:[%s4559 + $0xe8] sm:$0xff]
                %4620 = vst [vmem:[%s4560 + $0x168] sm:$0xff] %v4619
                %v4621 = vld [vmem:[%s4559 + $0xf0] sm:$0xff]
                %4622 = vst [vmem:[%s4560 + $0x170] sm:$0xff] %v4621
                %v4623 = vld [vmem:[%s4559 + $0xf8] sm:$0xff]
                %4624 = vst [vmem:[%s4560 + $0x178] sm:$0xff] %v4623
                %v4625 = vld [vmem:[%s4559 + $0x100] sm:$0xff]
                %4626 = vst [vmem:[%s4560 + $0x200] sm:$0xff] %v4625
                %v4627 = vld [vmem:[%s4559 + $0x108] sm:$0xff]
                %4628 = vst [vmem:[%s4560 + $0x208] sm:$0xff] %v4627
                %v4629 = vld [vmem:[%s4559 + $0x110] sm:$0xff]
                %4630 = vst [vmem:[%s4560 + $0x210] sm:$0xff] %v4629
                %v4631 = vld [vmem:[%s4559 + $0x118] sm:$0xff]
                %4632 = vst [vmem:[%s4560 + $0x218] sm:$0xff] %v4631
                %v4633 = vld [vmem:[%s4559 + $0x120] sm:$0xff]
                %4634 = vst [vmem:[%s4560 + $0x220] sm:$0xff] %v4633
                %v4635 = vld [vmem:[%s4559 + $0x128] sm:$0xff]
                %4636 = vst [vmem:[%s4560 + $0x228] sm:$0xff] %v4635
                %v4637 = vld [vmem:[%s4559 + $0x130] sm:$0xff]
                %4638 = vst [vmem:[%s4560 + $0x230] sm:$0xff] %v4637
                %v4639 = vld [vmem:[%s4559 + $0x138] sm:$0xff]
                %4640 = vst [vmem:[%s4560 + $0x238] sm:$0xff] %v4639
                %v4641 = vld [vmem:[%s4559 + $0x140] sm:$0xff]
                %4642 = vst [vmem:[%s4560 + $0x240] sm:$0xff] %v4641
                %v4643 = vld [vmem:[%s4559 + $0x148] sm:$0xff]
                %4644 = vst [vmem:[%s4560 + $0x248] sm:$0xff] %v4643
                %v4645 = vld [vmem:[%s4559 + $0x150] sm:$0xff]
                %4646 = vst [vmem:[%s4560 + $0x250] sm:$0xff] %v4645
                %v4647 = vld [vmem:[%s4559 + $0x158] sm:$0xff]
                %4648 = vst [vmem:[%s4560 + $0x258] sm:$0xff] %v4647
                %v4649 = vld [vmem:[%s4559 + $0x160] sm:$0xff]
                %4650 = vst [vmem:[%s4560 + $0x260] sm:$0xff] %v4649
                %v4651 = vld [vmem:[%s4559 + $0x168] sm:$0xff]
                %4652 = vst [vmem:[%s4560 + $0x268] sm:$0xff] %v4651
                %v4653 = vld [vmem:[%s4559 + $0x170] sm:$0xff]
                %4654 = vst [vmem:[%s4560 + $0x270] sm:$0xff] %v4653
                %v4655 = vld [vmem:[%s4559 + $0x178] sm:$0xff]
                %4656 = vst [vmem:[%s4560 + $0x278] sm:$0xff] %v4655
                %v4657 = vld [vmem:[%s4559 + $0x180] sm:$0xff]
                %4658 = vst [vmem:[%s4560 + $0x300] sm:$0xff] %v4657
                %v4659 = vld [vmem:[%s4559 + $0x188] sm:$0xff]
                %4660 = vst [vmem:[%s4560 + $0x308] sm:$0xff] %v4659
                %v4661 = vld [vmem:[%s4559 + $0x190] sm:$0xff]
                %4662 = vst [vmem:[%s4560 + $0x310] sm:$0xff] %v4661
                %v4663 = vld [vmem:[%s4559 + $0x198] sm:$0xff]
                %4664 = vst [vmem:[%s4560 + $0x318] sm:$0xff] %v4663
                %v4665 = vld [vmem:[%s4559 + $0x1a0] sm:$0xff]
                %4666 = vst [vmem:[%s4560 + $0x320] sm:$0xff] %v4665
                %v4667 = vld [vmem:[%s4559 + $0x1a8] sm:$0xff]
                %4668 = vst [vmem:[%s4560 + $0x328] sm:$0xff] %v4667
                %v4669 = vld [vmem:[%s4559 + $0x1b0] sm:$0xff]
                %4670 = vst [vmem:[%s4560 + $0x330] sm:$0xff] %v4669
                %v4671 = vld [vmem:[%s4559 + $0x1b8] sm:$0xff]
                %4672 = vst [vmem:[%s4560 + $0x338] sm:$0xff] %v4671
                %v4673 = vld [vmem:[%s4559 + $0x1c0] sm:$0xff]
                %4674 = vst [vmem:[%s4560 + $0x340] sm:$0xff] %v4673
                %v4675 = vld [vmem:[%s4559 + $0x1c8] sm:$0xff]
                %4676 = vst [vmem:[%s4560 + $0x348] sm:$0xff] %v4675
                %v4677 = vld [vmem:[%s4559 + $0x1d0] sm:$0xff]
                %4678 = vst [vmem:[%s4560 + $0x350] sm:$0xff] %v4677
                %v4679 = vld [vmem:[%s4559 + $0x1d8] sm:$0xff]
                %4680 = vst [vmem:[%s4560 + $0x358] sm:$0xff] %v4679
                %v4681 = vld [vmem:[%s4559 + $0x1e0] sm:$0xff]
                %4682 = vst [vmem:[%s4560 + $0x360] sm:$0xff] %v4681
                %v4683 = vld [vmem:[%s4559 + $0x1e8] sm:$0xff]
                %4684 = vst [vmem:[%s4560 + $0x368] sm:$0xff] %v4683
                %v4685 = vld [vmem:[%s4559 + $0x1f0] sm:$0xff]
                %4686 = vst [vmem:[%s4560 + $0x370] sm:$0xff] %v4685
                %v4687 = vld [vmem:[%s4559 + $0x1f8] sm:$0xff]
                %4688 = vst [vmem:[%s4560 + $0x378] sm:$0xff] %v4687
                %v4689 = vld [vmem:[%s4559 + $0x200] sm:$0xff]
                %4690 = vst [vmem:[%s4560 + $0x400] sm:$0xff] %v4689
                %v4691 = vld [vmem:[%s4559 + $0x208] sm:$0xff]
                %4692 = vst [vmem:[%s4560 + $0x408] sm:$0xff] %v4691
                %v4693 = vld [vmem:[%s4559 + $0x210] sm:$0xff]
                %4694 = vst [vmem:[%s4560 + $0x410] sm:$0xff] %v4693
                %v4695 = vld [vmem:[%s4559 + $0x218] sm:$0xff]
                %4696 = vst [vmem:[%s4560 + $0x418] sm:$0xff] %v4695
                %v4697 = vld [vmem:[%s4559 + $0x220] sm:$0xff]
                %4698 = vst [vmem:[%s4560 + $0x420] sm:$0xff] %v4697
                %v4699 = vld [vmem:[%s4559 + $0x228] sm:$0xff]
                %4700 = vst [vmem:[%s4560 + $0x428] sm:$0xff] %v4699
                %v4701 = vld [vmem:[%s4559 + $0x230] sm:$0xff]
                %4702 = vst [vmem:[%s4560 + $0x430] sm:$0xff] %v4701
                %v4703 = vld [vmem:[%s4559 + $0x238] sm:$0xff]
                %4704 = vst [vmem:[%s4560 + $0x438] sm:$0xff] %v4703
                %v4705 = vld [vmem:[%s4559 + $0x240] sm:$0xff]
                %4706 = vst [vmem:[%s4560 + $0x440] sm:$0xff] %v4705
                %v4707 = vld [vmem:[%s4559 + $0x248] sm:$0xff]
                %4708 = vst [vmem:[%s4560 + $0x448] sm:$0xff] %v4707
                %v4709 = vld [vmem:[%s4559 + $0x250] sm:$0xff]
                %4710 = vst [vmem:[%s4560 + $0x450] sm:$0xff] %v4709
                %v4711 = vld [vmem:[%s4559 + $0x258] sm:$0xff]
                %4712 = vst [vmem:[%s4560 + $0x458] sm:$0xff] %v4711
                %v4713 = vld [vmem:[%s4559 + $0x260] sm:$0xff]
                %4714 = vst [vmem:[%s4560 + $0x460] sm:$0xff] %v4713
                %v4715 = vld [vmem:[%s4559 + $0x268] sm:$0xff]
                %4716 = vst [vmem:[%s4560 + $0x468] sm:$0xff] %v4715
                %v4717 = vld [vmem:[%s4559 + $0x270] sm:$0xff]
                %4718 = vst [vmem:[%s4560 + $0x470] sm:$0xff] %v4717
                %v4719 = vld [vmem:[%s4559 + $0x278] sm:$0xff]
                %4720 = vst [vmem:[%s4560 + $0x478] sm:$0xff] %v4719
                %v4721 = vld [vmem:[%s4559 + $0x280] sm:$0xff]
                %4722 = vst [vmem:[%s4560 + $0x500] sm:$0xff] %v4721
                %v4723 = vld [vmem:[%s4559 + $0x288] sm:$0xff]
                %4724 = vst [vmem:[%s4560 + $0x508] sm:$0xff] %v4723
                %v4725 = vld [vmem:[%s4559 + $0x290] sm:$0xff]
                %4726 = vst [vmem:[%s4560 + $0x510] sm:$0xff] %v4725
                %v4727 = vld [vmem:[%s4559 + $0x298] sm:$0xff]
                %4728 = vst [vmem:[%s4560 + $0x518] sm:$0xff] %v4727
                %v4729 = vld [vmem:[%s4559 + $0x2a0] sm:$0xff]
                %4730 = vst [vmem:[%s4560 + $0x520] sm:$0xff] %v4729
                %v4731 = vld [vmem:[%s4559 + $0x2a8] sm:$0xff]
                %4732 = vst [vmem:[%s4560 + $0x528] sm:$0xff] %v4731
                %v4733 = vld [vmem:[%s4559 + $0x2b0] sm:$0xff]
                %4734 = vst [vmem:[%s4560 + $0x530] sm:$0xff] %v4733
                %v4735 = vld [vmem:[%s4559 + $0x2b8] sm:$0xff]
                %4736 = vst [vmem:[%s4560 + $0x538] sm:$0xff] %v4735
                %v4737 = vld [vmem:[%s4559 + $0x2c0] sm:$0xff]
                %4738 = vst [vmem:[%s4560 + $0x540] sm:$0xff] %v4737
                %v4739 = vld [vmem:[%s4559 + $0x2c8] sm:$0xff]
                %4740 = vst [vmem:[%s4560 + $0x548] sm:$0xff] %v4739
                %v4741 = vld [vmem:[%s4559 + $0x2d0] sm:$0xff]
                %4742 = vst [vmem:[%s4560 + $0x550] sm:$0xff] %v4741
                %v4743 = vld [vmem:[%s4559 + $0x2d8] sm:$0xff]
                %4744 = vst [vmem:[%s4560 + $0x558] sm:$0xff] %v4743
                %v4745 = vld [vmem:[%s4559 + $0x2e0] sm:$0xff]
                %4746 = vst [vmem:[%s4560 + $0x560] sm:$0xff] %v4745
                %v4747 = vld [vmem:[%s4559 + $0x2e8] sm:$0xff]
                %4748 = vst [vmem:[%s4560 + $0x568] sm:$0xff] %v4747
                %v4749 = vld [vmem:[%s4559 + $0x2f0] sm:$0xff]
                %4750 = vst [vmem:[%s4560 + $0x570] sm:$0xff] %v4749
                %v4751 = vld [vmem:[%s4559 + $0x2f8] sm:$0xff]
                %4752 = vst [vmem:[%s4560 + $0x578] sm:$0xff] %v4751
                %v4753 = vld [vmem:[%s4559 + $0x300] sm:$0xff]
                %4754 = vst [vmem:[%s4560 + $0x600] sm:$0xff] %v4753
                %v4755 = vld [vmem:[%s4559 + $0x308] sm:$0xff]
                %4756 = vst [vmem:[%s4560 + $0x608] sm:$0xff] %v4755
                %v4757 = vld [vmem:[%s4559 + $0x310] sm:$0xff]
                %4758 = vst [vmem:[%s4560 + $0x610] sm:$0xff] %v4757
                %v4759 = vld [vmem:[%s4559 + $0x318] sm:$0xff]
                %4760 = vst [vmem:[%s4560 + $0x618] sm:$0xff] %v4759
                %v4761 = vld [vmem:[%s4559 + $0x320] sm:$0xff]
                %4762 = vst [vmem:[%s4560 + $0x620] sm:$0xff] %v4761
                %v4763 = vld [vmem:[%s4559 + $0x328] sm:$0xff]
                %4764 = vst [vmem:[%s4560 + $0x628] sm:$0xff] %v4763
                %v4765 = vld [vmem:[%s4559 + $0x330] sm:$0xff]
                %4766 = vst [vmem:[%s4560 + $0x630] sm:$0xff] %v4765
                %v4767 = vld [vmem:[%s4559 + $0x338] sm:$0xff]
                %4768 = vst [vmem:[%s4560 + $0x638] sm:$0xff] %v4767
                %v4769 = vld [vmem:[%s4559 + $0x340] sm:$0xff]
                %4770 = vst [vmem:[%s4560 + $0x640] sm:$0xff] %v4769
                %v4771 = vld [vmem:[%s4559 + $0x348] sm:$0xff]
                %4772 = vst [vmem:[%s4560 + $0x648] sm:$0xff] %v4771
                %v4773 = vld [vmem:[%s4559 + $0x350] sm:$0xff]
                %4774 = vst [vmem:[%s4560 + $0x650] sm:$0xff] %v4773
                %v4775 = vld [vmem:[%s4559 + $0x358] sm:$0xff]
                %4776 = vst [vmem:[%s4560 + $0x658] sm:$0xff] %v4775
                %v4777 = vld [vmem:[%s4559 + $0x360] sm:$0xff]
                %4778 = vst [vmem:[%s4560 + $0x660] sm:$0xff] %v4777
                %v4779 = vld [vmem:[%s4559 + $0x368] sm:$0xff]
                %4780 = vst [vmem:[%s4560 + $0x668] sm:$0xff] %v4779
                %v4781 = vld [vmem:[%s4559 + $0x370] sm:$0xff]
                %4782 = vst [vmem:[%s4560 + $0x670] sm:$0xff] %v4781
                %v4783 = vld [vmem:[%s4559 + $0x378] sm:$0xff]
                %4784 = vst [vmem:[%s4560 + $0x678] sm:$0xff] %v4783
                %v4785 = vld [vmem:[%s4559 + $0x380] sm:$0xff]
                %4786 = vst [vmem:[%s4560 + $0x700] sm:$0xff] %v4785
                %v4787 = vld [vmem:[%s4559 + $0x388] sm:$0xff]
                %4788 = vst [vmem:[%s4560 + $0x708] sm:$0xff] %v4787
                %v4789 = vld [vmem:[%s4559 + $0x390] sm:$0xff]
                %4790 = vst [vmem:[%s4560 + $0x710] sm:$0xff] %v4789
                %v4791 = vld [vmem:[%s4559 + $0x398] sm:$0xff]
                %4792 = vst [vmem:[%s4560 + $0x718] sm:$0xff] %v4791
                %v4793 = vld [vmem:[%s4559 + $0x3a0] sm:$0xff]
                %4794 = vst [vmem:[%s4560 + $0x720] sm:$0xff] %v4793
                %v4795 = vld [vmem:[%s4559 + $0x3a8] sm:$0xff]
                %4796 = vst [vmem:[%s4560 + $0x728] sm:$0xff] %v4795
                %v4797 = vld [vmem:[%s4559 + $0x3b0] sm:$0xff]
                %4798 = vst [vmem:[%s4560 + $0x730] sm:$0xff] %v4797
                %v4799 = vld [vmem:[%s4559 + $0x3b8] sm:$0xff]
                %4800 = vst [vmem:[%s4560 + $0x738] sm:$0xff] %v4799
                %v4801 = vld [vmem:[%s4559 + $0x3c0] sm:$0xff]
                %4802 = vst [vmem:[%s4560 + $0x740] sm:$0xff] %v4801
                %v4803 = vld [vmem:[%s4559 + $0x3c8] sm:$0xff]
                %4804 = vst [vmem:[%s4560 + $0x748] sm:$0xff] %v4803
                %v4805 = vld [vmem:[%s4559 + $0x3d0] sm:$0xff]
                %4806 = vst [vmem:[%s4560 + $0x750] sm:$0xff] %v4805
                %v4807 = vld [vmem:[%s4559 + $0x3d8] sm:$0xff]
                %4808 = vst [vmem:[%s4560 + $0x758] sm:$0xff] %v4807
                %v4809 = vld [vmem:[%s4559 + $0x3e0] sm:$0xff]
                %4810 = vst [vmem:[%s4560 + $0x760] sm:$0xff] %v4809
                %v4811 = vld [vmem:[%s4559 + $0x3e8] sm:$0xff]
                %4812 = vst [vmem:[%s4560 + $0x768] sm:$0xff] %v4811
                %v4813 = vld [vmem:[%s4559 + $0x3f0] sm:$0xff]
                %4814 = vst [vmem:[%s4560 + $0x770] sm:$0xff] %v4813
                %v4815 = vld [vmem:[%s4559 + $0x3f8] sm:$0xff]
                %4816 = vst [vmem:[%s4560 + $0x778] sm:$0xff] %v4815
              $region91: #{spatiotemporal_conv_nobnr.3} parent=85 // loop_footer
                %s4558 = sadd.s32 1, %s4554
              $region92: #{spatiotemporal_conv_nobnr.3} parent=85 // loop_footer_branch
                %4553 = sbr.rel target = $region88
              $region93: #{spatiotemporal_conv_nobnr.3} parent=85 // loop_exit
                _
            $region86: #{spatiotemporal_conv_nobnr.3} parent=77 // pred_fallthru
              _
          $region78: #{spatiotemporal_conv_nobnr.3} parent=73 // pred_fallthru
            _
          %5085 = vnop
        $region74: #{spatiotemporal_conv_nobnr.3} parent=65 // pred_fallthru
          _
      $region66: #{spatiotemporal_conv_nobnr.3} parent=5 // pred_fallthru
        _
      %p5086 = scmp.le.s32.totalorder 2, %s9
      // Predicated region
      $region109: #{spatiotemporal_conv_nobnr.3} parent=5 // pred_check
        %p5087 = pneg %p5086
      $region110: #{spatiotemporal_conv_nobnr.3} parent=5 // pred_check_branch
        %5089 = sbr.rel (%p5087) target = $region112
      $region111: #{spatiotemporal_conv_nobnr.3} parent=5 // pred_region
        %s5090 = ssub.s32 %s9, 2
        // Predicated region
        $region113: #{spatiotemporal_conv_nobnr.3} parent=111 // pred_check
          %p5091 = pneg %p122
        $region114: #{spatiotemporal_conv_nobnr.3} parent=111 // pred_check_branch
          %5093 = sbr.rel (%p5091) target = $region116
        $region115: #{spatiotemporal_conv_nobnr.3} parent=111 // pred_region
          %s5094 = sand.u32 %s107, 1
          %s5095 = sand.u32 %s107, 1
          %s5096 = smul.addr %s5095, 1024
          %s5097 = scalar_lea.vmem [#allocation4], %s5096
        $region116: #{spatiotemporal_conv_nobnr.3} parent=111 // pred_fallthru
          _
      $region112: #{spatiotemporal_conv_nobnr.3} parent=5 // pred_fallthru
        _
    $region6: #{spatiotemporal_conv_nobnr.3} parent=1 // loop_footer
      %s13 = sadd.s32 1, %s9
    $region7: #{spatiotemporal_conv_nobnr.3} parent=1 // loop_footer_branch
      %8 = sbr.rel target = $region3
    $region8: #{spatiotemporal_conv_nobnr.3} parent=1 // loop_exit
      _

</llo_original>
